<compile_context>
chip_gen: v5e
topology: v5e:2x2
jax: 0.10.0
libtpu: 0.0.40
codegen_flags: <defaults>
</compile_context>

<pallas_src>
import jax
import jax.numpy as jnp
from jax import lax
from jax.experimental import pallas as pl
from jax.experimental.pallas import tpu as pltpu

# ----------------------------- small config ---------------------------------
BATCH = 2
N_COMMENTS = 3          # n_comments_to_process
SEQ = 8                 # BERT sequence length
HIDDEN = 32             # bert hidden size
N_HEADS = 4
HEAD_DIM = HIDDEN // N_HEADS
FFN = 64
N_LAYERS = 4            # mini-BERT encoder layers
N_LAYERS_POOL = 4       # num_bert_layers_to_pool
ATT_HIDDEN = 16         # attention_hidden_dim
NUM_Q = 3               # num_q_features_per_comment
NUM_OTHER = 4           # num_other_numerical_features (>0 -> numerical branch on)
NUM_EMB = 8             # numerical_embedding_dim
NUM_TRAITS = 5
VOCAB = 100
NEG_INF = -1e9

assert N_LAYERS_POOL <= N_LAYERS


def layer_norm(x, gamma, beta, eps=1e-12):
    m = jnp.mean(x, axis=-1, keepdims=True)
    var = jnp.mean((x - m) ** 2, axis=-1, keepdims=True)
    return (x - m) * lax.rsqrt(var + eps) * gamma + beta


# ================ single fused Pallas kernel: BERT stack + head ==============
def fused_kernel(x_ref, bias_ref, pool_ref, q_ref, cmask_ref, onum_ref,
                 wq_ref, bq_ref, wk_ref, bk_ref, wv_ref, bv_ref,
                 wo_ref, bo_ref, g1_ref, be1_ref,
                 w1_ref, bf1_ref, w2_ref, bf2_ref, g2_ref, be2_ref,
                 wa_e_ref, wa_q_ref, ba_ref, va_ref, wn_ref, bn_ref,
                 wr_e_ref, wr_q_ref, wr_n_ref, br_ref,
                 out_ref, ctx_ref):
    x = x_ref[...]                        # (B_flat*S, H) = (48, 32)
    bias = bias_ref[...]                  # (48, 48) block-diagonal + key-padding bias
    scale = 1.0 / (HEAD_DIM ** 0.5)

    layer_sum = jnp.zeros_like(x)
    for l in range(N_LAYERS):             # static, fully unrolled; weights VMEM-resident
        q = jnp.dot(x, wq_ref[l], preferred_element_type=jnp.float32) + bq_ref[l]
        k = jnp.dot(x, wk_ref[l], preferred_element_type=jnp.float32) + bk_ref[l]
        v = jnp.dot(x, wv_ref[l], preferred_element_type=jnp.float32) + bv_ref[l]

        for h in range(N_HEADS):          # static loop; each head is dense in M (48 rows)
            sl = slice(h * HEAD_DIM, (h + 1) * HEAD_DIM)
            qh, kh, vh = q[:, sl], k[:, sl], v[:, sl]
            s = jnp.einsum("qd,kd->qk", qh, kh,
                           preferred_element_type=jnp.float32) * scale + bias
            s = s - jnp.max(s, axis=-1, keepdims=True)
            p = jnp.exp(s)                # cross-sequence / masked keys underflow to 0 exactly
            p = p * pl.reciprocal(jnp.sum(p, axis=-1, keepdims=True), approx=True)
            ctx_ref[:, sl] = jnp.dot(p, vh, preferred_element_type=jnp.float32)

        ctx = ctx_ref[...]                                        # (48, H)
        attn_out = jnp.dot(ctx, wo_ref[l],
                           preferred_element_type=jnp.float32) + bo_ref[l]
        h1 = layer_norm(x + attn_out, g1_ref[l], be1_ref[l])
        f = jax.nn.gelu(jnp.dot(h1, w1_ref[l],
                                preferred_element_type=jnp.float32) + bf1_ref[l])
        f = jnp.dot(f, w2_ref[l], preferred_element_type=jnp.float32) + bf2_ref[l]
        x = layer_norm(h1 + f, g2_ref[l], be2_ref[l])

        if l >= N_LAYERS - N_LAYERS_POOL:  # hidden_states[-N_LAYERS_POOL:]
            layer_sum = layer_sum + x

    # masked mean over seq + mean over pooled layers, folded into one matmul
    emb_pooled = jnp.dot(pool_ref[...], layer_sum,
                         preferred_element_type=jnp.float32)      # (B*nc, H)

    qsc = q_ref[...]                                              # (B*nc, NUM_Q)
    # comment-level attention (split-weight form of Linear(concat([emb, q])))
    u = jnp.tanh(jnp.dot(emb_pooled, wa_e_ref[...], preferred_element_type=jnp.float32)
                 + jnp.dot(qsc, wa_q_ref[...], preferred_element_type=jnp.float32)
                 + ba_ref[...])                                   # (B*nc, A)
    scores = jnp.dot(u, va_ref[...], preferred_element_type=jnp.float32)   # (B*nc, 1)
    scores = jnp.where(cmask_ref[...] > 0.5, scores, NEG_INF)     # masked_fill(~mask)

    onum = onum_ref[...]                                          # (B, NUM_OTHER)
    z = jnp.maximum(jnp.dot(onum, wn_ref[...], preferred_element_type=jnp.float32)
                    + bn_ref[...], 0.0)                           # (B, NUM_EMB)

    batch = onum.shape[0]
    for b in range(batch):                # static loop over the 2 batch elements
        rs = slice(b * N_COMMENTS, (b + 1) * N_COMMENTS)
        s_b = scores[rs, :]                                       # (nc, 1)
        s_b = s_b - jnp.max(s_b, axis=0, keepdims=True)
        e_b = jnp.exp(s_b)
        w_b = e_b * pl.reciprocal(jnp.sum(e_b, axis=0, keepdims=True), approx=True)
        agg_e = jnp.sum(w_b * emb_pooled[rs, :], axis=0, keepdims=True)    # (1, H)
        agg_q = jnp.sum(w_b * qsc[rs, :], axis=0, keepdims=True)           # (1, NUM_Q)
        raw = (jnp.dot(agg_e, wr_e_ref[...], preferred_element_type=jnp.float32)
               + jnp.dot(agg_q, wr_q_ref[...], preferred_element_type=jnp.float32)
               + jnp.dot(z[b:b + 1, :], wr_n_ref[...], preferred_element_type=jnp.float32)
               + br_ref[...])                                     # (1, NUM_TRAITS)
        out_ref[b:b + 1, :] = jax.nn.sigmoid(raw)


def _vmem_spec():
    return pl.BlockSpec(memory_space=pltpu.MemorySpace.VMEM)


# ========================= full forward (glue in JAX) ========================
def personality_model_forward(params, input_ids, attention_mask, q_scores,
                              comment_active_mask, other_numerical_features):
    batch, n_comments, seq = input_ids.shape
    b_flat = batch * n_comments
    ids_flat = input_ids.reshape(b_flat, seq)
    mask_flat = attention_mask.reshape(b_flat, seq).astype(jnp.float32)

    # mini-BERT embeddings (token gather kept as plain-JAX glue)
    emb = (params["word_emb"][ids_flat]
           + params["pos_emb"][None, :, :]
           + params["type_emb"][0][None, None, :])
    emb = layer_norm(emb, params["emb_ln_g"], params["emb_ln_b"])
    x0 = emb.reshape(b_flat * seq, HIDDEN)                          # (48, 32)

    # block-diagonal attention bias: 0 where (same sequence AND key valid), else NEG_INF
    seq_id = jnp.repeat(jnp.arange(b_flat), seq)                    # (48,)
    same_seq = seq_id[:, None] == seq_id[None, :]
    key_valid = mask_flat.reshape(-1) > 0.5
    attn_bias = jnp.where(same_seq & key_valid[None, :], 0.0, NEG_INF).astype(jnp.float32)

    # pooling matrix: masked mean over seq positions, / N_LAYERS_POOL folded in
    sum_mask = jnp.maximum(jnp.sum(mask_flat, axis=1, keepdims=True), 1e-9)   # (6, 1)
    pool_w = (mask_flat / (sum_mask * float(N_LAYERS_POOL))).reshape(1, b_flat * seq)
    comment_sel = (jnp.arange(b_flat)[:, None] == seq_id[None, :]).astype(jnp.float32)
    pool_mat = comment_sel * pool_w                                 # (6, 48)

    q_flat = q_scores.reshape(b_flat, NUM_Q).astype(jnp.float32)
    cmask_col = comment_active_mask.reshape(b_flat, 1).astype(jnp.float32)
    onum = other_numerical_features.astype(jnp.float32)

    # stack per-layer weights along a leading layer axis (16 arrays total)
    lp = params["layers"]
    stacked = [jnp.stack([lp[l][i] for l in range(N_LAYERS)], axis=0)
               for i in range(len(lp[0]))]
    head_w = [params[k] for k in ("wa_e", "wa_q", "ba", "va", "wn", "bn",
                                  "wr_e", "wr_q", "wr_n", "br")]

    args = [x0, attn_bias, pool_mat, q_flat, cmask_col, onum] + stacked + head_w
    out = pl.pallas_call(
        fused_kernel,
        out_shape=jax.ShapeDtypeStruct((batch, NUM_TRAITS), jnp.float32),
        in_specs=[_vmem_spec() for _ in args],
        out_specs=_vmem_spec(),
        scratch_shapes=[pltpu.VMEM((b_flat * seq, HIDDEN), jnp.float32)],
    )(*args)
    return out


# =========================== pure-JAX reference ==============================
def bert_layer_ref(x, mask_bias, p):
    (wq, bq, wk, bk, wv, bv, wo, bo, g1, be1, w1, bf1, w2, bf2, g2, be2) = p
    B = x.shape[0]
    q = (x @ wq + bq).reshape(B, SEQ, N_HEADS, HEAD_DIM)
    k = (x @ wk + bk).reshape(B, SEQ, N_HEADS, HEAD_DIM)
    v = (x @ wv + bv).reshape(B, SEQ, N_HEADS, HEAD_DIM)
    s = jnp.einsum("bqhd,bkhd->bhqk", q, k) / (HEAD_DIM ** 0.5)
    s = s + mask_bias[:, :, None, :]
    a = jax.nn.softmax(s, axis=-1)
    ctx = jnp.einsum("bhqk,bkhd->bqhd", a, v).reshape(B, SEQ, HIDDEN)
    attn_out = ctx @ wo + bo
    h1 = layer_norm(x + attn_out, g1, be1)
    f = jax.nn.gelu(h1 @ w1 + bf1) @ w2 + bf2
    return layer_norm(h1 + f, g2, be2)


def reference_forward(params, input_ids, attention_mask, q_scores,
                      comment_active_mask, other_num):
    with jax.default_matmul_precision("float32"):
        batch = input_ids.shape[0]
        ids_flat = input_ids.reshape(-1, SEQ)
        mask_flat = attention_mask.reshape(-1, SEQ).astype(jnp.float32)
        emb = (params["word_emb"][ids_flat] + params["pos_emb"][None]
               + params["type_emb"][0][None, None])
        emb = layer_norm(emb, params["emb_ln_g"], params["emb_ln_b"])
        mask_bias = ((1.0 - mask_flat) * NEG_INF)[:, None, :]
        hidden_states = [emb]
        h = emb
        for l in range(N_LAYERS):
            h = bert_layer_ref(h, mask_bias, params["layers"][l])
            hidden_states.append(h)
        hs = hidden_states[-N_LAYERS_POOL:]
        m = mask_flat[:, :, None]
        pooled = []
        for layer in hs:
            se = jnp.sum(layer * m, axis=1)
            sm = jnp.maximum(jnp.sum(jnp.broadcast_to(m, layer.shape), axis=1), 1e-9)
            pooled.append(se / sm)
        emb_p = jnp.mean(jnp.stack(pooled, 0), 0).reshape(batch, N_COMMENTS, HIDDEN)
        cf = jnp.concatenate([emb_p, q_scores], axis=2)
        W_att = jnp.concatenate([params["wa_e"], params["wa_q"]], axis=0)
        u = jnp.tanh(cf @ W_att + params["ba"][0])
        scores = jnp.squeeze(u @ params["va"], -1)
        scores = jnp.where(comment_active_mask, scores, NEG_INF)
        w = jax.nn.softmax(scores, axis=1)
        agg = jnp.sum(w[..., None] * cf, axis=1)
        z = jax.nn.relu(other_num @ params["wn"] + params["bn"][0])
        final = jnp.concatenate([agg, z], axis=1)
        Wr = jnp.concatenate([params["wr_e"], params["wr_q"], params["wr_n"]], axis=0)
        raw = final @ Wr + params["br"][0]
        return jax.nn.sigmoid(raw)


# ============================ deterministic init =============================
def init_params(key):
    keys = jax.random.split(key, 128)
    it = iter(keys)

    def nrm(shape, scale=0.05):
        return scale * jax.random.normal(next(it), shape, jnp.float32)

    params = {
        "word_emb": nrm((VOCAB, HIDDEN), 0.1),
        "pos_emb": nrm((SEQ, HIDDEN), 0.02),
        "type_emb": nrm((2, HIDDEN), 0.02),
        "emb_ln_g": jnp.ones((1, HIDDEN), jnp.float32),
        "emb_ln_b": jnp.zeros((1, HIDDEN), jnp.float32),
    }
    layers = []
    for _ in range(N_LAYERS):
        layers.append((
            nrm((HIDDEN, HIDDEN)), nrm((1, HIDDEN), 0.01),    # wq, bq
            nrm((HIDDEN, HIDDEN)), nrm((1, HIDDEN), 0.01),    # wk, bk
            nrm((HIDDEN, HIDDEN)), nrm((1, HIDDEN), 0.01),    # wv, bv
            nrm((HIDDEN, HIDDEN)), nrm((1, HIDDEN), 0.01),    # wo, bo
            jnp.ones((1, HIDDEN), jnp.float32), jnp.zeros((1, HIDDEN), jnp.float32),
            nrm((HIDDEN, FFN)), nrm((1, FFN), 0.01),          # w1, bf1
            nrm((FFN, HIDDEN)), nrm((1, HIDDEN), 0.01),       # w2, bf2
            jnp.ones((1, HIDDEN), jnp.float32), jnp.zeros((1, HIDDEN), jnp.float32),
        ))
    params["layers"] = layers
    params["wa_e"] = nrm((HIDDEN, ATT_HIDDEN), 0.1)   # attention_w (emb part)
    params["wa_q"] = nrm((NUM_Q, ATT_HIDDEN), 0.1)    # attention_w (q-score part)
    params["ba"] = nrm((1, ATT_HIDDEN), 0.01)
    params["va"] = nrm((ATT_HIDDEN, 1), 0.1)          # attention_v (no bias)
    params["wn"] = nrm((NUM_OTHER, NUM_EMB), 0.1)     # other_numerical_processor
    params["bn"] = nrm((1, NUM_EMB), 0.01)
    params["wr_e"] = nrm((HIDDEN, NUM_TRAITS), 0.1)   # trait regressors (split)
    params["wr_q"] = nrm((NUM_Q, NUM_TRAITS), 0.1)
    params["wr_n"] = nrm((NUM_EMB, NUM_TRAITS), 0.1)
    params["br"] = nrm((1, NUM_TRAITS), 0.01)
    return params


# =================================== main ====================================
if __name__ == "__main__":
    key = jax.random.PRNGKey(0)
    pkey, k_ids, k_q, k_on = jax.random.split(key, 4)
    params = init_params(pkey)

    input_ids = jax.random.randint(k_ids, (BATCH, N_COMMENTS, SEQ), 0, VOCAB,
                                   dtype=jnp.int32)
    lens = jnp.array([[8, 5, 3], [6, 8, 4]], dtype=jnp.int32)
    attention_mask = (jnp.arange(SEQ)[None, None, :] < lens[:, :, None]).astype(jnp.int32)
    q_scores = jax.random.normal(k_q, (BATCH, N_COMMENTS, NUM_Q), jnp.float32)
    comment_active_mask = jnp.array([[True, True, False], [True, True, True]])
    other_num = jax.random.normal(k_on, (BATCH, NUM_OTHER), jnp.float32)

    fwd = jax.jit(personality_model_forward)
    out = fwd(params, input_ids, attention_mask, q_scores,
              comment_active_mask, other_num)
    out = jax.block_until_ready(out)

    ref = reference_forward(params, input_ids, attention_mask, q_scores,
                            comment_active_mask, other_num)
    assert out.shape == (BATCH, NUM_TRAITS)
    assert bool(jnp.all(jnp.isfinite(out)))
    assert float(jnp.max(jnp.abs(out - ref))) < 2e-2
    print("KERNEL_OK")
</pallas_src>

<mosaic_0001>
module attributes {stable_mosaic.version = 11 : i64} {
  func.func @fused_kernel(%arg0: memref<48x32xf32, #tpu.memory_space<vmem>>, %arg1: memref<48x48xf32, #tpu.memory_space<vmem>>, %arg2: memref<6x48xf32, #tpu.memory_space<vmem>>, %arg3: memref<6x3xf32, #tpu.memory_space<vmem>>, %arg4: memref<6x1xf32, #tpu.memory_space<vmem>>, %arg5: memref<2x4xf32, #tpu.memory_space<vmem>>, %arg6: memref<4x32x32xf32, #tpu.memory_space<vmem>>, %arg7: memref<4x1x32xf32, #tpu.memory_space<vmem>>, %arg8: memref<4x32x32xf32, #tpu.memory_space<vmem>>, %arg9: memref<4x1x32xf32, #tpu.memory_space<vmem>>, %arg10: memref<4x32x32xf32, #tpu.memory_space<vmem>>, %arg11: memref<4x1x32xf32, #tpu.memory_space<vmem>>, %arg12: memref<4x32x32xf32, #tpu.memory_space<vmem>>, %arg13: memref<4x1x32xf32, #tpu.memory_space<vmem>>, %arg14: memref<4x1x32xf32, #tpu.memory_space<vmem>>, %arg15: memref<4x1x32xf32, #tpu.memory_space<vmem>>, %arg16: memref<4x32x64xf32, #tpu.memory_space<vmem>>, %arg17: memref<4x1x64xf32, #tpu.memory_space<vmem>>, %arg18: memref<4x64x32xf32, #tpu.memory_space<vmem>>, %arg19: memref<4x1x32xf32, #tpu.memory_space<vmem>>, %arg20: memref<4x1x32xf32, #tpu.memory_space<vmem>>, %arg21: memref<4x1x32xf32, #tpu.memory_space<vmem>>, %arg22: memref<32x16xf32, #tpu.memory_space<vmem>>, %arg23: memref<3x16xf32, #tpu.memory_space<vmem>>, %arg24: memref<1x16xf32, #tpu.memory_space<vmem>>, %arg25: memref<16x1xf32, #tpu.memory_space<vmem>>, %arg26: memref<4x8xf32, #tpu.memory_space<vmem>>, %arg27: memref<1x8xf32, #tpu.memory_space<vmem>>, %arg28: memref<32x5xf32, #tpu.memory_space<vmem>>, %arg29: memref<3x5xf32, #tpu.memory_space<vmem>>, %arg30: memref<8x5xf32, #tpu.memory_space<vmem>>, %arg31: memref<1x5xf32, #tpu.memory_space<vmem>>, %arg32: memref<2x5xf32, #tpu.memory_space<vmem>>, %arg33: memref<48x32xf32, #tpu.memory_space<vmem>>) attributes {dimension_semantics = [], scalar_prefetch = 0 : i64, scratch_operands = 1 : i64, tpu.core_type = #tpu.core_type<tc>} {
    %c0 = arith.constant 0 : index
    %c0_0 = arith.constant 0 : index
    %0 = vector.load %arg0[%c0, %c0_0] : memref<48x32xf32, #tpu.memory_space<vmem>>, vector<48x32xf32>
    %c0_1 = arith.constant 0 : index
    %c0_2 = arith.constant 0 : index
    %1 = vector.load %arg1[%c0_1, %c0_2] : memref<48x48xf32, #tpu.memory_space<vmem>>, vector<48x48xf32>
    %cst = arith.constant 0.000000e+00 : f32
    %2 = vector.broadcast %cst : f32 to vector<48x32xf32>
    %c0_3 = arith.constant 0 : index
    %c0_4 = arith.constant 0 : index
    %c0_5 = arith.constant 0 : index
    %3 = vector.load %arg6[%c0_3, %c0_4, %c0_5] : memref<4x32x32xf32, #tpu.memory_space<vmem>>, vector<1x32x32xf32>
    %4 = vector.shape_cast %3 : vector<1x32x32xf32> to vector<32x32xf32>
    %cst_6 = arith.constant dense<0.000000e+00> : vector<48x32xf32>
    %5 = tpu.matmul %0, %4, %cst_6 {dimension_numbers = #tpu.dot_dimension_numbers<[1], [0], [0], [1], [0, 0, 1, 1], [], []>} : vector<48x32xf32>, vector<32x32xf32>, vector<48x32xf32> -> vector<48x32xf32>
    %c0_7 = arith.constant 0 : index
    %c0_8 = arith.constant 0 : index
    %c0_9 = arith.constant 0 : index
    %6 = vector.load %arg7[%c0_7, %c0_8, %c0_9] : memref<4x1x32xf32, #tpu.memory_space<vmem>>, vector<1x1x32xf32>
    %7 = vector.shape_cast %6 : vector<1x1x32xf32> to vector<1x32xf32>
    %8 = vector.broadcast %7 : vector<1x32xf32> to vector<48x32xf32>
    %9 = arith.addf %5, %8 : vector<48x32xf32>
    %c0_10 = arith.constant 0 : index
    %c0_11 = arith.constant 0 : index
    %c0_12 = arith.constant 0 : index
    %10 = vector.load %arg8[%c0_10, %c0_11, %c0_12] : memref<4x32x32xf32, #tpu.memory_space<vmem>>, vector<1x32x32xf32>
    %11 = vector.shape_cast %10 : vector<1x32x32xf32> to vector<32x32xf32>
    %cst_13 = arith.constant dense<0.000000e+00> : vector<48x32xf32>
    %12 = tpu.matmul %0, %11, %cst_13 {dimension_numbers = #tpu.dot_dimension_numbers<[1], [0], [0], [1], [0, 0, 1, 1], [], []>} : vector<48x32xf32>, vector<32x32xf32>, vector<48x32xf32> -> vector<48x32xf32>
    %c0_14 = arith.constant 0 : index
    %c0_15 = arith.constant 0 : index
    %c0_16 = arith.constant 0 : index
    %13 = vector.load %arg9[%c0_14, %c0_15, %c0_16] : memref<4x1x32xf32, #tpu.memory_space<vmem>>, vector<1x1x32xf32>
    %14 = vector.shape_cast %13 : vector<1x1x32xf32> to vector<1x32xf32>
    %15 = vector.broadcast %14 : vector<1x32xf32> to vector<48x32xf32>
    %16 = arith.addf %12, %15 : vector<48x32xf32>
    %c0_17 = arith.constant 0 : index
    %c0_18 = arith.constant 0 : index
    %c0_19 = arith.constant 0 : index
    %17 = vector.load %arg10[%c0_17, %c0_18, %c0_19] : memref<4x32x32xf32, #tpu.memory_space<vmem>>, vector<1x32x32xf32>
    %18 = vector.shape_cast %17 : vector<1x32x32xf32> to vector<32x32xf32>
    %cst_20 = arith.constant dense<0.000000e+00> : vector<48x32xf32>
    %19 = tpu.matmul %0, %18, %cst_20 {dimension_numbers = #tpu.dot_dimension_numbers<[1], [0], [0], [1], [0, 0, 1, 1], [], []>} : vector<48x32xf32>, vector<32x32xf32>, vector<48x32xf32> -> vector<48x32xf32>
    %c0_21 = arith.constant 0 : index
    %c0_22 = arith.constant 0 : index
    %c0_23 = arith.constant 0 : index
    %20 = vector.load %arg11[%c0_21, %c0_22, %c0_23] : memref<4x1x32xf32, #tpu.memory_space<vmem>>, vector<1x1x32xf32>
    %21 = vector.shape_cast %20 : vector<1x1x32xf32> to vector<1x32xf32>
    %22 = vector.broadcast %21 : vector<1x32xf32> to vector<48x32xf32>
    %23 = arith.addf %19, %22 : vector<48x32xf32>
    %24 = vector.extract_strided_slice %9 {offsets = [0, 0], sizes = [48, 8], strides = [1, 1]} : vector<48x32xf32> to vector<48x8xf32>
    %25 = vector.extract_strided_slice %16 {offsets = [0, 0], sizes = [48, 8], strides = [1, 1]} : vector<48x32xf32> to vector<48x8xf32>
    %26 = vector.extract_strided_slice %23 {offsets = [0, 0], sizes = [48, 8], strides = [1, 1]} : vector<48x32xf32> to vector<48x8xf32>
    "tpu.trace_start"() <{level = 10 : i32, message = "qd,kd->qk"}> : () -> ()
    %cst_24 = arith.constant dense<0.000000e+00> : vector<48x48xf32>
    %27 = tpu.matmul %24, %25, %cst_24 {dimension_numbers = #tpu.dot_dimension_numbers<[1], [1], [0], [0], [0, 0, 1, 0], [], []>} : vector<48x8xf32>, vector<48x8xf32>, vector<48x48xf32> -> vector<48x48xf32>
    "tpu.trace_stop"() : () -> ()
    %cst_25 = arith.constant 0.353553385 : f32
    %28 = vector.broadcast %cst_25 : f32 to vector<48x48xf32>
    %29 = arith.mulf %27, %28 : vector<48x48xf32>
    %30 = arith.addf %29, %1 : vector<48x48xf32>
    %cst_26 = arith.constant dense<0xFF800000> : vector<48xf32>
    %31 = vector.multi_reduction <maximumf>, %30, %cst_26 [1] : vector<48x48xf32> to vector<48xf32>
    %32 = vector.shape_cast %31 : vector<48xf32> to vector<48x1xf32>
    %33 = vector.broadcast %32 : vector<48x1xf32> to vector<48x48xf32>
    %34 = arith.subf %30, %33 : vector<48x48xf32>
    %35 = math.exp %34 : vector<48x48xf32>
    %cst_27 = arith.constant dense<0.000000e+00> : vector<48xf32>
    %36 = vector.multi_reduction <add>, %35, %cst_27 [1] : vector<48x48xf32> to vector<48xf32>
    %37 = vector.shape_cast %36 : vector<48xf32> to vector<48x1xf32>
    %38 = tpu.reciprocal %37 {approx = true} : vector<48x1xf32> -> vector<48x1xf32>
    %39 = vector.broadcast %38 : vector<48x1xf32> to vector<48x48xf32>
    %40 = arith.mulf %35, %39 : vector<48x48xf32>
    %cst_28 = arith.constant dense<0.000000e+00> : vector<48x8xf32>
    %41 = tpu.matmul %40, %26, %cst_28 {dimension_numbers = #tpu.dot_dimension_numbers<[1], [0], [0], [1], [0, 0, 1, 1], [], []>} : vector<48x48xf32>, vector<48x8xf32>, vector<48x8xf32> -> vector<48x8xf32>
    %c0_29 = arith.constant 0 : index
    %c0_30 = arith.constant 0 : index
    %42 = vector.load %arg33[%c0_29, %c0_30] : memref<48x32xf32, #tpu.memory_space<vmem>>, vector<48x8xf32>
    tpu.vector_store %arg33[%c0_29, %c0_30], %41 {strides = array<i32>} : memref<48x32xf32, #tpu.memory_space<vmem>>, vector<48x8xf32>,
    %43 = vector.extract_strided_slice %9 {offsets = [0, 8], sizes = [48, 8], strides = [1, 1]} : vector<48x32xf32> to vector<48x8xf32>
    %44 = vector.extract_strided_slice %16 {offsets = [0, 8], sizes = [48, 8], strides = [1, 1]} : vector<48x32xf32> to vector<48x8xf32>
    %45 = vector.extract_strided_slice %23 {offsets = [0, 8], sizes = [48, 8], strides = [1, 1]} : vector<48x32xf32> to vector<48x8xf32>
    "tpu.trace_start"() <{level = 10 : i32, message = "qd,kd->qk"}> : () -> ()
    %cst_31 = arith.constant dense<0.000000e+00> : vector<48x48xf32>
    %46 = tpu.matmul %43, %44, %cst_31 {dimension_numbers = #tpu.dot_dimension_numbers<[1], [1], [0], [0], [0, 0, 1, 0], [], []>} : vector<48x8xf32>, vector<48x8xf32>, vector<48x48xf32> -> vector<48x48xf32>
    "tpu.trace_stop"() : () -> ()
    %cst_32 = arith.constant 0.353553385 : f32
    %47 = vector.broadcast %cst_32 : f32 to vector<48x48xf32>
    %48 = arith.mulf %46, %47 : vector<48x48xf32>
    %49 = arith.addf %48, %1 : vector<48x48xf32>
    %cst_33 = arith.constant dense<0xFF800000> : vector<48xf32>
    %50 = vector.multi_reduction <maximumf>, %49, %cst_33 [1] : vector<48x48xf32> to vector<48xf32>
    %51 = vector.shape_cast %50 : vector<48xf32> to vector<48x1xf32>
    %52 = vector.broadcast %51 : vector<48x1xf32> to vector<48x48xf32>
    %53 = arith.subf %49, %52 : vector<48x48xf32>
    %54 = math.exp %53 : vector<48x48xf32>
    %cst_34 = arith.constant dense<0.000000e+00> : vector<48xf32>
    %55 = vector.multi_reduction <add>, %54, %cst_34 [1] : vector<48x48xf32> to vector<48xf32>
    %56 = vector.shape_cast %55 : vector<48xf32> to vector<48x1xf32>
    %57 = tpu.reciprocal %56 {approx = true} : vector<48x1xf32> -> vector<48x1xf32>
    %58 = vector.broadcast %57 : vector<48x1xf32> to vector<48x48xf32>
    %59 = arith.mulf %54, %58 : vector<48x48xf32>
    %cst_35 = arith.constant dense<0.000000e+00> : vector<48x8xf32>
    %60 = tpu.matmul %59, %45, %cst_35 {dimension_numbers = #tpu.dot_dimension_numbers<[1], [0], [0], [1], [0, 0, 1, 1], [], []>} : vector<48x48xf32>, vector<48x8xf32>, vector<48x8xf32> -> vector<48x8xf32>
    %c0_36 = arith.constant 0 : index
    %c8 = arith.constant 8 : index
    %61 = vector.load %arg33[%c0_36, %c8] : memref<48x32xf32, #tpu.memory_space<vmem>>, vector<48x8xf32>
    tpu.vector_store %arg33[%c0_36, %c8], %60 {strides = array<i32>} : memref<48x32xf32, #tpu.memory_space<vmem>>, vector<48x8xf32>,
    %62 = vector.extract_strided_slice %9 {offsets = [0, 16], sizes = [48, 8], strides = [1, 1]} : vector<48x32xf32> to vector<48x8xf32>
    %63 = vector.extract_strided_slice %16 {offsets = [0, 16], sizes = [48, 8], strides = [1, 1]} : vector<48x32xf32> to vector<48x8xf32>
    %64 = vector.extract_strided_slice %23 {offsets = [0, 16], sizes = [48, 8], strides = [1, 1]} : vector<48x32xf32> to vector<48x8xf32>
    "tpu.trace_start"() <{level = 10 : i32, message = "qd,kd->qk"}> : () -> ()
    %cst_37 = arith.constant dense<0.000000e+00> : vector<48x48xf32>
    %65 = tpu.matmul %62, %63, %cst_37 {dimension_numbers = #tpu.dot_dimension_numbers<[1], [1], [0], [0], [0, 0, 1, 0], [], []>} : vector<48x8xf32>, vector<48x8xf32>, vector<48x48xf32> -> vector<48x48xf32>
    "tpu.trace_stop"() : () -> ()
    %cst_38 = arith.constant 0.353553385 : f32
    %66 = vector.broadcast %cst_38 : f32 to vector<48x48xf32>
    %67 = arith.mulf %65, %66 : vector<48x48xf32>
    %68 = arith.addf %67, %1 : vector<48x48xf32>
    %cst_39 = arith.constant dense<0xFF800000> : vector<48xf32>
    %69 = vector.multi_reduction <maximumf>, %68, %cst_39 [1] : vector<48x48xf32> to vector<48xf32>
    %70 = vector.shape_cast %69 : vector<48xf32> to vector<48x1xf32>
    %71 = vector.broadcast %70 : vector<48x1xf32> to vector<48x48xf32>
    %72 = arith.subf %68, %71 : vector<48x48xf32>
    %73 = math.exp %72 : vector<48x48xf32>
    %cst_40 = arith.constant dense<0.000000e+00> : vector<48xf32>
    %74 = vector.multi_reduction <add>, %73, %cst_40 [1] : vector<48x48xf32> to vector<48xf32>
    %75 = vector.shape_cast %74 : vector<48xf32> to vector<48x1xf32>
    %76 = tpu.reciprocal %75 {approx = true} : vector<48x1xf32> -> vector<48x1xf32>
    %77 = vector.broadcast %76 : vector<48x1xf32> to vector<48x48xf32>
    %78 = arith.mulf %73, %77 : vector<48x48xf32>
    %cst_41 = arith.constant dense<0.000000e+00> : vector<48x8xf32>
    %79 = tpu.matmul %78, %64, %cst_41 {dimension_numbers = #tpu.dot_dimension_numbers<[1], [0], [0], [1], [0, 0, 1, 1], [], []>} : vector<48x48xf32>, vector<48x8xf32>, vector<48x8xf32> -> vector<48x8xf32>
    %c0_42 = arith.constant 0 : index
    %c16 = arith.constant 16 : index
    %80 = vector.load %arg33[%c0_42, %c16] : memref<48x32xf32, #tpu.memory_space<vmem>>, vector<48x8xf32>
    tpu.vector_store %arg33[%c0_42, %c16], %79 {strides = array<i32>} : memref<48x32xf32, #tpu.memory_space<vmem>>, vector<48x8xf32>,
    %81 = vector.extract_strided_slice %9 {offsets = [0, 24], sizes = [48, 8], strides = [1, 1]} : vector<48x32xf32> to vector<48x8xf32>
    %82 = vector.extract_strided_slice %16 {offsets = [0, 24], sizes = [48, 8], strides = [1, 1]} : vector<48x32xf32> to vector<48x8xf32>
    %83 = vector.extract_strided_slice %23 {offsets = [0, 24], sizes = [48, 8], strides = [1, 1]} : vector<48x32xf32> to vector<48x8xf32>
    "tpu.trace_start"() <{level = 10 : i32, message = "qd,kd->qk"}> : () -> ()
    %cst_43 = arith.constant dense<0.000000e+00> : vector<48x48xf32>
    %84 = tpu.matmul %81, %82, %cst_43 {dimension_numbers = #tpu.dot_dimension_numbers<[1], [1], [0], [0], [0, 0, 1, 0], [], []>} : vector<48x8xf32>, vector<48x8xf32>, vector<48x48xf32> -> vector<48x48xf32>
    "tpu.trace_stop"() : () -> ()
    %cst_44 = arith.constant 0.353553385 : f32
    %85 = vector.broadcast %cst_44 : f32 to vector<48x48xf32>
    %86 = arith.mulf %84, %85 : vector<48x48xf32>
    %87 = arith.addf %86, %1 : vector<48x48xf32>
    %cst_45 = arith.constant dense<0xFF800000> : vector<48xf32>
    %88 = vector.multi_reduction <maximumf>, %87, %cst_45 [1] : vector<48x48xf32> to vector<48xf32>
    %89 = vector.shape_cast %88 : vector<48xf32> to vector<48x1xf32>
    %90 = vector.broadcast %89 : vector<48x1xf32> to vector<48x48xf32>
    %91 = arith.subf %87, %90 : vector<48x48xf32>
    %92 = math.exp %91 : vector<48x48xf32>
    %cst_46 = arith.constant dense<0.000000e+00> : vector<48xf32>
    %93 = vector.multi_reduction <add>, %92, %cst_46 [1] : vector<48x48xf32> to vector<48xf32>
    %94 = vector.shape_cast %93 : vector<48xf32> to vector<48x1xf32>
    %95 = tpu.reciprocal %94 {approx = true} : vector<48x1xf32> -> vector<48x1xf32>
    %96 = vector.broadcast %95 : vector<48x1xf32> to vector<48x48xf32>
    %97 = arith.mulf %92, %96 : vector<48x48xf32>
    %cst_47 = arith.constant dense<0.000000e+00> : vector<48x8xf32>
    %98 = tpu.matmul %97, %83, %cst_47 {dimension_numbers = #tpu.dot_dimension_numbers<[1], [0], [0], [1], [0, 0, 1, 1], [], []>} : vector<48x48xf32>, vector<48x8xf32>, vector<48x8xf32> -> vector<48x8xf32>
    %c0_48 = arith.constant 0 : index
    %c24 = arith.constant 24 : index
    %99 = vector.load %arg33[%c0_48, %c24] : memref<48x32xf32, #tpu.memory_space<vmem>>, vector<48x8xf32>
    tpu.vector_store %arg33[%c0_48, %c24], %98 {strides = array<i32>} : memref<48x32xf32, #tpu.memory_space<vmem>>, vector<48x8xf32>,
    %c0_49 = arith.constant 0 : index
    %c0_50 = arith.constant 0 : index
    %100 = vector.load %arg33[%c0_49, %c0_50] : memref<48x32xf32, #tpu.memory_space<vmem>>, vector<48x32xf32>
    %c0_51 = arith.constant 0 : index
    %c0_52 = arith.constant 0 : index
    %c0_53 = arith.constant 0 : index
    %101 = vector.load %arg12[%c0_51, %c0_52, %c0_53] : memref<4x32x32xf32, #tpu.memory_space<vmem>>, vector<1x32x32xf32>
    %102 = vector.shape_cast %101 : vector<1x32x32xf32> to vector<32x32xf32>
    %cst_54 = arith.constant dense<0.000000e+00> : vector<48x32xf32>
    %103 = tpu.matmul %100, %102, %cst_54 {dimension_numbers = #tpu.dot_dimension_numbers<[1], [0], [0], [1], [0, 0, 1, 1], [], []>} : vector<48x32xf32>, vector<32x32xf32>, vector<48x32xf32> -> vector<48x32xf32>
    %c0_55 = arith.constant 0 : index
    %c0_56 = arith.constant 0 : index
    %c0_57 = arith.constant 0 : index
    %104 = vector.load %arg13[%c0_55, %c0_56, %c0_57] : memref<4x1x32xf32, #tpu.memory_space<vmem>>, vector<1x1x32xf32>
    %105 = vector.shape_cast %104 : vector<1x1x32xf32> to vector<1x32xf32>
    %106 = vector.broadcast %105 : vector<1x32xf32> to vector<48x32xf32>
    %107 = arith.addf %103, %106 : vector<48x32xf32>
    %108 = arith.addf %0, %107 : vector<48x32xf32>
    %c0_58 = arith.constant 0 : index
    %c0_59 = arith.constant 0 : index
    %c0_60 = arith.constant 0 : index
    %109 = vector.load %arg14[%c0_58, %c0_59, %c0_60] : memref<4x1x32xf32, #tpu.memory_space<vmem>>, vector<1x1x32xf32>
    %110 = vector.shape_cast %109 : vector<1x1x32xf32> to vector<1x32xf32>
    %c0_61 = arith.constant 0 : index
    %c0_62 = arith.constant 0 : index
    %c0_63 = arith.constant 0 : index
    %111 = vector.load %arg15[%c0_61, %c0_62, %c0_63] : memref<4x1x32xf32, #tpu.memory_space<vmem>>, vector<1x1x32xf32>
    %112 = vector.shape_cast %111 : vector<1x1x32xf32> to vector<1x32xf32>
    %cst_64 = arith.constant dense<0.000000e+00> : vector<48xf32>
    %113 = vector.multi_reduction <add>, %108, %cst_64 [1] : vector<48x32xf32> to vector<48xf32>
    %114 = vector.shape_cast %113 : vector<48xf32> to vector<48x1xf32>
    %cst_65 = arith.constant 3.200000e+01 : f32
    %115 = vector.broadcast %cst_65 : f32 to vector<48x1xf32>
    %116 = arith.divf %114, %115 : vector<48x1xf32>
    %117 = vector.broadcast %116 : vector<48x1xf32> to vector<48x32xf32>
    %118 = arith.subf %108, %117 : vector<48x32xf32>
    %119 = arith.mulf %118, %118 : vector<48x32xf32>
    %cst_66 = arith.constant dense<0.000000e+00> : vector<48xf32>
    %120 = vector.multi_reduction <add>, %119, %cst_66 [1] : vector<48x32xf32> to vector<48xf32>
    %121 = vector.shape_cast %120 : vector<48xf32> to vector<48x1xf32>
    %cst_67 = arith.constant 3.200000e+01 : f32
    %122 = vector.broadcast %cst_67 : f32 to vector<48x1xf32>
    %123 = arith.divf %121, %122 : vector<48x1xf32>
    %124 = vector.broadcast %116 : vector<48x1xf32> to vector<48x32xf32>
    %125 = arith.subf %108, %124 : vector<48x32xf32>
    %cst_68 = arith.constant 9.99999996E-13 : f32
    %126 = vector.broadcast %cst_68 : f32 to vector<48x1xf32>
    %127 = arith.addf %123, %126 : vector<48x1xf32>
    %128 = math.rsqrt %127 : vector<48x1xf32>
    %129 = vector.broadcast %128 : vector<48x1xf32> to vector<48x32xf32>
    %130 = arith.mulf %125, %129 : vector<48x32xf32>
    %131 = vector.broadcast %110 : vector<1x32xf32> to vector<48x32xf32>
    %132 = arith.mulf %130, %131 : vector<48x32xf32>
    %133 = vector.broadcast %112 : vector<1x32xf32> to vector<48x32xf32>
    %134 = arith.addf %132, %133 : vector<48x32xf32>
    %c0_69 = arith.constant 0 : index
    %c0_70 = arith.constant 0 : index
    %c0_71 = arith.constant 0 : index
    %135 = vector.load %arg16[%c0_69, %c0_70, %c0_71] : memref<4x32x64xf32, #tpu.memory_space<vmem>>, vector<1x32x64xf32>
    %136 = vector.shape_cast %135 : vector<1x32x64xf32> to vector<32x64xf32>
    %cst_72 = arith.constant dense<0.000000e+00> : vector<48x64xf32>
    %137 = tpu.matmul %134, %136, %cst_72 {dimension_numbers = #tpu.dot_dimension_numbers<[1], [0], [0], [1], [0, 0, 1, 1], [], []>} : vector<48x32xf32>, vector<32x64xf32>, vector<48x64xf32> -> vector<48x64xf32>
    %c0_73 = arith.constant 0 : index
    %c0_74 = arith.constant 0 : index
    %c0_75 = arith.constant 0 : index
    %138 = vector.load %arg17[%c0_73, %c0_74, %c0_75] : memref<4x1x64xf32, #tpu.memory_space<vmem>>, vector<1x1x64xf32>
    %139 = vector.shape_cast %138 : vector<1x1x64xf32> to vector<1x64xf32>
    %140 = vector.broadcast %139 : vector<1x64xf32> to vector<48x64xf32>
    %141 = arith.addf %137, %140 : vector<48x64xf32>
    %142 = arith.mulf %141, %141 : vector<48x64xf32>
    %143 = arith.mulf %141, %142 : vector<48x64xf32>
    %cst_76 = arith.constant 4.471500e-02 : f32
    %144 = vector.broadcast %cst_76 : f32 to vector<48x64xf32>
    %145 = arith.mulf %144, %143 : vector<48x64xf32>
    %146 = arith.addf %141, %145 : vector<48x64xf32>
    %cst_77 = arith.constant 0.797884583 : f32
    %147 = vector.broadcast %cst_77 : f32 to vector<48x64xf32>
    %148 = arith.mulf %147, %146 : vector<48x64xf32>
    %149 = math.tanh %148 : vector<48x64xf32>
    %cst_78 = arith.constant 1.000000e+00 : f32
    %150 = vector.broadcast %cst_78 : f32 to vector<48x64xf32>
    %151 = arith.addf %150, %149 : vector<48x64xf32>
    %cst_79 = arith.constant 5.000000e-01 : f32
    %152 = vector.broadcast %cst_79 : f32 to vector<48x64xf32>
    %153 = arith.mulf %152, %151 : vector<48x64xf32>
    %154 = arith.mulf %141, %153 : vector<48x64xf32>
    %c0_80 = arith.constant 0 : index
    %c0_81 = arith.constant 0 : index
    %c0_82 = arith.constant 0 : index
    %155 = vector.load %arg18[%c0_80, %c0_81, %c0_82] : memref<4x64x32xf32, #tpu.memory_space<vmem>>, vector<1x64x32xf32>
    %156 = vector.shape_cast %155 : vector<1x64x32xf32> to vector<64x32xf32>
    %cst_83 = arith.constant dense<0.000000e+00> : vector<48x32xf32>
    %157 = tpu.matmul %154, %156, %cst_83 {dimension_numbers = #tpu.dot_dimension_numbers<[1], [0], [0], [1], [0, 0, 1, 1], [], []>} : vector<48x64xf32>, vector<64x32xf32>, vector<48x32xf32> -> vector<48x32xf32>
    %c0_84 = arith.constant 0 : index
    %c0_85 = arith.constant 0 : index
    %c0_86 = arith.constant 0 : index
    %158 = vector.load %arg19[%c0_84, %c0_85, %c0_86] : memref<4x1x32xf32, #tpu.memory_space<vmem>>, vector<1x1x32xf32>
    %159 = vector.shape_cast %158 : vector<1x1x32xf32> to vector<1x32xf32>
    %160 = vector.broadcast %159 : vector<1x32xf32> to vector<48x32xf32>
    %161 = arith.addf %157, %160 : vector<48x32xf32>
    %162 = arith.addf %134, %161 : vector<48x32xf32>
    %c0_87 = arith.constant 0 : index
    %c0_88 = arith.constant 0 : index
    %c0_89 = arith.constant 0 : index
    %163 = vector.load %arg20[%c0_87, %c0_88, %c0_89] : memref<4x1x32xf32, #tpu.memory_space<vmem>>, vector<1x1x32xf32>
    %164 = vector.shape_cast %163 : vector<1x1x32xf32> to vector<1x32xf32>
    %c0_90 = arith.constant 0 : index
    %c0_91 = arith.constant 0 : index
    %c0_92 = arith.constant 0 : index
    %165 = vector.load %arg21[%c0_90, %c0_91, %c0_92] : memref<4x1x32xf32, #tpu.memory_space<vmem>>, vector<1x1x32xf32>
    %166 = vector.shape_cast %165 : vector<1x1x32xf32> to vector<1x32xf32>
    %cst_93 = arith.constant dense<0.000000e+00> : vector<48xf32>
    %167 = vector.multi_reduction <add>, %162, %cst_93 [1] : vector<48x32xf32> to vector<48xf32>
    %168 = vector.shape_cast %167 : vector<48xf32> to vector<48x1xf32>
    %cst_94 = arith.constant 3.200000e+01 : f32
    %169 = vector.broadcast %cst_94 : f32 to vector<48x1xf32>
    %170 = arith.divf %168, %169 : vector<48x1xf32>
    %171 = vector.broadcast %170 : vector<48x1xf32> to vector<48x32xf32>
    %172 = arith.subf %162, %171 : vector<48x32xf32>
    %173 = arith.mulf %172, %172 : vector<48x32xf32>
    %cst_95 = arith.constant dense<0.000000e+00> : vector<48xf32>
    %174 = vector.multi_reduction <add>, %173, %cst_95 [1] : vector<48x32xf32> to vector<48xf32>
    %175 = vector.shape_cast %174 : vector<48xf32> to vector<48x1xf32>
    %cst_96 = arith.constant 3.200000e+01 : f32
    %176 = vector.broadcast %cst_96 : f32 to vector<48x1xf32>
    %177 = arith.divf %175, %176 : vector<48x1xf32>
    %178 = vector.broadcast %170 : vector<48x1xf32> to vector<48x32xf32>
    %179 = arith.subf %162, %178 : vector<48x32xf32>
    %cst_97 = arith.constant 9.99999996E-13 : f32
    %180 = vector.broadcast %cst_97 : f32 to vector<48x1xf32>
    %181 = arith.addf %177, %180 : vector<48x1xf32>
    %182 = math.rsqrt %181 : vector<48x1xf32>
    %183 = vector.broadcast %182 : vector<48x1xf32> to vector<48x32xf32>
    %184 = arith.mulf %179, %183 : vector<48x32xf32>
    %185 = vector.broadcast %164 : vector<1x32xf32> to vector<48x32xf32>
    %186 = arith.mulf %184, %185 : vector<48x32xf32>
    %187 = vector.broadcast %166 : vector<1x32xf32> to vector<48x32xf32>
    %188 = arith.addf %186, %187 : vector<48x32xf32>
    %189 = arith.addf %2, %188 : vector<48x32xf32>
    %c1 = arith.constant 1 : index
    %c0_98 = arith.constant 0 : index
    %c0_99 = arith.constant 0 : index
    %190 = vector.load %arg6[%c1, %c0_98, %c0_99] : memref<4x32x32xf32, #tpu.memory_space<vmem>>, vector<1x32x32xf32>
    %191 = vector.shape_cast %190 : vector<1x32x32xf32> to vector<32x32xf32>
    %cst_100 = arith.constant dense<0.000000e+00> : vector<48x32xf32>
    %192 = tpu.matmul %188, %191, %cst_100 {dimension_numbers = #tpu.dot_dimension_numbers<[1], [0], [0], [1], [0, 0, 1, 1], [], []>} : vector<48x32xf32>, vector<32x32xf32>, vector<48x32xf32> -> vector<48x32xf32>
    %c1_101 = arith.constant 1 : index
    %c0_102 = arith.constant 0 : index
    %c0_103 = arith.constant 0 : index
    %193 = vector.load %arg7[%c1_101, %c0_102, %c0_103] : memref<4x1x32xf32, #tpu.memory_space<vmem>>, vector<1x1x32xf32>
    %194 = vector.shape_cast %193 : vector<1x1x32xf32> to vector<1x32xf32>
    %195 = vector.broadcast %194 : vector<1x32xf32> to vector<48x32xf32>
    %196 = arith.addf %192, %195 : vector<48x32xf32>
    %c1_104 = arith.constant 1 : index
    %c0_105 = arith.constant 0 : index
    %c0_106 = arith.constant 0 : index
    %197 = vector.load %arg8[%c1_104, %c0_105, %c0_106] : memref<4x32x32xf32, #tpu.memory_space<vmem>>, vector<1x32x32xf32>
    %198 = vector.shape_cast %197 : vector<1x32x32xf32> to vector<32x32xf32>
    %cst_107 = arith.constant dense<0.000000e+00> : vector<48x32xf32>
    %199 = tpu.matmul %188, %198, %cst_107 {dimension_numbers = #tpu.dot_dimension_numbers<[1], [0], [0], [1], [0, 0, 1, 1], [], []>} : vector<48x32xf32>, vector<32x32xf32>, vector<48x32xf32> -> vector<48x32xf32>
    %c1_108 = arith.constant 1 : index
    %c0_109 = arith.constant 0 : index
    %c0_110 = arith.constant 0 : index
    %200 = vector.load %arg9[%c1_108, %c0_109, %c0_110] : memref<4x1x32xf32, #tpu.memory_space<vmem>>, vector<1x1x32xf32>
    %201 = vector.shape_cast %200 : vector<1x1x32xf32> to vector<1x32xf32>
    %202 = vector.broadcast %201 : vector<1x32xf32> to vector<48x32xf32>
    %203 = arith.addf %199, %202 : vector<48x32xf32>
    %c1_111 = arith.constant 1 : index
    %c0_112 = arith.constant 0 : index
    %c0_113 = arith.constant 0 : index
    %204 = vector.load %arg10[%c1_111, %c0_112, %c0_113] : memref<4x32x32xf32, #tpu.memory_space<vmem>>, vector<1x32x32xf32>
    %205 = vector.shape_cast %204 : vector<1x32x32xf32> to vector<32x32xf32>
    %cst_114 = arith.constant dense<0.000000e+00> : vector<48x32xf32>
    %206 = tpu.matmul %188, %205, %cst_114 {dimension_numbers = #tpu.dot_dimension_numbers<[1], [0], [0], [1], [0, 0, 1, 1], [], []>} : vector<48x32xf32>, vector<32x32xf32>, vector<48x32xf32> -> vector<48x32xf32>
    %c1_115 = arith.constant 1 : index
    %c0_116 = arith.constant 0 : index
    %c0_117 = arith.constant 0 : index
    %207 = vector.load %arg11[%c1_115, %c0_116, %c0_117] : memref<4x1x32xf32, #tpu.memory_space<vmem>>, vector<1x1x32xf32>
    %208 = vector.shape_cast %207 : vector<1x1x32xf32> to vector<1x32xf32>
    %209 = vector.broadcast %208 : vector<1x32xf32> to vector<48x32xf32>
    %210 = arith.addf %206, %209 : vector<48x32xf32>
    %211 = vector.extract_strided_slice %196 {offsets = [0, 0], sizes = [48, 8], strides = [1, 1]} : vector<48x32xf32> to vector<48x8xf32>
    %212 = vector.extract_strided_slice %203 {offsets = [0, 0], sizes = [48, 8], strides = [1, 1]} : vector<48x32xf32> to vector<48x8xf32>
    %213 = vector.extract_strided_slice %210 {offsets = [0, 0], sizes = [48, 8], strides = [1, 1]} : vector<48x32xf32> to vector<48x8xf32>
    "tpu.trace_start"() <{level = 10 : i32, message = "qd,kd->qk"}> : () -> ()
    %cst_118 = arith.constant dense<0.000000e+00> : vector<48x48xf32>
    %214 = tpu.matmul %211, %212, %cst_118 {dimension_numbers = #tpu.dot_dimension_numbers<[1], [1], [0], [0], [0, 0, 1, 0], [], []>} : vector<48x8xf32>, vector<48x8xf32>, vector<48x48xf32> -> vector<48x48xf32>
    "tpu.trace_stop"() : () -> ()
    %cst_119 = arith.constant 0.353553385 : f32
    %215 = vector.broadcast %cst_119 : f32 to vector<48x48xf32>
    %216 = arith.mulf %214, %215 : vector<48x48xf32>
    %217 = arith.addf %216, %1 : vector<48x48xf32>
    %cst_120 = arith.constant dense<0xFF800000> : vector<48xf32>
    %218 = vector.multi_reduction <maximumf>, %217, %cst_120 [1] : vector<48x48xf32> to vector<48xf32>
    %219 = vector.shape_cast %218 : vector<48xf32> to vector<48x1xf32>
    %220 = vector.broadcast %219 : vector<48x1xf32> to vector<48x48xf32>
    %221 = arith.subf %217, %220 : vector<48x48xf32>
    %222 = math.exp %221 : vector<48x48xf32>
    %cst_121 = arith.constant dense<0.000000e+00> : vector<48xf32>
    %223 = vector.multi_reduction <add>, %222, %cst_121 [1] : vector<48x48xf32> to vector<48xf32>
    %224 = vector.shape_cast %223 : vector<48xf32> to vector<48x1xf32>
    %225 = tpu.reciprocal %224 {approx = true} : vector<48x1xf32> -> vector<48x1xf32>
    %226 = vector.broadcast %225 : vector<48x1xf32> to vector<48x48xf32>
    %227 = arith.mulf %222, %226 : vector<48x48xf32>
    %cst_122 = arith.constant dense<0.000000e+00> : vector<48x8xf32>
    %228 = tpu.matmul %227, %213, %cst_122 {dimension_numbers = #tpu.dot_dimension_numbers<[1], [0], [0], [1], [0, 0, 1, 1], [], []>} : vector<48x48xf32>, vector<48x8xf32>, vector<48x8xf32> -> vector<48x8xf32>
    %c0_123 = arith.constant 0 : index
    %c0_124 = arith.constant 0 : index
    %229 = vector.load %arg33[%c0_123, %c0_124] : memref<48x32xf32, #tpu.memory_space<vmem>>, vector<48x8xf32>
    tpu.vector_store %arg33[%c0_123, %c0_124], %228 {strides = array<i32>} : memref<48x32xf32, #tpu.memory_space<vmem>>, vector<48x8xf32>,
    %230 = vector.extract_strided_slice %196 {offsets = [0, 8], sizes = [48, 8], strides = [1, 1]} : vector<48x32xf32> to vector<48x8xf32>
    %231 = vector.extract_strided_slice %203 {offsets = [0, 8], sizes = [48, 8], strides = [1, 1]} : vector<48x32xf32> to vector<48x8xf32>
    %232 = vector.extract_strided_slice %210 {offsets = [0, 8], sizes = [48, 8], strides = [1, 1]} : vector<48x32xf32> to vector<48x8xf32>
    "tpu.trace_start"() <{level = 10 : i32, message = "qd,kd->qk"}> : () -> ()
    %cst_125 = arith.constant dense<0.000000e+00> : vector<48x48xf32>
    %233 = tpu.matmul %230, %231, %cst_125 {dimension_numbers = #tpu.dot_dimension_numbers<[1], [1], [0], [0], [0, 0, 1, 0], [], []>} : vector<48x8xf32>, vector<48x8xf32>, vector<48x48xf32> -> vector<48x48xf32>
    "tpu.trace_stop"() : () -> ()
    %cst_126 = arith.constant 0.353553385 : f32
    %234 = vector.broadcast %cst_126 : f32 to vector<48x48xf32>
    %235 = arith.mulf %233, %234 : vector<48x48xf32>
    %236 = arith.addf %235, %1 : vector<48x48xf32>
    %cst_127 = arith.constant dense<0xFF800000> : vector<48xf32>
    %237 = vector.multi_reduction <maximumf>, %236, %cst_127 [1] : vector<48x48xf32> to vector<48xf32>
    %238 = vector.shape_cast %237 : vector<48xf32> to vector<48x1xf32>
    %239 = vector.broadcast %238 : vector<48x1xf32> to vector<48x48xf32>
    %240 = arith.subf %236, %239 : vector<48x48xf32>
    %241 = math.exp %240 : vector<48x48xf32>
    %cst_128 = arith.constant dense<0.000000e+00> : vector<48xf32>
    %242 = vector.multi_reduction <add>, %241, %cst_128 [1] : vector<48x48xf32> to vector<48xf32>
    %243 = vector.shape_cast %242 : vector<48xf32> to vector<48x1xf32>
    %244 = tpu.reciprocal %243 {approx = true} : vector<48x1xf32> -> vector<48x1xf32>
    %245 = vector.broadcast %244 : vector<48x1xf32> to vector<48x48xf32>
    %246 = arith.mulf %241, %245 : vector<48x48xf32>
    %cst_129 = arith.constant dense<0.000000e+00> : vector<48x8xf32>
    %247 = tpu.matmul %246, %232, %cst_129 {dimension_numbers = #tpu.dot_dimension_numbers<[1], [0], [0], [1], [0, 0, 1, 1], [], []>} : vector<48x48xf32>, vector<48x8xf32>, vector<48x8xf32> -> vector<48x8xf32>
    %c0_130 = arith.constant 0 : index
    %c8_131 = arith.constant 8 : index
    %248 = vector.load %arg33[%c0_130, %c8_131] : memref<48x32xf32, #tpu.memory_space<vmem>>, vector<48x8xf32>
    tpu.vector_store %arg33[%c0_130, %c8_131], %247 {strides = array<i32>} : memref<48x32xf32, #tpu.memory_space<vmem>>, vector<48x8xf32>,
    %249 = vector.extract_strided_slice %196 {offsets = [0, 16], sizes = [48, 8], strides = [1, 1]} : vector<48x32xf32> to vector<48x8xf32>
    %250 = vector.extract_strided_slice %203 {offsets = [0, 16], sizes = [48, 8], strides = [1, 1]} : vector<48x32xf32> to vector<48x8xf32>
    %251 = vector.extract_strided_slice %210 {offsets = [0, 16], sizes = [48, 8], strides = [1, 1]} : vector<48x32xf32> to vector<48x8xf32>
    "tpu.trace_start"() <{level = 10 : i32, message = "qd,kd->qk"}> : () -> ()
    %cst_132 = arith.constant dense<0.000000e+00> : vector<48x48xf32>
    %252 = tpu.matmul %249, %250, %cst_132 {dimension_numbers = #tpu.dot_dimension_numbers<[1], [1], [0], [0], [0, 0, 1, 0], [], []>} : vector<48x8xf32>, vector<48x8xf32>, vector<48x48xf32> -> vector<48x48xf32>
    "tpu.trace_stop"() : () -> ()
    %cst_133 = arith.constant 0.353553385 : f32
    %253 = vector.broadcast %cst_133 : f32 to vector<48x48xf32>
    %254 = arith.mulf %252, %253 : vector<48x48xf32>
    %255 = arith.addf %254, %1 : vector<48x48xf32>
    %cst_134 = arith.constant dense<0xFF800000> : vector<48xf32>
    %256 = vector.multi_reduction <maximumf>, %255, %cst_134 [1] : vector<48x48xf32> to vector<48xf32>
    %257 = vector.shape_cast %256 : vector<48xf32> to vector<48x1xf32>
    %258 = vector.broadcast %257 : vector<48x1xf32> to vector<48x48xf32>
    %259 = arith.subf %255, %258 : vector<48x48xf32>
    %260 = math.exp %259 : vector<48x48xf32>
    %cst_135 = arith.constant dense<0.000000e+00> : vector<48xf32>
    %261 = vector.multi_reduction <add>, %260, %cst_135 [1] : vector<48x48xf32> to vector<48xf32>
    %262 = vector.shape_cast %261 : vector<48xf32> to vector<48x1xf32>
    %263 = tpu.reciprocal %262 {approx = true} : vector<48x1xf32> -> vector<48x1xf32>
    %264 = vector.broadcast %263 : vector<48x1xf32> to vector<48x48xf32>
    %265 = arith.mulf %260, %264 : vector<48x48xf32>
    %cst_136 = arith.constant dense<0.000000e+00> : vector<48x8xf32>
    %266 = tpu.matmul %265, %251, %cst_136 {dimension_numbers = #tpu.dot_dimension_numbers<[1], [0], [0], [1], [0, 0, 1, 1], [], []>} : vector<48x48xf32>, vector<48x8xf32>, vector<48x8xf32> -> vector<48x8xf32>
    %c0_137 = arith.constant 0 : index
    %c16_138 = arith.constant 16 : index
    %267 = vector.load %arg33[%c0_137, %c16_138] : memref<48x32xf32, #tpu.memory_space<vmem>>, vector<48x8xf32>
    tpu.vector_store %arg33[%c0_137, %c16_138], %266 {strides = array<i32>} : memref<48x32xf32, #tpu.memory_space<vmem>>, vector<48x8xf32>,
    %268 = vector.extract_strided_slice %196 {offsets = [0, 24], sizes = [48, 8], strides = [1, 1]} : vector<48x32xf32> to vector<48x8xf32>
    %269 = vector.extract_strided_slice %203 {offsets = [0, 24], sizes = [48, 8], strides = [1, 1]} : vector<48x32xf32> to vector<48x8xf32>
    %270 = vector.extract_strided_slice %210 {offsets = [0, 24], sizes = [48, 8], strides = [1, 1]} : vector<48x32xf32> to vector<48x8xf32>
    "tpu.trace_start"() <{level = 10 : i32, message = "qd,kd->qk"}> : () -> ()
    %cst_139 = arith.constant dense<0.000000e+00> : vector<48x48xf32>
    %271 = tpu.matmul %268, %269, %cst_139 {dimension_numbers = #tpu.dot_dimension_numbers<[1], [1], [0], [0], [0, 0, 1, 0], [], []>} : vector<48x8xf32>, vector<48x8xf32>, vector<48x48xf32> -> vector<48x48xf32>
    "tpu.trace_stop"() : () -> ()
    %cst_140 = arith.constant 0.353553385 : f32
    %272 = vector.broadcast %cst_140 : f32 to vector<48x48xf32>
    %273 = arith.mulf %271, %272 : vector<48x48xf32>
    %274 = arith.addf %273, %1 : vector<48x48xf32>
    %cst_141 = arith.constant dense<0xFF800000> : vector<48xf32>
    %275 = vector.multi_reduction <maximumf>, %274, %cst_141 [1] : vector<48x48xf32> to vector<48xf32>
    %276 = vector.shape_cast %275 : vector<48xf32> to vector<48x1xf32>
    %277 = vector.broadcast %276 : vector<48x1xf32> to vector<48x48xf32>
    %278 = arith.subf %274, %277 : vector<48x48xf32>
    %279 = math.exp %278 : vector<48x48xf32>
    %cst_142 = arith.constant dense<0.000000e+00> : vector<48xf32>
    %280 = vector.multi_reduction <add>, %279, %cst_142 [1] : vector<48x48xf32> to vector<48xf32>
    %281 = vector.shape_cast %280 : vector<48xf32> to vector<48x1xf32>
    %282 = tpu.reciprocal %281 {approx = true} : vector<48x1xf32> -> vector<48x1xf32>
    %283 = vector.broadcast %282 : vector<48x1xf32> to vector<48x48xf32>
    %284 = arith.mulf %279, %283 : vector<48x48xf32>
    %cst_143 = arith.constant dense<0.000000e+00> : vector<48x8xf32>
    %285 = tpu.matmul %284, %270, %cst_143 {dimension_numbers = #tpu.dot_dimension_numbers<[1], [0], [0], [1], [0, 0, 1, 1], [], []>} : vector<48x48xf32>, vector<48x8xf32>, vector<48x8xf32> -> vector<48x8xf32>
    %c0_144 = arith.constant 0 : index
    %c24_145 = arith.constant 24 : index
    %286 = vector.load %arg33[%c0_144, %c24_145] : memref<48x32xf32, #tpu.memory_space<vmem>>, vector<48x8xf32>
    tpu.vector_store %arg33[%c0_144, %c24_145], %285 {strides = array<i32>} : memref<48x32xf32, #tpu.memory_space<vmem>>, vector<48x8xf32>,
    %c0_146 = arith.constant 0 : index
    %c0_147 = arith.constant 0 : index
    %287 = vector.load %arg33[%c0_146, %c0_147] : memref<48x32xf32, #tpu.memory_space<vmem>>, vector<48x32xf32>
    %c1_148 = arith.constant 1 : index
    %c0_149 = arith.constant 0 : index
    %c0_150 = arith.constant 0 : index
    %288 = vector.load %arg12[%c1_148, %c0_149, %c0_150] : memref<4x32x32xf32, #tpu.memory_space<vmem>>, vector<1x32x32xf32>
    %289 = vector.shape_cast %288 : vector<1x32x32xf32> to vector<32x32xf32>
    %cst_151 = arith.constant dense<0.000000e+00> : vector<48x32xf32>
    %290 = tpu.matmul %287, %289, %cst_151 {dimension_numbers = #tpu.dot_dimension_numbers<[1], [0], [0], [1], [0, 0, 1, 1], [], []>} : vector<48x32xf32>, vector<32x32xf32>, vector<48x32xf32> -> vector<48x32xf32>
    %c1_152 = arith.constant 1 : index
    %c0_153 = arith.constant 0 : index
    %c0_154 = arith.constant 0 : index
    %291 = vector.load %arg13[%c1_152, %c0_153, %c0_154] : memref<4x1x32xf32, #tpu.memory_space<vmem>>, vector<1x1x32xf32>
    %292 = vector.shape_cast %291 : vector<1x1x32xf32> to vector<1x32xf32>
    %293 = vector.broadcast %292 : vector<1x32xf32> to vector<48x32xf32>
    %294 = arith.addf %290, %293 : vector<48x32xf32>
    %295 = arith.addf %188, %294 : vector<48x32xf32>
    %c1_155 = arith.constant 1 : index
    %c0_156 = arith.constant 0 : index
    %c0_157 = arith.constant 0 : index
    %296 = vector.load %arg14[%c1_155, %c0_156, %c0_157] : memref<4x1x32xf32, #tpu.memory_space<vmem>>, vector<1x1x32xf32>
    %297 = vector.shape_cast %296 : vector<1x1x32xf32> to vector<1x32xf32>
    %c1_158 = arith.constant 1 : index
    %c0_159 = arith.constant 0 : index
    %c0_160 = arith.constant 0 : index
    %298 = vector.load %arg15[%c1_158, %c0_159, %c0_160] : memref<4x1x32xf32, #tpu.memory_space<vmem>>, vector<1x1x32xf32>
    %299 = vector.shape_cast %298 : vector<1x1x32xf32> to vector<1x32xf32>
    %cst_161 = arith.constant dense<0.000000e+00> : vector<48xf32>
    %300 = vector.multi_reduction <add>, %295, %cst_161 [1] : vector<48x32xf32> to vector<48xf32>
    %301 = vector.shape_cast %300 : vector<48xf32> to vector<48x1xf32>
    %cst_162 = arith.constant 3.200000e+01 : f32
    %302 = vector.broadcast %cst_162 : f32 to vector<48x1xf32>
    %303 = arith.divf %301, %302 : vector<48x1xf32>
    %304 = vector.broadcast %303 : vector<48x1xf32> to vector<48x32xf32>
    %305 = arith.subf %295, %304 : vector<48x32xf32>
    %306 = arith.mulf %305, %305 : vector<48x32xf32>
    %cst_163 = arith.constant dense<0.000000e+00> : vector<48xf32>
    %307 = vector.multi_reduction <add>, %306, %cst_163 [1] : vector<48x32xf32> to vector<48xf32>
    %308 = vector.shape_cast %307 : vector<48xf32> to vector<48x1xf32>
    %cst_164 = arith.constant 3.200000e+01 : f32
    %309 = vector.broadcast %cst_164 : f32 to vector<48x1xf32>
    %310 = arith.divf %308, %309 : vector<48x1xf32>
    %311 = vector.broadcast %303 : vector<48x1xf32> to vector<48x32xf32>
    %312 = arith.subf %295, %311 : vector<48x32xf32>
    %cst_165 = arith.constant 9.99999996E-13 : f32
    %313 = vector.broadcast %cst_165 : f32 to vector<48x1xf32>
    %314 = arith.addf %310, %313 : vector<48x1xf32>
    %315 = math.rsqrt %314 : vector<48x1xf32>
    %316 = vector.broadcast %315 : vector<48x1xf32> to vector<48x32xf32>
    %317 = arith.mulf %312, %316 : vector<48x32xf32>
    %318 = vector.broadcast %297 : vector<1x32xf32> to vector<48x32xf32>
    %319 = arith.mulf %317, %318 : vector<48x32xf32>
    %320 = vector.broadcast %299 : vector<1x32xf32> to vector<48x32xf32>
    %321 = arith.addf %319, %320 : vector<48x32xf32>
    %c1_166 = arith.constant 1 : index
    %c0_167 = arith.constant 0 : index
    %c0_168 = arith.constant 0 : index
    %322 = vector.load %arg16[%c1_166, %c0_167, %c0_168] : memref<4x32x64xf32, #tpu.memory_space<vmem>>, vector<1x32x64xf32>
    %323 = vector.shape_cast %322 : vector<1x32x64xf32> to vector<32x64xf32>
    %cst_169 = arith.constant dense<0.000000e+00> : vector<48x64xf32>
    %324 = tpu.matmul %321, %323, %cst_169 {dimension_numbers = #tpu.dot_dimension_numbers<[1], [0], [0], [1], [0, 0, 1, 1], [], []>} : vector<48x32xf32>, vector<32x64xf32>, vector<48x64xf32> -> vector<48x64xf32>
    %c1_170 = arith.constant 1 : index
    %c0_171 = arith.constant 0 : index
    %c0_172 = arith.constant 0 : index
    %325 = vector.load %arg17[%c1_170, %c0_171, %c0_172] : memref<4x1x64xf32, #tpu.memory_space<vmem>>, vector<1x1x64xf32>
    %326 = vector.shape_cast %325 : vector<1x1x64xf32> to vector<1x64xf32>
    %327 = vector.broadcast %326 : vector<1x64xf32> to vector<48x64xf32>
    %328 = arith.addf %324, %327 : vector<48x64xf32>
    %329 = arith.mulf %328, %328 : vector<48x64xf32>
    %330 = arith.mulf %328, %329 : vector<48x64xf32>
    %cst_173 = arith.constant 4.471500e-02 : f32
    %331 = vector.broadcast %cst_173 : f32 to vector<48x64xf32>
    %332 = arith.mulf %331, %330 : vector<48x64xf32>
    %333 = arith.addf %328, %332 : vector<48x64xf32>
    %cst_174 = arith.constant 0.797884583 : f32
    %334 = vector.broadcast %cst_174 : f32 to vector<48x64xf32>
    %335 = arith.mulf %334, %333 : vector<48x64xf32>
    %336 = math.tanh %335 : vector<48x64xf32>
    %cst_175 = arith.constant 1.000000e+00 : f32
    %337 = vector.broadcast %cst_175 : f32 to vector<48x64xf32>
    %338 = arith.addf %337, %336 : vector<48x64xf32>
    %cst_176 = arith.constant 5.000000e-01 : f32
    %339 = vector.broadcast %cst_176 : f32 to vector<48x64xf32>
    %340 = arith.mulf %339, %338 : vector<48x64xf32>
    %341 = arith.mulf %328, %340 : vector<48x64xf32>
    %c1_177 = arith.constant 1 : index
    %c0_178 = arith.constant 0 : index
    %c0_179 = arith.constant 0 : index
    %342 = vector.load %arg18[%c1_177, %c0_178, %c0_179] : memref<4x64x32xf32, #tpu.memory_space<vmem>>, vector<1x64x32xf32>
    %343 = vector.shape_cast %342 : vector<1x64x32xf32> to vector<64x32xf32>
    %cst_180 = arith.constant dense<0.000000e+00> : vector<48x32xf32>
    %344 = tpu.matmul %341, %343, %cst_180 {dimension_numbers = #tpu.dot_dimension_numbers<[1], [0], [0], [1], [0, 0, 1, 1], [], []>} : vector<48x64xf32>, vector<64x32xf32>, vector<48x32xf32> -> vector<48x32xf32>
    %c1_181 = arith.constant 1 : index
    %c0_182 = arith.constant 0 : index
    %c0_183 = arith.constant 0 : index
    %345 = vector.load %arg19[%c1_181, %c0_182, %c0_183] : memref<4x1x32xf32, #tpu.memory_space<vmem>>, vector<1x1x32xf32>
    %346 = vector.shape_cast %345 : vector<1x1x32xf32> to vector<1x32xf32>
    %347 = vector.broadcast %346 : vector<1x32xf32> to vector<48x32xf32>
    %348 = arith.addf %344, %347 : vector<48x32xf32>
    %349 = arith.addf %321, %348 : vector<48x32xf32>
    %c1_184 = arith.constant 1 : index
    %c0_185 = arith.constant 0 : index
    %c0_186 = arith.constant 0 : index
    %350 = vector.load %arg20[%c1_184, %c0_185, %c0_186] : memref<4x1x32xf32, #tpu.memory_space<vmem>>, vector<1x1x32xf32>
    %351 = vector.shape_cast %350 : vector<1x1x32xf32> to vector<1x32xf32>
    %c1_187 = arith.constant 1 : index
    %c0_188 = arith.constant 0 : index
    %c0_189 = arith.constant 0 : index
    %352 = vector.load %arg21[%c1_187, %c0_188, %c0_189] : memref<4x1x32xf32, #tpu.memory_space<vmem>>, vector<1x1x32xf32>
    %353 = vector.shape_cast %352 : vector<1x1x32xf32> to vector<1x32xf32>
    %cst_190 = arith.constant dense<0.000000e+00> : vector<48xf32>
    %354 = vector.multi_reduction <add>, %349, %cst_190 [1] : vector<48x32xf32> to vector<48xf32>
    %355 = vector.shape_cast %354 : vector<48xf32> to vector<48x1xf32>
    %cst_191 = arith.constant 3.200000e+01 : f32
    %356 = vector.broadcast %cst_191 : f32 to vector<48x1xf32>
    %357 = arith.divf %355, %356 : vector<48x1xf32>
    %358 = vector.broadcast %357 : vector<48x1xf32> to vector<48x32xf32>
    %359 = arith.subf %349, %358 : vector<48x32xf32>
    %360 = arith.mulf %359, %359 : vector<48x32xf32>
    %cst_192 = arith.constant dense<0.000000e+00> : vector<48xf32>
    %361 = vector.multi_reduction <add>, %360, %cst_192 [1] : vector<48x32xf32> to vector<48xf32>
    %362 = vector.shape_cast %361 : vector<48xf32> to vector<48x1xf32>
    %cst_193 = arith.constant 3.200000e+01 : f32
    %363 = vector.broadcast %cst_193 : f32 to vector<48x1xf32>
    %364 = arith.divf %362, %363 : vector<48x1xf32>
    %365 = vector.broadcast %357 : vector<48x1xf32> to vector<48x32xf32>
    %366 = arith.subf %349, %365 : vector<48x32xf32>
    %cst_194 = arith.constant 9.99999996E-13 : f32
    %367 = vector.broadcast %cst_194 : f32 to vector<48x1xf32>
    %368 = arith.addf %364, %367 : vector<48x1xf32>
    %369 = math.rsqrt %368 : vector<48x1xf32>
    %370 = vector.broadcast %369 : vector<48x1xf32> to vector<48x32xf32>
    %371 = arith.mulf %366, %370 : vector<48x32xf32>
    %372 = vector.broadcast %351 : vector<1x32xf32> to vector<48x32xf32>
    %373 = arith.mulf %371, %372 : vector<48x32xf32>
    %374 = vector.broadcast %353 : vector<1x32xf32> to vector<48x32xf32>
    %375 = arith.addf %373, %374 : vector<48x32xf32>
    %376 = arith.addf %189, %375 : vector<48x32xf32>
    %c2 = arith.constant 2 : index
    %c0_195 = arith.constant 0 : index
    %c0_196 = arith.constant 0 : index
    %377 = vector.load %arg6[%c2, %c0_195, %c0_196] : memref<4x32x32xf32, #tpu.memory_space<vmem>>, vector<1x32x32xf32>
    %378 = vector.shape_cast %377 : vector<1x32x32xf32> to vector<32x32xf32>
    %cst_197 = arith.constant dense<0.000000e+00> : vector<48x32xf32>
    %379 = tpu.matmul %375, %378, %cst_197 {dimension_numbers = #tpu.dot_dimension_numbers<[1], [0], [0], [1], [0, 0, 1, 1], [], []>} : vector<48x32xf32>, vector<32x32xf32>, vector<48x32xf32> -> vector<48x32xf32>
    %c2_198 = arith.constant 2 : index
    %c0_199 = arith.constant 0 : index
    %c0_200 = arith.constant 0 : index
    %380 = vector.load %arg7[%c2_198, %c0_199, %c0_200] : memref<4x1x32xf32, #tpu.memory_space<vmem>>, vector<1x1x32xf32>
    %381 = vector.shape_cast %380 : vector<1x1x32xf32> to vector<1x32xf32>
    %382 = vector.broadcast %381 : vector<1x32xf32> to vector<48x32xf32>
    %383 = arith.addf %379, %382 : vector<48x32xf32>
    %c2_201 = arith.constant 2 : index
    %c0_202 = arith.constant 0 : index
    %c0_203 = arith.constant 0 : index
    %384 = vector.load %arg8[%c2_201, %c0_202, %c0_203] : memref<4x32x32xf32, #tpu.memory_space<vmem>>, vector<1x32x32xf32>
    %385 = vector.shape_cast %384 : vector<1x32x32xf32> to vector<32x32xf32>
    %cst_204 = arith.constant dense<0.000000e+00> : vector<48x32xf32>
    %386 = tpu.matmul %375, %385, %cst_204 {dimension_numbers = #tpu.dot_dimension_numbers<[1], [0], [0], [1], [0, 0, 1, 1], [], []>} : vector<48x32xf32>, vector<32x32xf32>, vector<48x32xf32> -> vector<48x32xf32>
    %c2_205 = arith.constant 2 : index
    %c0_206 = arith.constant 0 : index
    %c0_207 = arith.constant 0 : index
    %387 = vector.load %arg9[%c2_205, %c0_206, %c0_207] : memref<4x1x32xf32, #tpu.memory_space<vmem>>, vector<1x1x32xf32>
    %388 = vector.shape_cast %387 : vector<1x1x32xf32> to vector<1x32xf32>
    %389 = vector.broadcast %388 : vector<1x32xf32> to vector<48x32xf32>
    %390 = arith.addf %386, %389 : vector<48x32xf32>
    %c2_208 = arith.constant 2 : index
    %c0_209 = arith.constant 0 : index
    %c0_210 = arith.constant 0 : index
    %391 = vector.load %arg10[%c2_208, %c0_209, %c0_210] : memref<4x32x32xf32, #tpu.memory_space<vmem>>, vector<1x32x32xf32>
    %392 = vector.shape_cast %391 : vector<1x32x32xf32> to vector<32x32xf32>
    %cst_211 = arith.constant dense<0.000000e+00> : vector<48x32xf32>
    %393 = tpu.matmul %375, %392, %cst_211 {dimension_numbers = #tpu.dot_dimension_numbers<[1], [0], [0], [1], [0, 0, 1, 1], [], []>} : vector<48x32xf32>, vector<32x32xf32>, vector<48x32xf32> -> vector<48x32xf32>
    %c2_212 = arith.constant 2 : index
    %c0_213 = arith.constant 0 : index
    %c0_214 = arith.constant 0 : index
    %394 = vector.load %arg11[%c2_212, %c0_213, %c0_214] : memref<4x1x32xf32, #tpu.memory_space<vmem>>, vector<1x1x32xf32>
    %395 = vector.shape_cast %394 : vector<1x1x32xf32> to vector<1x32xf32>
    %396 = vector.broadcast %395 : vector<1x32xf32> to vector<48x32xf32>
    %397 = arith.addf %393, %396 : vector<48x32xf32>
    %398 = vector.extract_strided_slice %383 {offsets = [0, 0], sizes = [48, 8], strides = [1, 1]} : vector<48x32xf32> to vector<48x8xf32>
    %399 = vector.extract_strided_slice %390 {offsets = [0, 0], sizes = [48, 8], strides = [1, 1]} : vector<48x32xf32> to vector<48x8xf32>
    %400 = vector.extract_strided_slice %397 {offsets = [0, 0], sizes = [48, 8], strides = [1, 1]} : vector<48x32xf32> to vector<48x8xf32>
    "tpu.trace_start"() <{level = 10 : i32, message = "qd,kd->qk"}> : () -> ()
    %cst_215 = arith.constant dense<0.000000e+00> : vector<48x48xf32>
    %401 = tpu.matmul %398, %399, %cst_215 {dimension_numbers = #tpu.dot_dimension_numbers<[1], [1], [0], [0], [0, 0, 1, 0], [], []>} : vector<48x8xf32>, vector<48x8xf32>, vector<48x48xf32> -> vector<48x48xf32>
    "tpu.trace_stop"() : () -> ()
    %cst_216 = arith.constant 0.353553385 : f32
    %402 = vector.broadcast %cst_216 : f32 to vector<48x48xf32>
    %403 = arith.mulf %401, %402 : vector<48x48xf32>
    %404 = arith.addf %403, %1 : vector<48x48xf32>
    %cst_217 = arith.constant dense<0xFF800000> : vector<48xf32>
    %405 = vector.multi_reduction <maximumf>, %404, %cst_217 [1] : vector<48x48xf32> to vector<48xf32>
    %406 = vector.shape_cast %405 : vector<48xf32> to vector<48x1xf32>
    %407 = vector.broadcast %406 : vector<48x1xf32> to vector<48x48xf32>
    %408 = arith.subf %404, %407 : vector<48x48xf32>
    %409 = math.exp %408 : vector<48x48xf32>
    %cst_218 = arith.constant dense<0.000000e+00> : vector<48xf32>
    %410 = vector.multi_reduction <add>, %409, %cst_218 [1] : vector<48x48xf32> to vector<48xf32>
    %411 = vector.shape_cast %410 : vector<48xf32> to vector<48x1xf32>
    %412 = tpu.reciprocal %411 {approx = true} : vector<48x1xf32> -> vector<48x1xf32>
    %413 = vector.broadcast %412 : vector<48x1xf32> to vector<48x48xf32>
    %414 = arith.mulf %409, %413 : vector<48x48xf32>
    %cst_219 = arith.constant dense<0.000000e+00> : vector<48x8xf32>
    %415 = tpu.matmul %414, %400, %cst_219 {dimension_numbers = #tpu.dot_dimension_numbers<[1], [0], [0], [1], [0, 0, 1, 1], [], []>} : vector<48x48xf32>, vector<48x8xf32>, vector<48x8xf32> -> vector<48x8xf32>
    %c0_220 = arith.constant 0 : index
    %c0_221 = arith.constant 0 : index
    %416 = vector.load %arg33[%c0_220, %c0_221] : memref<48x32xf32, #tpu.memory_space<vmem>>, vector<48x8xf32>
    tpu.vector_store %arg33[%c0_220, %c0_221], %415 {strides = array<i32>} : memref<48x32xf32, #tpu.memory_space<vmem>>, vector<48x8xf32>,
    %417 = vector.extract_strided_slice %383 {offsets = [0, 8], sizes = [48, 8], strides = [1, 1]} : vector<48x32xf32> to vector<48x8xf32>
    %418 = vector.extract_strided_slice %390 {offsets = [0, 8], sizes = [48, 8], strides = [1, 1]} : vector<48x32xf32> to vector<48x8xf32>
    %419 = vector.extract_strided_slice %397 {offsets = [0, 8], sizes = [48, 8], strides = [1, 1]} : vector<48x32xf32> to vector<48x8xf32>
    "tpu.trace_start"() <{level = 10 : i32, message = "qd,kd->qk"}> : () -> ()
    %cst_222 = arith.constant dense<0.000000e+00> : vector<48x48xf32>
    %420 = tpu.matmul %417, %418, %cst_222 {dimension_numbers = #tpu.dot_dimension_numbers<[1], [1], [0], [0], [0, 0, 1, 0], [], []>} : vector<48x8xf32>, vector<48x8xf32>, vector<48x48xf32> -> vector<48x48xf32>
    "tpu.trace_stop"() : () -> ()
    %cst_223 = arith.constant 0.353553385 : f32
    %421 = vector.broadcast %cst_223 : f32 to vector<48x48xf32>
    %422 = arith.mulf %420, %421 : vector<48x48xf32>
    %423 = arith.addf %422, %1 : vector<48x48xf32>
    %cst_224 = arith.constant dense<0xFF800000> : vector<48xf32>
    %424 = vector.multi_reduction <maximumf>, %423, %cst_224 [1] : vector<48x48xf32> to vector<48xf32>
    %425 = vector.shape_cast %424 : vector<48xf32> to vector<48x1xf32>
    %426 = vector.broadcast %425 : vector<48x1xf32> to vector<48x48xf32>
    %427 = arith.subf %423, %426 : vector<48x48xf32>
    %428 = math.exp %427 : vector<48x48xf32>
    %cst_225 = arith.constant dense<0.000000e+00> : vector<48xf32>
    %429 = vector.multi_reduction <add>, %428, %cst_225 [1] : vector<48x48xf32> to vector<48xf32>
    %430 = vector.shape_cast %429 : vector<48xf32> to vector<48x1xf32>
    %431 = tpu.reciprocal %430 {approx = true} : vector<48x1xf32> -> vector<48x1xf32>
    %432 = vector.broadcast %431 : vector<48x1xf32> to vector<48x48xf32>
    %433 = arith.mulf %428, %432 : vector<48x48xf32>
    %cst_226 = arith.constant dense<0.000000e+00> : vector<48x8xf32>
    %434 = tpu.matmul %433, %419, %cst_226 {dimension_numbers = #tpu.dot_dimension_numbers<[1], [0], [0], [1], [0, 0, 1, 1], [], []>} : vector<48x48xf32>, vector<48x8xf32>, vector<48x8xf32> -> vector<48x8xf32>
    %c0_227 = arith.constant 0 : index
    %c8_228 = arith.constant 8 : index
    %435 = vector.load %arg33[%c0_227, %c8_228] : memref<48x32xf32, #tpu.memory_space<vmem>>, vector<48x8xf32>
    tpu.vector_store %arg33[%c0_227, %c8_228], %434 {strides = array<i32>} : memref<48x32xf32, #tpu.memory_space<vmem>>, vector<48x8xf32>,
    %436 = vector.extract_strided_slice %383 {offsets = [0, 16], sizes = [48, 8], strides = [1, 1]} : vector<48x32xf32> to vector<48x8xf32>
    %437 = vector.extract_strided_slice %390 {offsets = [0, 16], sizes = [48, 8], strides = [1, 1]} : vector<48x32xf32> to vector<48x8xf32>
    %438 = vector.extract_strided_slice %397 {offsets = [0, 16], sizes = [48, 8], strides = [1, 1]} : vector<48x32xf32> to vector<48x8xf32>
    "tpu.trace_start"() <{level = 10 : i32, message = "qd,kd->qk"}> : () -> ()
    %cst_229 = arith.constant dense<0.000000e+00> : vector<48x48xf32>
    %439 = tpu.matmul %436, %437, %cst_229 {dimension_numbers = #tpu.dot_dimension_numbers<[1], [1], [0], [0], [0, 0, 1, 0], [], []>} : vector<48x8xf32>, vector<48x8xf32>, vector<48x48xf32> -> vector<48x48xf32>
    "tpu.trace_stop"() : () -> ()
    %cst_230 = arith.constant 0.353553385 : f32
    %440 = vector.broadcast %cst_230 : f32 to vector<48x48xf32>
    %441 = arith.mulf %439, %440 : vector<48x48xf32>
    %442 = arith.addf %441, %1 : vector<48x48xf32>
    %cst_231 = arith.constant dense<0xFF800000> : vector<48xf32>
    %443 = vector.multi_reduction <maximumf>, %442, %cst_231 [1] : vector<48x48xf32> to vector<48xf32>
    %444 = vector.shape_cast %443 : vector<48xf32> to vector<48x1xf32>
    %445 = vector.broadcast %444 : vector<48x1xf32> to vector<48x48xf32>
    %446 = arith.subf %442, %445 : vector<48x48xf32>
    %447 = math.exp %446 : vector<48x48xf32>
    %cst_232 = arith.constant dense<0.000000e+00> : vector<48xf32>
    %448 = vector.multi_reduction <add>, %447, %cst_232 [1] : vector<48x48xf32> to vector<48xf32>
    %449 = vector.shape_cast %448 : vector<48xf32> to vector<48x1xf32>
    %450 = tpu.reciprocal %449 {approx = true} : vector<48x1xf32> -> vector<48x1xf32>
    %451 = vector.broadcast %450 : vector<48x1xf32> to vector<48x48xf32>
    %452 = arith.mulf %447, %451 : vector<48x48xf32>
    %cst_233 = arith.constant dense<0.000000e+00> : vector<48x8xf32>
    %453 = tpu.matmul %452, %438, %cst_233 {dimension_numbers = #tpu.dot_dimension_numbers<[1], [0], [0], [1], [0, 0, 1, 1], [], []>} : vector<48x48xf32>, vector<48x8xf32>, vector<48x8xf32> -> vector<48x8xf32>
    %c0_234 = arith.constant 0 : index
    %c16_235 = arith.constant 16 : index
    %454 = vector.load %arg33[%c0_234, %c16_235] : memref<48x32xf32, #tpu.memory_space<vmem>>, vector<48x8xf32>
    tpu.vector_store %arg33[%c0_234, %c16_235], %453 {strides = array<i32>} : memref<48x32xf32, #tpu.memory_space<vmem>>, vector<48x8xf32>,
    %455 = vector.extract_strided_slice %383 {offsets = [0, 24], sizes = [48, 8], strides = [1, 1]} : vector<48x32xf32> to vector<48x8xf32>
    %456 = vector.extract_strided_slice %390 {offsets = [0, 24], sizes = [48, 8], strides = [1, 1]} : vector<48x32xf32> to vector<48x8xf32>
    %457 = vector.extract_strided_slice %397 {offsets = [0, 24], sizes = [48, 8], strides = [1, 1]} : vector<48x32xf32> to vector<48x8xf32>
    "tpu.trace_start"() <{level = 10 : i32, message = "qd,kd->qk"}> : () -> ()
    %cst_236 = arith.constant dense<0.000000e+00> : vector<48x48xf32>
    %458 = tpu.matmul %455, %456, %cst_236 {dimension_numbers = #tpu.dot_dimension_numbers<[1], [1], [0], [0], [0, 0, 1, 0], [], []>} : vector<48x8xf32>, vector<48x8xf32>, vector<48x48xf32> -> vector<48x48xf32>
    "tpu.trace_stop"() : () -> ()
    %cst_237 = arith.constant 0.353553385 : f32
    %459 = vector.broadcast %cst_237 : f32 to vector<48x48xf32>
    %460 = arith.mulf %458, %459 : vector<48x48xf32>
    %461 = arith.addf %460, %1 : vector<48x48xf32>
    %cst_238 = arith.constant dense<0xFF800000> : vector<48xf32>
    %462 = vector.multi_reduction <maximumf>, %461, %cst_238 [1] : vector<48x48xf32> to vector<48xf32>
    %463 = vector.shape_cast %462 : vector<48xf32> to vector<48x1xf32>
    %464 = vector.broadcast %463 : vector<48x1xf32> to vector<48x48xf32>
    %465 = arith.subf %461, %464 : vector<48x48xf32>
    %466 = math.exp %465 : vector<48x48xf32>
    %cst_239 = arith.constant dense<0.000000e+00> : vector<48xf32>
    %467 = vector.multi_reduction <add>, %466, %cst_239 [1] : vector<48x48xf32> to vector<48xf32>
    %468 = vector.shape_cast %467 : vector<48xf32> to vector<48x1xf32>
    %469 = tpu.reciprocal %468 {approx = true} : vector<48x1xf32> -> vector<48x1xf32>
    %470 = vector.broadcast %469 : vector<48x1xf32> to vector<48x48xf32>
    %471 = arith.mulf %466, %470 : vector<48x48xf32>
    %cst_240 = arith.constant dense<0.000000e+00> : vector<48x8xf32>
    %472 = tpu.matmul %471, %457, %cst_240 {dimension_numbers = #tpu.dot_dimension_numbers<[1], [0], [0], [1], [0, 0, 1, 1], [], []>} : vector<48x48xf32>, vector<48x8xf32>, vector<48x8xf32> -> vector<48x8xf32>
    %c0_241 = arith.constant 0 : index
    %c24_242 = arith.constant 24 : index
    %473 = vector.load %arg33[%c0_241, %c24_242] : memref<48x32xf32, #tpu.memory_space<vmem>>, vector<48x8xf32>
    tpu.vector_store %arg33[%c0_241, %c24_242], %472 {strides = array<i32>} : memref<48x32xf32, #tpu.memory_space<vmem>>, vector<48x8xf32>,
    %c0_243 = arith.constant 0 : index
    %c0_244 = arith.constant 0 : index
    %474 = vector.load %arg33[%c0_243, %c0_244] : memref<48x32xf32, #tpu.memory_space<vmem>>, vector<48x32xf32>
    %c2_245 = arith.constant 2 : index
    %c0_246 = arith.constant 0 : index
    %c0_247 = arith.constant 0 : index
    %475 = vector.load %arg12[%c2_245, %c0_246, %c0_247] : memref<4x32x32xf32, #tpu.memory_space<vmem>>, vector<1x32x32xf32>
    %476 = vector.shape_cast %475 : vector<1x32x32xf32> to vector<32x32xf32>
    %cst_248 = arith.constant dense<0.000000e+00> : vector<48x32xf32>
    %477 = tpu.matmul %474, %476, %cst_248 {dimension_numbers = #tpu.dot_dimension_numbers<[1], [0], [0], [1], [0, 0, 1, 1], [], []>} : vector<48x32xf32>, vector<32x32xf32>, vector<48x32xf32> -> vector<48x32xf32>
    %c2_249 = arith.constant 2 : index
    %c0_250 = arith.constant 0 : index
    %c0_251 = arith.constant 0 : index
    %478 = vector.load %arg13[%c2_249, %c0_250, %c0_251] : memref<4x1x32xf32, #tpu.memory_space<vmem>>, vector<1x1x32xf32>
    %479 = vector.shape_cast %478 : vector<1x1x32xf32> to vector<1x32xf32>
    %480 = vector.broadcast %479 : vector<1x32xf32> to vector<48x32xf32>
    %481 = arith.addf %477, %480 : vector<48x32xf32>
    %482 = arith.addf %375, %481 : vector<48x32xf32>
    %c2_252 = arith.constant 2 : index
    %c0_253 = arith.constant 0 : index
    %c0_254 = arith.constant 0 : index
    %483 = vector.load %arg14[%c2_252, %c0_253, %c0_254] : memref<4x1x32xf32, #tpu.memory_space<vmem>>, vector<1x1x32xf32>
    %484 = vector.shape_cast %483 : vector<1x1x32xf32> to vector<1x32xf32>
    %c2_255 = arith.constant 2 : index
    %c0_256 = arith.constant 0 : index
    %c0_257 = arith.constant 0 : index
    %485 = vector.load %arg15[%c2_255, %c0_256, %c0_257] : memref<4x1x32xf32, #tpu.memory_space<vmem>>, vector<1x1x32xf32>
    %486 = vector.shape_cast %485 : vector<1x1x32xf32> to vector<1x32xf32>
    %cst_258 = arith.constant dense<0.000000e+00> : vector<48xf32>
    %487 = vector.multi_reduction <add>, %482, %cst_258 [1] : vector<48x32xf32> to vector<48xf32>
    %488 = vector.shape_cast %487 : vector<48xf32> to vector<48x1xf32>
    %cst_259 = arith.constant 3.200000e+01 : f32
    %489 = vector.broadcast %cst_259 : f32 to vector<48x1xf32>
    %490 = arith.divf %488, %489 : vector<48x1xf32>
    %491 = vector.broadcast %490 : vector<48x1xf32> to vector<48x32xf32>
    %492 = arith.subf %482, %491 : vector<48x32xf32>
    %493 = arith.mulf %492, %492 : vector<48x32xf32>
    %cst_260 = arith.constant dense<0.000000e+00> : vector<48xf32>
    %494 = vector.multi_reduction <add>, %493, %cst_260 [1] : vector<48x32xf32> to vector<48xf32>
    %495 = vector.shape_cast %494 : vector<48xf32> to vector<48x1xf32>
    %cst_261 = arith.constant 3.200000e+01 : f32
    %496 = vector.broadcast %cst_261 : f32 to vector<48x1xf32>
    %497 = arith.divf %495, %496 : vector<48x1xf32>
    %498 = vector.broadcast %490 : vector<48x1xf32> to vector<48x32xf32>
    %499 = arith.subf %482, %498 : vector<48x32xf32>
    %cst_262 = arith.constant 9.99999996E-13 : f32
    %500 = vector.broadcast %cst_262 : f32 to vector<48x1xf32>
    %501 = arith.addf %497, %500 : vector<48x1xf32>
    %502 = math.rsqrt %501 : vector<48x1xf32>
    %503 = vector.broadcast %502 : vector<48x1xf32> to vector<48x32xf32>
    %504 = arith.mulf %499, %503 : vector<48x32xf32>
    %505 = vector.broadcast %484 : vector<1x32xf32> to vector<48x32xf32>
    %506 = arith.mulf %504, %505 : vector<48x32xf32>
    %507 = vector.broadcast %486 : vector<1x32xf32> to vector<48x32xf32>
    %508 = arith.addf %506, %507 : vector<48x32xf32>
    %c2_263 = arith.constant 2 : index
    %c0_264 = arith.constant 0 : index
    %c0_265 = arith.constant 0 : index
    %509 = vector.load %arg16[%c2_263, %c0_264, %c0_265] : memref<4x32x64xf32, #tpu.memory_space<vmem>>, vector<1x32x64xf32>
    %510 = vector.shape_cast %509 : vector<1x32x64xf32> to vector<32x64xf32>
    %cst_266 = arith.constant dense<0.000000e+00> : vector<48x64xf32>
    %511 = tpu.matmul %508, %510, %cst_266 {dimension_numbers = #tpu.dot_dimension_numbers<[1], [0], [0], [1], [0, 0, 1, 1], [], []>} : vector<48x32xf32>, vector<32x64xf32>, vector<48x64xf32> -> vector<48x64xf32>
    %c2_267 = arith.constant 2 : index
    %c0_268 = arith.constant 0 : index
    %c0_269 = arith.constant 0 : index
    %512 = vector.load %arg17[%c2_267, %c0_268, %c0_269] : memref<4x1x64xf32, #tpu.memory_space<vmem>>, vector<1x1x64xf32>
    %513 = vector.shape_cast %512 : vector<1x1x64xf32> to vector<1x64xf32>
    %514 = vector.broadcast %513 : vector<1x64xf32> to vector<48x64xf32>
    %515 = arith.addf %511, %514 : vector<48x64xf32>
    %516 = arith.mulf %515, %515 : vector<48x64xf32>
    %517 = arith.mulf %515, %516 : vector<48x64xf32>
    %cst_270 = arith.constant 4.471500e-02 : f32
    %518 = vector.broadcast %cst_270 : f32 to vector<48x64xf32>
    %519 = arith.mulf %518, %517 : vector<48x64xf32>
    %520 = arith.addf %515, %519 : vector<48x64xf32>
    %cst_271 = arith.constant 0.797884583 : f32
    %521 = vector.broadcast %cst_271 : f32 to vector<48x64xf32>
    %522 = arith.mulf %521, %520 : vector<48x64xf32>
    %523 = math.tanh %522 : vector<48x64xf32>
    %cst_272 = arith.constant 1.000000e+00 : f32
    %524 = vector.broadcast %cst_272 : f32 to vector<48x64xf32>
    %525 = arith.addf %524, %523 : vector<48x64xf32>
    %cst_273 = arith.constant 5.000000e-01 : f32
    %526 = vector.broadcast %cst_273 : f32 to vector<48x64xf32>
    %527 = arith.mulf %526, %525 : vector<48x64xf32>
    %528 = arith.mulf %515, %527 : vector<48x64xf32>
    %c2_274 = arith.constant 2 : index
    %c0_275 = arith.constant 0 : index
    %c0_276 = arith.constant 0 : index
    %529 = vector.load %arg18[%c2_274, %c0_275, %c0_276] : memref<4x64x32xf32, #tpu.memory_space<vmem>>, vector<1x64x32xf32>
    %530 = vector.shape_cast %529 : vector<1x64x32xf32> to vector<64x32xf32>
    %cst_277 = arith.constant dense<0.000000e+00> : vector<48x32xf32>
    %531 = tpu.matmul %528, %530, %cst_277 {dimension_numbers = #tpu.dot_dimension_numbers<[1], [0], [0], [1], [0, 0, 1, 1], [], []>} : vector<48x64xf32>, vector<64x32xf32>, vector<48x32xf32> -> vector<48x32xf32>
    %c2_278 = arith.constant 2 : index
    %c0_279 = arith.constant 0 : index
    %c0_280 = arith.constant 0 : index
    %532 = vector.load %arg19[%c2_278, %c0_279, %c0_280] : memref<4x1x32xf32, #tpu.memory_space<vmem>>, vector<1x1x32xf32>
    %533 = vector.shape_cast %532 : vector<1x1x32xf32> to vector<1x32xf32>
    %534 = vector.broadcast %533 : vector<1x32xf32> to vector<48x32xf32>
    %535 = arith.addf %531, %534 : vector<48x32xf32>
    %536 = arith.addf %508, %535 : vector<48x32xf32>
    %c2_281 = arith.constant 2 : index
    %c0_282 = arith.constant 0 : index
    %c0_283 = arith.constant 0 : index
    %537 = vector.load %arg20[%c2_281, %c0_282, %c0_283] : memref<4x1x32xf32, #tpu.memory_space<vmem>>, vector<1x1x32xf32>
    %538 = vector.shape_cast %537 : vector<1x1x32xf32> to vector<1x32xf32>
    %c2_284 = arith.constant 2 : index
    %c0_285 = arith.constant 0 : index
    %c0_286 = arith.constant 0 : index
    %539 = vector.load %arg21[%c2_284, %c0_285, %c0_286] : memref<4x1x32xf32, #tpu.memory_space<vmem>>, vector<1x1x32xf32>
    %540 = vector.shape_cast %539 : vector<1x1x32xf32> to vector<1x32xf32>
    %cst_287 = arith.constant dense<0.000000e+00> : vector<48xf32>
    %541 = vector.multi_reduction <add>, %536, %cst_287 [1] : vector<48x32xf32> to vector<48xf32>
    %542 = vector.shape_cast %541 : vector<48xf32> to vector<48x1xf32>
    %cst_288 = arith.constant 3.200000e+01 : f32
    %543 = vector.broadcast %cst_288 : f32 to vector<48x1xf32>
    %544 = arith.divf %542, %543 : vector<48x1xf32>
    %545 = vector.broadcast %544 : vector<48x1xf32> to vector<48x32xf32>
    %546 = arith.subf %536, %545 : vector<48x32xf32>
    %547 = arith.mulf %546, %546 : vector<48x32xf32>
    %cst_289 = arith.constant dense<0.000000e+00> : vector<48xf32>
    %548 = vector.multi_reduction <add>, %547, %cst_289 [1] : vector<48x32xf32> to vector<48xf32>
    %549 = vector.shape_cast %548 : vector<48xf32> to vector<48x1xf32>
    %cst_290 = arith.constant 3.200000e+01 : f32
    %550 = vector.broadcast %cst_290 : f32 to vector<48x1xf32>
    %551 = arith.divf %549, %550 : vector<48x1xf32>
    %552 = vector.broadcast %544 : vector<48x1xf32> to vector<48x32xf32>
    %553 = arith.subf %536, %552 : vector<48x32xf32>
    %cst_291 = arith.constant 9.99999996E-13 : f32
    %554 = vector.broadcast %cst_291 : f32 to vector<48x1xf32>
    %555 = arith.addf %551, %554 : vector<48x1xf32>
    %556 = math.rsqrt %555 : vector<48x1xf32>
    %557 = vector.broadcast %556 : vector<48x1xf32> to vector<48x32xf32>
    %558 = arith.mulf %553, %557 : vector<48x32xf32>
    %559 = vector.broadcast %538 : vector<1x32xf32> to vector<48x32xf32>
    %560 = arith.mulf %558, %559 : vector<48x32xf32>
    %561 = vector.broadcast %540 : vector<1x32xf32> to vector<48x32xf32>
    %562 = arith.addf %560, %561 : vector<48x32xf32>
    %563 = arith.addf %376, %562 : vector<48x32xf32>
    %c3 = arith.constant 3 : index
    %c0_292 = arith.constant 0 : index
    %c0_293 = arith.constant 0 : index
    %564 = vector.load %arg6[%c3, %c0_292, %c0_293] : memref<4x32x32xf32, #tpu.memory_space<vmem>>, vector<1x32x32xf32>
    %565 = vector.shape_cast %564 : vector<1x32x32xf32> to vector<32x32xf32>
    %cst_294 = arith.constant dense<0.000000e+00> : vector<48x32xf32>
    %566 = tpu.matmul %562, %565, %cst_294 {dimension_numbers = #tpu.dot_dimension_numbers<[1], [0], [0], [1], [0, 0, 1, 1], [], []>} : vector<48x32xf32>, vector<32x32xf32>, vector<48x32xf32> -> vector<48x32xf32>
    %c3_295 = arith.constant 3 : index
    %c0_296 = arith.constant 0 : index
    %c0_297 = arith.constant 0 : index
    %567 = vector.load %arg7[%c3_295, %c0_296, %c0_297] : memref<4x1x32xf32, #tpu.memory_space<vmem>>, vector<1x1x32xf32>
    %568 = vector.shape_cast %567 : vector<1x1x32xf32> to vector<1x32xf32>
    %569 = vector.broadcast %568 : vector<1x32xf32> to vector<48x32xf32>
    %570 = arith.addf %566, %569 : vector<48x32xf32>
    %c3_298 = arith.constant 3 : index
    %c0_299 = arith.constant 0 : index
    %c0_300 = arith.constant 0 : index
    %571 = vector.load %arg8[%c3_298, %c0_299, %c0_300] : memref<4x32x32xf32, #tpu.memory_space<vmem>>, vector<1x32x32xf32>
    %572 = vector.shape_cast %571 : vector<1x32x32xf32> to vector<32x32xf32>
    %cst_301 = arith.constant dense<0.000000e+00> : vector<48x32xf32>
    %573 = tpu.matmul %562, %572, %cst_301 {dimension_numbers = #tpu.dot_dimension_numbers<[1], [0], [0], [1], [0, 0, 1, 1], [], []>} : vector<48x32xf32>, vector<32x32xf32>, vector<48x32xf32> -> vector<48x32xf32>
    %c3_302 = arith.constant 3 : index
    %c0_303 = arith.constant 0 : index
    %c0_304 = arith.constant 0 : index
    %574 = vector.load %arg9[%c3_302, %c0_303, %c0_304] : memref<4x1x32xf32, #tpu.memory_space<vmem>>, vector<1x1x32xf32>
    %575 = vector.shape_cast %574 : vector<1x1x32xf32> to vector<1x32xf32>
    %576 = vector.broadcast %575 : vector<1x32xf32> to vector<48x32xf32>
    %577 = arith.addf %573, %576 : vector<48x32xf32>
    %c3_305 = arith.constant 3 : index
    %c0_306 = arith.constant 0 : index
    %c0_307 = arith.constant 0 : index
    %578 = vector.load %arg10[%c3_305, %c0_306, %c0_307] : memref<4x32x32xf32, #tpu.memory_space<vmem>>, vector<1x32x32xf32>
    %579 = vector.shape_cast %578 : vector<1x32x32xf32> to vector<32x32xf32>
    %cst_308 = arith.constant dense<0.000000e+00> : vector<48x32xf32>
    %580 = tpu.matmul %562, %579, %cst_308 {dimension_numbers = #tpu.dot_dimension_numbers<[1], [0], [0], [1], [0, 0, 1, 1], [], []>} : vector<48x32xf32>, vector<32x32xf32>, vector<48x32xf32> -> vector<48x32xf32>
    %c3_309 = arith.constant 3 : index
    %c0_310 = arith.constant 0 : index
    %c0_311 = arith.constant 0 : index
    %581 = vector.load %arg11[%c3_309, %c0_310, %c0_311] : memref<4x1x32xf32, #tpu.memory_space<vmem>>, vector<1x1x32xf32>
    %582 = vector.shape_cast %581 : vector<1x1x32xf32> to vector<1x32xf32>
    %583 = vector.broadcast %582 : vector<1x32xf32> to vector<48x32xf32>
    %584 = arith.addf %580, %583 : vector<48x32xf32>
    %585 = vector.extract_strided_slice %570 {offsets = [0, 0], sizes = [48, 8], strides = [1, 1]} : vector<48x32xf32> to vector<48x8xf32>
    %586 = vector.extract_strided_slice %577 {offsets = [0, 0], sizes = [48, 8], strides = [1, 1]} : vector<48x32xf32> to vector<48x8xf32>
    %587 = vector.extract_strided_slice %584 {offsets = [0, 0], sizes = [48, 8], strides = [1, 1]} : vector<48x32xf32> to vector<48x8xf32>
    "tpu.trace_start"() <{level = 10 : i32, message = "qd,kd->qk"}> : () -> ()
    %cst_312 = arith.constant dense<0.000000e+00> : vector<48x48xf32>
    %588 = tpu.matmul %585, %586, %cst_312 {dimension_numbers = #tpu.dot_dimension_numbers<[1], [1], [0], [0], [0, 0, 1, 0], [], []>} : vector<48x8xf32>, vector<48x8xf32>, vector<48x48xf32> -> vector<48x48xf32>
    "tpu.trace_stop"() : () -> ()
    %cst_313 = arith.constant 0.353553385 : f32
    %589 = vector.broadcast %cst_313 : f32 to vector<48x48xf32>
    %590 = arith.mulf %588, %589 : vector<48x48xf32>
    %591 = arith.addf %590, %1 : vector<48x48xf32>
    %cst_314 = arith.constant dense<0xFF800000> : vector<48xf32>
    %592 = vector.multi_reduction <maximumf>, %591, %cst_314 [1] : vector<48x48xf32> to vector<48xf32>
    %593 = vector.shape_cast %592 : vector<48xf32> to vector<48x1xf32>
    %594 = vector.broadcast %593 : vector<48x1xf32> to vector<48x48xf32>
    %595 = arith.subf %591, %594 : vector<48x48xf32>
    %596 = math.exp %595 : vector<48x48xf32>
    %cst_315 = arith.constant dense<0.000000e+00> : vector<48xf32>
    %597 = vector.multi_reduction <add>, %596, %cst_315 [1] : vector<48x48xf32> to vector<48xf32>
    %598 = vector.shape_cast %597 : vector<48xf32> to vector<48x1xf32>
    %599 = tpu.reciprocal %598 {approx = true} : vector<48x1xf32> -> vector<48x1xf32>
    %600 = vector.broadcast %599 : vector<48x1xf32> to vector<48x48xf32>
    %601 = arith.mulf %596, %600 : vector<48x48xf32>
    %cst_316 = arith.constant dense<0.000000e+00> : vector<48x8xf32>
    %602 = tpu.matmul %601, %587, %cst_316 {dimension_numbers = #tpu.dot_dimension_numbers<[1], [0], [0], [1], [0, 0, 1, 1], [], []>} : vector<48x48xf32>, vector<48x8xf32>, vector<48x8xf32> -> vector<48x8xf32>
    %c0_317 = arith.constant 0 : index
    %c0_318 = arith.constant 0 : index
    %603 = vector.load %arg33[%c0_317, %c0_318] : memref<48x32xf32, #tpu.memory_space<vmem>>, vector<48x8xf32>
    tpu.vector_store %arg33[%c0_317, %c0_318], %602 {strides = array<i32>} : memref<48x32xf32, #tpu.memory_space<vmem>>, vector<48x8xf32>,
    %604 = vector.extract_strided_slice %570 {offsets = [0, 8], sizes = [48, 8], strides = [1, 1]} : vector<48x32xf32> to vector<48x8xf32>
    %605 = vector.extract_strided_slice %577 {offsets = [0, 8], sizes = [48, 8], strides = [1, 1]} : vector<48x32xf32> to vector<48x8xf32>
    %606 = vector.extract_strided_slice %584 {offsets = [0, 8], sizes = [48, 8], strides = [1, 1]} : vector<48x32xf32> to vector<48x8xf32>
    "tpu.trace_start"() <{level = 10 : i32, message = "qd,kd->qk"}> : () -> ()
    %cst_319 = arith.constant dense<0.000000e+00> : vector<48x48xf32>
    %607 = tpu.matmul %604, %605, %cst_319 {dimension_numbers = #tpu.dot_dimension_numbers<[1], [1], [0], [0], [0, 0, 1, 0], [], []>} : vector<48x8xf32>, vector<48x8xf32>, vector<48x48xf32> -> vector<48x48xf32>
    "tpu.trace_stop"() : () -> ()
    %cst_320 = arith.constant 0.353553385 : f32
    %608 = vector.broadcast %cst_320 : f32 to vector<48x48xf32>
    %609 = arith.mulf %607, %608 : vector<48x48xf32>
    %610 = arith.addf %609, %1 : vector<48x48xf32>
    %cst_321 = arith.constant dense<0xFF800000> : vector<48xf32>
    %611 = vector.multi_reduction <maximumf>, %610, %cst_321 [1] : vector<48x48xf32> to vector<48xf32>
    %612 = vector.shape_cast %611 : vector<48xf32> to vector<48x1xf32>
    %613 = vector.broadcast %612 : vector<48x1xf32> to vector<48x48xf32>
    %614 = arith.subf %610, %613 : vector<48x48xf32>
    %615 = math.exp %614 : vector<48x48xf32>
    %cst_322 = arith.constant dense<0.000000e+00> : vector<48xf32>
    %616 = vector.multi_reduction <add>, %615, %cst_322 [1] : vector<48x48xf32> to vector<48xf32>
    %617 = vector.shape_cast %616 : vector<48xf32> to vector<48x1xf32>
    %618 = tpu.reciprocal %617 {approx = true} : vector<48x1xf32> -> vector<48x1xf32>
    %619 = vector.broadcast %618 : vector<48x1xf32> to vector<48x48xf32>
    %620 = arith.mulf %615, %619 : vector<48x48xf32>
    %cst_323 = arith.constant dense<0.000000e+00> : vector<48x8xf32>
    %621 = tpu.matmul %620, %606, %cst_323 {dimension_numbers = #tpu.dot_dimension_numbers<[1], [0], [0], [1], [0, 0, 1, 1], [], []>} : vector<48x48xf32>, vector<48x8xf32>, vector<48x8xf32> -> vector<48x8xf32>
    %c0_324 = arith.constant 0 : index
    %c8_325 = arith.constant 8 : index
    %622 = vector.load %arg33[%c0_324, %c8_325] : memref<48x32xf32, #tpu.memory_space<vmem>>, vector<48x8xf32>
    tpu.vector_store %arg33[%c0_324, %c8_325], %621 {strides = array<i32>} : memref<48x32xf32, #tpu.memory_space<vmem>>, vector<48x8xf32>,
    %623 = vector.extract_strided_slice %570 {offsets = [0, 16], sizes = [48, 8], strides = [1, 1]} : vector<48x32xf32> to vector<48x8xf32>
    %624 = vector.extract_strided_slice %577 {offsets = [0, 16], sizes = [48, 8], strides = [1, 1]} : vector<48x32xf32> to vector<48x8xf32>
    %625 = vector.extract_strided_slice %584 {offsets = [0, 16], sizes = [48, 8], strides = [1, 1]} : vector<48x32xf32> to vector<48x8xf32>
    "tpu.trace_start"() <{level = 10 : i32, message = "qd,kd->qk"}> : () -> ()
    %cst_326 = arith.constant dense<0.000000e+00> : vector<48x48xf32>
    %626 = tpu.matmul %623, %624, %cst_326 {dimension_numbers = #tpu.dot_dimension_numbers<[1], [1], [0], [0], [0, 0, 1, 0], [], []>} : vector<48x8xf32>, vector<48x8xf32>, vector<48x48xf32> -> vector<48x48xf32>
    "tpu.trace_stop"() : () -> ()
    %cst_327 = arith.constant 0.353553385 : f32
    %627 = vector.broadcast %cst_327 : f32 to vector<48x48xf32>
    %628 = arith.mulf %626, %627 : vector<48x48xf32>
    %629 = arith.addf %628, %1 : vector<48x48xf32>
    %cst_328 = arith.constant dense<0xFF800000> : vector<48xf32>
    %630 = vector.multi_reduction <maximumf>, %629, %cst_328 [1] : vector<48x48xf32> to vector<48xf32>
    %631 = vector.shape_cast %630 : vector<48xf32> to vector<48x1xf32>
    %632 = vector.broadcast %631 : vector<48x1xf32> to vector<48x48xf32>
    %633 = arith.subf %629, %632 : vector<48x48xf32>
    %634 = math.exp %633 : vector<48x48xf32>
    %cst_329 = arith.constant dense<0.000000e+00> : vector<48xf32>
    %635 = vector.multi_reduction <add>, %634, %cst_329 [1] : vector<48x48xf32> to vector<48xf32>
    %636 = vector.shape_cast %635 : vector<48xf32> to vector<48x1xf32>
    %637 = tpu.reciprocal %636 {approx = true} : vector<48x1xf32> -> vector<48x1xf32>
    %638 = vector.broadcast %637 : vector<48x1xf32> to vector<48x48xf32>
    %639 = arith.mulf %634, %638 : vector<48x48xf32>
    %cst_330 = arith.constant dense<0.000000e+00> : vector<48x8xf32>
    %640 = tpu.matmul %639, %625, %cst_330 {dimension_numbers = #tpu.dot_dimension_numbers<[1], [0], [0], [1], [0, 0, 1, 1], [], []>} : vector<48x48xf32>, vector<48x8xf32>, vector<48x8xf32> -> vector<48x8xf32>
    %c0_331 = arith.constant 0 : index
    %c16_332 = arith.constant 16 : index
    %641 = vector.load %arg33[%c0_331, %c16_332] : memref<48x32xf32, #tpu.memory_space<vmem>>, vector<48x8xf32>
    tpu.vector_store %arg33[%c0_331, %c16_332], %640 {strides = array<i32>} : memref<48x32xf32, #tpu.memory_space<vmem>>, vector<48x8xf32>,
    %642 = vector.extract_strided_slice %570 {offsets = [0, 24], sizes = [48, 8], strides = [1, 1]} : vector<48x32xf32> to vector<48x8xf32>
    %643 = vector.extract_strided_slice %577 {offsets = [0, 24], sizes = [48, 8], strides = [1, 1]} : vector<48x32xf32> to vector<48x8xf32>
    %644 = vector.extract_strided_slice %584 {offsets = [0, 24], sizes = [48, 8], strides = [1, 1]} : vector<48x32xf32> to vector<48x8xf32>
    "tpu.trace_start"() <{level = 10 : i32, message = "qd,kd->qk"}> : () -> ()
    %cst_333 = arith.constant dense<0.000000e+00> : vector<48x48xf32>
    %645 = tpu.matmul %642, %643, %cst_333 {dimension_numbers = #tpu.dot_dimension_numbers<[1], [1], [0], [0], [0, 0, 1, 0], [], []>} : vector<48x8xf32>, vector<48x8xf32>, vector<48x48xf32> -> vector<48x48xf32>
    "tpu.trace_stop"() : () -> ()
    %cst_334 = arith.constant 0.353553385 : f32
    %646 = vector.broadcast %cst_334 : f32 to vector<48x48xf32>
    %647 = arith.mulf %645, %646 : vector<48x48xf32>
    %648 = arith.addf %647, %1 : vector<48x48xf32>
    %cst_335 = arith.constant dense<0xFF800000> : vector<48xf32>
    %649 = vector.multi_reduction <maximumf>, %648, %cst_335 [1] : vector<48x48xf32> to vector<48xf32>
    %650 = vector.shape_cast %649 : vector<48xf32> to vector<48x1xf32>
    %651 = vector.broadcast %650 : vector<48x1xf32> to vector<48x48xf32>
    %652 = arith.subf %648, %651 : vector<48x48xf32>
    %653 = math.exp %652 : vector<48x48xf32>
    %cst_336 = arith.constant dense<0.000000e+00> : vector<48xf32>
    %654 = vector.multi_reduction <add>, %653, %cst_336 [1] : vector<48x48xf32> to vector<48xf32>
    %655 = vector.shape_cast %654 : vector<48xf32> to vector<48x1xf32>
    %656 = tpu.reciprocal %655 {approx = true} : vector<48x1xf32> -> vector<48x1xf32>
    %657 = vector.broadcast %656 : vector<48x1xf32> to vector<48x48xf32>
    %658 = arith.mulf %653, %657 : vector<48x48xf32>
    %cst_337 = arith.constant dense<0.000000e+00> : vector<48x8xf32>
    %659 = tpu.matmul %658, %644, %cst_337 {dimension_numbers = #tpu.dot_dimension_numbers<[1], [0], [0], [1], [0, 0, 1, 1], [], []>} : vector<48x48xf32>, vector<48x8xf32>, vector<48x8xf32> -> vector<48x8xf32>
    %c0_338 = arith.constant 0 : index
    %c24_339 = arith.constant 24 : index
    %660 = vector.load %arg33[%c0_338, %c24_339] : memref<48x32xf32, #tpu.memory_space<vmem>>, vector<48x8xf32>
    tpu.vector_store %arg33[%c0_338, %c24_339], %659 {strides = array<i32>} : memref<48x32xf32, #tpu.memory_space<vmem>>, vector<48x8xf32>,
    %c0_340 = arith.constant 0 : index
    %c0_341 = arith.constant 0 : index
    %661 = vector.load %arg33[%c0_340, %c0_341] : memref<48x32xf32, #tpu.memory_space<vmem>>, vector<48x32xf32>
    %c3_342 = arith.constant 3 : index
    %c0_343 = arith.constant 0 : index
    %c0_344 = arith.constant 0 : index
    %662 = vector.load %arg12[%c3_342, %c0_343, %c0_344] : memref<4x32x32xf32, #tpu.memory_space<vmem>>, vector<1x32x32xf32>
    %663 = vector.shape_cast %662 : vector<1x32x32xf32> to vector<32x32xf32>
    %cst_345 = arith.constant dense<0.000000e+00> : vector<48x32xf32>
    %664 = tpu.matmul %661, %663, %cst_345 {dimension_numbers = #tpu.dot_dimension_numbers<[1], [0], [0], [1], [0, 0, 1, 1], [], []>} : vector<48x32xf32>, vector<32x32xf32>, vector<48x32xf32> -> vector<48x32xf32>
    %c3_346 = arith.constant 3 : index
    %c0_347 = arith.constant 0 : index
    %c0_348 = arith.constant 0 : index
    %665 = vector.load %arg13[%c3_346, %c0_347, %c0_348] : memref<4x1x32xf32, #tpu.memory_space<vmem>>, vector<1x1x32xf32>
    %666 = vector.shape_cast %665 : vector<1x1x32xf32> to vector<1x32xf32>
    %667 = vector.broadcast %666 : vector<1x32xf32> to vector<48x32xf32>
    %668 = arith.addf %664, %667 : vector<48x32xf32>
    %669 = arith.addf %562, %668 : vector<48x32xf32>
    %c3_349 = arith.constant 3 : index
    %c0_350 = arith.constant 0 : index
    %c0_351 = arith.constant 0 : index
    %670 = vector.load %arg14[%c3_349, %c0_350, %c0_351] : memref<4x1x32xf32, #tpu.memory_space<vmem>>, vector<1x1x32xf32>
    %671 = vector.shape_cast %670 : vector<1x1x32xf32> to vector<1x32xf32>
    %c3_352 = arith.constant 3 : index
    %c0_353 = arith.constant 0 : index
    %c0_354 = arith.constant 0 : index
    %672 = vector.load %arg15[%c3_352, %c0_353, %c0_354] : memref<4x1x32xf32, #tpu.memory_space<vmem>>, vector<1x1x32xf32>
    %673 = vector.shape_cast %672 : vector<1x1x32xf32> to vector<1x32xf32>
    %cst_355 = arith.constant dense<0.000000e+00> : vector<48xf32>
    %674 = vector.multi_reduction <add>, %669, %cst_355 [1] : vector<48x32xf32> to vector<48xf32>
    %675 = vector.shape_cast %674 : vector<48xf32> to vector<48x1xf32>
    %cst_356 = arith.constant 3.200000e+01 : f32
    %676 = vector.broadcast %cst_356 : f32 to vector<48x1xf32>
    %677 = arith.divf %675, %676 : vector<48x1xf32>
    %678 = vector.broadcast %677 : vector<48x1xf32> to vector<48x32xf32>
    %679 = arith.subf %669, %678 : vector<48x32xf32>
    %680 = arith.mulf %679, %679 : vector<48x32xf32>
    %cst_357 = arith.constant dense<0.000000e+00> : vector<48xf32>
    %681 = vector.multi_reduction <add>, %680, %cst_357 [1] : vector<48x32xf32> to vector<48xf32>
    %682 = vector.shape_cast %681 : vector<48xf32> to vector<48x1xf32>
    %cst_358 = arith.constant 3.200000e+01 : f32
    %683 = vector.broadcast %cst_358 : f32 to vector<48x1xf32>
    %684 = arith.divf %682, %683 : vector<48x1xf32>
    %685 = vector.broadcast %677 : vector<48x1xf32> to vector<48x32xf32>
    %686 = arith.subf %669, %685 : vector<48x32xf32>
    %cst_359 = arith.constant 9.99999996E-13 : f32
    %687 = vector.broadcast %cst_359 : f32 to vector<48x1xf32>
    %688 = arith.addf %684, %687 : vector<48x1xf32>
    %689 = math.rsqrt %688 : vector<48x1xf32>
    %690 = vector.broadcast %689 : vector<48x1xf32> to vector<48x32xf32>
    %691 = arith.mulf %686, %690 : vector<48x32xf32>
    %692 = vector.broadcast %671 : vector<1x32xf32> to vector<48x32xf32>
    %693 = arith.mulf %691, %692 : vector<48x32xf32>
    %694 = vector.broadcast %673 : vector<1x32xf32> to vector<48x32xf32>
    %695 = arith.addf %693, %694 : vector<48x32xf32>
    %c3_360 = arith.constant 3 : index
    %c0_361 = arith.constant 0 : index
    %c0_362 = arith.constant 0 : index
    %696 = vector.load %arg16[%c3_360, %c0_361, %c0_362] : memref<4x32x64xf32, #tpu.memory_space<vmem>>, vector<1x32x64xf32>
    %697 = vector.shape_cast %696 : vector<1x32x64xf32> to vector<32x64xf32>
    %cst_363 = arith.constant dense<0.000000e+00> : vector<48x64xf32>
    %698 = tpu.matmul %695, %697, %cst_363 {dimension_numbers = #tpu.dot_dimension_numbers<[1], [0], [0], [1], [0, 0, 1, 1], [], []>} : vector<48x32xf32>, vector<32x64xf32>, vector<48x64xf32> -> vector<48x64xf32>
    %c3_364 = arith.constant 3 : index
    %c0_365 = arith.constant 0 : index
    %c0_366 = arith.constant 0 : index
    %699 = vector.load %arg17[%c3_364, %c0_365, %c0_366] : memref<4x1x64xf32, #tpu.memory_space<vmem>>, vector<1x1x64xf32>
    %700 = vector.shape_cast %699 : vector<1x1x64xf32> to vector<1x64xf32>
    %701 = vector.broadcast %700 : vector<1x64xf32> to vector<48x64xf32>
    %702 = arith.addf %698, %701 : vector<48x64xf32>
    %703 = arith.mulf %702, %702 : vector<48x64xf32>
    %704 = arith.mulf %702, %703 : vector<48x64xf32>
    %cst_367 = arith.constant 4.471500e-02 : f32
    %705 = vector.broadcast %cst_367 : f32 to vector<48x64xf32>
    %706 = arith.mulf %705, %704 : vector<48x64xf32>
    %707 = arith.addf %702, %706 : vector<48x64xf32>
    %cst_368 = arith.constant 0.797884583 : f32
    %708 = vector.broadcast %cst_368 : f32 to vector<48x64xf32>
    %709 = arith.mulf %708, %707 : vector<48x64xf32>
    %710 = math.tanh %709 : vector<48x64xf32>
    %cst_369 = arith.constant 1.000000e+00 : f32
    %711 = vector.broadcast %cst_369 : f32 to vector<48x64xf32>
    %712 = arith.addf %711, %710 : vector<48x64xf32>
    %cst_370 = arith.constant 5.000000e-01 : f32
    %713 = vector.broadcast %cst_370 : f32 to vector<48x64xf32>
    %714 = arith.mulf %713, %712 : vector<48x64xf32>
    %715 = arith.mulf %702, %714 : vector<48x64xf32>
    %c3_371 = arith.constant 3 : index
    %c0_372 = arith.constant 0 : index
    %c0_373 = arith.constant 0 : index
    %716 = vector.load %arg18[%c3_371, %c0_372, %c0_373] : memref<4x64x32xf32, #tpu.memory_space<vmem>>, vector<1x64x32xf32>
    %717 = vector.shape_cast %716 : vector<1x64x32xf32> to vector<64x32xf32>
    %cst_374 = arith.constant dense<0.000000e+00> : vector<48x32xf32>
    %718 = tpu.matmul %715, %717, %cst_374 {dimension_numbers = #tpu.dot_dimension_numbers<[1], [0], [0], [1], [0, 0, 1, 1], [], []>} : vector<48x64xf32>, vector<64x32xf32>, vector<48x32xf32> -> vector<48x32xf32>
    %c3_375 = arith.constant 3 : index
    %c0_376 = arith.constant 0 : index
    %c0_377 = arith.constant 0 : index
    %719 = vector.load %arg19[%c3_375, %c0_376, %c0_377] : memref<4x1x32xf32, #tpu.memory_space<vmem>>, vector<1x1x32xf32>
    %720 = vector.shape_cast %719 : vector<1x1x32xf32> to vector<1x32xf32>
    %721 = vector.broadcast %720 : vector<1x32xf32> to vector<48x32xf32>
    %722 = arith.addf %718, %721 : vector<48x32xf32>
    %723 = arith.addf %695, %722 : vector<48x32xf32>
    %c3_378 = arith.constant 3 : index
    %c0_379 = arith.constant 0 : index
    %c0_380 = arith.constant 0 : index
    %724 = vector.load %arg20[%c3_378, %c0_379, %c0_380] : memref<4x1x32xf32, #tpu.memory_space<vmem>>, vector<1x1x32xf32>
    %725 = vector.shape_cast %724 : vector<1x1x32xf32> to vector<1x32xf32>
    %c3_381 = arith.constant 3 : index
    %c0_382 = arith.constant 0 : index
    %c0_383 = arith.constant 0 : index
    %726 = vector.load %arg21[%c3_381, %c0_382, %c0_383] : memref<4x1x32xf32, #tpu.memory_space<vmem>>, vector<1x1x32xf32>
    %727 = vector.shape_cast %726 : vector<1x1x32xf32> to vector<1x32xf32>
    %cst_384 = arith.constant dense<0.000000e+00> : vector<48xf32>
    %728 = vector.multi_reduction <add>, %723, %cst_384 [1] : vector<48x32xf32> to vector<48xf32>
    %729 = vector.shape_cast %728 : vector<48xf32> to vector<48x1xf32>
    %cst_385 = arith.constant 3.200000e+01 : f32
    %730 = vector.broadcast %cst_385 : f32 to vector<48x1xf32>
    %731 = arith.divf %729, %730 : vector<48x1xf32>
    %732 = vector.broadcast %731 : vector<48x1xf32> to vector<48x32xf32>
    %733 = arith.subf %723, %732 : vector<48x32xf32>
    %734 = arith.mulf %733, %733 : vector<48x32xf32>
    %cst_386 = arith.constant dense<0.000000e+00> : vector<48xf32>
    %735 = vector.multi_reduction <add>, %734, %cst_386 [1] : vector<48x32xf32> to vector<48xf32>
    %736 = vector.shape_cast %735 : vector<48xf32> to vector<48x1xf32>
    %cst_387 = arith.constant 3.200000e+01 : f32
    %737 = vector.broadcast %cst_387 : f32 to vector<48x1xf32>
    %738 = arith.divf %736, %737 : vector<48x1xf32>
    %739 = vector.broadcast %731 : vector<48x1xf32> to vector<48x32xf32>
    %740 = arith.subf %723, %739 : vector<48x32xf32>
    %cst_388 = arith.constant 9.99999996E-13 : f32
    %741 = vector.broadcast %cst_388 : f32 to vector<48x1xf32>
    %742 = arith.addf %738, %741 : vector<48x1xf32>
    %743 = math.rsqrt %742 : vector<48x1xf32>
    %744 = vector.broadcast %743 : vector<48x1xf32> to vector<48x32xf32>
    %745 = arith.mulf %740, %744 : vector<48x32xf32>
    %746 = vector.broadcast %725 : vector<1x32xf32> to vector<48x32xf32>
    %747 = arith.mulf %745, %746 : vector<48x32xf32>
    %748 = vector.broadcast %727 : vector<1x32xf32> to vector<48x32xf32>
    %749 = arith.addf %747, %748 : vector<48x32xf32>
    %750 = arith.addf %563, %749 : vector<48x32xf32>
    %c0_389 = arith.constant 0 : index
    %c0_390 = arith.constant 0 : index
    %751 = vector.load %arg2[%c0_389, %c0_390] : memref<6x48xf32, #tpu.memory_space<vmem>>, vector<6x48xf32>
    %cst_391 = arith.constant dense<0.000000e+00> : vector<6x32xf32>
    %752 = tpu.matmul %751, %750, %cst_391 {dimension_numbers = #tpu.dot_dimension_numbers<[1], [0], [0], [1], [0, 0, 1, 1], [], []>} : vector<6x48xf32>, vector<48x32xf32>, vector<6x32xf32> -> vector<6x32xf32>
    %c0_392 = arith.constant 0 : index
    %c0_393 = arith.constant 0 : index
    %753 = vector.load %arg3[%c0_392, %c0_393] : memref<6x3xf32, #tpu.memory_space<vmem>>, vector<6x3xf32>
    %c0_394 = arith.constant 0 : index
    %c0_395 = arith.constant 0 : index
    %754 = vector.load %arg22[%c0_394, %c0_395] : memref<32x16xf32, #tpu.memory_space<vmem>>, vector<32x16xf32>
    %cst_396 = arith.constant dense<0.000000e+00> : vector<6x16xf32>
    %755 = tpu.matmul %752, %754, %cst_396 {dimension_numbers = #tpu.dot_dimension_numbers<[1], [0], [0], [1], [0, 0, 1, 1], [], []>} : vector<6x32xf32>, vector<32x16xf32>, vector<6x16xf32> -> vector<6x16xf32>
    %c0_397 = arith.constant 0 : index
    %c0_398 = arith.constant 0 : index
    %756 = vector.load %arg23[%c0_397, %c0_398] : memref<3x16xf32, #tpu.memory_space<vmem>>, vector<3x16xf32>
    %cst_399 = arith.constant dense<0.000000e+00> : vector<6x16xf32>
    %757 = tpu.matmul %753, %756, %cst_399 {dimension_numbers = #tpu.dot_dimension_numbers<[1], [0], [0], [1], [0, 0, 1, 1], [], []>} : vector<6x3xf32>, vector<3x16xf32>, vector<6x16xf32> -> vector<6x16xf32>
    %758 = arith.addf %755, %757 : vector<6x16xf32>
    %c0_400 = arith.constant 0 : index
    %c0_401 = arith.constant 0 : index
    %759 = vector.load %arg24[%c0_400, %c0_401] : memref<1x16xf32, #tpu.memory_space<vmem>>, vector<1x16xf32>
    %760 = vector.broadcast %759 : vector<1x16xf32> to vector<6x16xf32>
    %761 = arith.addf %758, %760 : vector<6x16xf32>
    %762 = math.tanh %761 : vector<6x16xf32>
    %c0_402 = arith.constant 0 : index
    %c0_403 = arith.constant 0 : index
    %763 = vector.load %arg25[%c0_402, %c0_403] : memref<16x1xf32, #tpu.memory_space<vmem>>, vector<16x1xf32>
    %cst_404 = arith.constant dense<0.000000e+00> : vector<6x1xf32>
    %764 = tpu.matmul %762, %763, %cst_404 {dimension_numbers = #tpu.dot_dimension_numbers<[1], [0], [0], [1], [0, 0, 1, 1], [], []>} : vector<6x16xf32>, vector<16x1xf32>, vector<6x1xf32> -> vector<6x1xf32>
    %c0_405 = arith.constant 0 : index
    %c0_406 = arith.constant 0 : index
    %765 = vector.load %arg4[%c0_405, %c0_406] : memref<6x1xf32, #tpu.memory_space<vmem>>, vector<6x1xf32>
    %cst_407 = arith.constant 5.000000e-01 : f32
    %766 = vector.broadcast %cst_407 : f32 to vector<6x1xf32>
    %767 = arith.cmpf ogt, %765, %766 : vector<6x1xf32>
    %cst_408 = arith.constant -1.000000e+09 : f32
    %768 = vector.broadcast %cst_408 : f32 to vector<6x1xf32>
    %769 = arith.select %767, %764, %768 : vector<6x1xi1>, vector<6x1xf32>
    %c0_409 = arith.constant 0 : index
    %c0_410 = arith.constant 0 : index
    %770 = vector.load %arg5[%c0_409, %c0_410] : memref<2x4xf32, #tpu.memory_space<vmem>>, vector<2x4xf32>
    %c0_411 = arith.constant 0 : index
    %c0_412 = arith.constant 0 : index
    %771 = vector.load %arg26[%c0_411, %c0_412] : memref<4x8xf32, #tpu.memory_space<vmem>>, vector<4x8xf32>
    %cst_413 = arith.constant dense<0.000000e+00> : vector<2x8xf32>
    %772 = tpu.matmul %770, %771, %cst_413 {dimension_numbers = #tpu.dot_dimension_numbers<[1], [0], [0], [1], [0, 0, 1, 1], [], []>} : vector<2x4xf32>, vector<4x8xf32>, vector<2x8xf32> -> vector<2x8xf32>
    %c0_414 = arith.constant 0 : index
    %c0_415 = arith.constant 0 : index
    %773 = vector.load %arg27[%c0_414, %c0_415] : memref<1x8xf32, #tpu.memory_space<vmem>>, vector<1x8xf32>
    %774 = vector.broadcast %773 : vector<1x8xf32> to vector<2x8xf32>
    %775 = arith.addf %772, %774 : vector<2x8xf32>
    %cst_416 = arith.constant 0.000000e+00 : f32
    %776 = vector.broadcast %cst_416 : f32 to vector<2x8xf32>
    %777 = arith.maximumf %775, %776 : vector<2x8xf32>
    %778 = vector.extract_strided_slice %769 {offsets = [0, 0], sizes = [3, 1], strides = [1, 1]} : vector<6x1xf32> to vector<3x1xf32>
    %cst_417 = arith.constant dense<0xFF800000> : vector<1xf32>
    %779 = vector.multi_reduction <maximumf>, %778, %cst_417 [0] : vector<3x1xf32> to vector<1xf32>
    %780 = vector.shape_cast %779 : vector<1xf32> to vector<1x1xf32>
    %781 = vector.broadcast %780 : vector<1x1xf32> to vector<3x1xf32>
    %782 = arith.subf %778, %781 : vector<3x1xf32>
    %783 = math.exp %782 : vector<3x1xf32>
    %cst_418 = arith.constant dense<0.000000e+00> : vector<1xf32>
    %784 = vector.multi_reduction <add>, %783, %cst_418 [0] : vector<3x1xf32> to vector<1xf32>
    %785 = vector.shape_cast %784 : vector<1xf32> to vector<1x1xf32>
    %786 = tpu.reciprocal %785 {approx = true} : vector<1x1xf32> -> vector<1x1xf32>
    %787 = vector.broadcast %786 : vector<1x1xf32> to vector<3x1xf32>
    %788 = arith.mulf %783, %787 : vector<3x1xf32>
    %789 = vector.extract_strided_slice %752 {offsets = [0, 0], sizes = [3, 32], strides = [1, 1]} : vector<6x32xf32> to vector<3x32xf32>
    %790 = vector.broadcast %788 : vector<3x1xf32> to vector<3x32xf32>
    %791 = arith.mulf %790, %789 : vector<3x32xf32>
    %cst_419 = arith.constant dense<0.000000e+00> : vector<32xf32>
    %792 = vector.multi_reduction <add>, %791, %cst_419 [0] : vector<3x32xf32> to vector<32xf32>
    %793 = vector.shape_cast %792 : vector<32xf32> to vector<1x32xf32>
    %794 = vector.extract_strided_slice %753 {offsets = [0, 0], sizes = [3, 3], strides = [1, 1]} : vector<6x3xf32> to vector<3x3xf32>
    %795 = vector.broadcast %788 : vector<3x1xf32> to vector<3x3xf32>
    %796 = arith.mulf %795, %794 : vector<3x3xf32>
    %cst_420 = arith.constant dense<0.000000e+00> : vector<3xf32>
    %797 = vector.multi_reduction <add>, %796, %cst_420 [0] : vector<3x3xf32> to vector<3xf32>
    %798 = vector.shape_cast %797 : vector<3xf32> to vector<1x3xf32>
    %c0_421 = arith.constant 0 : index
    %c0_422 = arith.constant 0 : index
    %799 = vector.load %arg28[%c0_421, %c0_422] : memref<32x5xf32, #tpu.memory_space<vmem>>, vector<32x5xf32>
    %cst_423 = arith.constant dense<0.000000e+00> : vector<1x5xf32>
    %800 = tpu.matmul %793, %799, %cst_423 {dimension_numbers = #tpu.dot_dimension_numbers<[1], [0], [0], [1], [0, 0, 1, 1], [], []>} : vector<1x32xf32>, vector<32x5xf32>, vector<1x5xf32> -> vector<1x5xf32>
    %c0_424 = arith.constant 0 : index
    %c0_425 = arith.constant 0 : index
    %801 = vector.load %arg29[%c0_424, %c0_425] : memref<3x5xf32, #tpu.memory_space<vmem>>, vector<3x5xf32>
    %cst_426 = arith.constant dense<0.000000e+00> : vector<1x5xf32>
    %802 = tpu.matmul %798, %801, %cst_426 {dimension_numbers = #tpu.dot_dimension_numbers<[1], [0], [0], [1], [0, 0, 1, 1], [], []>} : vector<1x3xf32>, vector<3x5xf32>, vector<1x5xf32> -> vector<1x5xf32>
    %803 = arith.addf %800, %802 : vector<1x5xf32>
    %804 = vector.extract_strided_slice %777 {offsets = [0, 0], sizes = [1, 8], strides = [1, 1]} : vector<2x8xf32> to vector<1x8xf32>
    %c0_427 = arith.constant 0 : index
    %c0_428 = arith.constant 0 : index
    %805 = vector.load %arg30[%c0_427, %c0_428] : memref<8x5xf32, #tpu.memory_space<vmem>>, vector<8x5xf32>
    %cst_429 = arith.constant dense<0.000000e+00> : vector<1x5xf32>
    %806 = tpu.matmul %804, %805, %cst_429 {dimension_numbers = #tpu.dot_dimension_numbers<[1], [0], [0], [1], [0, 0, 1, 1], [], []>} : vector<1x8xf32>, vector<8x5xf32>, vector<1x5xf32> -> vector<1x5xf32>
    %807 = arith.addf %803, %806 : vector<1x5xf32>
    %c0_430 = arith.constant 0 : index
    %c0_431 = arith.constant 0 : index
    %808 = vector.load %arg31[%c0_430, %c0_431] : memref<1x5xf32, #tpu.memory_space<vmem>>, vector<1x5xf32>
    %809 = arith.addf %807, %808 : vector<1x5xf32>
    %810 = arith.negf %809 : vector<1x5xf32>
    %811 = math.exp %810 : vector<1x5xf32>
    %cst_432 = arith.constant 1.000000e+00 : f32
    %812 = vector.broadcast %cst_432 : f32 to vector<1x5xf32>
    %813 = arith.addf %812, %811 : vector<1x5xf32>
    %814 = arith.divf %812, %813 : vector<1x5xf32>
    %c0_433 = arith.constant 0 : index
    %c0_434 = arith.constant 0 : index
    %815 = vector.load %arg32[%c0_433, %c0_434] : memref<2x5xf32, #tpu.memory_space<vmem>>, vector<1x5xf32>
    tpu.vector_store %arg32[%c0_433, %c0_434], %814 {strides = array<i32>} : memref<2x5xf32, #tpu.memory_space<vmem>>, vector<1x5xf32>,
    %816 = vector.extract_strided_slice %769 {offsets = [3, 0], sizes = [3, 1], strides = [1, 1]} : vector<6x1xf32> to vector<3x1xf32>
    %cst_435 = arith.constant dense<0xFF800000> : vector<1xf32>
    %817 = vector.multi_reduction <maximumf>, %816, %cst_435 [0] : vector<3x1xf32> to vector<1xf32>
    %818 = vector.shape_cast %817 : vector<1xf32> to vector<1x1xf32>
    %819 = vector.broadcast %818 : vector<1x1xf32> to vector<3x1xf32>
    %820 = arith.subf %816, %819 : vector<3x1xf32>
    %821 = math.exp %820 : vector<3x1xf32>
    %cst_436 = arith.constant dense<0.000000e+00> : vector<1xf32>
    %822 = vector.multi_reduction <add>, %821, %cst_436 [0] : vector<3x1xf32> to vector<1xf32>
    %823 = vector.shape_cast %822 : vector<1xf32> to vector<1x1xf32>
    %824 = tpu.reciprocal %823 {approx = true} : vector<1x1xf32> -> vector<1x1xf32>
    %825 = vector.broadcast %824 : vector<1x1xf32> to vector<3x1xf32>
    %826 = arith.mulf %821, %825 : vector<3x1xf32>
    %827 = vector.extract_strided_slice %752 {offsets = [3, 0], sizes = [3, 32], strides = [1, 1]} : vector<6x32xf32> to vector<3x32xf32>
    %828 = vector.broadcast %826 : vector<3x1xf32> to vector<3x32xf32>
    %829 = arith.mulf %828, %827 : vector<3x32xf32>
    %cst_437 = arith.constant dense<0.000000e+00> : vector<32xf32>
    %830 = vector.multi_reduction <add>, %829, %cst_437 [0] : vector<3x32xf32> to vector<32xf32>
    %831 = vector.shape_cast %830 : vector<32xf32> to vector<1x32xf32>
    %832 = vector.extract_strided_slice %753 {offsets = [3, 0], sizes = [3, 3], strides = [1, 1]} : vector<6x3xf32> to vector<3x3xf32>
    %833 = vector.broadcast %826 : vector<3x1xf32> to vector<3x3xf32>
    %834 = arith.mulf %833, %832 : vector<3x3xf32>
    %cst_438 = arith.constant dense<0.000000e+00> : vector<3xf32>
    %835 = vector.multi_reduction <add>, %834, %cst_438 [0] : vector<3x3xf32> to vector<3xf32>
    %836 = vector.shape_cast %835 : vector<3xf32> to vector<1x3xf32>
    %c0_439 = arith.constant 0 : index
    %c0_440 = arith.constant 0 : index
    %837 = vector.load %arg28[%c0_439, %c0_440] : memref<32x5xf32, #tpu.memory_space<vmem>>, vector<32x5xf32>
    %cst_441 = arith.constant dense<0.000000e+00> : vector<1x5xf32>
    %838 = tpu.matmul %831, %837, %cst_441 {dimension_numbers = #tpu.dot_dimension_numbers<[1], [0], [0], [1], [0, 0, 1, 1], [], []>} : vector<1x32xf32>, vector<32x5xf32>, vector<1x5xf32> -> vector<1x5xf32>
    %c0_442 = arith.constant 0 : index
    %c0_443 = arith.constant 0 : index
    %839 = vector.load %arg29[%c0_442, %c0_443] : memref<3x5xf32, #tpu.memory_space<vmem>>, vector<3x5xf32>
    %cst_444 = arith.constant dense<0.000000e+00> : vector<1x5xf32>
    %840 = tpu.matmul %836, %839, %cst_444 {dimension_numbers = #tpu.dot_dimension_numbers<[1], [0], [0], [1], [0, 0, 1, 1], [], []>} : vector<1x3xf32>, vector<3x5xf32>, vector<1x5xf32> -> vector<1x5xf32>
    %841 = arith.addf %838, %840 : vector<1x5xf32>
    %842 = vector.extract_strided_slice %777 {offsets = [1, 0], sizes = [1, 8], strides = [1, 1]} : vector<2x8xf32> to vector<1x8xf32>
    %c0_445 = arith.constant 0 : index
    %c0_446 = arith.constant 0 : index
    %843 = vector.load %arg30[%c0_445, %c0_446] : memref<8x5xf32, #tpu.memory_space<vmem>>, vector<8x5xf32>
    %cst_447 = arith.constant dense<0.000000e+00> : vector<1x5xf32>
    %844 = tpu.matmul %842, %843, %cst_447 {dimension_numbers = #tpu.dot_dimension_numbers<[1], [0], [0], [1], [0, 0, 1, 1], [], []>} : vector<1x8xf32>, vector<8x5xf32>, vector<1x5xf32> -> vector<1x5xf32>
    %845 = arith.addf %841, %844 : vector<1x5xf32>
    %c0_448 = arith.constant 0 : index
    %c0_449 = arith.constant 0 : index
    %846 = vector.load %arg31[%c0_448, %c0_449] : memref<1x5xf32, #tpu.memory_space<vmem>>, vector<1x5xf32>
    %847 = arith.addf %845, %846 : vector<1x5xf32>
    %848 = arith.negf %847 : vector<1x5xf32>
    %849 = math.exp %848 : vector<1x5xf32>
    %cst_450 = arith.constant 1.000000e+00 : f32
    %850 = vector.broadcast %cst_450 : f32 to vector<1x5xf32>
    %851 = arith.addf %850, %849 : vector<1x5xf32>
    %852 = arith.divf %850, %851 : vector<1x5xf32>
    %c1_451 = arith.constant 1 : index
    %c0_452 = arith.constant 0 : index
    %853 = vector.load %arg32[%c1_451, %c0_452] : memref<2x5xf32, #tpu.memory_space<vmem>>, vector<1x5xf32>
    tpu.vector_store %arg32[%c1_451, %c0_452], %852 {strides = array<i32>} : memref<2x5xf32, #tpu.memory_space<vmem>>, vector<1x5xf32>,
    return
  }
}

</mosaic_0001>

<llo_original>
// kernel: div.1
$region0: #{div.1}
  #allocation0 [shape = 's32[1]{0}', space=sflag, size = 0x4, scoped, tag = 'scoped memory for div.1']
  %s0 = inlined_call_operand.vmem [shape: f32[48], index: 0, kind: input, shape index: {}]
  %s1 = inlined_call_operand.vmem [shape: f32[48], index: 1, kind: input, shape index: {}]
  %s2 = inlined_call_operand.vmem [shape: f32[48], index: 2, kind: output, shape index: {}]
  %v3 = vld [vmem:[%s0] sm:$0x1]
  %v4 = vld [vmem:[%s1] sm:$0x1]
  %5 = xla_tuple %v3, %v4
  %6 = xla_tuple %5
  %v7 = vrcp.pop %v4
  %v8 = vmul.f32 %v4, %v7
  %v9 = vsub.f32 1.0, %v8
  %v10 = vmul.f32 %v7, %v9
  %v11 = vadd.f32 %v7, %v10
  %vm12 = vweird.f32 %v4
  %vm13 = vweird.f32 %v7
  %vm14 = vmor %vm12, %vm13
  %v15 = vsel %vm14, %v7, %v11
  %v16 = vand.u32 2147483647, %v4
  %vm17 = vcmp.eq.f32.partialorder %v16, 8.507059e+37
  %v18 = vand.u32 %v4, 2147483648
  %v19 = vor.u32 1.1754944e-38, %v18
  %v20 = vsel %vm17, %v19, %v15
  %v21 = vmul.f32 %v3, %v20
  %22 = xla_tuple %v21
  %23 = vst [vmem:[%s2] sm:$0x1] %v21

// kernel: eq.15
$region0: #{eq.15}
  %s0 = inlined_call_operand.vmem [shape: s32[6,8], index: 0, kind: input, shape index: {}]
  %s1 = inlined_call_operand.vmem [shape: s32[48], index: 1, kind: output, shape index: {}]
  $region1: #{eq.15} parent=0
    #allocation0 [shape = 'u8[4096]{0}', space=vmem, size = 0x1000, scoped, tag = 'scoped mem for output reshape']
    %v2 = vld [vmem:[%s0] sm:$0x1]
    %vm3 = vcmask 64512
    %4 = vst.msk [vmem:[#allocation0] sm:$0x1] %vm3, %v2
    %s5 = scalar_lea.vmem %s0, 5
    %v6 = vld [vmem:[%s5] sm:$0x1]
    %7 = vrot.lane.b32.xlu0 %v6, 40
    %v8 = vpop.permute.xlu0 %7
    %vm9 = vcmask 392512
    %10 = vst.msk [vmem:[#allocation0] sm:$0x1] %vm9, %v8
    %s11 = scalar_lea.vmem %s0, 4
    %v12 = vld [vmem:[%s11] sm:$0x1]
    %13 = vrot.lane.b32.xlu0 %v12, 32
    %v14 = vpop.permute.xlu0 %13
    %vm15 = vcmask 326912
    %16 = vst.msk [vmem:[#allocation0] sm:$0x1] %vm15, %v14
    %s17 = scalar_lea.vmem %s0, 3
    %v18 = vld [vmem:[%s17] sm:$0x1]
    %19 = vrot.lane.b32.xlu0 %v18, 24
    %v20 = vpop.permute.xlu0 %19
    %vm21 = vcmask 261312
    %22 = vst.msk [vmem:[#allocation0] sm:$0x1] %vm21, %v20
    %s23 = scalar_lea.vmem %s0, 2
    %v24 = vld [vmem:[%s23] sm:$0x1]
    %25 = vrot.lane.b32.xlu0 %v24, 16
    %v26 = vpop.permute.xlu0 %25
    %vm27 = vcmask 195712
    %28 = vst.msk [vmem:[#allocation0] sm:$0x1] %vm27, %v26
    %s29 = scalar_lea.vmem %s0, 1
    %v30 = vld [vmem:[%s29] sm:$0x1]
    %31 = vrot.lane.b32.xlu0 %v30, 8
    %v32 = vpop.permute.xlu0 %31
    %vm33 = vcmask 130112
    %34 = vst.msk [vmem:[#allocation0] sm:$0x1] %vm33, %v32
    %s36 = ssub.s32 2, 1
    %v37 = vld [vmem:[#allocation0] sm:%s36]
    %s39 = ssub.s32 2, 1
    %40 = vst [vmem:[%s1] sm:%s39] %v37

// kernel: personality_model_forward.1
$region0: #{personality_model_forward.1}
  #allocation0 [shape = 'u32[]', space=smem, size = 0x4, offset = 0x4, fixed_abs, tag = 'smem constant byte address 0x4 - core index']
  #allocation1 [shape = 'u32[72,128]{1,0:T(1,128)}', space=vmem, size = 0x9000, scoped, tag = 'internal scratch']
  #allocation2 [shape = 'f32[48,32]{1,0:T(8,128)}', space=vmem, size = 0x6000, scoped, tag = 'scratch operand']
  %s0 = inlined_call_operand.smem [shape: u32[33], index: -1, kind: input, shape index: {}]
  %s1 = sld [smem:[%s0]]
  %s2 = scalar_lea.smem %s0, 1
  %s3 = sld [smem:[%s2]]
  %s4 = scalar_lea.smem %s0, 2
  %s5 = sld [smem:[%s4]]
  %s6 = scalar_lea.smem %s0, 3
  %s7 = sld [smem:[%s6]]
  %s8 = scalar_lea.smem %s0, 4
  %s9 = sld [smem:[%s8]]
  %s10 = scalar_lea.smem %s0, 5
  %s11 = sld [smem:[%s10]]
  %s12 = scalar_lea.smem %s0, 6
  %s13 = sld [smem:[%s12]]
  %s14 = scalar_lea.smem %s0, 7
  %s15 = sld [smem:[%s14]]
  %s16 = scalar_lea.smem %s0, 8
  %s17 = sld [smem:[%s16]]
  %s18 = scalar_lea.smem %s0, 9
  %s19 = sld [smem:[%s18]]
  %s20 = scalar_lea.smem %s0, 10
  %s21 = sld [smem:[%s20]]
  %s22 = scalar_lea.smem %s0, 11
  %s23 = sld [smem:[%s22]]
  %s24 = scalar_lea.smem %s0, 12
  %s25 = sld [smem:[%s24]]
  %s26 = scalar_lea.smem %s0, 13
  %s27 = sld [smem:[%s26]]
  %s28 = scalar_lea.smem %s0, 14
  %s29 = sld [smem:[%s28]]
  %s30 = scalar_lea.smem %s0, 15
  %s31 = sld [smem:[%s30]]
  %s32 = scalar_lea.smem %s0, 16
  %s33 = sld [smem:[%s32]]
  %s34 = scalar_lea.smem %s0, 17
  %s35 = sld [smem:[%s34]]
  %s36 = scalar_lea.smem %s0, 18
  %s37 = sld [smem:[%s36]]
  %s38 = scalar_lea.smem %s0, 19
  %s39 = sld [smem:[%s38]]
  %s40 = scalar_lea.smem %s0, 20
  %s41 = sld [smem:[%s40]]
  %s42 = scalar_lea.smem %s0, 21
  %s43 = sld [smem:[%s42]]
  %s44 = scalar_lea.smem %s0, 22
  %s45 = sld [smem:[%s44]]
  %s46 = scalar_lea.smem %s0, 23
  %s47 = sld [smem:[%s46]]
  %s48 = scalar_lea.smem %s0, 24
  %s49 = sld [smem:[%s48]]
  %s50 = scalar_lea.smem %s0, 25
  %s51 = sld [smem:[%s50]]
  %s52 = scalar_lea.smem %s0, 26
  %s53 = sld [smem:[%s52]]
  %s54 = scalar_lea.smem %s0, 27
  %s55 = sld [smem:[%s54]]
  %s56 = scalar_lea.smem %s0, 28
  %s57 = sld [smem:[%s56]]
  %s58 = scalar_lea.smem %s0, 29
  %s59 = sld [smem:[%s58]]
  %s60 = scalar_lea.smem %s0, 30
  %s61 = sld [smem:[%s60]]
  %s62 = scalar_lea.smem %s0, 31
  %s63 = sld [smem:[%s62]]
  %s64 = scalar_lea.smem %s0, 32
  %s65 = sld [smem:[%s64]]
  %s66 = sld [smem:[#allocation0]]
  $region138: #{personality_model_forward.1} parent=0
    _
  %s68 = ssub.s32 1, %s66
  %s69 = scalar_select 0, %s68, %s66
  $region1: #{personality_model_forward.1} parent=0
    #allocation3 [shape = 'u8[1024]{0}', space=vmem, size = 0x400, scoped, tag = 'output window, operand 0, single buffered']
    #allocation4 [shape = 's32[1]{0}', space=sflag, size = 0x4, scoped, tag = 'scoped memory for personality_model_forward.1']
    %70 = vsyncpa [#allocation4], 0
    // Predicated region
    $region2: #{personality_model_forward.1} parent=1 // pred_check
      _
    $region3: #{personality_model_forward.1} parent=1 // pred_check_branch
      %72 = sbr.rel (0) target = $region5
    $region4: #{personality_model_forward.1} parent=1 // pred_region
      _
    $region5: #{personality_model_forward.1} parent=1 // pred_fallthru
      _
    // Predicated region
    $region6: #{personality_model_forward.1} parent=1 // pred_check
      _
    $region7: #{personality_model_forward.1} parent=1 // pred_check_branch
      %74 = sbr.rel (0) target = $region9
    $region8: #{personality_model_forward.1} parent=1 // pred_region
      _
    $region9: #{personality_model_forward.1} parent=1 // pred_fallthru
      _
    // Predicated region
    $region10: #{personality_model_forward.1} parent=1 // pred_check
      _
    $region11: #{personality_model_forward.1} parent=1 // pred_check_branch
      %76 = sbr.rel (0) target = $region13
    $region12: #{personality_model_forward.1} parent=1 // pred_region
      _
    $region13: #{personality_model_forward.1} parent=1 // pred_fallthru
      _
    // Predicated region
    $region14: #{personality_model_forward.1} parent=1 // pred_check
      _
    $region15: #{personality_model_forward.1} parent=1 // pred_check_branch
      %78 = sbr.rel (0) target = $region17
    $region16: #{personality_model_forward.1} parent=1 // pred_region
      _
    $region17: #{personality_model_forward.1} parent=1 // pred_fallthru
      _
    // Predicated region
    $region18: #{personality_model_forward.1} parent=1 // pred_check
      _
    $region19: #{personality_model_forward.1} parent=1 // pred_check_branch
      %80 = sbr.rel (0) target = $region21
    $region20: #{personality_model_forward.1} parent=1 // pred_region
      _
    $region21: #{personality_model_forward.1} parent=1 // pred_fallthru
      _
    // Predicated region
    $region22: #{personality_model_forward.1} parent=1 // pred_check
      _
    $region23: #{personality_model_forward.1} parent=1 // pred_check_branch
      %82 = sbr.rel (0) target = $region25
    $region24: #{personality_model_forward.1} parent=1 // pred_region
      _
    $region25: #{personality_model_forward.1} parent=1 // pred_fallthru
      _
    // Predicated region
    $region26: #{personality_model_forward.1} parent=1 // pred_check
      _
    $region27: #{personality_model_forward.1} parent=1 // pred_check_branch
      %84 = sbr.rel (0) target = $region29
    $region28: #{personality_model_forward.1} parent=1 // pred_region
      _
    $region29: #{personality_model_forward.1} parent=1 // pred_fallthru
      _
    // Predicated region
    $region30: #{personality_model_forward.1} parent=1 // pred_check
      _
    $region31: #{personality_model_forward.1} parent=1 // pred_check_branch
      %86 = sbr.rel (0) target = $region33
    $region32: #{personality_model_forward.1} parent=1 // pred_region
      _
    $region33: #{personality_model_forward.1} parent=1 // pred_fallthru
      _
    // Predicated region
    $region34: #{personality_model_forward.1} parent=1 // pred_check
      _
    $region35: #{personality_model_forward.1} parent=1 // pred_check_branch
      %88 = sbr.rel (0) target = $region37
    $region36: #{personality_model_forward.1} parent=1 // pred_region
      _
    $region37: #{personality_model_forward.1} parent=1 // pred_fallthru
      _
    // Predicated region
    $region38: #{personality_model_forward.1} parent=1 // pred_check
      _
    $region39: #{personality_model_forward.1} parent=1 // pred_check_branch
      %90 = sbr.rel (0) target = $region41
    $region40: #{personality_model_forward.1} parent=1 // pred_region
      _
    $region41: #{personality_model_forward.1} parent=1 // pred_fallthru
      _
    // Predicated region
    $region42: #{personality_model_forward.1} parent=1 // pred_check
      _
    $region43: #{personality_model_forward.1} parent=1 // pred_check_branch
      %92 = sbr.rel (0) target = $region45
    $region44: #{personality_model_forward.1} parent=1 // pred_region
      _
    $region45: #{personality_model_forward.1} parent=1 // pred_fallthru
      _
    // Predicated region
    $region46: #{personality_model_forward.1} parent=1 // pred_check
      _
    $region47: #{personality_model_forward.1} parent=1 // pred_check_branch
      %94 = sbr.rel (0) target = $region49
    $region48: #{personality_model_forward.1} parent=1 // pred_region
      _
    $region49: #{personality_model_forward.1} parent=1 // pred_fallthru
      _
    // Predicated region
    $region50: #{personality_model_forward.1} parent=1 // pred_check
      _
    $region51: #{personality_model_forward.1} parent=1 // pred_check_branch
      %96 = sbr.rel (0) target = $region53
    $region52: #{personality_model_forward.1} parent=1 // pred_region
      _
    $region53: #{personality_model_forward.1} parent=1 // pred_fallthru
      _
    // Predicated region
    $region54: #{personality_model_forward.1} parent=1 // pred_check
      _
    $region55: #{personality_model_forward.1} parent=1 // pred_check_branch
      %98 = sbr.rel (0) target = $region57
    $region56: #{personality_model_forward.1} parent=1 // pred_region
      _
    $region57: #{personality_model_forward.1} parent=1 // pred_fallthru
      _
    // Predicated region
    $region58: #{personality_model_forward.1} parent=1 // pred_check
      _
    $region59: #{personality_model_forward.1} parent=1 // pred_check_branch
      %100 = sbr.rel (0) target = $region61
    $region60: #{personality_model_forward.1} parent=1 // pred_region
      _
    $region61: #{personality_model_forward.1} parent=1 // pred_fallthru
      _
    // Predicated region
    $region62: #{personality_model_forward.1} parent=1 // pred_check
      _
    $region63: #{personality_model_forward.1} parent=1 // pred_check_branch
      %102 = sbr.rel (0) target = $region65
    $region64: #{personality_model_forward.1} parent=1 // pred_region
      _
    $region65: #{personality_model_forward.1} parent=1 // pred_fallthru
      _
    // Predicated region
    $region66: #{personality_model_forward.1} parent=1 // pred_check
      _
    $region67: #{personality_model_forward.1} parent=1 // pred_check_branch
      %104 = sbr.rel (0) target = $region69
    $region68: #{personality_model_forward.1} parent=1 // pred_region
      _
    $region69: #{personality_model_forward.1} parent=1 // pred_fallthru
      _
    // Predicated region
    $region70: #{personality_model_forward.1} parent=1 // pred_check
      _
    $region71: #{personality_model_forward.1} parent=1 // pred_check_branch
      %106 = sbr.rel (0) target = $region73
    $region72: #{personality_model_forward.1} parent=1 // pred_region
      _
    $region73: #{personality_model_forward.1} parent=1 // pred_fallthru
      _
    // Predicated region
    $region74: #{personality_model_forward.1} parent=1 // pred_check
      _
    $region75: #{personality_model_forward.1} parent=1 // pred_check_branch
      %108 = sbr.rel (0) target = $region77
    $region76: #{personality_model_forward.1} parent=1 // pred_region
      _
    $region77: #{personality_model_forward.1} parent=1 // pred_fallthru
      _
    // Predicated region
    $region78: #{personality_model_forward.1} parent=1 // pred_check
      _
    $region79: #{personality_model_forward.1} parent=1 // pred_check_branch
      %110 = sbr.rel (0) target = $region81
    $region80: #{personality_model_forward.1} parent=1 // pred_region
      _
    $region81: #{personality_model_forward.1} parent=1 // pred_fallthru
      _
    // Predicated region
    $region82: #{personality_model_forward.1} parent=1 // pred_check
      _
    $region83: #{personality_model_forward.1} parent=1 // pred_check_branch
      %112 = sbr.rel (0) target = $region85
    $region84: #{personality_model_forward.1} parent=1 // pred_region
      _
    $region85: #{personality_model_forward.1} parent=1 // pred_fallthru
      _
    // Predicated region
    $region86: #{personality_model_forward.1} parent=1 // pred_check
      _
    $region87: #{personality_model_forward.1} parent=1 // pred_check_branch
      %114 = sbr.rel (0) target = $region89
    $region88: #{personality_model_forward.1} parent=1 // pred_region
      _
    $region89: #{personality_model_forward.1} parent=1 // pred_fallthru
      _
    // Predicated region
    $region90: #{personality_model_forward.1} parent=1 // pred_check
      _
    $region91: #{personality_model_forward.1} parent=1 // pred_check_branch
      %116 = sbr.rel (0) target = $region93
    $region92: #{personality_model_forward.1} parent=1 // pred_region
      _
    $region93: #{personality_model_forward.1} parent=1 // pred_fallthru
      _
    // Predicated region
    $region94: #{personality_model_forward.1} parent=1 // pred_check
      _
    $region95: #{personality_model_forward.1} parent=1 // pred_check_branch
      %118 = sbr.rel (0) target = $region97
    $region96: #{personality_model_forward.1} parent=1 // pred_region
      _
    $region97: #{personality_model_forward.1} parent=1 // pred_fallthru
      _
    // Predicated region
    $region98: #{personality_model_forward.1} parent=1 // pred_check
      _
    $region99: #{personality_model_forward.1} parent=1 // pred_check_branch
      %120 = sbr.rel (0) target = $region101
    $region100: #{personality_model_forward.1} parent=1 // pred_region
      _
    $region101: #{personality_model_forward.1} parent=1 // pred_fallthru
      _
    // Predicated region
    $region102: #{personality_model_forward.1} parent=1 // pred_check
      _
    $region103: #{personality_model_forward.1} parent=1 // pred_check_branch
      %122 = sbr.rel (0) target = $region105
    $region104: #{personality_model_forward.1} parent=1 // pred_region
      _
    $region105: #{personality_model_forward.1} parent=1 // pred_fallthru
      _
    // Predicated region
    $region106: #{personality_model_forward.1} parent=1 // pred_check
      _
    $region107: #{personality_model_forward.1} parent=1 // pred_check_branch
      %124 = sbr.rel (0) target = $region109
    $region108: #{personality_model_forward.1} parent=1 // pred_region
      _
    $region109: #{personality_model_forward.1} parent=1 // pred_fallthru
      _
    // Predicated region
    $region110: #{personality_model_forward.1} parent=1 // pred_check
      _
    $region111: #{personality_model_forward.1} parent=1 // pred_check_branch
      %126 = sbr.rel (0) target = $region113
    $region112: #{personality_model_forward.1} parent=1 // pred_region
      _
    $region113: #{personality_model_forward.1} parent=1 // pred_fallthru
      _
    // Predicated region
    $region114: #{personality_model_forward.1} parent=1 // pred_check
      _
    $region115: #{personality_model_forward.1} parent=1 // pred_check_branch
      %128 = sbr.rel (0) target = $region117
    $region116: #{personality_model_forward.1} parent=1 // pred_region
      _
    $region117: #{personality_model_forward.1} parent=1 // pred_fallthru
      _
    // Predicated region
    $region118: #{personality_model_forward.1} parent=1 // pred_check
      _
    $region119: #{personality_model_forward.1} parent=1 // pred_check_branch
      %130 = sbr.rel (0) target = $region121
    $region120: #{personality_model_forward.1} parent=1 // pred_region
      _
    $region121: #{personality_model_forward.1} parent=1 // pred_fallthru
      _
    // Predicated region
    $region122: #{personality_model_forward.1} parent=1 // pred_check
      _
    $region123: #{personality_model_forward.1} parent=1 // pred_check_branch
      %132 = sbr.rel (0) target = $region125
    $region124: #{personality_model_forward.1} parent=1 // pred_region
      _
    $region125: #{personality_model_forward.1} parent=1 // pred_fallthru
      _
    // Predicated region
    $region126: #{personality_model_forward.1} parent=1 // pred_check
      _
    $region127: #{personality_model_forward.1} parent=1 // pred_check_branch
      %134 = sbr.rel (0) target = $region129
    $region128: #{personality_model_forward.1} parent=1 // pred_region
      _
    $region129: #{personality_model_forward.1} parent=1 // pred_fallthru
      _
    %v135 = vld [vmem:[%s1] sm:$0xff]
    %v136 = vld [vmem:[%s1 + $0x8] sm:$0xff]
    %v137 = vld [vmem:[%s1 + $0x10] sm:$0xff]
    %v138 = vld [vmem:[%s1 + $0x18] sm:$0xff]
    %v139 = vld [vmem:[%s1 + $0x20] sm:$0xff]
    %v140 = vld [vmem:[%s1 + $0x28] sm:$0xff]
    %v141 = vld [vmem:[%s3] sm:$0xff]
    %v142 = vld [vmem:[%s3 + $0x8] sm:$0xff]
    %v143 = vld [vmem:[%s3 + $0x10] sm:$0xff]
    %v144 = vld [vmem:[%s3 + $0x18] sm:$0xff]
    %v145 = vld [vmem:[%s3 + $0x20] sm:$0xff]
    %v146 = vld [vmem:[%s3 + $0x28] sm:$0xff]
    %v147 = vld [vmem:[%s13] sm:$0xff]
    %v148 = vld [vmem:[%s13 + $0x8] sm:$0xff]
    %v149 = vld [vmem:[%s13 + $0x10] sm:$0xff]
    %v150 = vld [vmem:[%s13 + $0x18] sm:$0xff]
    %v151 = vld [vmem:[%s15] sm:$0x1]
    %v153 = vperm.slane %v151, 0
    %vm155 = vcmask 261120
    %v157 = vsel %vm155, %v135, 0
    %v160 = vsel %vm155, %v136, 0
    %v163 = vsel %vm155, %v137, 0
    %v166 = vsel %vm155, %v138, 0
    %v169 = vsel %vm155, %v139, 0
    %v172 = vsel %vm155, %v140, 0
    %174 = vmatpush.msra.mxu0 0.0
    %175 = vmatpush.msra.mxu0 0.0
    %176 = vmatpush.msra.mxu0 0.0
    %177 = vmatpush.msra.mxu0 0.0
    %178 = vmatpush.msra.mxu0 0.0
    %179 = vmatpush.msra.mxu0 0.0
    %180 = vmatpush.msra.mxu0 0.0
    %181 = vmatpush.msra.mxu0 0.0
    %182 = vmatpush.msra.mxu0 0.0
    %183 = vmatpush.msra.mxu0 0.0
    %184 = vmatpush.msra.mxu0 0.0
    %185 = vmatpush.msra.mxu0 0.0
    %186 = vmatpush.msra.mxu0 %v150
    %187 = vmatpush.msra.mxu0 %v149
    %188 = vmatpush.msra.mxu0 %v148
    %189 = vmatpush.msra.mxu0 %v147
    %190 = vmatmul.f32.gmra.mxu0 %v157
    %v191 = vpop.f32.mrf.mxu0
    %v192 = vadd.f32 %v153, %v191
    %193 = vmatmul.f32.gmra.mxu0 %v160
    %v194 = vpop.f32.mrf.mxu0
    %v195 = vadd.f32 %v153, %v194
    %196 = vmatmul.f32.gmra.mxu0 %v163
    %v197 = vpop.f32.mrf.mxu0
    %v198 = vadd.f32 %v153, %v197
    %199 = vmatmul.f32.gmra.mxu0 %v166
    %v200 = vpop.f32.mrf.mxu0
    %v201 = vadd.f32 %v153, %v200
    %202 = vmatmul.f32.gmra.mxu0 %v169
    %v203 = vpop.f32.mrf.mxu0
    %v204 = vadd.f32 %v153, %v203
    %205 = vmatmul.f32.gmra.mxu0 %v172
    %v206 = vpop.f32.mrf.mxu0
    %v207 = vadd.f32 %v153, %v206
    %208 = vdwg.mxu0
    %v209 = vld [vmem:[%s17] sm:$0xff]
    %v210 = vld [vmem:[%s17 + $0x8] sm:$0xff]
    %v211 = vld [vmem:[%s17 + $0x10] sm:$0xff]
    %v212 = vld [vmem:[%s17 + $0x18] sm:$0xff]
    %v213 = vld [vmem:[%s19] sm:$0x1]
    %v215 = vperm.slane %v213, 0
    %217 = vmatpush.msra.mxu0 0.0
    %218 = vmatpush.msra.mxu0 0.0
    %219 = vmatpush.msra.mxu0 0.0
    %220 = vmatpush.msra.mxu0 0.0
    %221 = vmatpush.msra.mxu0 0.0
    %222 = vmatpush.msra.mxu0 0.0
    %223 = vmatpush.msra.mxu0 0.0
    %224 = vmatpush.msra.mxu0 0.0
    %225 = vmatpush.msra.mxu0 0.0
    %226 = vmatpush.msra.mxu0 0.0
    %227 = vmatpush.msra.mxu0 0.0
    %228 = vmatpush.msra.mxu0 0.0
    %229 = vmatpush.msra.mxu0 %v212
    %230 = vmatpush.msra.mxu0 %v211
    %231 = vmatpush.msra.mxu0 %v210
    %232 = vmatpush.msra.mxu0 %v209
    %233 = vmatmul.f32.gmra.mxu0 %v157
    %v234 = vpop.f32.mrf.mxu0
    %v235 = vadd.f32 %v215, %v234
    %236 = vmatmul.f32.gmra.mxu0 %v160
    %v237 = vpop.f32.mrf.mxu0
    %v238 = vadd.f32 %v215, %v237
    %239 = vmatmul.f32.gmra.mxu0 %v163
    %v240 = vpop.f32.mrf.mxu0
    %v241 = vadd.f32 %v215, %v240
    %242 = vmatmul.f32.gmra.mxu0 %v166
    %v243 = vpop.f32.mrf.mxu0
    %v244 = vadd.f32 %v215, %v243
    %245 = vmatmul.f32.gmra.mxu0 %v169
    %v246 = vpop.f32.mrf.mxu0
    %v247 = vadd.f32 %v215, %v246
    %248 = vmatmul.f32.gmra.mxu0 %v172
    %v249 = vpop.f32.mrf.mxu0
    %v250 = vadd.f32 %v215, %v249
    %251 = vdwg.mxu0
    %v252 = vld [vmem:[%s21] sm:$0xff]
    %v253 = vld [vmem:[%s21 + $0x8] sm:$0xff]
    %v254 = vld [vmem:[%s21 + $0x10] sm:$0xff]
    %v255 = vld [vmem:[%s21 + $0x18] sm:$0xff]
    %v256 = vld [vmem:[%s23] sm:$0x1]
    %v258 = vperm.slane %v256, 0
    %260 = vmatpush.msra.mxu0 0.0
    %261 = vmatpush.msra.mxu0 0.0
    %262 = vmatpush.msra.mxu0 0.0
    %263 = vmatpush.msra.mxu0 0.0
    %264 = vmatpush.msra.mxu0 0.0
    %265 = vmatpush.msra.mxu0 0.0
    %266 = vmatpush.msra.mxu0 0.0
    %267 = vmatpush.msra.mxu0 0.0
    %268 = vmatpush.msra.mxu0 0.0
    %269 = vmatpush.msra.mxu0 0.0
    %270 = vmatpush.msra.mxu0 0.0
    %271 = vmatpush.msra.mxu0 0.0
    %272 = vmatpush.msra.mxu0 %v255
    %273 = vmatpush.msra.mxu0 %v254
    %274 = vmatpush.msra.mxu0 %v253
    %275 = vmatpush.msra.mxu0 %v252
    %276 = vmatmul.f32.gmra.mxu0 %v157
    %v277 = vpop.f32.mrf.mxu0
    %v278 = vadd.f32 %v258, %v277
    %279 = vmatmul.f32.gmra.mxu0 %v160
    %v280 = vpop.f32.mrf.mxu0
    %v281 = vadd.f32 %v258, %v280
    %282 = vmatmul.f32.gmra.mxu0 %v163
    %v283 = vpop.f32.mrf.mxu0
    %v284 = vadd.f32 %v258, %v283
    %285 = vmatmul.f32.gmra.mxu0 %v166
    %v286 = vpop.f32.mrf.mxu0
    %v287 = vadd.f32 %v258, %v286
    %288 = vmatmul.f32.gmra.mxu0 %v169
    %v289 = vpop.f32.mrf.mxu0
    %v290 = vadd.f32 %v258, %v289
    %291 = vmatmul.f32.gmra.mxu0 %v172
    %v292 = vpop.f32.mrf.mxu0
    %v293 = vadd.f32 %v258, %v292
    %294 = vdwg.mxu0
    %vm295 = vcmask 64512
    %v297 = vsel %vm295, %v192, 0
    %v300 = vsel %vm295, %v195, 0
    %v303 = vsel %vm295, %v198, 0
    %v306 = vsel %vm295, %v201, 0
    %v309 = vsel %vm295, %v204, 0
    %v312 = vsel %vm295, %v207, 0
    %v315 = vsel %vm295, %v235, 0
    %v318 = vsel %vm295, %v238, 0
    %v321 = vsel %vm295, %v241, 0
    %v324 = vsel %vm295, %v244, 0
    %v327 = vsel %vm295, %v247, 0
    %v330 = vsel %vm295, %v250, 0
    %332 = vmatpush.xpose.msra.mxu0 0.0
    %333 = vmatpush.xpose.msra.mxu0 0.0
    %334 = vmatpush.xpose.msra.mxu0 0.0
    %335 = vmatpush.xpose.msra.mxu0 0.0
    %336 = vmatpush.xpose.msra.mxu0 0.0
    %337 = vmatpush.xpose.msra.mxu0 0.0
    %338 = vmatpush.xpose.msra.mxu0 0.0
    %339 = vmatpush.xpose.msra.mxu0 0.0
    %340 = vmatpush.xpose.msra.mxu0 0.0
    %341 = vmatpush.xpose.msra.mxu0 0.0
    %342 = vmatpush.xpose.msra.mxu0 %v330
    %343 = vmatpush.xpose.msra.mxu0 %v327
    %344 = vmatpush.xpose.msra.mxu0 %v324
    %345 = vmatpush.xpose.msra.mxu0 %v321
    %346 = vmatpush.xpose.msra.mxu0 %v318
    %347 = vmatpush.xpose.msra.mxu0 %v315
    %348 = vmatmul.f32.gmra.mxu0 %v297
    %v349 = vpop.f32.mrf.mxu0
    %v350 = vadd.f32 0.0, %v349
    %351 = vmatmul.f32.gmra.mxu0 %v300
    %v352 = vpop.f32.mrf.mxu0
    %v353 = vadd.f32 0.0, %v352
    %354 = vmatmul.f32.gmra.mxu0 %v303
    %v355 = vpop.f32.mrf.mxu0
    %v356 = vadd.f32 0.0, %v355
    %357 = vmatmul.f32.gmra.mxu0 %v306
    %v358 = vpop.f32.mrf.mxu0
    %v359 = vadd.f32 0.0, %v358
    %360 = vmatmul.f32.gmra.mxu0 %v309
    %v361 = vpop.f32.mrf.mxu0
    %v362 = vadd.f32 0.0, %v361
    %363 = vmatmul.f32.gmra.mxu0 %v312
    %v364 = vpop.f32.mrf.mxu0
    %v365 = vadd.f32 0.0, %v364
    %366 = vdwg.mxu0
    %v367 = vmul.f32 %v350, 0.35355338
    %v368 = vmul.f32 %v353, 0.35355338
    %v369 = vmul.f32 %v356, 0.35355338
    %v370 = vmul.f32 %v359, 0.35355338
    %v371 = vmul.f32 %v362, 0.35355338
    %v372 = vmul.f32 %v365, 0.35355338
    %v373 = vadd.f32 %v367, %v141
    %v374 = vadd.f32 %v368, %v142
    %v375 = vadd.f32 %v369, %v143
    %v376 = vadd.f32 %v370, %v144
    %v377 = vadd.f32 %v371, %v145
    %v378 = vadd.f32 %v372, %v146
    %vm379 = vcmask 392192
    %v380 = vsel %vm379, %v373, -inf
    %381 = vmax.xlane.f32.xlu0 %v380
    %v382 = vpop.xlane.xlu0 %381
    %v383 = vsel %vm379, %v374, -inf
    %384 = vmax.xlane.f32.xlu0 %v383
    %v385 = vpop.xlane.xlu0 %384
    %v386 = vsel %vm379, %v375, -inf
    %387 = vmax.xlane.f32.xlu0 %v386
    %v388 = vpop.xlane.xlu0 %387
    %v389 = vsel %vm379, %v376, -inf
    %390 = vmax.xlane.f32.xlu0 %v389
    %v391 = vpop.xlane.xlu0 %390
    %v392 = vsel %vm379, %v377, -inf
    %393 = vmax.xlane.f32.xlu0 %v392
    %v394 = vpop.xlane.xlu0 %393
    %v395 = vsel %vm379, %v378, -inf
    %396 = vmax.xlane.f32.xlu0 %v395
    %v397 = vpop.xlane.xlu0 %396
    %v398 = vsub.f32 %v373, %v382
    %v399 = vsub.f32 %v374, %v385
    %v400 = vsub.f32 %v375, %v388
    %v401 = vsub.f32 %v376, %v391
    %v402 = vsub.f32 %v377, %v394
    %v403 = vsub.f32 %v378, %v397
    %v404 = vmul.f32 %v398, 1.442695
    %v405 = vpow.pop %v404
    %v406 = vmul.f32 %v399, 1.442695
    %v407 = vpow.pop %v406
    %v408 = vmul.f32 %v400, 1.442695
    %v409 = vpow.pop %v408
    %v410 = vmul.f32 %v401, 1.442695
    %v411 = vpow.pop %v410
    %v412 = vmul.f32 %v402, 1.442695
    %v413 = vpow.pop %v412
    %v414 = vmul.f32 %v403, 1.442695
    %v415 = vpow.pop %v414
    %v416 = vsel %vm379, %v405, 0.0
    %417 = vadd.xlane.f32.xlu0 %v416
    %v418 = vpop.xlane.xlu0 %417
    %v419 = vsel %vm379, %v407, 0.0
    %420 = vadd.xlane.f32.xlu0 %v419
    %v421 = vpop.xlane.xlu0 %420
    %v422 = vsel %vm379, %v409, 0.0
    %423 = vadd.xlane.f32.xlu0 %v422
    %v424 = vpop.xlane.xlu0 %423
    %v425 = vsel %vm379, %v411, 0.0
    %426 = vadd.xlane.f32.xlu0 %v425
    %v427 = vpop.xlane.xlu0 %426
    %v428 = vsel %vm379, %v413, 0.0
    %429 = vadd.xlane.f32.xlu0 %v428
    %v430 = vpop.xlane.xlu0 %429
    %v431 = vsel %vm379, %v415, 0.0
    %432 = vadd.xlane.f32.xlu0 %v431
    %v433 = vpop.xlane.xlu0 %432
    %v434 = vrcp.pop %v418
    %v435 = vrcp.pop %v421
    %v436 = vrcp.pop %v424
    %v437 = vrcp.pop %v427
    %v438 = vrcp.pop %v430
    %v439 = vrcp.pop %v433
    %v440 = vmul.f32 %v405, %v434
    %v441 = vmul.f32 %v407, %v435
    %v442 = vmul.f32 %v409, %v436
    %v443 = vmul.f32 %v411, %v437
    %v444 = vmul.f32 %v413, %v438
    %v445 = vmul.f32 %v415, %v439
    %v447 = vsel %vm379, %v440, 0
    %v450 = vsel %vm379, %v441, 0
    %v453 = vsel %vm379, %v442, 0
    %v456 = vsel %vm379, %v443, 0
    %v459 = vsel %vm379, %v444, 0
    %v462 = vsel %vm379, %v445, 0
    %464 = vmatpush.msra.mxu0 0.0
    %465 = vmatpush.msra.mxu0 0.0
    %466 = vmatpush.msra.mxu0 0.0
    %467 = vmatpush.msra.mxu0 0.0
    %468 = vmatpush.msra.mxu0 0.0
    %469 = vmatpush.msra.mxu0 0.0
    %470 = vmatpush.msra.mxu0 0.0
    %471 = vmatpush.msra.mxu0 0.0
    %472 = vmatpush.msra.mxu0 0.0
    %473 = vmatpush.msra.mxu0 0.0
    %474 = vmatpush.msra.mxu0 %v293
    %475 = vmatpush.msra.mxu0 %v290
    %476 = vmatpush.msra.mxu0 %v287
    %477 = vmatpush.msra.mxu0 %v284
    %478 = vmatpush.msra.mxu0 %v281
    %479 = vmatpush.msra.mxu0 %v278
    %480 = vmatmul.f32.gmra.mxu0 %v447
    %v481 = vpop.f32.mrf.mxu0
    %v482 = vadd.f32 0.0, %v481
    %483 = vmatmul.f32.gmra.mxu0 %v450
    %v484 = vpop.f32.mrf.mxu0
    %v485 = vadd.f32 0.0, %v484
    %486 = vmatmul.f32.gmra.mxu0 %v453
    %v487 = vpop.f32.mrf.mxu0
    %v488 = vadd.f32 0.0, %v487
    %489 = vmatmul.f32.gmra.mxu0 %v456
    %v490 = vpop.f32.mrf.mxu0
    %v491 = vadd.f32 0.0, %v490
    %492 = vmatmul.f32.gmra.mxu0 %v459
    %v493 = vpop.f32.mrf.mxu0
    %v494 = vadd.f32 0.0, %v493
    %495 = vmatmul.f32.gmra.mxu0 %v462
    %v496 = vpop.f32.mrf.mxu0
    %v497 = vadd.f32 0.0, %v496
    %498 = vdwg.mxu0
    %499 = vst.msk [vmem:[#allocation2] sm:$0xff] %vm295, %v482
    %500 = vst.msk [vmem:[#allocation2 + $0x8] sm:$0xff] %vm295, %v485
    %501 = vst.msk [vmem:[#allocation2 + $0x10] sm:$0xff] %vm295, %v488
    %502 = vst.msk [vmem:[#allocation2 + $0x18] sm:$0xff] %vm295, %v491
    %503 = vst.msk [vmem:[#allocation2 + $0x20] sm:$0xff] %vm295, %v494
    %504 = vst.msk [vmem:[#allocation2 + $0x28] sm:$0xff] %vm295, %v497
    %505 = vrot.lane.b32.xlu0 %v192, 120
    %v506 = vpop.permute.xlu0 %505
    %507 = vrot.lane.b32.xlu0 %v195, 120
    %v508 = vpop.permute.xlu0 %507
    %509 = vrot.lane.b32.xlu0 %v198, 120
    %v510 = vpop.permute.xlu0 %509
    %511 = vrot.lane.b32.xlu0 %v201, 120
    %v512 = vpop.permute.xlu0 %511
    %513 = vrot.lane.b32.xlu0 %v204, 120
    %v514 = vpop.permute.xlu0 %513
    %515 = vrot.lane.b32.xlu0 %v207, 120
    %v516 = vpop.permute.xlu0 %515
    %517 = vrot.lane.b32.xlu0 %v235, 120
    %v518 = vpop.permute.xlu0 %517
    %519 = vrot.lane.b32.xlu0 %v238, 120
    %v520 = vpop.permute.xlu0 %519
    %521 = vrot.lane.b32.xlu0 %v241, 120
    %v522 = vpop.permute.xlu0 %521
    %523 = vrot.lane.b32.xlu0 %v244, 120
    %v524 = vpop.permute.xlu0 %523
    %525 = vrot.lane.b32.xlu0 %v247, 120
    %v526 = vpop.permute.xlu0 %525
    %527 = vrot.lane.b32.xlu0 %v250, 120
    %v528 = vpop.permute.xlu0 %527
    %v529 = vsel %vm295, %v506, 0
    %v531 = vsel %vm295, %v508, 0
    %v533 = vsel %vm295, %v510, 0
    %v535 = vsel %vm295, %v512, 0
    %v537 = vsel %vm295, %v514, 0
    %v539 = vsel %vm295, %v516, 0
    %v541 = vsel %vm295, %v518, 0
    %v543 = vsel %vm295, %v520, 0
    %v545 = vsel %vm295, %v522, 0
    %v547 = vsel %vm295, %v524, 0
    %v549 = vsel %vm295, %v526, 0
    %v551 = vsel %vm295, %v528, 0
    %553 = vmatpush.xpose.msra.mxu0 0.0
    %554 = vmatpush.xpose.msra.mxu0 0.0
    %555 = vmatpush.xpose.msra.mxu0 0.0
    %556 = vmatpush.xpose.msra.mxu0 0.0
    %557 = vmatpush.xpose.msra.mxu0 0.0
    %558 = vmatpush.xpose.msra.mxu0 0.0
    %559 = vmatpush.xpose.msra.mxu0 0.0
    %560 = vmatpush.xpose.msra.mxu0 0.0
    %561 = vmatpush.xpose.msra.mxu0 0.0
    %562 = vmatpush.xpose.msra.mxu0 0.0
    %563 = vmatpush.xpose.msra.mxu0 %v551
    %564 = vmatpush.xpose.msra.mxu0 %v549
    %565 = vmatpush.xpose.msra.mxu0 %v547
    %566 = vmatpush.xpose.msra.mxu0 %v545
    %567 = vmatpush.xpose.msra.mxu0 %v543
    %568 = vmatpush.xpose.msra.mxu0 %v541
    %569 = vmatmul.f32.gmra.mxu0 %v529
    %v570 = vpop.f32.mrf.mxu0
    %v571 = vadd.f32 0.0, %v570
    %572 = vmatmul.f32.gmra.mxu0 %v531
    %v573 = vpop.f32.mrf.mxu0
    %v574 = vadd.f32 0.0, %v573
    %575 = vmatmul.f32.gmra.mxu0 %v533
    %v576 = vpop.f32.mrf.mxu0
    %v577 = vadd.f32 0.0, %v576
    %578 = vmatmul.f32.gmra.mxu0 %v535
    %v579 = vpop.f32.mrf.mxu0
    %v580 = vadd.f32 0.0, %v579
    %581 = vmatmul.f32.gmra.mxu0 %v537
    %v582 = vpop.f32.mrf.mxu0
    %v583 = vadd.f32 0.0, %v582
    %584 = vmatmul.f32.gmra.mxu0 %v539
    %v585 = vpop.f32.mrf.mxu0
    %v586 = vadd.f32 0.0, %v585
    %587 = vdwg.mxu0
    %v588 = vmul.f32 %v571, 0.35355338
    %v589 = vmul.f32 %v574, 0.35355338
    %v590 = vmul.f32 %v577, 0.35355338
    %v591 = vmul.f32 %v580, 0.35355338
    %v592 = vmul.f32 %v583, 0.35355338
    %v593 = vmul.f32 %v586, 0.35355338
    %v594 = vadd.f32 %v588, %v141
    %v595 = vadd.f32 %v589, %v142
    %v596 = vadd.f32 %v590, %v143
    %v597 = vadd.f32 %v591, %v144
    %v598 = vadd.f32 %v592, %v145
    %v599 = vadd.f32 %v593, %v146
    %v600 = vsel %vm379, %v594, -inf
    %601 = vmax.xlane.f32.xlu0 %v600
    %v602 = vpop.xlane.xlu0 %601
    %v603 = vsel %vm379, %v595, -inf
    %604 = vmax.xlane.f32.xlu0 %v603
    %v605 = vpop.xlane.xlu0 %604
    %v606 = vsel %vm379, %v596, -inf
    %607 = vmax.xlane.f32.xlu0 %v606
    %v608 = vpop.xlane.xlu0 %607
    %v609 = vsel %vm379, %v597, -inf
    %610 = vmax.xlane.f32.xlu0 %v609
    %v611 = vpop.xlane.xlu0 %610
    %v612 = vsel %vm379, %v598, -inf
    %613 = vmax.xlane.f32.xlu0 %v612
    %v614 = vpop.xlane.xlu0 %613
    %v615 = vsel %vm379, %v599, -inf
    %616 = vmax.xlane.f32.xlu0 %v615
    %v617 = vpop.xlane.xlu0 %616
    %v618 = vsub.f32 %v594, %v602
    %v619 = vsub.f32 %v595, %v605
    %v620 = vsub.f32 %v596, %v608
    %v621 = vsub.f32 %v597, %v611
    %v622 = vsub.f32 %v598, %v614
    %v623 = vsub.f32 %v599, %v617
    %v624 = vmul.f32 %v618, 1.442695
    %v625 = vpow.pop %v624
    %v626 = vmul.f32 %v619, 1.442695
    %v627 = vpow.pop %v626
    %v628 = vmul.f32 %v620, 1.442695
    %v629 = vpow.pop %v628
    %v630 = vmul.f32 %v621, 1.442695
    %v631 = vpow.pop %v630
    %v632 = vmul.f32 %v622, 1.442695
    %v633 = vpow.pop %v632
    %v634 = vmul.f32 %v623, 1.442695
    %v635 = vpow.pop %v634
    %v636 = vsel %vm379, %v625, 0.0
    %637 = vadd.xlane.f32.xlu0 %v636
    %v638 = vpop.xlane.xlu0 %637
    %v639 = vsel %vm379, %v627, 0.0
    %640 = vadd.xlane.f32.xlu0 %v639
    %v641 = vpop.xlane.xlu0 %640
    %v642 = vsel %vm379, %v629, 0.0
    %643 = vadd.xlane.f32.xlu0 %v642
    %v644 = vpop.xlane.xlu0 %643
    %v645 = vsel %vm379, %v631, 0.0
    %646 = vadd.xlane.f32.xlu0 %v645
    %v647 = vpop.xlane.xlu0 %646
    %v648 = vsel %vm379, %v633, 0.0
    %649 = vadd.xlane.f32.xlu0 %v648
    %v650 = vpop.xlane.xlu0 %649
    %v651 = vsel %vm379, %v635, 0.0
    %652 = vadd.xlane.f32.xlu0 %v651
    %v653 = vpop.xlane.xlu0 %652
    %v654 = vrcp.pop %v638
    %v655 = vrcp.pop %v641
    %v656 = vrcp.pop %v644
    %v657 = vrcp.pop %v647
    %v658 = vrcp.pop %v650
    %v659 = vrcp.pop %v653
    %v660 = vmul.f32 %v625, %v654
    %v661 = vmul.f32 %v627, %v655
    %v662 = vmul.f32 %v629, %v656
    %v663 = vmul.f32 %v631, %v657
    %v664 = vmul.f32 %v633, %v658
    %v665 = vmul.f32 %v635, %v659
    %672 = vrot.lane.b32.xlu0 %v278, 120
    %v673 = vpop.permute.xlu0 %672
    %674 = vrot.lane.b32.xlu0 %v281, 120
    %v675 = vpop.permute.xlu0 %674
    %676 = vrot.lane.b32.xlu0 %v284, 120
    %v677 = vpop.permute.xlu0 %676
    %678 = vrot.lane.b32.xlu0 %v287, 120
    %v679 = vpop.permute.xlu0 %678
    %680 = vrot.lane.b32.xlu0 %v290, 120
    %v681 = vpop.permute.xlu0 %680
    %682 = vrot.lane.b32.xlu0 %v293, 120
    %v683 = vpop.permute.xlu0 %682
    %v691 = vsel %vm379, %v660, 0
    %v694 = vsel %vm379, %v661, 0
    %v697 = vsel %vm379, %v662, 0
    %v700 = vsel %vm379, %v663, 0
    %v703 = vsel %vm379, %v664, 0
    %v706 = vsel %vm379, %v665, 0
    %708 = vmatpush.msra.mxu0 0.0
    %709 = vmatpush.msra.mxu0 0.0
    %710 = vmatpush.msra.mxu0 0.0
    %711 = vmatpush.msra.mxu0 0.0
    %712 = vmatpush.msra.mxu0 0.0
    %713 = vmatpush.msra.mxu0 0.0
    %714 = vmatpush.msra.mxu0 0.0
    %715 = vmatpush.msra.mxu0 0.0
    %716 = vmatpush.msra.mxu0 0.0
    %717 = vmatpush.msra.mxu0 0.0
    %718 = vmatpush.msra.mxu0 %v683
    %719 = vmatpush.msra.mxu0 %v681
    %720 = vmatpush.msra.mxu0 %v679
    %721 = vmatpush.msra.mxu0 %v677
    %722 = vmatpush.msra.mxu0 %v675
    %723 = vmatpush.msra.mxu0 %v673
    %724 = vmatmul.f32.gmra.mxu0 %v691
    %v725 = vpop.f32.mrf.mxu0
    %v726 = vadd.f32 0.0, %v725
    %727 = vmatmul.f32.gmra.mxu0 %v694
    %v728 = vpop.f32.mrf.mxu0
    %v729 = vadd.f32 0.0, %v728
    %730 = vmatmul.f32.gmra.mxu0 %v697
    %v731 = vpop.f32.mrf.mxu0
    %v732 = vadd.f32 0.0, %v731
    %733 = vmatmul.f32.gmra.mxu0 %v700
    %v734 = vpop.f32.mrf.mxu0
    %v735 = vadd.f32 0.0, %v734
    %736 = vmatmul.f32.gmra.mxu0 %v703
    %v737 = vpop.f32.mrf.mxu0
    %v738 = vadd.f32 0.0, %v737
    %739 = vmatmul.f32.gmra.mxu0 %v706
    %v740 = vpop.f32.mrf.mxu0
    %v741 = vadd.f32 0.0, %v740
    %742 = vdwg.mxu0
    %749 = vrot.lane.b32.xlu0 %v726, 8
    %v750 = vpop.permute.xlu0 %749
    %751 = vrot.lane.b32.xlu0 %v729, 8
    %v752 = vpop.permute.xlu0 %751
    %753 = vrot.lane.b32.xlu0 %v732, 8
    %v754 = vpop.permute.xlu0 %753
    %755 = vrot.lane.b32.xlu0 %v735, 8
    %v756 = vpop.permute.xlu0 %755
    %757 = vrot.lane.b32.xlu0 %v738, 8
    %v758 = vpop.permute.xlu0 %757
    %759 = vrot.lane.b32.xlu0 %v741, 8
    %v760 = vpop.permute.xlu0 %759
    %vm767 = vcmask 130112
    %768 = vst.msk [vmem:[#allocation2] sm:$0xff] %vm767, %v750
    %769 = vst.msk [vmem:[#allocation2 + $0x8] sm:$0xff] %vm767, %v752
    %770 = vst.msk [vmem:[#allocation2 + $0x10] sm:$0xff] %vm767, %v754
    %771 = vst.msk [vmem:[#allocation2 + $0x18] sm:$0xff] %vm767, %v756
    %772 = vst.msk [vmem:[#allocation2 + $0x20] sm:$0xff] %vm767, %v758
    %773 = vst.msk [vmem:[#allocation2 + $0x28] sm:$0xff] %vm767, %v760
    %774 = vrot.lane.b32.xlu0 %v192, 112
    %v775 = vpop.permute.xlu0 %774
    %776 = vrot.lane.b32.xlu0 %v195, 112
    %v777 = vpop.permute.xlu0 %776
    %778 = vrot.lane.b32.xlu0 %v198, 112
    %v779 = vpop.permute.xlu0 %778
    %780 = vrot.lane.b32.xlu0 %v201, 112
    %v781 = vpop.permute.xlu0 %780
    %782 = vrot.lane.b32.xlu0 %v204, 112
    %v783 = vpop.permute.xlu0 %782
    %784 = vrot.lane.b32.xlu0 %v207, 112
    %v785 = vpop.permute.xlu0 %784
    %786 = vrot.lane.b32.xlu0 %v235, 112
    %v787 = vpop.permute.xlu0 %786
    %788 = vrot.lane.b32.xlu0 %v238, 112
    %v789 = vpop.permute.xlu0 %788
    %790 = vrot.lane.b32.xlu0 %v241, 112
    %v791 = vpop.permute.xlu0 %790
    %792 = vrot.lane.b32.xlu0 %v244, 112
    %v793 = vpop.permute.xlu0 %792
    %794 = vrot.lane.b32.xlu0 %v247, 112
    %v795 = vpop.permute.xlu0 %794
    %796 = vrot.lane.b32.xlu0 %v250, 112
    %v797 = vpop.permute.xlu0 %796
    %v798 = vsel %vm295, %v775, 0
    %v800 = vsel %vm295, %v777, 0
    %v802 = vsel %vm295, %v779, 0
    %v804 = vsel %vm295, %v781, 0
    %v806 = vsel %vm295, %v783, 0
    %v808 = vsel %vm295, %v785, 0
    %v810 = vsel %vm295, %v787, 0
    %v812 = vsel %vm295, %v789, 0
    %v814 = vsel %vm295, %v791, 0
    %v816 = vsel %vm295, %v793, 0
    %v818 = vsel %vm295, %v795, 0
    %v820 = vsel %vm295, %v797, 0
    %822 = vmatpush.xpose.msra.mxu0 0.0
    %823 = vmatpush.xpose.msra.mxu0 0.0
    %824 = vmatpush.xpose.msra.mxu0 0.0
    %825 = vmatpush.xpose.msra.mxu0 0.0
    %826 = vmatpush.xpose.msra.mxu0 0.0
    %827 = vmatpush.xpose.msra.mxu0 0.0
    %828 = vmatpush.xpose.msra.mxu0 0.0
    %829 = vmatpush.xpose.msra.mxu0 0.0
    %830 = vmatpush.xpose.msra.mxu0 0.0
    %831 = vmatpush.xpose.msra.mxu0 0.0
    %832 = vmatpush.xpose.msra.mxu0 %v820
    %833 = vmatpush.xpose.msra.mxu0 %v818
    %834 = vmatpush.xpose.msra.mxu0 %v816
    %835 = vmatpush.xpose.msra.mxu0 %v814
    %836 = vmatpush.xpose.msra.mxu0 %v812
    %837 = vmatpush.xpose.msra.mxu0 %v810
    %838 = vmatmul.f32.gmra.mxu0 %v798
    %v839 = vpop.f32.mrf.mxu0
    %v840 = vadd.f32 0.0, %v839
    %841 = vmatmul.f32.gmra.mxu0 %v800
    %v842 = vpop.f32.mrf.mxu0
    %v843 = vadd.f32 0.0, %v842
    %844 = vmatmul.f32.gmra.mxu0 %v802
    %v845 = vpop.f32.mrf.mxu0
    %v846 = vadd.f32 0.0, %v845
    %847 = vmatmul.f32.gmra.mxu0 %v804
    %v848 = vpop.f32.mrf.mxu0
    %v849 = vadd.f32 0.0, %v848
    %850 = vmatmul.f32.gmra.mxu0 %v806
    %v851 = vpop.f32.mrf.mxu0
    %v852 = vadd.f32 0.0, %v851
    %853 = vmatmul.f32.gmra.mxu0 %v808
    %v854 = vpop.f32.mrf.mxu0
    %v855 = vadd.f32 0.0, %v854
    %856 = vdwg.mxu0
    %v857 = vmul.f32 %v840, 0.35355338
    %v858 = vmul.f32 %v843, 0.35355338
    %v859 = vmul.f32 %v846, 0.35355338
    %v860 = vmul.f32 %v849, 0.35355338
    %v861 = vmul.f32 %v852, 0.35355338
    %v862 = vmul.f32 %v855, 0.35355338
    %v863 = vadd.f32 %v857, %v141
    %v864 = vadd.f32 %v858, %v142
    %v865 = vadd.f32 %v859, %v143
    %v866 = vadd.f32 %v860, %v144
    %v867 = vadd.f32 %v861, %v145
    %v868 = vadd.f32 %v862, %v146
    %v869 = vsel %vm379, %v863, -inf
    %870 = vmax.xlane.f32.xlu0 %v869
    %v871 = vpop.xlane.xlu0 %870
    %v872 = vsel %vm379, %v864, -inf
    %873 = vmax.xlane.f32.xlu0 %v872
    %v874 = vpop.xlane.xlu0 %873
    %v875 = vsel %vm379, %v865, -inf
    %876 = vmax.xlane.f32.xlu0 %v875
    %v877 = vpop.xlane.xlu0 %876
    %v878 = vsel %vm379, %v866, -inf
    %879 = vmax.xlane.f32.xlu0 %v878
    %v880 = vpop.xlane.xlu0 %879
    %v881 = vsel %vm379, %v867, -inf
    %882 = vmax.xlane.f32.xlu0 %v881
    %v883 = vpop.xlane.xlu0 %882
    %v884 = vsel %vm379, %v868, -inf
    %885 = vmax.xlane.f32.xlu0 %v884
    %v886 = vpop.xlane.xlu0 %885
    %v887 = vsub.f32 %v863, %v871
    %v888 = vsub.f32 %v864, %v874
    %v889 = vsub.f32 %v865, %v877
    %v890 = vsub.f32 %v866, %v880
    %v891 = vsub.f32 %v867, %v883
    %v892 = vsub.f32 %v868, %v886
    %v893 = vmul.f32 %v887, 1.442695
    %v894 = vpow.pop %v893
    %v895 = vmul.f32 %v888, 1.442695
    %v896 = vpow.pop %v895
    %v897 = vmul.f32 %v889, 1.442695
    %v898 = vpow.pop %v897
    %v899 = vmul.f32 %v890, 1.442695
    %v900 = vpow.pop %v899
    %v901 = vmul.f32 %v891, 1.442695
    %v902 = vpow.pop %v901
    %v903 = vmul.f32 %v892, 1.442695
    %v904 = vpow.pop %v903
    %v905 = vsel %vm379, %v894, 0.0
    %906 = vadd.xlane.f32.xlu0 %v905
    %v907 = vpop.xlane.xlu0 %906
    %v908 = vsel %vm379, %v896, 0.0
    %909 = vadd.xlane.f32.xlu0 %v908
    %v910 = vpop.xlane.xlu0 %909
    %v911 = vsel %vm379, %v898, 0.0
    %912 = vadd.xlane.f32.xlu0 %v911
    %v913 = vpop.xlane.xlu0 %912
    %v914 = vsel %vm379, %v900, 0.0
    %915 = vadd.xlane.f32.xlu0 %v914
    %v916 = vpop.xlane.xlu0 %915
    %v917 = vsel %vm379, %v902, 0.0
    %918 = vadd.xlane.f32.xlu0 %v917
    %v919 = vpop.xlane.xlu0 %918
    %v920 = vsel %vm379, %v904, 0.0
    %921 = vadd.xlane.f32.xlu0 %v920
    %v922 = vpop.xlane.xlu0 %921
    %v923 = vrcp.pop %v907
    %v924 = vrcp.pop %v910
    %v925 = vrcp.pop %v913
    %v926 = vrcp.pop %v916
    %v927 = vrcp.pop %v919
    %v928 = vrcp.pop %v922
    %v929 = vmul.f32 %v894, %v923
    %v930 = vmul.f32 %v896, %v924
    %v931 = vmul.f32 %v898, %v925
    %v932 = vmul.f32 %v900, %v926
    %v933 = vmul.f32 %v902, %v927
    %v934 = vmul.f32 %v904, %v928
    %935 = vrot.lane.b32.xlu0 %v278, 112
    %v936 = vpop.permute.xlu0 %935
    %937 = vrot.lane.b32.xlu0 %v281, 112
    %v938 = vpop.permute.xlu0 %937
    %939 = vrot.lane.b32.xlu0 %v284, 112
    %v940 = vpop.permute.xlu0 %939
    %941 = vrot.lane.b32.xlu0 %v287, 112
    %v942 = vpop.permute.xlu0 %941
    %943 = vrot.lane.b32.xlu0 %v290, 112
    %v944 = vpop.permute.xlu0 %943
    %945 = vrot.lane.b32.xlu0 %v293, 112
    %v946 = vpop.permute.xlu0 %945
    %v954 = vsel %vm379, %v929, 0
    %v957 = vsel %vm379, %v930, 0
    %v960 = vsel %vm379, %v931, 0
    %v963 = vsel %vm379, %v932, 0
    %v966 = vsel %vm379, %v933, 0
    %v969 = vsel %vm379, %v934, 0
    %971 = vmatpush.msra.mxu0 0.0
    %972 = vmatpush.msra.mxu0 0.0
    %973 = vmatpush.msra.mxu0 0.0
    %974 = vmatpush.msra.mxu0 0.0
    %975 = vmatpush.msra.mxu0 0.0
    %976 = vmatpush.msra.mxu0 0.0
    %977 = vmatpush.msra.mxu0 0.0
    %978 = vmatpush.msra.mxu0 0.0
    %979 = vmatpush.msra.mxu0 0.0
    %980 = vmatpush.msra.mxu0 0.0
    %981 = vmatpush.msra.mxu0 %v946
    %982 = vmatpush.msra.mxu0 %v944
    %983 = vmatpush.msra.mxu0 %v942
    %984 = vmatpush.msra.mxu0 %v940
    %985 = vmatpush.msra.mxu0 %v938
    %986 = vmatpush.msra.mxu0 %v936
    %987 = vmatmul.f32.gmra.mxu0 %v954
    %v988 = vpop.f32.mrf.mxu0
    %v989 = vadd.f32 0.0, %v988
    %990 = vmatmul.f32.gmra.mxu0 %v957
    %v991 = vpop.f32.mrf.mxu0
    %v992 = vadd.f32 0.0, %v991
    %993 = vmatmul.f32.gmra.mxu0 %v960
    %v994 = vpop.f32.mrf.mxu0
    %v995 = vadd.f32 0.0, %v994
    %996 = vmatmul.f32.gmra.mxu0 %v963
    %v997 = vpop.f32.mrf.mxu0
    %v998 = vadd.f32 0.0, %v997
    %999 = vmatmul.f32.gmra.mxu0 %v966
    %v1000 = vpop.f32.mrf.mxu0
    %v1001 = vadd.f32 0.0, %v1000
    %1002 = vmatmul.f32.gmra.mxu0 %v969
    %v1003 = vpop.f32.mrf.mxu0
    %v1004 = vadd.f32 0.0, %v1003
    %1005 = vdwg.mxu0
    %1012 = vrot.lane.b32.xlu0 %v989, 16
    %v1013 = vpop.permute.xlu0 %1012
    %1014 = vrot.lane.b32.xlu0 %v992, 16
    %v1015 = vpop.permute.xlu0 %1014
    %1016 = vrot.lane.b32.xlu0 %v995, 16
    %v1017 = vpop.permute.xlu0 %1016
    %1018 = vrot.lane.b32.xlu0 %v998, 16
    %v1019 = vpop.permute.xlu0 %1018
    %1020 = vrot.lane.b32.xlu0 %v1001, 16
    %v1021 = vpop.permute.xlu0 %1020
    %1022 = vrot.lane.b32.xlu0 %v1004, 16
    %v1023 = vpop.permute.xlu0 %1022
    %vm1030 = vcmask 195712
    %1031 = vst.msk [vmem:[#allocation2] sm:$0xff] %vm1030, %v1013
    %1032 = vst.msk [vmem:[#allocation2 + $0x8] sm:$0xff] %vm1030, %v1015
    %1033 = vst.msk [vmem:[#allocation2 + $0x10] sm:$0xff] %vm1030, %v1017
    %1034 = vst.msk [vmem:[#allocation2 + $0x18] sm:$0xff] %vm1030, %v1019
    %1035 = vst.msk [vmem:[#allocation2 + $0x20] sm:$0xff] %vm1030, %v1021
    %1036 = vst.msk [vmem:[#allocation2 + $0x28] sm:$0xff] %vm1030, %v1023
    %1037 = vrot.lane.b32.xlu0 %v192, 104
    %v1038 = vpop.permute.xlu0 %1037
    %1039 = vrot.lane.b32.xlu0 %v195, 104
    %v1040 = vpop.permute.xlu0 %1039
    %1041 = vrot.lane.b32.xlu0 %v198, 104
    %v1042 = vpop.permute.xlu0 %1041
    %1043 = vrot.lane.b32.xlu0 %v201, 104
    %v1044 = vpop.permute.xlu0 %1043
    %1045 = vrot.lane.b32.xlu0 %v204, 104
    %v1046 = vpop.permute.xlu0 %1045
    %1047 = vrot.lane.b32.xlu0 %v207, 104
    %v1048 = vpop.permute.xlu0 %1047
    %1049 = vrot.lane.b32.xlu0 %v235, 104
    %v1050 = vpop.permute.xlu0 %1049
    %1051 = vrot.lane.b32.xlu0 %v238, 104
    %v1052 = vpop.permute.xlu0 %1051
    %1053 = vrot.lane.b32.xlu0 %v241, 104
    %v1054 = vpop.permute.xlu0 %1053
    %1055 = vrot.lane.b32.xlu0 %v244, 104
    %v1056 = vpop.permute.xlu0 %1055
    %1057 = vrot.lane.b32.xlu0 %v247, 104
    %v1058 = vpop.permute.xlu0 %1057
    %1059 = vrot.lane.b32.xlu0 %v250, 104
    %v1060 = vpop.permute.xlu0 %1059
    %v1061 = vsel %vm295, %v1038, 0
    %v1063 = vsel %vm295, %v1040, 0
    %v1065 = vsel %vm295, %v1042, 0
    %v1067 = vsel %vm295, %v1044, 0
    %v1069 = vsel %vm295, %v1046, 0
    %v1071 = vsel %vm295, %v1048, 0
    %v1073 = vsel %vm295, %v1050, 0
    %v1075 = vsel %vm295, %v1052, 0
    %v1077 = vsel %vm295, %v1054, 0
    %v1079 = vsel %vm295, %v1056, 0
    %v1081 = vsel %vm295, %v1058, 0
    %v1083 = vsel %vm295, %v1060, 0
    %1085 = vmatpush.xpose.msra.mxu0 0.0
    %1086 = vmatpush.xpose.msra.mxu0 0.0
    %1087 = vmatpush.xpose.msra.mxu0 0.0
    %1088 = vmatpush.xpose.msra.mxu0 0.0
    %1089 = vmatpush.xpose.msra.mxu0 0.0
    %1090 = vmatpush.xpose.msra.mxu0 0.0
    %1091 = vmatpush.xpose.msra.mxu0 0.0
    %1092 = vmatpush.xpose.msra.mxu0 0.0
    %1093 = vmatpush.xpose.msra.mxu0 0.0
    %1094 = vmatpush.xpose.msra.mxu0 0.0
    %1095 = vmatpush.xpose.msra.mxu0 %v1083
    %1096 = vmatpush.xpose.msra.mxu0 %v1081
    %1097 = vmatpush.xpose.msra.mxu0 %v1079
    %1098 = vmatpush.xpose.msra.mxu0 %v1077
    %1099 = vmatpush.xpose.msra.mxu0 %v1075
    %1100 = vmatpush.xpose.msra.mxu0 %v1073
    %1101 = vmatmul.f32.gmra.mxu0 %v1061
    %v1102 = vpop.f32.mrf.mxu0
    %v1103 = vadd.f32 0.0, %v1102
    %1104 = vmatmul.f32.gmra.mxu0 %v1063
    %v1105 = vpop.f32.mrf.mxu0
    %v1106 = vadd.f32 0.0, %v1105
    %1107 = vmatmul.f32.gmra.mxu0 %v1065
    %v1108 = vpop.f32.mrf.mxu0
    %v1109 = vadd.f32 0.0, %v1108
    %1110 = vmatmul.f32.gmra.mxu0 %v1067
    %v1111 = vpop.f32.mrf.mxu0
    %v1112 = vadd.f32 0.0, %v1111
    %1113 = vmatmul.f32.gmra.mxu0 %v1069
    %v1114 = vpop.f32.mrf.mxu0
    %v1115 = vadd.f32 0.0, %v1114
    %1116 = vmatmul.f32.gmra.mxu0 %v1071
    %v1117 = vpop.f32.mrf.mxu0
    %v1118 = vadd.f32 0.0, %v1117
    %1119 = vdwg.mxu0
    %v1120 = vmul.f32 %v1103, 0.35355338
    %v1121 = vmul.f32 %v1106, 0.35355338
    %v1122 = vmul.f32 %v1109, 0.35355338
    %v1123 = vmul.f32 %v1112, 0.35355338
    %v1124 = vmul.f32 %v1115, 0.35355338
    %v1125 = vmul.f32 %v1118, 0.35355338
    %v1126 = vadd.f32 %v1120, %v141
    %v1127 = vadd.f32 %v1121, %v142
    %v1128 = vadd.f32 %v1122, %v143
    %v1129 = vadd.f32 %v1123, %v144
    %v1130 = vadd.f32 %v1124, %v145
    %v1131 = vadd.f32 %v1125, %v146
    %v1132 = vsel %vm379, %v1126, -inf
    %1133 = vmax.xlane.f32.xlu0 %v1132
    %v1134 = vpop.xlane.xlu0 %1133
    %v1135 = vsel %vm379, %v1127, -inf
    %1136 = vmax.xlane.f32.xlu0 %v1135
    %v1137 = vpop.xlane.xlu0 %1136
    %v1138 = vsel %vm379, %v1128, -inf
    %1139 = vmax.xlane.f32.xlu0 %v1138
    %v1140 = vpop.xlane.xlu0 %1139
    %v1141 = vsel %vm379, %v1129, -inf
    %1142 = vmax.xlane.f32.xlu0 %v1141
    %v1143 = vpop.xlane.xlu0 %1142
    %v1144 = vsel %vm379, %v1130, -inf
    %1145 = vmax.xlane.f32.xlu0 %v1144
    %v1146 = vpop.xlane.xlu0 %1145
    %v1147 = vsel %vm379, %v1131, -inf
    %1148 = vmax.xlane.f32.xlu0 %v1147
    %v1149 = vpop.xlane.xlu0 %1148
    %v1150 = vsub.f32 %v1126, %v1134
    %v1151 = vsub.f32 %v1127, %v1137
    %v1152 = vsub.f32 %v1128, %v1140
    %v1153 = vsub.f32 %v1129, %v1143
    %v1154 = vsub.f32 %v1130, %v1146
    %v1155 = vsub.f32 %v1131, %v1149
    %v1156 = vmul.f32 %v1150, 1.442695
    %v1157 = vpow.pop %v1156
    %v1158 = vmul.f32 %v1151, 1.442695
    %v1159 = vpow.pop %v1158
    %v1160 = vmul.f32 %v1152, 1.442695
    %v1161 = vpow.pop %v1160
    %v1162 = vmul.f32 %v1153, 1.442695
    %v1163 = vpow.pop %v1162
    %v1164 = vmul.f32 %v1154, 1.442695
    %v1165 = vpow.pop %v1164
    %v1166 = vmul.f32 %v1155, 1.442695
    %v1167 = vpow.pop %v1166
    %v1168 = vsel %vm379, %v1157, 0.0
    %1169 = vadd.xlane.f32.xlu0 %v1168
    %v1170 = vpop.xlane.xlu0 %1169
    %v1171 = vsel %vm379, %v1159, 0.0
    %1172 = vadd.xlane.f32.xlu0 %v1171
    %v1173 = vpop.xlane.xlu0 %1172
    %v1174 = vsel %vm379, %v1161, 0.0
    %1175 = vadd.xlane.f32.xlu0 %v1174
    %v1176 = vpop.xlane.xlu0 %1175
    %v1177 = vsel %vm379, %v1163, 0.0
    %1178 = vadd.xlane.f32.xlu0 %v1177
    %v1179 = vpop.xlane.xlu0 %1178
    %v1180 = vsel %vm379, %v1165, 0.0
    %1181 = vadd.xlane.f32.xlu0 %v1180
    %v1182 = vpop.xlane.xlu0 %1181
    %v1183 = vsel %vm379, %v1167, 0.0
    %1184 = vadd.xlane.f32.xlu0 %v1183
    %v1185 = vpop.xlane.xlu0 %1184
    %v1186 = vrcp.pop %v1170
    %v1187 = vrcp.pop %v1173
    %v1188 = vrcp.pop %v1176
    %v1189 = vrcp.pop %v1179
    %v1190 = vrcp.pop %v1182
    %v1191 = vrcp.pop %v1185
    %v1192 = vmul.f32 %v1157, %v1186
    %v1193 = vmul.f32 %v1159, %v1187
    %v1194 = vmul.f32 %v1161, %v1188
    %v1195 = vmul.f32 %v1163, %v1189
    %v1196 = vmul.f32 %v1165, %v1190
    %v1197 = vmul.f32 %v1167, %v1191
    %1198 = vrot.lane.b32.xlu0 %v278, 104
    %v1199 = vpop.permute.xlu0 %1198
    %1200 = vrot.lane.b32.xlu0 %v281, 104
    %v1201 = vpop.permute.xlu0 %1200
    %1202 = vrot.lane.b32.xlu0 %v284, 104
    %v1203 = vpop.permute.xlu0 %1202
    %1204 = vrot.lane.b32.xlu0 %v287, 104
    %v1205 = vpop.permute.xlu0 %1204
    %1206 = vrot.lane.b32.xlu0 %v290, 104
    %v1207 = vpop.permute.xlu0 %1206
    %1208 = vrot.lane.b32.xlu0 %v293, 104
    %v1209 = vpop.permute.xlu0 %1208
    %v1217 = vsel %vm379, %v1192, 0
    %v1220 = vsel %vm379, %v1193, 0
    %v1223 = vsel %vm379, %v1194, 0
    %v1226 = vsel %vm379, %v1195, 0
    %v1229 = vsel %vm379, %v1196, 0
    %v1232 = vsel %vm379, %v1197, 0
    %1234 = vmatpush.msra.mxu0 0.0
    %1235 = vmatpush.msra.mxu0 0.0
    %1236 = vmatpush.msra.mxu0 0.0
    %1237 = vmatpush.msra.mxu0 0.0
    %1238 = vmatpush.msra.mxu0 0.0
    %1239 = vmatpush.msra.mxu0 0.0
    %1240 = vmatpush.msra.mxu0 0.0
    %1241 = vmatpush.msra.mxu0 0.0
    %1242 = vmatpush.msra.mxu0 0.0
    %1243 = vmatpush.msra.mxu0 0.0
    %1244 = vmatpush.msra.mxu0 %v1209
    %1245 = vmatpush.msra.mxu0 %v1207
    %1246 = vmatpush.msra.mxu0 %v1205
    %1247 = vmatpush.msra.mxu0 %v1203
    %1248 = vmatpush.msra.mxu0 %v1201
    %1249 = vmatpush.msra.mxu0 %v1199
    %1250 = vmatmul.f32.gmra.mxu0 %v1217
    %v1251 = vpop.f32.mrf.mxu0
    %v1252 = vadd.f32 0.0, %v1251
    %1253 = vmatmul.f32.gmra.mxu0 %v1220
    %v1254 = vpop.f32.mrf.mxu0
    %v1255 = vadd.f32 0.0, %v1254
    %1256 = vmatmul.f32.gmra.mxu0 %v1223
    %v1257 = vpop.f32.mrf.mxu0
    %v1258 = vadd.f32 0.0, %v1257
    %1259 = vmatmul.f32.gmra.mxu0 %v1226
    %v1260 = vpop.f32.mrf.mxu0
    %v1261 = vadd.f32 0.0, %v1260
    %1262 = vmatmul.f32.gmra.mxu0 %v1229
    %v1263 = vpop.f32.mrf.mxu0
    %v1264 = vadd.f32 0.0, %v1263
    %1265 = vmatmul.f32.gmra.mxu0 %v1232
    %v1266 = vpop.f32.mrf.mxu0
    %v1267 = vadd.f32 0.0, %v1266
    %1268 = vdwg.mxu0
    %1275 = vrot.lane.b32.xlu0 %v1252, 24
    %v1276 = vpop.permute.xlu0 %1275
    %1277 = vrot.lane.b32.xlu0 %v1255, 24
    %v1278 = vpop.permute.xlu0 %1277
    %1279 = vrot.lane.b32.xlu0 %v1258, 24
    %v1280 = vpop.permute.xlu0 %1279
    %1281 = vrot.lane.b32.xlu0 %v1261, 24
    %v1282 = vpop.permute.xlu0 %1281
    %1283 = vrot.lane.b32.xlu0 %v1264, 24
    %v1284 = vpop.permute.xlu0 %1283
    %1285 = vrot.lane.b32.xlu0 %v1267, 24
    %v1286 = vpop.permute.xlu0 %1285
    %vm1293 = vcmask 261312
    %1294 = vst.msk [vmem:[#allocation2] sm:$0xff] %vm1293, %v1276
    %1295 = vst.msk [vmem:[#allocation2 + $0x8] sm:$0xff] %vm1293, %v1278
    %1296 = vst.msk [vmem:[#allocation2 + $0x10] sm:$0xff] %vm1293, %v1280
    %1297 = vst.msk [vmem:[#allocation2 + $0x18] sm:$0xff] %vm1293, %v1282
    %1298 = vst.msk [vmem:[#allocation2 + $0x20] sm:$0xff] %vm1293, %v1284
    %1299 = vst.msk [vmem:[#allocation2 + $0x28] sm:$0xff] %vm1293, %v1286
    %v1300 = vld [vmem:[#allocation2] sm:$0xff]
    %v1301 = vld [vmem:[#allocation2 + $0x8] sm:$0xff]
    %v1302 = vld [vmem:[#allocation2 + $0x10] sm:$0xff]
    %v1303 = vld [vmem:[#allocation2 + $0x18] sm:$0xff]
    %v1304 = vld [vmem:[#allocation2 + $0x20] sm:$0xff]
    %v1305 = vld [vmem:[#allocation2 + $0x28] sm:$0xff]
    %v1306 = vld [vmem:[%s25] sm:$0xff]
    %v1307 = vld [vmem:[%s25 + $0x8] sm:$0xff]
    %v1308 = vld [vmem:[%s25 + $0x10] sm:$0xff]
    %v1309 = vld [vmem:[%s25 + $0x18] sm:$0xff]
    %v1310 = vld [vmem:[%s27] sm:$0x1]
    %v1312 = vperm.slane %v1310, 0
    %v1315 = vsel %vm155, %v1300, 0
    %v1318 = vsel %vm155, %v1301, 0
    %v1321 = vsel %vm155, %v1302, 0
    %v1324 = vsel %vm155, %v1303, 0
    %v1327 = vsel %vm155, %v1304, 0
    %v1330 = vsel %vm155, %v1305, 0
    %1332 = vmatpush.msra.mxu0 0.0
    %1333 = vmatpush.msra.mxu0 0.0
    %1334 = vmatpush.msra.mxu0 0.0
    %1335 = vmatpush.msra.mxu0 0.0
    %1336 = vmatpush.msra.mxu0 0.0
    %1337 = vmatpush.msra.mxu0 0.0
    %1338 = vmatpush.msra.mxu0 0.0
    %1339 = vmatpush.msra.mxu0 0.0
    %1340 = vmatpush.msra.mxu0 0.0
    %1341 = vmatpush.msra.mxu0 0.0
    %1342 = vmatpush.msra.mxu0 0.0
    %1343 = vmatpush.msra.mxu0 0.0
    %1344 = vmatpush.msra.mxu0 %v1309
    %1345 = vmatpush.msra.mxu0 %v1308
    %1346 = vmatpush.msra.mxu0 %v1307
    %1347 = vmatpush.msra.mxu0 %v1306
    %1348 = vmatmul.f32.gmra.mxu0 %v1315
    %v1349 = vpop.f32.mrf.mxu0
    %v1350 = vadd.f32 %v1312, %v1349
    %1351 = vmatmul.f32.gmra.mxu0 %v1318
    %v1352 = vpop.f32.mrf.mxu0
    %v1353 = vadd.f32 %v1312, %v1352
    %1354 = vmatmul.f32.gmra.mxu0 %v1321
    %v1355 = vpop.f32.mrf.mxu0
    %v1356 = vadd.f32 %v1312, %v1355
    %1357 = vmatmul.f32.gmra.mxu0 %v1324
    %v1358 = vpop.f32.mrf.mxu0
    %v1359 = vadd.f32 %v1312, %v1358
    %1360 = vmatmul.f32.gmra.mxu0 %v1327
    %v1361 = vpop.f32.mrf.mxu0
    %v1362 = vadd.f32 %v1312, %v1361
    %1363 = vmatmul.f32.gmra.mxu0 %v1330
    %v1364 = vpop.f32.mrf.mxu0
    %v1365 = vadd.f32 %v1312, %v1364
    %1366 = vdwg.mxu0
    %v1367 = vadd.f32 %v135, %v1350
    %v1368 = vadd.f32 %v136, %v1353
    %v1369 = vadd.f32 %v137, %v1356
    %v1370 = vadd.f32 %v138, %v1359
    %v1371 = vadd.f32 %v139, %v1362
    %v1372 = vadd.f32 %v140, %v1365
    %v1373 = vld [vmem:[%s29] sm:$0x1]
    %v1374 = vld [vmem:[%s31] sm:$0x1]
    %v1375 = vsel %vm155, %v1367, 0.0
    %1376 = vadd.xlane.f32.xlu0 %v1375
    %v1377 = vpop.xlane.xlu0 %1376
    %v1378 = vsel %vm155, %v1368, 0.0
    %1379 = vadd.xlane.f32.xlu0 %v1378
    %v1380 = vpop.xlane.xlu0 %1379
    %v1381 = vsel %vm155, %v1369, 0.0
    %1382 = vadd.xlane.f32.xlu0 %v1381
    %v1383 = vpop.xlane.xlu0 %1382
    %v1384 = vsel %vm155, %v1370, 0.0
    %1385 = vadd.xlane.f32.xlu0 %v1384
    %v1386 = vpop.xlane.xlu0 %1385
    %v1387 = vsel %vm155, %v1371, 0.0
    %1388 = vadd.xlane.f32.xlu0 %v1387
    %v1389 = vpop.xlane.xlu0 %1388
    %v1390 = vsel %vm155, %v1372, 0.0
    %1391 = vadd.xlane.f32.xlu0 %v1390
    %v1392 = vpop.xlane.xlu0 %1391
    %v1393 = vrcp.pop 32.0
    %v1394 = vmul.f32 32.0, %v1393
    %v1395 = vsub.f32 1.0, %v1394
    %v1396 = vmul.f32 %v1393, %v1395
    %v1397 = vadd.f32 %v1393, %v1396
    %vm1398 = vweird.f32 %v1393
    %v1399 = vsel %vm1398, %v1393, %v1397
    %v1400 = vmul.f32 %v1377, %v1399
    %v1401 = vmul.f32 %v1380, %v1399
    %v1402 = vmul.f32 %v1383, %v1399
    %v1403 = vmul.f32 %v1386, %v1399
    %v1404 = vmul.f32 %v1389, %v1399
    %v1405 = vmul.f32 %v1392, %v1399
    %v1406 = vsub.f32 %v1367, %v1400
    %v1407 = vsub.f32 %v1368, %v1401
    %v1408 = vsub.f32 %v1369, %v1402
    %v1409 = vsub.f32 %v1370, %v1403
    %v1410 = vsub.f32 %v1371, %v1404
    %v1411 = vsub.f32 %v1372, %v1405
    %v1412 = vmul.f32 %v1406, %v1406
    %v1413 = vmul.f32 %v1407, %v1407
    %v1414 = vmul.f32 %v1408, %v1408
    %v1415 = vmul.f32 %v1409, %v1409
    %v1416 = vmul.f32 %v1410, %v1410
    %v1417 = vmul.f32 %v1411, %v1411
    %v1418 = vsel %vm155, %v1412, 0.0
    %1419 = vadd.xlane.f32.xlu0 %v1418
    %v1420 = vpop.xlane.xlu0 %1419
    %v1421 = vsel %vm155, %v1413, 0.0
    %1422 = vadd.xlane.f32.xlu0 %v1421
    %v1423 = vpop.xlane.xlu0 %1422
    %v1424 = vsel %vm155, %v1414, 0.0
    %1425 = vadd.xlane.f32.xlu0 %v1424
    %v1426 = vpop.xlane.xlu0 %1425
    %v1427 = vsel %vm155, %v1415, 0.0
    %1428 = vadd.xlane.f32.xlu0 %v1427
    %v1429 = vpop.xlane.xlu0 %1428
    %v1430 = vsel %vm155, %v1416, 0.0
    %1431 = vadd.xlane.f32.xlu0 %v1430
    %v1432 = vpop.xlane.xlu0 %1431
    %v1433 = vsel %vm155, %v1417, 0.0
    %1434 = vadd.xlane.f32.xlu0 %v1433
    %v1435 = vpop.xlane.xlu0 %1434
    %v1436 = vmul.f32 %v1420, %v1399
    %v1437 = vmul.f32 %v1423, %v1399
    %v1438 = vmul.f32 %v1426, %v1399
    %v1439 = vmul.f32 %v1429, %v1399
    %v1440 = vmul.f32 %v1432, %v1399
    %v1441 = vmul.f32 %v1435, %v1399
    %v1442 = vadd.f32 %v1436, 1e-12
    %v1443 = vadd.f32 %v1437, 1e-12
    %v1444 = vadd.f32 %v1438, 1e-12
    %v1445 = vadd.f32 %v1439, 1e-12
    %v1446 = vadd.f32 %v1440, 1e-12
    %v1447 = vadd.f32 %v1441, 1e-12
    %v1448 = vrsqrt.pop %v1442
    %v1449 = vmul.f32 %v1448, %v1442
    %v1450 = vmul.f32 %v1449, %v1448
    %v1451 = vmul.f32 0.5, %v1450
    %v1452 = vsub.f32 1.5, %v1451
    %v1453 = vmul.f32 %v1448, %v1452
    %vm1454 = vweird.f32 %v1442
    %vm1455 = vweird.f32 %v1448
    %vm1456 = vmor %vm1454, %vm1455
    %v1457 = vsel %vm1456, %v1448, %v1453
    %v1458 = vrsqrt.pop %v1443
    %v1459 = vmul.f32 %v1458, %v1443
    %v1460 = vmul.f32 %v1459, %v1458
    %v1461 = vmul.f32 0.5, %v1460
    %v1462 = vsub.f32 1.5, %v1461
    %v1463 = vmul.f32 %v1458, %v1462
    %vm1464 = vweird.f32 %v1443
    %vm1465 = vweird.f32 %v1458
    %vm1466 = vmor %vm1464, %vm1465
    %v1467 = vsel %vm1466, %v1458, %v1463
    %v1468 = vrsqrt.pop %v1444
    %v1469 = vmul.f32 %v1468, %v1444
    %v1470 = vmul.f32 %v1469, %v1468
    %v1471 = vmul.f32 0.5, %v1470
    %v1472 = vsub.f32 1.5, %v1471
    %v1473 = vmul.f32 %v1468, %v1472
    %vm1474 = vweird.f32 %v1444
    %vm1475 = vweird.f32 %v1468
    %vm1476 = vmor %vm1474, %vm1475
    %v1477 = vsel %vm1476, %v1468, %v1473
    %v1478 = vrsqrt.pop %v1445
    %v1479 = vmul.f32 %v1478, %v1445
    %v1480 = vmul.f32 %v1479, %v1478
    %v1481 = vmul.f32 0.5, %v1480
    %v1482 = vsub.f32 1.5, %v1481
    %v1483 = vmul.f32 %v1478, %v1482
    %vm1484 = vweird.f32 %v1445
    %vm1485 = vweird.f32 %v1478
    %vm1486 = vmor %vm1484, %vm1485
    %v1487 = vsel %vm1486, %v1478, %v1483
    %v1488 = vrsqrt.pop %v1446
    %v1489 = vmul.f32 %v1488, %v1446
    %v1490 = vmul.f32 %v1489, %v1488
    %v1491 = vmul.f32 0.5, %v1490
    %v1492 = vsub.f32 1.5, %v1491
    %v1493 = vmul.f32 %v1488, %v1492
    %vm1494 = vweird.f32 %v1446
    %vm1495 = vweird.f32 %v1488
    %vm1496 = vmor %vm1494, %vm1495
    %v1497 = vsel %vm1496, %v1488, %v1493
    %v1498 = vrsqrt.pop %v1447
    %v1499 = vmul.f32 %v1498, %v1447
    %v1500 = vmul.f32 %v1499, %v1498
    %v1501 = vmul.f32 0.5, %v1500
    %v1502 = vsub.f32 1.5, %v1501
    %v1503 = vmul.f32 %v1498, %v1502
    %vm1504 = vweird.f32 %v1447
    %vm1505 = vweird.f32 %v1498
    %vm1506 = vmor %vm1504, %vm1505
    %v1507 = vsel %vm1506, %v1498, %v1503
    %v1508 = vmul.f32 %v1406, %v1457
    %v1509 = vmul.f32 %v1407, %v1467
    %v1510 = vmul.f32 %v1408, %v1477
    %v1511 = vmul.f32 %v1409, %v1487
    %v1512 = vmul.f32 %v1410, %v1497
    %v1513 = vmul.f32 %v1411, %v1507
    %v1515 = vperm.slane %v1373, 0
    %v1517 = vmul.f32 %v1508, %v1515
    %v1518 = vmul.f32 %v1509, %v1515
    %v1519 = vmul.f32 %v1510, %v1515
    %v1520 = vmul.f32 %v1511, %v1515
    %v1521 = vmul.f32 %v1512, %v1515
    %v1522 = vmul.f32 %v1513, %v1515
    %v1524 = vperm.slane %v1374, 0
    %v1526 = vadd.f32 %v1517, %v1524
    %v1527 = vadd.f32 %v1518, %v1524
    %v1528 = vadd.f32 %v1519, %v1524
    %v1529 = vadd.f32 %v1520, %v1524
    %v1530 = vadd.f32 %v1521, %v1524
    %v1531 = vadd.f32 %v1522, %v1524
    %v1532 = vld [vmem:[%s33] sm:$0xff]
    %v1533 = vld [vmem:[%s33 + $0x8] sm:$0xff]
    %v1534 = vld [vmem:[%s33 + $0x10] sm:$0xff]
    %v1535 = vld [vmem:[%s33 + $0x18] sm:$0xff]
    %v1536 = vld [vmem:[%s35] sm:$0x1]
    %v1538 = vperm.slane %v1536, 0
    %v1541 = vsel %vm155, %v1526, 0
    %v1544 = vsel %vm155, %v1527, 0
    %v1547 = vsel %vm155, %v1528, 0
    %v1550 = vsel %vm155, %v1529, 0
    %v1553 = vsel %vm155, %v1530, 0
    %v1556 = vsel %vm155, %v1531, 0
    %1558 = vmatpush.msra.mxu0 0.0
    %1559 = vmatpush.msra.mxu0 0.0
    %1560 = vmatpush.msra.mxu0 0.0
    %1561 = vmatpush.msra.mxu0 0.0
    %1562 = vmatpush.msra.mxu0 0.0
    %1563 = vmatpush.msra.mxu0 0.0
    %1564 = vmatpush.msra.mxu0 0.0
    %1565 = vmatpush.msra.mxu0 0.0
    %1566 = vmatpush.msra.mxu0 0.0
    %1567 = vmatpush.msra.mxu0 0.0
    %1568 = vmatpush.msra.mxu0 0.0
    %1569 = vmatpush.msra.mxu0 0.0
    %1570 = vmatpush.msra.mxu0 %v1535
    %1571 = vmatpush.msra.mxu0 %v1534
    %1572 = vmatpush.msra.mxu0 %v1533
    %1573 = vmatpush.msra.mxu0 %v1532
    %1574 = vmatmul.f32.gmra.mxu0 %v1541
    %v1575 = vpop.f32.mrf.mxu0
    %v1576 = vadd.f32 %v1538, %v1575
    %1577 = vmatmul.f32.gmra.mxu0 %v1544
    %v1578 = vpop.f32.mrf.mxu0
    %v1579 = vadd.f32 %v1538, %v1578
    %1580 = vmatmul.f32.gmra.mxu0 %v1547
    %v1581 = vpop.f32.mrf.mxu0
    %v1582 = vadd.f32 %v1538, %v1581
    %1583 = vmatmul.f32.gmra.mxu0 %v1550
    %v1584 = vpop.f32.mrf.mxu0
    %v1585 = vadd.f32 %v1538, %v1584
    %1586 = vmatmul.f32.gmra.mxu0 %v1553
    %v1587 = vpop.f32.mrf.mxu0
    %v1588 = vadd.f32 %v1538, %v1587
    %1589 = vmatmul.f32.gmra.mxu0 %v1556
    %v1590 = vpop.f32.mrf.mxu0
    %v1591 = vadd.f32 %v1538, %v1590
    %1592 = vdwg.mxu0
    %v1593 = vmul.f32 %v1576, %v1576
    %v1594 = vmul.f32 %v1579, %v1579
    %v1595 = vmul.f32 %v1582, %v1582
    %v1596 = vmul.f32 %v1585, %v1585
    %v1597 = vmul.f32 %v1588, %v1588
    %v1598 = vmul.f32 %v1591, %v1591
    %v1599 = vmul.f32 %v1576, %v1593
    %v1600 = vmul.f32 %v1579, %v1594
    %v1601 = vmul.f32 %v1582, %v1595
    %v1602 = vmul.f32 %v1585, %v1596
    %v1603 = vmul.f32 %v1588, %v1597
    %v1604 = vmul.f32 %v1591, %v1598
    %v1605 = vmul.f32 %v1599, 0.044715
    %v1606 = vmul.f32 %v1600, 0.044715
    %v1607 = vmul.f32 %v1601, 0.044715
    %v1608 = vmul.f32 %v1602, 0.044715
    %v1609 = vmul.f32 %v1603, 0.044715
    %v1610 = vmul.f32 %v1604, 0.044715
    %v1611 = vadd.f32 %v1576, %v1605
    %v1612 = vadd.f32 %v1579, %v1606
    %v1613 = vadd.f32 %v1582, %v1607
    %v1614 = vadd.f32 %v1585, %v1608
    %v1615 = vadd.f32 %v1588, %v1609
    %v1616 = vadd.f32 %v1591, %v1610
    %v1617 = vmul.f32 %v1611, 0.7978846
    %v1618 = vmul.f32 %v1612, 0.7978846
    %v1619 = vmul.f32 %v1613, 0.7978846
    %v1620 = vmul.f32 %v1614, 0.7978846
    %v1621 = vmul.f32 %v1615, 0.7978846
    %v1622 = vmul.f32 %v1616, 0.7978846
    %v1623 = vtanh.pop %v1617
    %v1624 = vtanh.pop %v1618
    %v1625 = vtanh.pop %v1619
    %v1626 = vtanh.pop %v1620
    %v1627 = vtanh.pop %v1621
    %v1628 = vtanh.pop %v1622
    %v1629 = vadd.f32 %v1623, 1.0
    %v1630 = vadd.f32 %v1624, 1.0
    %v1631 = vadd.f32 %v1625, 1.0
    %v1632 = vadd.f32 %v1626, 1.0
    %v1633 = vadd.f32 %v1627, 1.0
    %v1634 = vadd.f32 %v1628, 1.0
    %v1635 = vmul.f32 %v1629, 0.5
    %v1636 = vmul.f32 %v1630, 0.5
    %v1637 = vmul.f32 %v1631, 0.5
    %v1638 = vmul.f32 %v1632, 0.5
    %v1639 = vmul.f32 %v1633, 0.5
    %v1640 = vmul.f32 %v1634, 0.5
    %v1641 = vmul.f32 %v1576, %v1635
    %v1642 = vmul.f32 %v1579, %v1636
    %v1643 = vmul.f32 %v1582, %v1637
    %v1644 = vmul.f32 %v1585, %v1638
    %v1645 = vmul.f32 %v1588, %v1639
    %v1646 = vmul.f32 %v1591, %v1640
    %v1647 = vld [vmem:[%s37] sm:$0xff]
    %v1648 = vld [vmem:[%s37 + $0x8] sm:$0xff]
    %v1649 = vld [vmem:[%s37 + $0x10] sm:$0xff]
    %v1650 = vld [vmem:[%s37 + $0x18] sm:$0xff]
    %v1651 = vld [vmem:[%s37 + $0x20] sm:$0xff]
    %v1652 = vld [vmem:[%s37 + $0x28] sm:$0xff]
    %v1653 = vld [vmem:[%s37 + $0x30] sm:$0xff]
    %v1654 = vld [vmem:[%s37 + $0x38] sm:$0xff]
    %v1655 = vld [vmem:[%s39] sm:$0x1]
    %v1657 = vperm.slane %v1655, 0
    %vm1659 = vcmask 523264
    %v1661 = vsel %vm1659, %v1641, 0
    %v1664 = vsel %vm1659, %v1642, 0
    %v1667 = vsel %vm1659, %v1643, 0
    %v1670 = vsel %vm1659, %v1644, 0
    %v1673 = vsel %vm1659, %v1645, 0
    %v1676 = vsel %vm1659, %v1646, 0
    %1678 = vmatpush.msra.mxu0 0.0
    %1679 = vmatpush.msra.mxu0 0.0
    %1680 = vmatpush.msra.mxu0 0.0
    %1681 = vmatpush.msra.mxu0 0.0
    %1682 = vmatpush.msra.mxu0 0.0
    %1683 = vmatpush.msra.mxu0 0.0
    %1684 = vmatpush.msra.mxu0 0.0
    %1685 = vmatpush.msra.mxu0 0.0
    %1686 = vmatpush.msra.mxu0 %v1654
    %1687 = vmatpush.msra.mxu0 %v1653
    %1688 = vmatpush.msra.mxu0 %v1652
    %1689 = vmatpush.msra.mxu0 %v1651
    %1690 = vmatpush.msra.mxu0 %v1650
    %1691 = vmatpush.msra.mxu0 %v1649
    %1692 = vmatpush.msra.mxu0 %v1648
    %1693 = vmatpush.msra.mxu0 %v1647
    %1694 = vmatmul.f32.gmra.mxu0 %v1661
    %v1695 = vpop.f32.mrf.mxu0
    %v1696 = vadd.f32 %v1657, %v1695
    %1697 = vmatmul.f32.gmra.mxu0 %v1664
    %v1698 = vpop.f32.mrf.mxu0
    %v1699 = vadd.f32 %v1657, %v1698
    %1700 = vmatmul.f32.gmra.mxu0 %v1667
    %v1701 = vpop.f32.mrf.mxu0
    %v1702 = vadd.f32 %v1657, %v1701
    %1703 = vmatmul.f32.gmra.mxu0 %v1670
    %v1704 = vpop.f32.mrf.mxu0
    %v1705 = vadd.f32 %v1657, %v1704
    %1706 = vmatmul.f32.gmra.mxu0 %v1673
    %v1707 = vpop.f32.mrf.mxu0
    %v1708 = vadd.f32 %v1657, %v1707
    %1709 = vmatmul.f32.gmra.mxu0 %v1676
    %v1710 = vpop.f32.mrf.mxu0
    %v1711 = vadd.f32 %v1657, %v1710
    %1712 = vdwg.mxu0
    %v1713 = vadd.f32 %v1526, %v1696
    %v1714 = vadd.f32 %v1527, %v1699
    %v1715 = vadd.f32 %v1528, %v1702
    %v1716 = vadd.f32 %v1529, %v1705
    %v1717 = vadd.f32 %v1530, %v1708
    %v1718 = vadd.f32 %v1531, %v1711
    %v1719 = vld [vmem:[%s41] sm:$0x1]
    %v1720 = vld [vmem:[%s43] sm:$0x1]
    %v1721 = vsel %vm155, %v1713, 0.0
    %1722 = vadd.xlane.f32.xlu0 %v1721
    %v1723 = vpop.xlane.xlu0 %1722
    %v1724 = vsel %vm155, %v1714, 0.0
    %1725 = vadd.xlane.f32.xlu0 %v1724
    %v1726 = vpop.xlane.xlu0 %1725
    %v1727 = vsel %vm155, %v1715, 0.0
    %1728 = vadd.xlane.f32.xlu0 %v1727
    %v1729 = vpop.xlane.xlu0 %1728
    %v1730 = vsel %vm155, %v1716, 0.0
    %1731 = vadd.xlane.f32.xlu0 %v1730
    %v1732 = vpop.xlane.xlu0 %1731
    %v1733 = vsel %vm155, %v1717, 0.0
    %1734 = vadd.xlane.f32.xlu0 %v1733
    %v1735 = vpop.xlane.xlu0 %1734
    %v1736 = vsel %vm155, %v1718, 0.0
    %1737 = vadd.xlane.f32.xlu0 %v1736
    %v1738 = vpop.xlane.xlu0 %1737
    %v1739 = vmul.f32 %v1723, %v1399
    %v1740 = vmul.f32 %v1726, %v1399
    %v1741 = vmul.f32 %v1729, %v1399
    %v1742 = vmul.f32 %v1732, %v1399
    %v1743 = vmul.f32 %v1735, %v1399
    %v1744 = vmul.f32 %v1738, %v1399
    %v1745 = vsub.f32 %v1713, %v1739
    %v1746 = vsub.f32 %v1714, %v1740
    %v1747 = vsub.f32 %v1715, %v1741
    %v1748 = vsub.f32 %v1716, %v1742
    %v1749 = vsub.f32 %v1717, %v1743
    %v1750 = vsub.f32 %v1718, %v1744
    %v1751 = vmul.f32 %v1745, %v1745
    %v1752 = vmul.f32 %v1746, %v1746
    %v1753 = vmul.f32 %v1747, %v1747
    %v1754 = vmul.f32 %v1748, %v1748
    %v1755 = vmul.f32 %v1749, %v1749
    %v1756 = vmul.f32 %v1750, %v1750
    %v1757 = vsel %vm155, %v1751, 0.0
    %1758 = vadd.xlane.f32.xlu0 %v1757
    %v1759 = vpop.xlane.xlu0 %1758
    %v1760 = vsel %vm155, %v1752, 0.0
    %1761 = vadd.xlane.f32.xlu0 %v1760
    %v1762 = vpop.xlane.xlu0 %1761
    %v1763 = vsel %vm155, %v1753, 0.0
    %1764 = vadd.xlane.f32.xlu0 %v1763
    %v1765 = vpop.xlane.xlu0 %1764
    %v1766 = vsel %vm155, %v1754, 0.0
    %1767 = vadd.xlane.f32.xlu0 %v1766
    %v1768 = vpop.xlane.xlu0 %1767
    %v1769 = vsel %vm155, %v1755, 0.0
    %1770 = vadd.xlane.f32.xlu0 %v1769
    %v1771 = vpop.xlane.xlu0 %1770
    %v1772 = vsel %vm155, %v1756, 0.0
    %1773 = vadd.xlane.f32.xlu0 %v1772
    %v1774 = vpop.xlane.xlu0 %1773
    %v1775 = vmul.f32 %v1759, %v1399
    %v1776 = vmul.f32 %v1762, %v1399
    %v1777 = vmul.f32 %v1765, %v1399
    %v1778 = vmul.f32 %v1768, %v1399
    %v1779 = vmul.f32 %v1771, %v1399
    %v1780 = vmul.f32 %v1774, %v1399
    %v1781 = vadd.f32 %v1775, 1e-12
    %v1782 = vadd.f32 %v1776, 1e-12
    %v1783 = vadd.f32 %v1777, 1e-12
    %v1784 = vadd.f32 %v1778, 1e-12
    %v1785 = vadd.f32 %v1779, 1e-12
    %v1786 = vadd.f32 %v1780, 1e-12
    %v1787 = vrsqrt.pop %v1781
    %v1788 = vmul.f32 %v1787, %v1781
    %v1789 = vmul.f32 %v1788, %v1787
    %v1790 = vmul.f32 0.5, %v1789
    %v1791 = vsub.f32 1.5, %v1790
    %v1792 = vmul.f32 %v1787, %v1791
    %vm1793 = vweird.f32 %v1781
    %vm1794 = vweird.f32 %v1787
    %vm1795 = vmor %vm1793, %vm1794
    %v1796 = vsel %vm1795, %v1787, %v1792
    %v1797 = vrsqrt.pop %v1782
    %v1798 = vmul.f32 %v1797, %v1782
    %v1799 = vmul.f32 %v1798, %v1797
    %v1800 = vmul.f32 0.5, %v1799
    %v1801 = vsub.f32 1.5, %v1800
    %v1802 = vmul.f32 %v1797, %v1801
    %vm1803 = vweird.f32 %v1782
    %vm1804 = vweird.f32 %v1797
    %vm1805 = vmor %vm1803, %vm1804
    %v1806 = vsel %vm1805, %v1797, %v1802
    %v1807 = vrsqrt.pop %v1783
    %v1808 = vmul.f32 %v1807, %v1783
    %v1809 = vmul.f32 %v1808, %v1807
    %v1810 = vmul.f32 0.5, %v1809
    %v1811 = vsub.f32 1.5, %v1810
    %v1812 = vmul.f32 %v1807, %v1811
    %vm1813 = vweird.f32 %v1783
    %vm1814 = vweird.f32 %v1807
    %vm1815 = vmor %vm1813, %vm1814
    %v1816 = vsel %vm1815, %v1807, %v1812
    %v1817 = vrsqrt.pop %v1784
    %v1818 = vmul.f32 %v1817, %v1784
    %v1819 = vmul.f32 %v1818, %v1817
    %v1820 = vmul.f32 0.5, %v1819
    %v1821 = vsub.f32 1.5, %v1820
    %v1822 = vmul.f32 %v1817, %v1821
    %vm1823 = vweird.f32 %v1784
    %vm1824 = vweird.f32 %v1817
    %vm1825 = vmor %vm1823, %vm1824
    %v1826 = vsel %vm1825, %v1817, %v1822
    %v1827 = vrsqrt.pop %v1785
    %v1828 = vmul.f32 %v1827, %v1785
    %v1829 = vmul.f32 %v1828, %v1827
    %v1830 = vmul.f32 0.5, %v1829
    %v1831 = vsub.f32 1.5, %v1830
    %v1832 = vmul.f32 %v1827, %v1831
    %vm1833 = vweird.f32 %v1785
    %vm1834 = vweird.f32 %v1827
    %vm1835 = vmor %vm1833, %vm1834
    %v1836 = vsel %vm1835, %v1827, %v1832
    %v1837 = vrsqrt.pop %v1786
    %v1838 = vmul.f32 %v1837, %v1786
    %v1839 = vmul.f32 %v1838, %v1837
    %v1840 = vmul.f32 0.5, %v1839
    %v1841 = vsub.f32 1.5, %v1840
    %v1842 = vmul.f32 %v1837, %v1841
    %vm1843 = vweird.f32 %v1786
    %vm1844 = vweird.f32 %v1837
    %vm1845 = vmor %vm1843, %vm1844
    %v1846 = vsel %vm1845, %v1837, %v1842
    %v1847 = vmul.f32 %v1745, %v1796
    %v1848 = vmul.f32 %v1746, %v1806
    %v1849 = vmul.f32 %v1747, %v1816
    %v1850 = vmul.f32 %v1748, %v1826
    %v1851 = vmul.f32 %v1749, %v1836
    %v1852 = vmul.f32 %v1750, %v1846
    %v1854 = vperm.slane %v1719, 0
    %v1856 = vmul.f32 %v1847, %v1854
    %v1857 = vmul.f32 %v1848, %v1854
    %v1858 = vmul.f32 %v1849, %v1854
    %v1859 = vmul.f32 %v1850, %v1854
    %v1860 = vmul.f32 %v1851, %v1854
    %v1861 = vmul.f32 %v1852, %v1854
    %v1863 = vperm.slane %v1720, 0
    %v1865 = vadd.f32 %v1856, %v1863
    %v1866 = vadd.f32 %v1857, %v1863
    %v1867 = vadd.f32 %v1858, %v1863
    %v1868 = vadd.f32 %v1859, %v1863
    %v1869 = vadd.f32 %v1860, %v1863
    %v1870 = vadd.f32 %v1861, %v1863
    %v1871 = vadd.f32 %v1865, 0.0
    %v1872 = vadd.f32 %v1866, 0.0
    %v1873 = vadd.f32 %v1867, 0.0
    %v1874 = vadd.f32 %v1868, 0.0
    %v1875 = vadd.f32 %v1869, 0.0
    %v1876 = vadd.f32 %v1870, 0.0
    %s1877 = scalar_lea.vmem %s13, 32
    %v1878 = vld [vmem:[%s1877] sm:$0xff]
    %v1879 = vld [vmem:[%s1877 + $0x8] sm:$0xff]
    %v1880 = vld [vmem:[%s1877 + $0x10] sm:$0xff]
    %v1881 = vld [vmem:[%s1877 + $0x18] sm:$0xff]
    %s1882 = scalar_lea.vmem %s15, 1
    %v1883 = vld [vmem:[%s1882] sm:$0x1]
    %v1885 = vperm.slane %v1883, 0
    %v1888 = vsel %vm155, %v1865, 0
    %v1891 = vsel %vm155, %v1866, 0
    %v1894 = vsel %vm155, %v1867, 0
    %v1897 = vsel %vm155, %v1868, 0
    %v1900 = vsel %vm155, %v1869, 0
    %v1903 = vsel %vm155, %v1870, 0
    %1905 = vmatpush.msra.mxu0 0.0
    %1906 = vmatpush.msra.mxu0 0.0
    %1907 = vmatpush.msra.mxu0 0.0
    %1908 = vmatpush.msra.mxu0 0.0
    %1909 = vmatpush.msra.mxu0 0.0
    %1910 = vmatpush.msra.mxu0 0.0
    %1911 = vmatpush.msra.mxu0 0.0
    %1912 = vmatpush.msra.mxu0 0.0
    %1913 = vmatpush.msra.mxu0 0.0
    %1914 = vmatpush.msra.mxu0 0.0
    %1915 = vmatpush.msra.mxu0 0.0
    %1916 = vmatpush.msra.mxu0 0.0
    %1917 = vmatpush.msra.mxu0 %v1881
    %1918 = vmatpush.msra.mxu0 %v1880
    %1919 = vmatpush.msra.mxu0 %v1879
    %1920 = vmatpush.msra.mxu0 %v1878
    %1921 = vmatmul.f32.gmra.mxu0 %v1888
    %v1922 = vpop.f32.mrf.mxu0
    %v1923 = vadd.f32 %v1885, %v1922
    %1924 = vmatmul.f32.gmra.mxu0 %v1891
    %v1925 = vpop.f32.mrf.mxu0
    %v1926 = vadd.f32 %v1885, %v1925
    %1927 = vmatmul.f32.gmra.mxu0 %v1894
    %v1928 = vpop.f32.mrf.mxu0
    %v1929 = vadd.f32 %v1885, %v1928
    %1930 = vmatmul.f32.gmra.mxu0 %v1897
    %v1931 = vpop.f32.mrf.mxu0
    %v1932 = vadd.f32 %v1885, %v1931
    %1933 = vmatmul.f32.gmra.mxu0 %v1900
    %v1934 = vpop.f32.mrf.mxu0
    %v1935 = vadd.f32 %v1885, %v1934
    %1936 = vmatmul.f32.gmra.mxu0 %v1903
    %v1937 = vpop.f32.mrf.mxu0
    %v1938 = vadd.f32 %v1885, %v1937
    %1939 = vdwg.mxu0
    %s1940 = scalar_lea.vmem %s17, 32
    %v1941 = vld [vmem:[%s1940] sm:$0xff]
    %v1942 = vld [vmem:[%s1940 + $0x8] sm:$0xff]
    %v1943 = vld [vmem:[%s1940 + $0x10] sm:$0xff]
    %v1944 = vld [vmem:[%s1940 + $0x18] sm:$0xff]
    %s1945 = scalar_lea.vmem %s19, 1
    %v1946 = vld [vmem:[%s1945] sm:$0x1]
    %v1948 = vperm.slane %v1946, 0
    %1950 = vmatpush.msra.mxu0 0.0
    %1951 = vmatpush.msra.mxu0 0.0
    %1952 = vmatpush.msra.mxu0 0.0
    %1953 = vmatpush.msra.mxu0 0.0
    %1954 = vmatpush.msra.mxu0 0.0
    %1955 = vmatpush.msra.mxu0 0.0
    %1956 = vmatpush.msra.mxu0 0.0
    %1957 = vmatpush.msra.mxu0 0.0
    %1958 = vmatpush.msra.mxu0 0.0
    %1959 = vmatpush.msra.mxu0 0.0
    %1960 = vmatpush.msra.mxu0 0.0
    %1961 = vmatpush.msra.mxu0 0.0
    %1962 = vmatpush.msra.mxu0 %v1944
    %1963 = vmatpush.msra.mxu0 %v1943
    %1964 = vmatpush.msra.mxu0 %v1942
    %1965 = vmatpush.msra.mxu0 %v1941
    %1966 = vmatmul.f32.gmra.mxu0 %v1888
    %v1967 = vpop.f32.mrf.mxu0
    %v1968 = vadd.f32 %v1948, %v1967
    %1969 = vmatmul.f32.gmra.mxu0 %v1891
    %v1970 = vpop.f32.mrf.mxu0
    %v1971 = vadd.f32 %v1948, %v1970
    %1972 = vmatmul.f32.gmra.mxu0 %v1894
    %v1973 = vpop.f32.mrf.mxu0
    %v1974 = vadd.f32 %v1948, %v1973
    %1975 = vmatmul.f32.gmra.mxu0 %v1897
    %v1976 = vpop.f32.mrf.mxu0
    %v1977 = vadd.f32 %v1948, %v1976
    %1978 = vmatmul.f32.gmra.mxu0 %v1900
    %v1979 = vpop.f32.mrf.mxu0
    %v1980 = vadd.f32 %v1948, %v1979
    %1981 = vmatmul.f32.gmra.mxu0 %v1903
    %v1982 = vpop.f32.mrf.mxu0
    %v1983 = vadd.f32 %v1948, %v1982
    %1984 = vdwg.mxu0
    %s1985 = scalar_lea.vmem %s21, 32
    %v1986 = vld [vmem:[%s1985] sm:$0xff]
    %v1987 = vld [vmem:[%s1985 + $0x8] sm:$0xff]
    %v1988 = vld [vmem:[%s1985 + $0x10] sm:$0xff]
    %v1989 = vld [vmem:[%s1985 + $0x18] sm:$0xff]
    %s1990 = scalar_lea.vmem %s23, 1
    %v1991 = vld [vmem:[%s1990] sm:$0x1]
    %v1993 = vperm.slane %v1991, 0
    %1995 = vmatpush.msra.mxu0 0.0
    %1996 = vmatpush.msra.mxu0 0.0
    %1997 = vmatpush.msra.mxu0 0.0
    %1998 = vmatpush.msra.mxu0 0.0
    %1999 = vmatpush.msra.mxu0 0.0
    %2000 = vmatpush.msra.mxu0 0.0
    %2001 = vmatpush.msra.mxu0 0.0
    %2002 = vmatpush.msra.mxu0 0.0
    %2003 = vmatpush.msra.mxu0 0.0
    %2004 = vmatpush.msra.mxu0 0.0
    %2005 = vmatpush.msra.mxu0 0.0
    %2006 = vmatpush.msra.mxu0 0.0
    %2007 = vmatpush.msra.mxu0 %v1989
    %2008 = vmatpush.msra.mxu0 %v1988
    %2009 = vmatpush.msra.mxu0 %v1987
    %2010 = vmatpush.msra.mxu0 %v1986
    %2011 = vmatmul.f32.gmra.mxu0 %v1888
    %v2012 = vpop.f32.mrf.mxu0
    %v2013 = vadd.f32 %v1993, %v2012
    %2014 = vmatmul.f32.gmra.mxu0 %v1891
    %v2015 = vpop.f32.mrf.mxu0
    %v2016 = vadd.f32 %v1993, %v2015
    %2017 = vmatmul.f32.gmra.mxu0 %v1894
    %v2018 = vpop.f32.mrf.mxu0
    %v2019 = vadd.f32 %v1993, %v2018
    %2020 = vmatmul.f32.gmra.mxu0 %v1897
    %v2021 = vpop.f32.mrf.mxu0
    %v2022 = vadd.f32 %v1993, %v2021
    %2023 = vmatmul.f32.gmra.mxu0 %v1900
    %v2024 = vpop.f32.mrf.mxu0
    %v2025 = vadd.f32 %v1993, %v2024
    %2026 = vmatmul.f32.gmra.mxu0 %v1903
    %v2027 = vpop.f32.mrf.mxu0
    %v2028 = vadd.f32 %v1993, %v2027
    %2029 = vdwg.mxu0
    %v2031 = vsel %vm295, %v1923, 0
    %v2034 = vsel %vm295, %v1926, 0
    %v2037 = vsel %vm295, %v1929, 0
    %v2040 = vsel %vm295, %v1932, 0
    %v2043 = vsel %vm295, %v1935, 0
    %v2046 = vsel %vm295, %v1938, 0
    %v2049 = vsel %vm295, %v1968, 0
    %v2052 = vsel %vm295, %v1971, 0
    %v2055 = vsel %vm295, %v1974, 0
    %v2058 = vsel %vm295, %v1977, 0
    %v2061 = vsel %vm295, %v1980, 0
    %v2064 = vsel %vm295, %v1983, 0
    %2066 = vmatpush.xpose.msra.mxu0 0.0
    %2067 = vmatpush.xpose.msra.mxu0 0.0
    %2068 = vmatpush.xpose.msra.mxu0 0.0
    %2069 = vmatpush.xpose.msra.mxu0 0.0
    %2070 = vmatpush.xpose.msra.mxu0 0.0
    %2071 = vmatpush.xpose.msra.mxu0 0.0
    %2072 = vmatpush.xpose.msra.mxu0 0.0
    %2073 = vmatpush.xpose.msra.mxu0 0.0
    %2074 = vmatpush.xpose.msra.mxu0 0.0
    %2075 = vmatpush.xpose.msra.mxu0 0.0
    %2076 = vmatpush.xpose.msra.mxu0 %v2064
    %2077 = vmatpush.xpose.msra.mxu0 %v2061
    %2078 = vmatpush.xpose.msra.mxu0 %v2058
    %2079 = vmatpush.xpose.msra.mxu0 %v2055
    %2080 = vmatpush.xpose.msra.mxu0 %v2052
    %2081 = vmatpush.xpose.msra.mxu0 %v2049
    %2082 = vmatmul.f32.gmra.mxu0 %v2031
    %v2083 = vpop.f32.mrf.mxu0
    %v2084 = vadd.f32 0.0, %v2083
    %2085 = vmatmul.f32.gmra.mxu0 %v2034
    %v2086 = vpop.f32.mrf.mxu0
    %v2087 = vadd.f32 0.0, %v2086
    %2088 = vmatmul.f32.gmra.mxu0 %v2037
    %v2089 = vpop.f32.mrf.mxu0
    %v2090 = vadd.f32 0.0, %v2089
    %2091 = vmatmul.f32.gmra.mxu0 %v2040
    %v2092 = vpop.f32.mrf.mxu0
    %v2093 = vadd.f32 0.0, %v2092
    %2094 = vmatmul.f32.gmra.mxu0 %v2043
    %v2095 = vpop.f32.mrf.mxu0
    %v2096 = vadd.f32 0.0, %v2095
    %2097 = vmatmul.f32.gmra.mxu0 %v2046
    %v2098 = vpop.f32.mrf.mxu0
    %v2099 = vadd.f32 0.0, %v2098
    %2100 = vdwg.mxu0
    %v2101 = vmul.f32 %v2084, 0.35355338
    %v2102 = vmul.f32 %v2087, 0.35355338
    %v2103 = vmul.f32 %v2090, 0.35355338
    %v2104 = vmul.f32 %v2093, 0.35355338
    %v2105 = vmul.f32 %v2096, 0.35355338
    %v2106 = vmul.f32 %v2099, 0.35355338
    %v2107 = vadd.f32 %v2101, %v141
    %v2108 = vadd.f32 %v2102, %v142
    %v2109 = vadd.f32 %v2103, %v143
    %v2110 = vadd.f32 %v2104, %v144
    %v2111 = vadd.f32 %v2105, %v145
    %v2112 = vadd.f32 %v2106, %v146
    %v2113 = vsel %vm379, %v2107, -inf
    %2114 = vmax.xlane.f32.xlu0 %v2113
    %v2115 = vpop.xlane.xlu0 %2114
    %v2116 = vsel %vm379, %v2108, -inf
    %2117 = vmax.xlane.f32.xlu0 %v2116
    %v2118 = vpop.xlane.xlu0 %2117
    %v2119 = vsel %vm379, %v2109, -inf
    %2120 = vmax.xlane.f32.xlu0 %v2119
    %v2121 = vpop.xlane.xlu0 %2120
    %v2122 = vsel %vm379, %v2110, -inf
    %2123 = vmax.xlane.f32.xlu0 %v2122
    %v2124 = vpop.xlane.xlu0 %2123
    %v2125 = vsel %vm379, %v2111, -inf
    %2126 = vmax.xlane.f32.xlu0 %v2125
    %v2127 = vpop.xlane.xlu0 %2126
    %v2128 = vsel %vm379, %v2112, -inf
    %2129 = vmax.xlane.f32.xlu0 %v2128
    %v2130 = vpop.xlane.xlu0 %2129
    %v2131 = vsub.f32 %v2107, %v2115
    %v2132 = vsub.f32 %v2108, %v2118
    %v2133 = vsub.f32 %v2109, %v2121
    %v2134 = vsub.f32 %v2110, %v2124
    %v2135 = vsub.f32 %v2111, %v2127
    %v2136 = vsub.f32 %v2112, %v2130
    %v2137 = vmul.f32 %v2131, 1.442695
    %v2138 = vpow.pop %v2137
    %v2139 = vmul.f32 %v2132, 1.442695
    %v2140 = vpow.pop %v2139
    %v2141 = vmul.f32 %v2133, 1.442695
    %v2142 = vpow.pop %v2141
    %v2143 = vmul.f32 %v2134, 1.442695
    %v2144 = vpow.pop %v2143
    %v2145 = vmul.f32 %v2135, 1.442695
    %v2146 = vpow.pop %v2145
    %v2147 = vmul.f32 %v2136, 1.442695
    %v2148 = vpow.pop %v2147
    %v2149 = vsel %vm379, %v2138, 0.0
    %2150 = vadd.xlane.f32.xlu0 %v2149
    %v2151 = vpop.xlane.xlu0 %2150
    %v2152 = vsel %vm379, %v2140, 0.0
    %2153 = vadd.xlane.f32.xlu0 %v2152
    %v2154 = vpop.xlane.xlu0 %2153
    %v2155 = vsel %vm379, %v2142, 0.0
    %2156 = vadd.xlane.f32.xlu0 %v2155
    %v2157 = vpop.xlane.xlu0 %2156
    %v2158 = vsel %vm379, %v2144, 0.0
    %2159 = vadd.xlane.f32.xlu0 %v2158
    %v2160 = vpop.xlane.xlu0 %2159
    %v2161 = vsel %vm379, %v2146, 0.0
    %2162 = vadd.xlane.f32.xlu0 %v2161
    %v2163 = vpop.xlane.xlu0 %2162
    %v2164 = vsel %vm379, %v2148, 0.0
    %2165 = vadd.xlane.f32.xlu0 %v2164
    %v2166 = vpop.xlane.xlu0 %2165
    %v2167 = vrcp.pop %v2151
    %v2168 = vrcp.pop %v2154
    %v2169 = vrcp.pop %v2157
    %v2170 = vrcp.pop %v2160
    %v2171 = vrcp.pop %v2163
    %v2172 = vrcp.pop %v2166
    %v2173 = vmul.f32 %v2138, %v2167
    %v2174 = vmul.f32 %v2140, %v2168
    %v2175 = vmul.f32 %v2142, %v2169
    %v2176 = vmul.f32 %v2144, %v2170
    %v2177 = vmul.f32 %v2146, %v2171
    %v2178 = vmul.f32 %v2148, %v2172
    %v2180 = vsel %vm379, %v2173, 0
    %v2183 = vsel %vm379, %v2174, 0
    %v2186 = vsel %vm379, %v2175, 0
    %v2189 = vsel %vm379, %v2176, 0
    %v2192 = vsel %vm379, %v2177, 0
    %v2195 = vsel %vm379, %v2178, 0
    %2197 = vmatpush.msra.mxu0 0.0
    %2198 = vmatpush.msra.mxu0 0.0
    %2199 = vmatpush.msra.mxu0 0.0
    %2200 = vmatpush.msra.mxu0 0.0
    %2201 = vmatpush.msra.mxu0 0.0
    %2202 = vmatpush.msra.mxu0 0.0
    %2203 = vmatpush.msra.mxu0 0.0
    %2204 = vmatpush.msra.mxu0 0.0
    %2205 = vmatpush.msra.mxu0 0.0
    %2206 = vmatpush.msra.mxu0 0.0
    %2207 = vmatpush.msra.mxu0 %v2028
    %2208 = vmatpush.msra.mxu0 %v2025
    %2209 = vmatpush.msra.mxu0 %v2022
    %2210 = vmatpush.msra.mxu0 %v2019
    %2211 = vmatpush.msra.mxu0 %v2016
    %2212 = vmatpush.msra.mxu0 %v2013
    %2213 = vmatmul.f32.gmra.mxu0 %v2180
    %v2214 = vpop.f32.mrf.mxu0
    %v2215 = vadd.f32 0.0, %v2214
    %2216 = vmatmul.f32.gmra.mxu0 %v2183
    %v2217 = vpop.f32.mrf.mxu0
    %v2218 = vadd.f32 0.0, %v2217
    %2219 = vmatmul.f32.gmra.mxu0 %v2186
    %v2220 = vpop.f32.mrf.mxu0
    %v2221 = vadd.f32 0.0, %v2220
    %2222 = vmatmul.f32.gmra.mxu0 %v2189
    %v2223 = vpop.f32.mrf.mxu0
    %v2224 = vadd.f32 0.0, %v2223
    %2225 = vmatmul.f32.gmra.mxu0 %v2192
    %v2226 = vpop.f32.mrf.mxu0
    %v2227 = vadd.f32 0.0, %v2226
    %2228 = vmatmul.f32.gmra.mxu0 %v2195
    %v2229 = vpop.f32.mrf.mxu0
    %v2230 = vadd.f32 0.0, %v2229
    %2231 = vdwg.mxu0
    %2232 = vst.msk [vmem:[#allocation2] sm:$0xff] %vm295, %v2215
    %2233 = vst.msk [vmem:[#allocation2 + $0x8] sm:$0xff] %vm295, %v2218
    %2234 = vst.msk [vmem:[#allocation2 + $0x10] sm:$0xff] %vm295, %v2221
    %2235 = vst.msk [vmem:[#allocation2 + $0x18] sm:$0xff] %vm295, %v2224
    %2236 = vst.msk [vmem:[#allocation2 + $0x20] sm:$0xff] %vm295, %v2227
    %2237 = vst.msk [vmem:[#allocation2 + $0x28] sm:$0xff] %vm295, %v2230
    %2238 = vrot.lane.b32.xlu0 %v1923, 120
    %v2239 = vpop.permute.xlu0 %2238
    %2240 = vrot.lane.b32.xlu0 %v1926, 120
    %v2241 = vpop.permute.xlu0 %2240
    %2242 = vrot.lane.b32.xlu0 %v1929, 120
    %v2243 = vpop.permute.xlu0 %2242
    %2244 = vrot.lane.b32.xlu0 %v1932, 120
    %v2245 = vpop.permute.xlu0 %2244
    %2246 = vrot.lane.b32.xlu0 %v1935, 120
    %v2247 = vpop.permute.xlu0 %2246
    %2248 = vrot.lane.b32.xlu0 %v1938, 120
    %v2249 = vpop.permute.xlu0 %2248
    %2250 = vrot.lane.b32.xlu0 %v1968, 120
    %v2251 = vpop.permute.xlu0 %2250
    %2252 = vrot.lane.b32.xlu0 %v1971, 120
    %v2253 = vpop.permute.xlu0 %2252
    %2254 = vrot.lane.b32.xlu0 %v1974, 120
    %v2255 = vpop.permute.xlu0 %2254
    %2256 = vrot.lane.b32.xlu0 %v1977, 120
    %v2257 = vpop.permute.xlu0 %2256
    %2258 = vrot.lane.b32.xlu0 %v1980, 120
    %v2259 = vpop.permute.xlu0 %2258
    %2260 = vrot.lane.b32.xlu0 %v1983, 120
    %v2261 = vpop.permute.xlu0 %2260
    %v2262 = vsel %vm295, %v2239, 0
    %v2264 = vsel %vm295, %v2241, 0
    %v2266 = vsel %vm295, %v2243, 0
    %v2268 = vsel %vm295, %v2245, 0
    %v2270 = vsel %vm295, %v2247, 0
    %v2272 = vsel %vm295, %v2249, 0
    %v2274 = vsel %vm295, %v2251, 0
    %v2276 = vsel %vm295, %v2253, 0
    %v2278 = vsel %vm295, %v2255, 0
    %v2280 = vsel %vm295, %v2257, 0
    %v2282 = vsel %vm295, %v2259, 0
    %v2284 = vsel %vm295, %v2261, 0
    %2286 = vmatpush.xpose.msra.mxu0 0.0
    %2287 = vmatpush.xpose.msra.mxu0 0.0
    %2288 = vmatpush.xpose.msra.mxu0 0.0
    %2289 = vmatpush.xpose.msra.mxu0 0.0
    %2290 = vmatpush.xpose.msra.mxu0 0.0
    %2291 = vmatpush.xpose.msra.mxu0 0.0
    %2292 = vmatpush.xpose.msra.mxu0 0.0
    %2293 = vmatpush.xpose.msra.mxu0 0.0
    %2294 = vmatpush.xpose.msra.mxu0 0.0
    %2295 = vmatpush.xpose.msra.mxu0 0.0
    %2296 = vmatpush.xpose.msra.mxu0 %v2284
    %2297 = vmatpush.xpose.msra.mxu0 %v2282
    %2298 = vmatpush.xpose.msra.mxu0 %v2280
    %2299 = vmatpush.xpose.msra.mxu0 %v2278
    %2300 = vmatpush.xpose.msra.mxu0 %v2276
    %2301 = vmatpush.xpose.msra.mxu0 %v2274
    %2302 = vmatmul.f32.gmra.mxu0 %v2262
    %v2303 = vpop.f32.mrf.mxu0
    %v2304 = vadd.f32 0.0, %v2303
    %2305 = vmatmul.f32.gmra.mxu0 %v2264
    %v2306 = vpop.f32.mrf.mxu0
    %v2307 = vadd.f32 0.0, %v2306
    %2308 = vmatmul.f32.gmra.mxu0 %v2266
    %v2309 = vpop.f32.mrf.mxu0
    %v2310 = vadd.f32 0.0, %v2309
    %2311 = vmatmul.f32.gmra.mxu0 %v2268
    %v2312 = vpop.f32.mrf.mxu0
    %v2313 = vadd.f32 0.0, %v2312
    %2314 = vmatmul.f32.gmra.mxu0 %v2270
    %v2315 = vpop.f32.mrf.mxu0
    %v2316 = vadd.f32 0.0, %v2315
    %2317 = vmatmul.f32.gmra.mxu0 %v2272
    %v2318 = vpop.f32.mrf.mxu0
    %v2319 = vadd.f32 0.0, %v2318
    %2320 = vdwg.mxu0
    %v2321 = vmul.f32 %v2304, 0.35355338
    %v2322 = vmul.f32 %v2307, 0.35355338
    %v2323 = vmul.f32 %v2310, 0.35355338
    %v2324 = vmul.f32 %v2313, 0.35355338
    %v2325 = vmul.f32 %v2316, 0.35355338
    %v2326 = vmul.f32 %v2319, 0.35355338
    %v2327 = vadd.f32 %v2321, %v141
    %v2328 = vadd.f32 %v2322, %v142
    %v2329 = vadd.f32 %v2323, %v143
    %v2330 = vadd.f32 %v2324, %v144
    %v2331 = vadd.f32 %v2325, %v145
    %v2332 = vadd.f32 %v2326, %v146
    %v2333 = vsel %vm379, %v2327, -inf
    %2334 = vmax.xlane.f32.xlu0 %v2333
    %v2335 = vpop.xlane.xlu0 %2334
    %v2336 = vsel %vm379, %v2328, -inf
    %2337 = vmax.xlane.f32.xlu0 %v2336
    %v2338 = vpop.xlane.xlu0 %2337
    %v2339 = vsel %vm379, %v2329, -inf
    %2340 = vmax.xlane.f32.xlu0 %v2339
    %v2341 = vpop.xlane.xlu0 %2340
    %v2342 = vsel %vm379, %v2330, -inf
    %2343 = vmax.xlane.f32.xlu0 %v2342
    %v2344 = vpop.xlane.xlu0 %2343
    %v2345 = vsel %vm379, %v2331, -inf
    %2346 = vmax.xlane.f32.xlu0 %v2345
    %v2347 = vpop.xlane.xlu0 %2346
    %v2348 = vsel %vm379, %v2332, -inf
    %2349 = vmax.xlane.f32.xlu0 %v2348
    %v2350 = vpop.xlane.xlu0 %2349
    %v2351 = vsub.f32 %v2327, %v2335
    %v2352 = vsub.f32 %v2328, %v2338
    %v2353 = vsub.f32 %v2329, %v2341
    %v2354 = vsub.f32 %v2330, %v2344
    %v2355 = vsub.f32 %v2331, %v2347
    %v2356 = vsub.f32 %v2332, %v2350
    %v2357 = vmul.f32 %v2351, 1.442695
    %v2358 = vpow.pop %v2357
    %v2359 = vmul.f32 %v2352, 1.442695
    %v2360 = vpow.pop %v2359
    %v2361 = vmul.f32 %v2353, 1.442695
    %v2362 = vpow.pop %v2361
    %v2363 = vmul.f32 %v2354, 1.442695
    %v2364 = vpow.pop %v2363
    %v2365 = vmul.f32 %v2355, 1.442695
    %v2366 = vpow.pop %v2365
    %v2367 = vmul.f32 %v2356, 1.442695
    %v2368 = vpow.pop %v2367
    %v2369 = vsel %vm379, %v2358, 0.0
    %2370 = vadd.xlane.f32.xlu0 %v2369
    %v2371 = vpop.xlane.xlu0 %2370
    %v2372 = vsel %vm379, %v2360, 0.0
    %2373 = vadd.xlane.f32.xlu0 %v2372
    %v2374 = vpop.xlane.xlu0 %2373
    %v2375 = vsel %vm379, %v2362, 0.0
    %2376 = vadd.xlane.f32.xlu0 %v2375
    %v2377 = vpop.xlane.xlu0 %2376
    %v2378 = vsel %vm379, %v2364, 0.0
    %2379 = vadd.xlane.f32.xlu0 %v2378
    %v2380 = vpop.xlane.xlu0 %2379
    %v2381 = vsel %vm379, %v2366, 0.0
    %2382 = vadd.xlane.f32.xlu0 %v2381
    %v2383 = vpop.xlane.xlu0 %2382
    %v2384 = vsel %vm379, %v2368, 0.0
    %2385 = vadd.xlane.f32.xlu0 %v2384
    %v2386 = vpop.xlane.xlu0 %2385
    %v2387 = vrcp.pop %v2371
    %v2388 = vrcp.pop %v2374
    %v2389 = vrcp.pop %v2377
    %v2390 = vrcp.pop %v2380
    %v2391 = vrcp.pop %v2383
    %v2392 = vrcp.pop %v2386
    %v2393 = vmul.f32 %v2358, %v2387
    %v2394 = vmul.f32 %v2360, %v2388
    %v2395 = vmul.f32 %v2362, %v2389
    %v2396 = vmul.f32 %v2364, %v2390
    %v2397 = vmul.f32 %v2366, %v2391
    %v2398 = vmul.f32 %v2368, %v2392
    %2405 = vrot.lane.b32.xlu0 %v2013, 120
    %v2406 = vpop.permute.xlu0 %2405
    %2407 = vrot.lane.b32.xlu0 %v2016, 120
    %v2408 = vpop.permute.xlu0 %2407
    %2409 = vrot.lane.b32.xlu0 %v2019, 120
    %v2410 = vpop.permute.xlu0 %2409
    %2411 = vrot.lane.b32.xlu0 %v2022, 120
    %v2412 = vpop.permute.xlu0 %2411
    %2413 = vrot.lane.b32.xlu0 %v2025, 120
    %v2414 = vpop.permute.xlu0 %2413
    %2415 = vrot.lane.b32.xlu0 %v2028, 120
    %v2416 = vpop.permute.xlu0 %2415
    %v2424 = vsel %vm379, %v2393, 0
    %v2427 = vsel %vm379, %v2394, 0
    %v2430 = vsel %vm379, %v2395, 0
    %v2433 = vsel %vm379, %v2396, 0
    %v2436 = vsel %vm379, %v2397, 0
    %v2439 = vsel %vm379, %v2398, 0
    %2441 = vmatpush.msra.mxu0 0.0
    %2442 = vmatpush.msra.mxu0 0.0
    %2443 = vmatpush.msra.mxu0 0.0
    %2444 = vmatpush.msra.mxu0 0.0
    %2445 = vmatpush.msra.mxu0 0.0
    %2446 = vmatpush.msra.mxu0 0.0
    %2447 = vmatpush.msra.mxu0 0.0
    %2448 = vmatpush.msra.mxu0 0.0
    %2449 = vmatpush.msra.mxu0 0.0
    %2450 = vmatpush.msra.mxu0 0.0
    %2451 = vmatpush.msra.mxu0 %v2416
    %2452 = vmatpush.msra.mxu0 %v2414
    %2453 = vmatpush.msra.mxu0 %v2412
    %2454 = vmatpush.msra.mxu0 %v2410
    %2455 = vmatpush.msra.mxu0 %v2408
    %2456 = vmatpush.msra.mxu0 %v2406
    %2457 = vmatmul.f32.gmra.mxu0 %v2424
    %v2458 = vpop.f32.mrf.mxu0
    %v2459 = vadd.f32 0.0, %v2458
    %2460 = vmatmul.f32.gmra.mxu0 %v2427
    %v2461 = vpop.f32.mrf.mxu0
    %v2462 = vadd.f32 0.0, %v2461
    %2463 = vmatmul.f32.gmra.mxu0 %v2430
    %v2464 = vpop.f32.mrf.mxu0
    %v2465 = vadd.f32 0.0, %v2464
    %2466 = vmatmul.f32.gmra.mxu0 %v2433
    %v2467 = vpop.f32.mrf.mxu0
    %v2468 = vadd.f32 0.0, %v2467
    %2469 = vmatmul.f32.gmra.mxu0 %v2436
    %v2470 = vpop.f32.mrf.mxu0
    %v2471 = vadd.f32 0.0, %v2470
    %2472 = vmatmul.f32.gmra.mxu0 %v2439
    %v2473 = vpop.f32.mrf.mxu0
    %v2474 = vadd.f32 0.0, %v2473
    %2475 = vdwg.mxu0
    %2482 = vrot.lane.b32.xlu0 %v2459, 8
    %v2483 = vpop.permute.xlu0 %2482
    %2484 = vrot.lane.b32.xlu0 %v2462, 8
    %v2485 = vpop.permute.xlu0 %2484
    %2486 = vrot.lane.b32.xlu0 %v2465, 8
    %v2487 = vpop.permute.xlu0 %2486
    %2488 = vrot.lane.b32.xlu0 %v2468, 8
    %v2489 = vpop.permute.xlu0 %2488
    %2490 = vrot.lane.b32.xlu0 %v2471, 8
    %v2491 = vpop.permute.xlu0 %2490
    %2492 = vrot.lane.b32.xlu0 %v2474, 8
    %v2493 = vpop.permute.xlu0 %2492
    %2500 = vst.msk [vmem:[#allocation2] sm:$0xff] %vm767, %v2483
    %2501 = vst.msk [vmem:[#allocation2 + $0x8] sm:$0xff] %vm767, %v2485
    %2502 = vst.msk [vmem:[#allocation2 + $0x10] sm:$0xff] %vm767, %v2487
    %2503 = vst.msk [vmem:[#allocation2 + $0x18] sm:$0xff] %vm767, %v2489
    %2504 = vst.msk [vmem:[#allocation2 + $0x20] sm:$0xff] %vm767, %v2491
    %2505 = vst.msk [vmem:[#allocation2 + $0x28] sm:$0xff] %vm767, %v2493
    %2506 = vrot.lane.b32.xlu0 %v1923, 112
    %v2507 = vpop.permute.xlu0 %2506
    %2508 = vrot.lane.b32.xlu0 %v1926, 112
    %v2509 = vpop.permute.xlu0 %2508
    %2510 = vrot.lane.b32.xlu0 %v1929, 112
    %v2511 = vpop.permute.xlu0 %2510
    %2512 = vrot.lane.b32.xlu0 %v1932, 112
    %v2513 = vpop.permute.xlu0 %2512
    %2514 = vrot.lane.b32.xlu0 %v1935, 112
    %v2515 = vpop.permute.xlu0 %2514
    %2516 = vrot.lane.b32.xlu0 %v1938, 112
    %v2517 = vpop.permute.xlu0 %2516
    %2518 = vrot.lane.b32.xlu0 %v1968, 112
    %v2519 = vpop.permute.xlu0 %2518
    %2520 = vrot.lane.b32.xlu0 %v1971, 112
    %v2521 = vpop.permute.xlu0 %2520
    %2522 = vrot.lane.b32.xlu0 %v1974, 112
    %v2523 = vpop.permute.xlu0 %2522
    %2524 = vrot.lane.b32.xlu0 %v1977, 112
    %v2525 = vpop.permute.xlu0 %2524
    %2526 = vrot.lane.b32.xlu0 %v1980, 112
    %v2527 = vpop.permute.xlu0 %2526
    %2528 = vrot.lane.b32.xlu0 %v1983, 112
    %v2529 = vpop.permute.xlu0 %2528
    %v2530 = vsel %vm295, %v2507, 0
    %v2532 = vsel %vm295, %v2509, 0
    %v2534 = vsel %vm295, %v2511, 0
    %v2536 = vsel %vm295, %v2513, 0
    %v2538 = vsel %vm295, %v2515, 0
    %v2540 = vsel %vm295, %v2517, 0
    %v2542 = vsel %vm295, %v2519, 0
    %v2544 = vsel %vm295, %v2521, 0
    %v2546 = vsel %vm295, %v2523, 0
    %v2548 = vsel %vm295, %v2525, 0
    %v2550 = vsel %vm295, %v2527, 0
    %v2552 = vsel %vm295, %v2529, 0
    %2554 = vmatpush.xpose.msra.mxu0 0.0
    %2555 = vmatpush.xpose.msra.mxu0 0.0
    %2556 = vmatpush.xpose.msra.mxu0 0.0
    %2557 = vmatpush.xpose.msra.mxu0 0.0
    %2558 = vmatpush.xpose.msra.mxu0 0.0
    %2559 = vmatpush.xpose.msra.mxu0 0.0
    %2560 = vmatpush.xpose.msra.mxu0 0.0
    %2561 = vmatpush.xpose.msra.mxu0 0.0
    %2562 = vmatpush.xpose.msra.mxu0 0.0
    %2563 = vmatpush.xpose.msra.mxu0 0.0
    %2564 = vmatpush.xpose.msra.mxu0 %v2552
    %2565 = vmatpush.xpose.msra.mxu0 %v2550
    %2566 = vmatpush.xpose.msra.mxu0 %v2548
    %2567 = vmatpush.xpose.msra.mxu0 %v2546
    %2568 = vmatpush.xpose.msra.mxu0 %v2544
    %2569 = vmatpush.xpose.msra.mxu0 %v2542
    %2570 = vmatmul.f32.gmra.mxu0 %v2530
    %v2571 = vpop.f32.mrf.mxu0
    %v2572 = vadd.f32 0.0, %v2571
    %2573 = vmatmul.f32.gmra.mxu0 %v2532
    %v2574 = vpop.f32.mrf.mxu0
    %v2575 = vadd.f32 0.0, %v2574
    %2576 = vmatmul.f32.gmra.mxu0 %v2534
    %v2577 = vpop.f32.mrf.mxu0
    %v2578 = vadd.f32 0.0, %v2577
    %2579 = vmatmul.f32.gmra.mxu0 %v2536
    %v2580 = vpop.f32.mrf.mxu0
    %v2581 = vadd.f32 0.0, %v2580
    %2582 = vmatmul.f32.gmra.mxu0 %v2538
    %v2583 = vpop.f32.mrf.mxu0
    %v2584 = vadd.f32 0.0, %v2583
    %2585 = vmatmul.f32.gmra.mxu0 %v2540
    %v2586 = vpop.f32.mrf.mxu0
    %v2587 = vadd.f32 0.0, %v2586
    %2588 = vdwg.mxu0
    %v2589 = vmul.f32 %v2572, 0.35355338
    %v2590 = vmul.f32 %v2575, 0.35355338
    %v2591 = vmul.f32 %v2578, 0.35355338
    %v2592 = vmul.f32 %v2581, 0.35355338
    %v2593 = vmul.f32 %v2584, 0.35355338
    %v2594 = vmul.f32 %v2587, 0.35355338
    %v2595 = vadd.f32 %v2589, %v141
    %v2596 = vadd.f32 %v2590, %v142
    %v2597 = vadd.f32 %v2591, %v143
    %v2598 = vadd.f32 %v2592, %v144
    %v2599 = vadd.f32 %v2593, %v145
    %v2600 = vadd.f32 %v2594, %v146
    %v2601 = vsel %vm379, %v2595, -inf
    %2602 = vmax.xlane.f32.xlu0 %v2601
    %v2603 = vpop.xlane.xlu0 %2602
    %v2604 = vsel %vm379, %v2596, -inf
    %2605 = vmax.xlane.f32.xlu0 %v2604
    %v2606 = vpop.xlane.xlu0 %2605
    %v2607 = vsel %vm379, %v2597, -inf
    %2608 = vmax.xlane.f32.xlu0 %v2607
    %v2609 = vpop.xlane.xlu0 %2608
    %v2610 = vsel %vm379, %v2598, -inf
    %2611 = vmax.xlane.f32.xlu0 %v2610
    %v2612 = vpop.xlane.xlu0 %2611
    %v2613 = vsel %vm379, %v2599, -inf
    %2614 = vmax.xlane.f32.xlu0 %v2613
    %v2615 = vpop.xlane.xlu0 %2614
    %v2616 = vsel %vm379, %v2600, -inf
    %2617 = vmax.xlane.f32.xlu0 %v2616
    %v2618 = vpop.xlane.xlu0 %2617
    %v2619 = vsub.f32 %v2595, %v2603
    %v2620 = vsub.f32 %v2596, %v2606
    %v2621 = vsub.f32 %v2597, %v2609
    %v2622 = vsub.f32 %v2598, %v2612
    %v2623 = vsub.f32 %v2599, %v2615
    %v2624 = vsub.f32 %v2600, %v2618
    %v2625 = vmul.f32 %v2619, 1.442695
    %v2626 = vpow.pop %v2625
    %v2627 = vmul.f32 %v2620, 1.442695
    %v2628 = vpow.pop %v2627
    %v2629 = vmul.f32 %v2621, 1.442695
    %v2630 = vpow.pop %v2629
    %v2631 = vmul.f32 %v2622, 1.442695
    %v2632 = vpow.pop %v2631
    %v2633 = vmul.f32 %v2623, 1.442695
    %v2634 = vpow.pop %v2633
    %v2635 = vmul.f32 %v2624, 1.442695
    %v2636 = vpow.pop %v2635
    %v2637 = vsel %vm379, %v2626, 0.0
    %2638 = vadd.xlane.f32.xlu0 %v2637
    %v2639 = vpop.xlane.xlu0 %2638
    %v2640 = vsel %vm379, %v2628, 0.0
    %2641 = vadd.xlane.f32.xlu0 %v2640
    %v2642 = vpop.xlane.xlu0 %2641
    %v2643 = vsel %vm379, %v2630, 0.0
    %2644 = vadd.xlane.f32.xlu0 %v2643
    %v2645 = vpop.xlane.xlu0 %2644
    %v2646 = vsel %vm379, %v2632, 0.0
    %2647 = vadd.xlane.f32.xlu0 %v2646
    %v2648 = vpop.xlane.xlu0 %2647
    %v2649 = vsel %vm379, %v2634, 0.0
    %2650 = vadd.xlane.f32.xlu0 %v2649
    %v2651 = vpop.xlane.xlu0 %2650
    %v2652 = vsel %vm379, %v2636, 0.0
    %2653 = vadd.xlane.f32.xlu0 %v2652
    %v2654 = vpop.xlane.xlu0 %2653
    %v2655 = vrcp.pop %v2639
    %v2656 = vrcp.pop %v2642
    %v2657 = vrcp.pop %v2645
    %v2658 = vrcp.pop %v2648
    %v2659 = vrcp.pop %v2651
    %v2660 = vrcp.pop %v2654
    %v2661 = vmul.f32 %v2626, %v2655
    %v2662 = vmul.f32 %v2628, %v2656
    %v2663 = vmul.f32 %v2630, %v2657
    %v2664 = vmul.f32 %v2632, %v2658
    %v2665 = vmul.f32 %v2634, %v2659
    %v2666 = vmul.f32 %v2636, %v2660
    %2667 = vrot.lane.b32.xlu0 %v2013, 112
    %v2668 = vpop.permute.xlu0 %2667
    %2669 = vrot.lane.b32.xlu0 %v2016, 112
    %v2670 = vpop.permute.xlu0 %2669
    %2671 = vrot.lane.b32.xlu0 %v2019, 112
    %v2672 = vpop.permute.xlu0 %2671
    %2673 = vrot.lane.b32.xlu0 %v2022, 112
    %v2674 = vpop.permute.xlu0 %2673
    %2675 = vrot.lane.b32.xlu0 %v2025, 112
    %v2676 = vpop.permute.xlu0 %2675
    %2677 = vrot.lane.b32.xlu0 %v2028, 112
    %v2678 = vpop.permute.xlu0 %2677
    %v2686 = vsel %vm379, %v2661, 0
    %v2689 = vsel %vm379, %v2662, 0
    %v2692 = vsel %vm379, %v2663, 0
    %v2695 = vsel %vm379, %v2664, 0
    %v2698 = vsel %vm379, %v2665, 0
    %v2701 = vsel %vm379, %v2666, 0
    %2703 = vmatpush.msra.mxu0 0.0
    %2704 = vmatpush.msra.mxu0 0.0
    %2705 = vmatpush.msra.mxu0 0.0
    %2706 = vmatpush.msra.mxu0 0.0
    %2707 = vmatpush.msra.mxu0 0.0
    %2708 = vmatpush.msra.mxu0 0.0
    %2709 = vmatpush.msra.mxu0 0.0
    %2710 = vmatpush.msra.mxu0 0.0
    %2711 = vmatpush.msra.mxu0 0.0
    %2712 = vmatpush.msra.mxu0 0.0
    %2713 = vmatpush.msra.mxu0 %v2678
    %2714 = vmatpush.msra.mxu0 %v2676
    %2715 = vmatpush.msra.mxu0 %v2674
    %2716 = vmatpush.msra.mxu0 %v2672
    %2717 = vmatpush.msra.mxu0 %v2670
    %2718 = vmatpush.msra.mxu0 %v2668
    %2719 = vmatmul.f32.gmra.mxu0 %v2686
    %v2720 = vpop.f32.mrf.mxu0
    %v2721 = vadd.f32 0.0, %v2720
    %2722 = vmatmul.f32.gmra.mxu0 %v2689
    %v2723 = vpop.f32.mrf.mxu0
    %v2724 = vadd.f32 0.0, %v2723
    %2725 = vmatmul.f32.gmra.mxu0 %v2692
    %v2726 = vpop.f32.mrf.mxu0
    %v2727 = vadd.f32 0.0, %v2726
    %2728 = vmatmul.f32.gmra.mxu0 %v2695
    %v2729 = vpop.f32.mrf.mxu0
    %v2730 = vadd.f32 0.0, %v2729
    %2731 = vmatmul.f32.gmra.mxu0 %v2698
    %v2732 = vpop.f32.mrf.mxu0
    %v2733 = vadd.f32 0.0, %v2732
    %2734 = vmatmul.f32.gmra.mxu0 %v2701
    %v2735 = vpop.f32.mrf.mxu0
    %v2736 = vadd.f32 0.0, %v2735
    %2737 = vdwg.mxu0
    %2744 = vrot.lane.b32.xlu0 %v2721, 16
    %v2745 = vpop.permute.xlu0 %2744
    %2746 = vrot.lane.b32.xlu0 %v2724, 16
    %v2747 = vpop.permute.xlu0 %2746
    %2748 = vrot.lane.b32.xlu0 %v2727, 16
    %v2749 = vpop.permute.xlu0 %2748
    %2750 = vrot.lane.b32.xlu0 %v2730, 16
    %v2751 = vpop.permute.xlu0 %2750
    %2752 = vrot.lane.b32.xlu0 %v2733, 16
    %v2753 = vpop.permute.xlu0 %2752
    %2754 = vrot.lane.b32.xlu0 %v2736, 16
    %v2755 = vpop.permute.xlu0 %2754
    %2762 = vst.msk [vmem:[#allocation2] sm:$0xff] %vm1030, %v2745
    %2763 = vst.msk [vmem:[#allocation2 + $0x8] sm:$0xff] %vm1030, %v2747
    %2764 = vst.msk [vmem:[#allocation2 + $0x10] sm:$0xff] %vm1030, %v2749
    %2765 = vst.msk [vmem:[#allocation2 + $0x18] sm:$0xff] %vm1030, %v2751
    %2766 = vst.msk [vmem:[#allocation2 + $0x20] sm:$0xff] %vm1030, %v2753
    %2767 = vst.msk [vmem:[#allocation2 + $0x28] sm:$0xff] %vm1030, %v2755
    %2768 = vrot.lane.b32.xlu0 %v1923, 104
    %v2769 = vpop.permute.xlu0 %2768
    %2770 = vrot.lane.b32.xlu0 %v1926, 104
    %v2771 = vpop.permute.xlu0 %2770
    %2772 = vrot.lane.b32.xlu0 %v1929, 104
    %v2773 = vpop.permute.xlu0 %2772
    %2774 = vrot.lane.b32.xlu0 %v1932, 104
    %v2775 = vpop.permute.xlu0 %2774
    %2776 = vrot.lane.b32.xlu0 %v1935, 104
    %v2777 = vpop.permute.xlu0 %2776
    %2778 = vrot.lane.b32.xlu0 %v1938, 104
    %v2779 = vpop.permute.xlu0 %2778
    %2780 = vrot.lane.b32.xlu0 %v1968, 104
    %v2781 = vpop.permute.xlu0 %2780
    %2782 = vrot.lane.b32.xlu0 %v1971, 104
    %v2783 = vpop.permute.xlu0 %2782
    %2784 = vrot.lane.b32.xlu0 %v1974, 104
    %v2785 = vpop.permute.xlu0 %2784
    %2786 = vrot.lane.b32.xlu0 %v1977, 104
    %v2787 = vpop.permute.xlu0 %2786
    %2788 = vrot.lane.b32.xlu0 %v1980, 104
    %v2789 = vpop.permute.xlu0 %2788
    %2790 = vrot.lane.b32.xlu0 %v1983, 104
    %v2791 = vpop.permute.xlu0 %2790
    %v2792 = vsel %vm295, %v2769, 0
    %v2794 = vsel %vm295, %v2771, 0
    %v2796 = vsel %vm295, %v2773, 0
    %v2798 = vsel %vm295, %v2775, 0
    %v2800 = vsel %vm295, %v2777, 0
    %v2802 = vsel %vm295, %v2779, 0
    %v2804 = vsel %vm295, %v2781, 0
    %v2806 = vsel %vm295, %v2783, 0
    %v2808 = vsel %vm295, %v2785, 0
    %v2810 = vsel %vm295, %v2787, 0
    %v2812 = vsel %vm295, %v2789, 0
    %v2814 = vsel %vm295, %v2791, 0
    %2816 = vmatpush.xpose.msra.mxu0 0.0
    %2817 = vmatpush.xpose.msra.mxu0 0.0
    %2818 = vmatpush.xpose.msra.mxu0 0.0
    %2819 = vmatpush.xpose.msra.mxu0 0.0
    %2820 = vmatpush.xpose.msra.mxu0 0.0
    %2821 = vmatpush.xpose.msra.mxu0 0.0
    %2822 = vmatpush.xpose.msra.mxu0 0.0
    %2823 = vmatpush.xpose.msra.mxu0 0.0
    %2824 = vmatpush.xpose.msra.mxu0 0.0
    %2825 = vmatpush.xpose.msra.mxu0 0.0
    %2826 = vmatpush.xpose.msra.mxu0 %v2814
    %2827 = vmatpush.xpose.msra.mxu0 %v2812
    %2828 = vmatpush.xpose.msra.mxu0 %v2810
    %2829 = vmatpush.xpose.msra.mxu0 %v2808
    %2830 = vmatpush.xpose.msra.mxu0 %v2806
    %2831 = vmatpush.xpose.msra.mxu0 %v2804
    %2832 = vmatmul.f32.gmra.mxu0 %v2792
    %v2833 = vpop.f32.mrf.mxu0
    %v2834 = vadd.f32 0.0, %v2833
    %2835 = vmatmul.f32.gmra.mxu0 %v2794
    %v2836 = vpop.f32.mrf.mxu0
    %v2837 = vadd.f32 0.0, %v2836
    %2838 = vmatmul.f32.gmra.mxu0 %v2796
    %v2839 = vpop.f32.mrf.mxu0
    %v2840 = vadd.f32 0.0, %v2839
    %2841 = vmatmul.f32.gmra.mxu0 %v2798
    %v2842 = vpop.f32.mrf.mxu0
    %v2843 = vadd.f32 0.0, %v2842
    %2844 = vmatmul.f32.gmra.mxu0 %v2800
    %v2845 = vpop.f32.mrf.mxu0
    %v2846 = vadd.f32 0.0, %v2845
    %2847 = vmatmul.f32.gmra.mxu0 %v2802
    %v2848 = vpop.f32.mrf.mxu0
    %v2849 = vadd.f32 0.0, %v2848
    %2850 = vdwg.mxu0
    %v2851 = vmul.f32 %v2834, 0.35355338
    %v2852 = vmul.f32 %v2837, 0.35355338
    %v2853 = vmul.f32 %v2840, 0.35355338
    %v2854 = vmul.f32 %v2843, 0.35355338
    %v2855 = vmul.f32 %v2846, 0.35355338
    %v2856 = vmul.f32 %v2849, 0.35355338
    %v2857 = vadd.f32 %v2851, %v141
    %v2858 = vadd.f32 %v2852, %v142
    %v2859 = vadd.f32 %v2853, %v143
    %v2860 = vadd.f32 %v2854, %v144
    %v2861 = vadd.f32 %v2855, %v145
    %v2862 = vadd.f32 %v2856, %v146
    %v2863 = vsel %vm379, %v2857, -inf
    %2864 = vmax.xlane.f32.xlu0 %v2863
    %v2865 = vpop.xlane.xlu0 %2864
    %v2866 = vsel %vm379, %v2858, -inf
    %2867 = vmax.xlane.f32.xlu0 %v2866
    %v2868 = vpop.xlane.xlu0 %2867
    %v2869 = vsel %vm379, %v2859, -inf
    %2870 = vmax.xlane.f32.xlu0 %v2869
    %v2871 = vpop.xlane.xlu0 %2870
    %v2872 = vsel %vm379, %v2860, -inf
    %2873 = vmax.xlane.f32.xlu0 %v2872
    %v2874 = vpop.xlane.xlu0 %2873
    %v2875 = vsel %vm379, %v2861, -inf
    %2876 = vmax.xlane.f32.xlu0 %v2875
    %v2877 = vpop.xlane.xlu0 %2876
    %v2878 = vsel %vm379, %v2862, -inf
    %2879 = vmax.xlane.f32.xlu0 %v2878
    %v2880 = vpop.xlane.xlu0 %2879
    %v2881 = vsub.f32 %v2857, %v2865
    %v2882 = vsub.f32 %v2858, %v2868
    %v2883 = vsub.f32 %v2859, %v2871
    %v2884 = vsub.f32 %v2860, %v2874
    %v2885 = vsub.f32 %v2861, %v2877
    %v2886 = vsub.f32 %v2862, %v2880
    %v2887 = vmul.f32 %v2881, 1.442695
    %v2888 = vpow.pop %v2887
    %v2889 = vmul.f32 %v2882, 1.442695
    %v2890 = vpow.pop %v2889
    %v2891 = vmul.f32 %v2883, 1.442695
    %v2892 = vpow.pop %v2891
    %v2893 = vmul.f32 %v2884, 1.442695
    %v2894 = vpow.pop %v2893
    %v2895 = vmul.f32 %v2885, 1.442695
    %v2896 = vpow.pop %v2895
    %v2897 = vmul.f32 %v2886, 1.442695
    %v2898 = vpow.pop %v2897
    %v2899 = vsel %vm379, %v2888, 0.0
    %2900 = vadd.xlane.f32.xlu0 %v2899
    %v2901 = vpop.xlane.xlu0 %2900
    %v2902 = vsel %vm379, %v2890, 0.0
    %2903 = vadd.xlane.f32.xlu0 %v2902
    %v2904 = vpop.xlane.xlu0 %2903
    %v2905 = vsel %vm379, %v2892, 0.0
    %2906 = vadd.xlane.f32.xlu0 %v2905
    %v2907 = vpop.xlane.xlu0 %2906
    %v2908 = vsel %vm379, %v2894, 0.0
    %2909 = vadd.xlane.f32.xlu0 %v2908
    %v2910 = vpop.xlane.xlu0 %2909
    %v2911 = vsel %vm379, %v2896, 0.0
    %2912 = vadd.xlane.f32.xlu0 %v2911
    %v2913 = vpop.xlane.xlu0 %2912
    %v2914 = vsel %vm379, %v2898, 0.0
    %2915 = vadd.xlane.f32.xlu0 %v2914
    %v2916 = vpop.xlane.xlu0 %2915
    %v2917 = vrcp.pop %v2901
    %v2918 = vrcp.pop %v2904
    %v2919 = vrcp.pop %v2907
    %v2920 = vrcp.pop %v2910
    %v2921 = vrcp.pop %v2913
    %v2922 = vrcp.pop %v2916
    %v2923 = vmul.f32 %v2888, %v2917
    %v2924 = vmul.f32 %v2890, %v2918
    %v2925 = vmul.f32 %v2892, %v2919
    %v2926 = vmul.f32 %v2894, %v2920
    %v2927 = vmul.f32 %v2896, %v2921
    %v2928 = vmul.f32 %v2898, %v2922
    %2929 = vrot.lane.b32.xlu0 %v2013, 104
    %v2930 = vpop.permute.xlu0 %2929
    %2931 = vrot.lane.b32.xlu0 %v2016, 104
    %v2932 = vpop.permute.xlu0 %2931
    %2933 = vrot.lane.b32.xlu0 %v2019, 104
    %v2934 = vpop.permute.xlu0 %2933
    %2935 = vrot.lane.b32.xlu0 %v2022, 104
    %v2936 = vpop.permute.xlu0 %2935
    %2937 = vrot.lane.b32.xlu0 %v2025, 104
    %v2938 = vpop.permute.xlu0 %2937
    %2939 = vrot.lane.b32.xlu0 %v2028, 104
    %v2940 = vpop.permute.xlu0 %2939
    %v2948 = vsel %vm379, %v2923, 0
    %v2951 = vsel %vm379, %v2924, 0
    %v2954 = vsel %vm379, %v2925, 0
    %v2957 = vsel %vm379, %v2926, 0
    %v2960 = vsel %vm379, %v2927, 0
    %v2963 = vsel %vm379, %v2928, 0
    %2965 = vmatpush.msra.mxu0 0.0
    %2966 = vmatpush.msra.mxu0 0.0
    %2967 = vmatpush.msra.mxu0 0.0
    %2968 = vmatpush.msra.mxu0 0.0
    %2969 = vmatpush.msra.mxu0 0.0
    %2970 = vmatpush.msra.mxu0 0.0
    %2971 = vmatpush.msra.mxu0 0.0
    %2972 = vmatpush.msra.mxu0 0.0
    %2973 = vmatpush.msra.mxu0 0.0
    %2974 = vmatpush.msra.mxu0 0.0
    %2975 = vmatpush.msra.mxu0 %v2940
    %2976 = vmatpush.msra.mxu0 %v2938
    %2977 = vmatpush.msra.mxu0 %v2936
    %2978 = vmatpush.msra.mxu0 %v2934
    %2979 = vmatpush.msra.mxu0 %v2932
    %2980 = vmatpush.msra.mxu0 %v2930
    %2981 = vmatmul.f32.gmra.mxu0 %v2948
    %v2982 = vpop.f32.mrf.mxu0
    %v2983 = vadd.f32 0.0, %v2982
    %2984 = vmatmul.f32.gmra.mxu0 %v2951
    %v2985 = vpop.f32.mrf.mxu0
    %v2986 = vadd.f32 0.0, %v2985
    %2987 = vmatmul.f32.gmra.mxu0 %v2954
    %v2988 = vpop.f32.mrf.mxu0
    %v2989 = vadd.f32 0.0, %v2988
    %2990 = vmatmul.f32.gmra.mxu0 %v2957
    %v2991 = vpop.f32.mrf.mxu0
    %v2992 = vadd.f32 0.0, %v2991
    %2993 = vmatmul.f32.gmra.mxu0 %v2960
    %v2994 = vpop.f32.mrf.mxu0
    %v2995 = vadd.f32 0.0, %v2994
    %2996 = vmatmul.f32.gmra.mxu0 %v2963
    %v2997 = vpop.f32.mrf.mxu0
    %v2998 = vadd.f32 0.0, %v2997
    %2999 = vdwg.mxu0
    %3006 = vrot.lane.b32.xlu0 %v2983, 24
    %v3007 = vpop.permute.xlu0 %3006
    %3008 = vrot.lane.b32.xlu0 %v2986, 24
    %v3009 = vpop.permute.xlu0 %3008
    %3010 = vrot.lane.b32.xlu0 %v2989, 24
    %v3011 = vpop.permute.xlu0 %3010
    %3012 = vrot.lane.b32.xlu0 %v2992, 24
    %v3013 = vpop.permute.xlu0 %3012
    %3014 = vrot.lane.b32.xlu0 %v2995, 24
    %v3015 = vpop.permute.xlu0 %3014
    %3016 = vrot.lane.b32.xlu0 %v2998, 24
    %v3017 = vpop.permute.xlu0 %3016
    %3024 = vst.msk [vmem:[#allocation2] sm:$0xff] %vm1293, %v3007
    %3025 = vst.msk [vmem:[#allocation2 + $0x8] sm:$0xff] %vm1293, %v3009
    %3026 = vst.msk [vmem:[#allocation2 + $0x10] sm:$0xff] %vm1293, %v3011
    %3027 = vst.msk [vmem:[#allocation2 + $0x18] sm:$0xff] %vm1293, %v3013
    %3028 = vst.msk [vmem:[#allocation2 + $0x20] sm:$0xff] %vm1293, %v3015
    %3029 = vst.msk [vmem:[#allocation2 + $0x28] sm:$0xff] %vm1293, %v3017
    %v3030 = vld [vmem:[#allocation2] sm:$0xff]
    %v3031 = vld [vmem:[#allocation2 + $0x8] sm:$0xff]
    %v3032 = vld [vmem:[#allocation2 + $0x10] sm:$0xff]
    %v3033 = vld [vmem:[#allocation2 + $0x18] sm:$0xff]
    %v3034 = vld [vmem:[#allocation2 + $0x20] sm:$0xff]
    %v3035 = vld [vmem:[#allocation2 + $0x28] sm:$0xff]
    %s3036 = scalar_lea.vmem %s25, 32
    %v3037 = vld [vmem:[%s3036] sm:$0xff]
    %v3038 = vld [vmem:[%s3036 + $0x8] sm:$0xff]
    %v3039 = vld [vmem:[%s3036 + $0x10] sm:$0xff]
    %v3040 = vld [vmem:[%s3036 + $0x18] sm:$0xff]
    %s3041 = scalar_lea.vmem %s27, 1
    %v3042 = vld [vmem:[%s3041] sm:$0x1]
    %v3044 = vperm.slane %v3042, 0
    %v3047 = vsel %vm155, %v3030, 0
    %v3050 = vsel %vm155, %v3031, 0
    %v3053 = vsel %vm155, %v3032, 0
    %v3056 = vsel %vm155, %v3033, 0
    %v3059 = vsel %vm155, %v3034, 0
    %v3062 = vsel %vm155, %v3035, 0
    %3064 = vmatpush.msra.mxu0 0.0
    %3065 = vmatpush.msra.mxu0 0.0
    %3066 = vmatpush.msra.mxu0 0.0
    %3067 = vmatpush.msra.mxu0 0.0
    %3068 = vmatpush.msra.mxu0 0.0
    %3069 = vmatpush.msra.mxu0 0.0
    %3070 = vmatpush.msra.mxu0 0.0
    %3071 = vmatpush.msra.mxu0 0.0
    %3072 = vmatpush.msra.mxu0 0.0
    %3073 = vmatpush.msra.mxu0 0.0
    %3074 = vmatpush.msra.mxu0 0.0
    %3075 = vmatpush.msra.mxu0 0.0
    %3076 = vmatpush.msra.mxu0 %v3040
    %3077 = vmatpush.msra.mxu0 %v3039
    %3078 = vmatpush.msra.mxu0 %v3038
    %3079 = vmatpush.msra.mxu0 %v3037
    %3080 = vmatmul.f32.gmra.mxu0 %v3047
    %v3081 = vpop.f32.mrf.mxu0
    %v3082 = vadd.f32 %v3044, %v3081
    %3083 = vmatmul.f32.gmra.mxu0 %v3050
    %v3084 = vpop.f32.mrf.mxu0
    %v3085 = vadd.f32 %v3044, %v3084
    %3086 = vmatmul.f32.gmra.mxu0 %v3053
    %v3087 = vpop.f32.mrf.mxu0
    %v3088 = vadd.f32 %v3044, %v3087
    %3089 = vmatmul.f32.gmra.mxu0 %v3056
    %v3090 = vpop.f32.mrf.mxu0
    %v3091 = vadd.f32 %v3044, %v3090
    %3092 = vmatmul.f32.gmra.mxu0 %v3059
    %v3093 = vpop.f32.mrf.mxu0
    %v3094 = vadd.f32 %v3044, %v3093
    %3095 = vmatmul.f32.gmra.mxu0 %v3062
    %v3096 = vpop.f32.mrf.mxu0
    %v3097 = vadd.f32 %v3044, %v3096
    %3098 = vdwg.mxu0
    %v3099 = vadd.f32 %v1865, %v3082
    %v3100 = vadd.f32 %v1866, %v3085
    %v3101 = vadd.f32 %v1867, %v3088
    %v3102 = vadd.f32 %v1868, %v3091
    %v3103 = vadd.f32 %v1869, %v3094
    %v3104 = vadd.f32 %v1870, %v3097
    %s3105 = scalar_lea.vmem %s29, 1
    %v3106 = vld [vmem:[%s3105] sm:$0x1]
    %s3107 = scalar_lea.vmem %s31, 1
    %v3108 = vld [vmem:[%s3107] sm:$0x1]
    %v3109 = vsel %vm155, %v3099, 0.0
    %3110 = vadd.xlane.f32.xlu0 %v3109
    %v3111 = vpop.xlane.xlu0 %3110
    %v3112 = vsel %vm155, %v3100, 0.0
    %3113 = vadd.xlane.f32.xlu0 %v3112
    %v3114 = vpop.xlane.xlu0 %3113
    %v3115 = vsel %vm155, %v3101, 0.0
    %3116 = vadd.xlane.f32.xlu0 %v3115
    %v3117 = vpop.xlane.xlu0 %3116
    %v3118 = vsel %vm155, %v3102, 0.0
    %3119 = vadd.xlane.f32.xlu0 %v3118
    %v3120 = vpop.xlane.xlu0 %3119
    %v3121 = vsel %vm155, %v3103, 0.0
    %3122 = vadd.xlane.f32.xlu0 %v3121
    %v3123 = vpop.xlane.xlu0 %3122
    %v3124 = vsel %vm155, %v3104, 0.0
    %3125 = vadd.xlane.f32.xlu0 %v3124
    %v3126 = vpop.xlane.xlu0 %3125
    %v3127 = vmul.f32 %v3111, %v1399
    %v3128 = vmul.f32 %v3114, %v1399
    %v3129 = vmul.f32 %v3117, %v1399
    %v3130 = vmul.f32 %v3120, %v1399
    %v3131 = vmul.f32 %v3123, %v1399
    %v3132 = vmul.f32 %v3126, %v1399
    %v3133 = vsub.f32 %v3099, %v3127
    %v3134 = vsub.f32 %v3100, %v3128
    %v3135 = vsub.f32 %v3101, %v3129
    %v3136 = vsub.f32 %v3102, %v3130
    %v3137 = vsub.f32 %v3103, %v3131
    %v3138 = vsub.f32 %v3104, %v3132
    %v3139 = vmul.f32 %v3133, %v3133
    %v3140 = vmul.f32 %v3134, %v3134
    %v3141 = vmul.f32 %v3135, %v3135
    %v3142 = vmul.f32 %v3136, %v3136
    %v3143 = vmul.f32 %v3137, %v3137
    %v3144 = vmul.f32 %v3138, %v3138
    %v3145 = vsel %vm155, %v3139, 0.0
    %3146 = vadd.xlane.f32.xlu0 %v3145
    %v3147 = vpop.xlane.xlu0 %3146
    %v3148 = vsel %vm155, %v3140, 0.0
    %3149 = vadd.xlane.f32.xlu0 %v3148
    %v3150 = vpop.xlane.xlu0 %3149
    %v3151 = vsel %vm155, %v3141, 0.0
    %3152 = vadd.xlane.f32.xlu0 %v3151
    %v3153 = vpop.xlane.xlu0 %3152
    %v3154 = vsel %vm155, %v3142, 0.0
    %3155 = vadd.xlane.f32.xlu0 %v3154
    %v3156 = vpop.xlane.xlu0 %3155
    %v3157 = vsel %vm155, %v3143, 0.0
    %3158 = vadd.xlane.f32.xlu0 %v3157
    %v3159 = vpop.xlane.xlu0 %3158
    %v3160 = vsel %vm155, %v3144, 0.0
    %3161 = vadd.xlane.f32.xlu0 %v3160
    %v3162 = vpop.xlane.xlu0 %3161
    %v3163 = vmul.f32 %v3147, %v1399
    %v3164 = vmul.f32 %v3150, %v1399
    %v3165 = vmul.f32 %v3153, %v1399
    %v3166 = vmul.f32 %v3156, %v1399
    %v3167 = vmul.f32 %v3159, %v1399
    %v3168 = vmul.f32 %v3162, %v1399
    %v3169 = vadd.f32 %v3163, 1e-12
    %v3170 = vadd.f32 %v3164, 1e-12
    %v3171 = vadd.f32 %v3165, 1e-12
    %v3172 = vadd.f32 %v3166, 1e-12
    %v3173 = vadd.f32 %v3167, 1e-12
    %v3174 = vadd.f32 %v3168, 1e-12
    %v3175 = vrsqrt.pop %v3169
    %v3176 = vmul.f32 %v3175, %v3169
    %v3177 = vmul.f32 %v3176, %v3175
    %v3178 = vmul.f32 0.5, %v3177
    %v3179 = vsub.f32 1.5, %v3178
    %v3180 = vmul.f32 %v3175, %v3179
    %vm3181 = vweird.f32 %v3169
    %vm3182 = vweird.f32 %v3175
    %vm3183 = vmor %vm3181, %vm3182
    %v3184 = vsel %vm3183, %v3175, %v3180
    %v3185 = vrsqrt.pop %v3170
    %v3186 = vmul.f32 %v3185, %v3170
    %v3187 = vmul.f32 %v3186, %v3185
    %v3188 = vmul.f32 0.5, %v3187
    %v3189 = vsub.f32 1.5, %v3188
    %v3190 = vmul.f32 %v3185, %v3189
    %vm3191 = vweird.f32 %v3170
    %vm3192 = vweird.f32 %v3185
    %vm3193 = vmor %vm3191, %vm3192
    %v3194 = vsel %vm3193, %v3185, %v3190
    %v3195 = vrsqrt.pop %v3171
    %v3196 = vmul.f32 %v3195, %v3171
    %v3197 = vmul.f32 %v3196, %v3195
    %v3198 = vmul.f32 0.5, %v3197
    %v3199 = vsub.f32 1.5, %v3198
    %v3200 = vmul.f32 %v3195, %v3199
    %vm3201 = vweird.f32 %v3171
    %vm3202 = vweird.f32 %v3195
    %vm3203 = vmor %vm3201, %vm3202
    %v3204 = vsel %vm3203, %v3195, %v3200
    %v3205 = vrsqrt.pop %v3172
    %v3206 = vmul.f32 %v3205, %v3172
    %v3207 = vmul.f32 %v3206, %v3205
    %v3208 = vmul.f32 0.5, %v3207
    %v3209 = vsub.f32 1.5, %v3208
    %v3210 = vmul.f32 %v3205, %v3209
    %vm3211 = vweird.f32 %v3172
    %vm3212 = vweird.f32 %v3205
    %vm3213 = vmor %vm3211, %vm3212
    %v3214 = vsel %vm3213, %v3205, %v3210
    %v3215 = vrsqrt.pop %v3173
    %v3216 = vmul.f32 %v3215, %v3173
    %v3217 = vmul.f32 %v3216, %v3215
    %v3218 = vmul.f32 0.5, %v3217
    %v3219 = vsub.f32 1.5, %v3218
    %v3220 = vmul.f32 %v3215, %v3219
    %vm3221 = vweird.f32 %v3173
    %vm3222 = vweird.f32 %v3215
    %vm3223 = vmor %vm3221, %vm3222
    %v3224 = vsel %vm3223, %v3215, %v3220
    %v3225 = vrsqrt.pop %v3174
    %v3226 = vmul.f32 %v3225, %v3174
    %v3227 = vmul.f32 %v3226, %v3225
    %v3228 = vmul.f32 0.5, %v3227
    %v3229 = vsub.f32 1.5, %v3228
    %v3230 = vmul.f32 %v3225, %v3229
    %vm3231 = vweird.f32 %v3174
    %vm3232 = vweird.f32 %v3225
    %vm3233 = vmor %vm3231, %vm3232
    %v3234 = vsel %vm3233, %v3225, %v3230
    %v3235 = vmul.f32 %v3133, %v3184
    %v3236 = vmul.f32 %v3134, %v3194
    %v3237 = vmul.f32 %v3135, %v3204
    %v3238 = vmul.f32 %v3136, %v3214
    %v3239 = vmul.f32 %v3137, %v3224
    %v3240 = vmul.f32 %v3138, %v3234
    %v3242 = vperm.slane %v3106, 0
    %v3244 = vmul.f32 %v3235, %v3242
    %v3245 = vmul.f32 %v3236, %v3242
    %v3246 = vmul.f32 %v3237, %v3242
    %v3247 = vmul.f32 %v3238, %v3242
    %v3248 = vmul.f32 %v3239, %v3242
    %v3249 = vmul.f32 %v3240, %v3242
    %v3251 = vperm.slane %v3108, 0
    %v3253 = vadd.f32 %v3244, %v3251
    %v3254 = vadd.f32 %v3245, %v3251
    %v3255 = vadd.f32 %v3246, %v3251
    %v3256 = vadd.f32 %v3247, %v3251
    %v3257 = vadd.f32 %v3248, %v3251
    %v3258 = vadd.f32 %v3249, %v3251
    %s3259 = scalar_lea.vmem %s33, 32
    %v3260 = vld [vmem:[%s3259] sm:$0xff]
    %v3261 = vld [vmem:[%s3259 + $0x8] sm:$0xff]
    %v3262 = vld [vmem:[%s3259 + $0x10] sm:$0xff]
    %v3263 = vld [vmem:[%s3259 + $0x18] sm:$0xff]
    %s3264 = scalar_lea.vmem %s35, 1
    %v3265 = vld [vmem:[%s3264] sm:$0x1]
    %v3267 = vperm.slane %v3265, 0
    %v3270 = vsel %vm155, %v3253, 0
    %v3273 = vsel %vm155, %v3254, 0
    %v3276 = vsel %vm155, %v3255, 0
    %v3279 = vsel %vm155, %v3256, 0
    %v3282 = vsel %vm155, %v3257, 0
    %v3285 = vsel %vm155, %v3258, 0
    %3287 = vmatpush.msra.mxu0 0.0
    %3288 = vmatpush.msra.mxu0 0.0
    %3289 = vmatpush.msra.mxu0 0.0
    %3290 = vmatpush.msra.mxu0 0.0
    %3291 = vmatpush.msra.mxu0 0.0
    %3292 = vmatpush.msra.mxu0 0.0
    %3293 = vmatpush.msra.mxu0 0.0
    %3294 = vmatpush.msra.mxu0 0.0
    %3295 = vmatpush.msra.mxu0 0.0
    %3296 = vmatpush.msra.mxu0 0.0
    %3297 = vmatpush.msra.mxu0 0.0
    %3298 = vmatpush.msra.mxu0 0.0
    %3299 = vmatpush.msra.mxu0 %v3263
    %3300 = vmatpush.msra.mxu0 %v3262
    %3301 = vmatpush.msra.mxu0 %v3261
    %3302 = vmatpush.msra.mxu0 %v3260
    %3303 = vmatmul.f32.gmra.mxu0 %v3270
    %v3304 = vpop.f32.mrf.mxu0
    %v3305 = vadd.f32 %v3267, %v3304
    %3306 = vmatmul.f32.gmra.mxu0 %v3273
    %v3307 = vpop.f32.mrf.mxu0
    %v3308 = vadd.f32 %v3267, %v3307
    %3309 = vmatmul.f32.gmra.mxu0 %v3276
    %v3310 = vpop.f32.mrf.mxu0
    %v3311 = vadd.f32 %v3267, %v3310
    %3312 = vmatmul.f32.gmra.mxu0 %v3279
    %v3313 = vpop.f32.mrf.mxu0
    %v3314 = vadd.f32 %v3267, %v3313
    %3315 = vmatmul.f32.gmra.mxu0 %v3282
    %v3316 = vpop.f32.mrf.mxu0
    %v3317 = vadd.f32 %v3267, %v3316
    %3318 = vmatmul.f32.gmra.mxu0 %v3285
    %v3319 = vpop.f32.mrf.mxu0
    %v3320 = vadd.f32 %v3267, %v3319
    %3321 = vdwg.mxu0
    %v3322 = vmul.f32 %v3305, %v3305
    %v3323 = vmul.f32 %v3308, %v3308
    %v3324 = vmul.f32 %v3311, %v3311
    %v3325 = vmul.f32 %v3314, %v3314
    %v3326 = vmul.f32 %v3317, %v3317
    %v3327 = vmul.f32 %v3320, %v3320
    %v3328 = vmul.f32 %v3305, %v3322
    %v3329 = vmul.f32 %v3308, %v3323
    %v3330 = vmul.f32 %v3311, %v3324
    %v3331 = vmul.f32 %v3314, %v3325
    %v3332 = vmul.f32 %v3317, %v3326
    %v3333 = vmul.f32 %v3320, %v3327
    %v3334 = vmul.f32 %v3328, 0.044715
    %v3335 = vmul.f32 %v3329, 0.044715
    %v3336 = vmul.f32 %v3330, 0.044715
    %v3337 = vmul.f32 %v3331, 0.044715
    %v3338 = vmul.f32 %v3332, 0.044715
    %v3339 = vmul.f32 %v3333, 0.044715
    %v3340 = vadd.f32 %v3305, %v3334
    %v3341 = vadd.f32 %v3308, %v3335
    %v3342 = vadd.f32 %v3311, %v3336
    %v3343 = vadd.f32 %v3314, %v3337
    %v3344 = vadd.f32 %v3317, %v3338
    %v3345 = vadd.f32 %v3320, %v3339
    %v3346 = vmul.f32 %v3340, 0.7978846
    %v3347 = vmul.f32 %v3341, 0.7978846
    %v3348 = vmul.f32 %v3342, 0.7978846
    %v3349 = vmul.f32 %v3343, 0.7978846
    %v3350 = vmul.f32 %v3344, 0.7978846
    %v3351 = vmul.f32 %v3345, 0.7978846
    %v3352 = vtanh.pop %v3346
    %v3353 = vtanh.pop %v3347
    %v3354 = vtanh.pop %v3348
    %v3355 = vtanh.pop %v3349
    %v3356 = vtanh.pop %v3350
    %v3357 = vtanh.pop %v3351
    %v3358 = vadd.f32 %v3352, 1.0
    %v3359 = vadd.f32 %v3353, 1.0
    %v3360 = vadd.f32 %v3354, 1.0
    %v3361 = vadd.f32 %v3355, 1.0
    %v3362 = vadd.f32 %v3356, 1.0
    %v3363 = vadd.f32 %v3357, 1.0
    %v3364 = vmul.f32 %v3358, 0.5
    %v3365 = vmul.f32 %v3359, 0.5
    %v3366 = vmul.f32 %v3360, 0.5
    %v3367 = vmul.f32 %v3361, 0.5
    %v3368 = vmul.f32 %v3362, 0.5
    %v3369 = vmul.f32 %v3363, 0.5
    %v3370 = vmul.f32 %v3305, %v3364
    %v3371 = vmul.f32 %v3308, %v3365
    %v3372 = vmul.f32 %v3311, %v3366
    %v3373 = vmul.f32 %v3314, %v3367
    %v3374 = vmul.f32 %v3317, %v3368
    %v3375 = vmul.f32 %v3320, %v3369
    %s3376 = scalar_lea.vmem %s37, 64
    %v3377 = vld [vmem:[%s3376] sm:$0xff]
    %v3378 = vld [vmem:[%s3376 + $0x8] sm:$0xff]
    %v3379 = vld [vmem:[%s3376 + $0x10] sm:$0xff]
    %v3380 = vld [vmem:[%s3376 + $0x18] sm:$0xff]
    %v3381 = vld [vmem:[%s3376 + $0x20] sm:$0xff]
    %v3382 = vld [vmem:[%s3376 + $0x28] sm:$0xff]
    %v3383 = vld [vmem:[%s3376 + $0x30] sm:$0xff]
    %v3384 = vld [vmem:[%s3376 + $0x38] sm:$0xff]
    %s3385 = scalar_lea.vmem %s39, 1
    %v3386 = vld [vmem:[%s3385] sm:$0x1]
    %v3388 = vperm.slane %v3386, 0
    %v3391 = vsel %vm1659, %v3370, 0
    %v3394 = vsel %vm1659, %v3371, 0
    %v3397 = vsel %vm1659, %v3372, 0
    %v3400 = vsel %vm1659, %v3373, 0
    %v3403 = vsel %vm1659, %v3374, 0
    %v3406 = vsel %vm1659, %v3375, 0
    %3408 = vmatpush.msra.mxu0 0.0
    %3409 = vmatpush.msra.mxu0 0.0
    %3410 = vmatpush.msra.mxu0 0.0
    %3411 = vmatpush.msra.mxu0 0.0
    %3412 = vmatpush.msra.mxu0 0.0
    %3413 = vmatpush.msra.mxu0 0.0
    %3414 = vmatpush.msra.mxu0 0.0
    %3415 = vmatpush.msra.mxu0 0.0
    %3416 = vmatpush.msra.mxu0 %v3384
    %3417 = vmatpush.msra.mxu0 %v3383
    %3418 = vmatpush.msra.mxu0 %v3382
    %3419 = vmatpush.msra.mxu0 %v3381
    %3420 = vmatpush.msra.mxu0 %v3380
    %3421 = vmatpush.msra.mxu0 %v3379
    %3422 = vmatpush.msra.mxu0 %v3378
    %3423 = vmatpush.msra.mxu0 %v3377
    %3424 = vmatmul.f32.gmra.mxu0 %v3391
    %v3425 = vpop.f32.mrf.mxu0
    %v3426 = vadd.f32 %v3388, %v3425
    %3427 = vmatmul.f32.gmra.mxu0 %v3394
    %v3428 = vpop.f32.mrf.mxu0
    %v3429 = vadd.f32 %v3388, %v3428
    %3430 = vmatmul.f32.gmra.mxu0 %v3397
    %v3431 = vpop.f32.mrf.mxu0
    %v3432 = vadd.f32 %v3388, %v3431
    %3433 = vmatmul.f32.gmra.mxu0 %v3400
    %v3434 = vpop.f32.mrf.mxu0
    %v3435 = vadd.f32 %v3388, %v3434
    %3436 = vmatmul.f32.gmra.mxu0 %v3403
    %v3437 = vpop.f32.mrf.mxu0
    %v3438 = vadd.f32 %v3388, %v3437
    %3439 = vmatmul.f32.gmra.mxu0 %v3406
    %v3440 = vpop.f32.mrf.mxu0
    %v3441 = vadd.f32 %v3388, %v3440
    %3442 = vdwg.mxu0
    %v3443 = vadd.f32 %v3253, %v3426
    %v3444 = vadd.f32 %v3254, %v3429
    %v3445 = vadd.f32 %v3255, %v3432
    %v3446 = vadd.f32 %v3256, %v3435
    %v3447 = vadd.f32 %v3257, %v3438
    %v3448 = vadd.f32 %v3258, %v3441
    %s3449 = scalar_lea.vmem %s41, 1
    %v3450 = vld [vmem:[%s3449] sm:$0x1]
    %s3451 = scalar_lea.vmem %s43, 1
    %v3452 = vld [vmem:[%s3451] sm:$0x1]
    %v3453 = vsel %vm155, %v3443, 0.0
    %3454 = vadd.xlane.f32.xlu0 %v3453
    %v3455 = vpop.xlane.xlu0 %3454
    %v3456 = vsel %vm155, %v3444, 0.0
    %3457 = vadd.xlane.f32.xlu0 %v3456
    %v3458 = vpop.xlane.xlu0 %3457
    %v3459 = vsel %vm155, %v3445, 0.0
    %3460 = vadd.xlane.f32.xlu0 %v3459
    %v3461 = vpop.xlane.xlu0 %3460
    %v3462 = vsel %vm155, %v3446, 0.0
    %3463 = vadd.xlane.f32.xlu0 %v3462
    %v3464 = vpop.xlane.xlu0 %3463
    %v3465 = vsel %vm155, %v3447, 0.0
    %3466 = vadd.xlane.f32.xlu0 %v3465
    %v3467 = vpop.xlane.xlu0 %3466
    %v3468 = vsel %vm155, %v3448, 0.0
    %3469 = vadd.xlane.f32.xlu0 %v3468
    %v3470 = vpop.xlane.xlu0 %3469
    %v3471 = vmul.f32 %v3455, %v1399
    %v3472 = vmul.f32 %v3458, %v1399
    %v3473 = vmul.f32 %v3461, %v1399
    %v3474 = vmul.f32 %v3464, %v1399
    %v3475 = vmul.f32 %v3467, %v1399
    %v3476 = vmul.f32 %v3470, %v1399
    %v3477 = vsub.f32 %v3443, %v3471
    %v3478 = vsub.f32 %v3444, %v3472
    %v3479 = vsub.f32 %v3445, %v3473
    %v3480 = vsub.f32 %v3446, %v3474
    %v3481 = vsub.f32 %v3447, %v3475
    %v3482 = vsub.f32 %v3448, %v3476
    %v3483 = vmul.f32 %v3477, %v3477
    %v3484 = vmul.f32 %v3478, %v3478
    %v3485 = vmul.f32 %v3479, %v3479
    %v3486 = vmul.f32 %v3480, %v3480
    %v3487 = vmul.f32 %v3481, %v3481
    %v3488 = vmul.f32 %v3482, %v3482
    %v3489 = vsel %vm155, %v3483, 0.0
    %3490 = vadd.xlane.f32.xlu0 %v3489
    %v3491 = vpop.xlane.xlu0 %3490
    %v3492 = vsel %vm155, %v3484, 0.0
    %3493 = vadd.xlane.f32.xlu0 %v3492
    %v3494 = vpop.xlane.xlu0 %3493
    %v3495 = vsel %vm155, %v3485, 0.0
    %3496 = vadd.xlane.f32.xlu0 %v3495
    %v3497 = vpop.xlane.xlu0 %3496
    %v3498 = vsel %vm155, %v3486, 0.0
    %3499 = vadd.xlane.f32.xlu0 %v3498
    %v3500 = vpop.xlane.xlu0 %3499
    %v3501 = vsel %vm155, %v3487, 0.0
    %3502 = vadd.xlane.f32.xlu0 %v3501
    %v3503 = vpop.xlane.xlu0 %3502
    %v3504 = vsel %vm155, %v3488, 0.0
    %3505 = vadd.xlane.f32.xlu0 %v3504
    %v3506 = vpop.xlane.xlu0 %3505
    %v3507 = vmul.f32 %v3491, %v1399
    %v3508 = vmul.f32 %v3494, %v1399
    %v3509 = vmul.f32 %v3497, %v1399
    %v3510 = vmul.f32 %v3500, %v1399
    %v3511 = vmul.f32 %v3503, %v1399
    %v3512 = vmul.f32 %v3506, %v1399
    %v3513 = vadd.f32 %v3507, 1e-12
    %v3514 = vadd.f32 %v3508, 1e-12
    %v3515 = vadd.f32 %v3509, 1e-12
    %v3516 = vadd.f32 %v3510, 1e-12
    %v3517 = vadd.f32 %v3511, 1e-12
    %v3518 = vadd.f32 %v3512, 1e-12
    %v3519 = vrsqrt.pop %v3513
    %v3520 = vmul.f32 %v3519, %v3513
    %v3521 = vmul.f32 %v3520, %v3519
    %v3522 = vmul.f32 0.5, %v3521
    %v3523 = vsub.f32 1.5, %v3522
    %v3524 = vmul.f32 %v3519, %v3523
    %vm3525 = vweird.f32 %v3513
    %vm3526 = vweird.f32 %v3519
    %vm3527 = vmor %vm3525, %vm3526
    %v3528 = vsel %vm3527, %v3519, %v3524
    %v3529 = vrsqrt.pop %v3514
    %v3530 = vmul.f32 %v3529, %v3514
    %v3531 = vmul.f32 %v3530, %v3529
    %v3532 = vmul.f32 0.5, %v3531
    %v3533 = vsub.f32 1.5, %v3532
    %v3534 = vmul.f32 %v3529, %v3533
    %vm3535 = vweird.f32 %v3514
    %vm3536 = vweird.f32 %v3529
    %vm3537 = vmor %vm3535, %vm3536
    %v3538 = vsel %vm3537, %v3529, %v3534
    %v3539 = vrsqrt.pop %v3515
    %v3540 = vmul.f32 %v3539, %v3515
    %v3541 = vmul.f32 %v3540, %v3539
    %v3542 = vmul.f32 0.5, %v3541
    %v3543 = vsub.f32 1.5, %v3542
    %v3544 = vmul.f32 %v3539, %v3543
    %vm3545 = vweird.f32 %v3515
    %vm3546 = vweird.f32 %v3539
    %vm3547 = vmor %vm3545, %vm3546
    %v3548 = vsel %vm3547, %v3539, %v3544
    %v3549 = vrsqrt.pop %v3516
    %v3550 = vmul.f32 %v3549, %v3516
    %v3551 = vmul.f32 %v3550, %v3549
    %v3552 = vmul.f32 0.5, %v3551
    %v3553 = vsub.f32 1.5, %v3552
    %v3554 = vmul.f32 %v3549, %v3553
    %vm3555 = vweird.f32 %v3516
    %vm3556 = vweird.f32 %v3549
    %vm3557 = vmor %vm3555, %vm3556
    %v3558 = vsel %vm3557, %v3549, %v3554
    %v3559 = vrsqrt.pop %v3517
    %v3560 = vmul.f32 %v3559, %v3517
    %v3561 = vmul.f32 %v3560, %v3559
    %v3562 = vmul.f32 0.5, %v3561
    %v3563 = vsub.f32 1.5, %v3562
    %v3564 = vmul.f32 %v3559, %v3563
    %vm3565 = vweird.f32 %v3517
    %vm3566 = vweird.f32 %v3559
    %vm3567 = vmor %vm3565, %vm3566
    %v3568 = vsel %vm3567, %v3559, %v3564
    %v3569 = vrsqrt.pop %v3518
    %v3570 = vmul.f32 %v3569, %v3518
    %v3571 = vmul.f32 %v3570, %v3569
    %v3572 = vmul.f32 0.5, %v3571
    %v3573 = vsub.f32 1.5, %v3572
    %v3574 = vmul.f32 %v3569, %v3573
    %vm3575 = vweird.f32 %v3518
    %vm3576 = vweird.f32 %v3569
    %vm3577 = vmor %vm3575, %vm3576
    %v3578 = vsel %vm3577, %v3569, %v3574
    %v3579 = vmul.f32 %v3477, %v3528
    %v3580 = vmul.f32 %v3478, %v3538
    %v3581 = vmul.f32 %v3479, %v3548
    %v3582 = vmul.f32 %v3480, %v3558
    %v3583 = vmul.f32 %v3481, %v3568
    %v3584 = vmul.f32 %v3482, %v3578
    %v3586 = vperm.slane %v3450, 0
    %v3588 = vmul.f32 %v3579, %v3586
    %v3589 = vmul.f32 %v3580, %v3586
    %v3590 = vmul.f32 %v3581, %v3586
    %v3591 = vmul.f32 %v3582, %v3586
    %v3592 = vmul.f32 %v3583, %v3586
    %v3593 = vmul.f32 %v3584, %v3586
    %v3595 = vperm.slane %v3452, 0
    %v3597 = vadd.f32 %v3588, %v3595
    %v3598 = vadd.f32 %v3589, %v3595
    %v3599 = vadd.f32 %v3590, %v3595
    %v3600 = vadd.f32 %v3591, %v3595
    %v3601 = vadd.f32 %v3592, %v3595
    %v3602 = vadd.f32 %v3593, %v3595
    %v3603 = vadd.f32 %v1871, %v3597
    %v3604 = vadd.f32 %v1872, %v3598
    %v3605 = vadd.f32 %v1873, %v3599
    %v3606 = vadd.f32 %v1874, %v3600
    %v3607 = vadd.f32 %v1875, %v3601
    %v3608 = vadd.f32 %v1876, %v3602
    %s3609 = scalar_lea.vmem %s13, 64
    %v3610 = vld [vmem:[%s3609] sm:$0xff]
    %v3611 = vld [vmem:[%s3609 + $0x8] sm:$0xff]
    %v3612 = vld [vmem:[%s3609 + $0x10] sm:$0xff]
    %v3613 = vld [vmem:[%s3609 + $0x18] sm:$0xff]
    %s3614 = scalar_lea.vmem %s15, 2
    %v3615 = vld [vmem:[%s3614] sm:$0x1]
    %v3617 = vperm.slane %v3615, 0
    %v3620 = vsel %vm155, %v3597, 0
    %v3623 = vsel %vm155, %v3598, 0
    %v3626 = vsel %vm155, %v3599, 0
    %v3629 = vsel %vm155, %v3600, 0
    %v3632 = vsel %vm155, %v3601, 0
    %v3635 = vsel %vm155, %v3602, 0
    %3637 = vmatpush.msra.mxu0 0.0
    %3638 = vmatpush.msra.mxu0 0.0
    %3639 = vmatpush.msra.mxu0 0.0
    %3640 = vmatpush.msra.mxu0 0.0
    %3641 = vmatpush.msra.mxu0 0.0
    %3642 = vmatpush.msra.mxu0 0.0
    %3643 = vmatpush.msra.mxu0 0.0
    %3644 = vmatpush.msra.mxu0 0.0
    %3645 = vmatpush.msra.mxu0 0.0
    %3646 = vmatpush.msra.mxu0 0.0
    %3647 = vmatpush.msra.mxu0 0.0
    %3648 = vmatpush.msra.mxu0 0.0
    %3649 = vmatpush.msra.mxu0 %v3613
    %3650 = vmatpush.msra.mxu0 %v3612
    %3651 = vmatpush.msra.mxu0 %v3611
    %3652 = vmatpush.msra.mxu0 %v3610
    %3653 = vmatmul.f32.gmra.mxu0 %v3620
    %v3654 = vpop.f32.mrf.mxu0
    %v3655 = vadd.f32 %v3617, %v3654
    %3656 = vmatmul.f32.gmra.mxu0 %v3623
    %v3657 = vpop.f32.mrf.mxu0
    %v3658 = vadd.f32 %v3617, %v3657
    %3659 = vmatmul.f32.gmra.mxu0 %v3626
    %v3660 = vpop.f32.mrf.mxu0
    %v3661 = vadd.f32 %v3617, %v3660
    %3662 = vmatmul.f32.gmra.mxu0 %v3629
    %v3663 = vpop.f32.mrf.mxu0
    %v3664 = vadd.f32 %v3617, %v3663
    %3665 = vmatmul.f32.gmra.mxu0 %v3632
    %v3666 = vpop.f32.mrf.mxu0
    %v3667 = vadd.f32 %v3617, %v3666
    %3668 = vmatmul.f32.gmra.mxu0 %v3635
    %v3669 = vpop.f32.mrf.mxu0
    %v3670 = vadd.f32 %v3617, %v3669
    %3671 = vdwg.mxu0
    %s3672 = scalar_lea.vmem %s17, 64
    %v3673 = vld [vmem:[%s3672] sm:$0xff]
    %v3674 = vld [vmem:[%s3672 + $0x8] sm:$0xff]
    %v3675 = vld [vmem:[%s3672 + $0x10] sm:$0xff]
    %v3676 = vld [vmem:[%s3672 + $0x18] sm:$0xff]
    %s3677 = scalar_lea.vmem %s19, 2
    %v3678 = vld [vmem:[%s3677] sm:$0x1]
    %v3680 = vperm.slane %v3678, 0
    %3682 = vmatpush.msra.mxu0 0.0
    %3683 = vmatpush.msra.mxu0 0.0
    %3684 = vmatpush.msra.mxu0 0.0
    %3685 = vmatpush.msra.mxu0 0.0
    %3686 = vmatpush.msra.mxu0 0.0
    %3687 = vmatpush.msra.mxu0 0.0
    %3688 = vmatpush.msra.mxu0 0.0
    %3689 = vmatpush.msra.mxu0 0.0
    %3690 = vmatpush.msra.mxu0 0.0
    %3691 = vmatpush.msra.mxu0 0.0
    %3692 = vmatpush.msra.mxu0 0.0
    %3693 = vmatpush.msra.mxu0 0.0
    %3694 = vmatpush.msra.mxu0 %v3676
    %3695 = vmatpush.msra.mxu0 %v3675
    %3696 = vmatpush.msra.mxu0 %v3674
    %3697 = vmatpush.msra.mxu0 %v3673
    %3698 = vmatmul.f32.gmra.mxu0 %v3620
    %v3699 = vpop.f32.mrf.mxu0
    %v3700 = vadd.f32 %v3680, %v3699
    %3701 = vmatmul.f32.gmra.mxu0 %v3623
    %v3702 = vpop.f32.mrf.mxu0
    %v3703 = vadd.f32 %v3680, %v3702
    %3704 = vmatmul.f32.gmra.mxu0 %v3626
    %v3705 = vpop.f32.mrf.mxu0
    %v3706 = vadd.f32 %v3680, %v3705
    %3707 = vmatmul.f32.gmra.mxu0 %v3629
    %v3708 = vpop.f32.mrf.mxu0
    %v3709 = vadd.f32 %v3680, %v3708
    %3710 = vmatmul.f32.gmra.mxu0 %v3632
    %v3711 = vpop.f32.mrf.mxu0
    %v3712 = vadd.f32 %v3680, %v3711
    %3713 = vmatmul.f32.gmra.mxu0 %v3635
    %v3714 = vpop.f32.mrf.mxu0
    %v3715 = vadd.f32 %v3680, %v3714
    %3716 = vdwg.mxu0
    %s3717 = scalar_lea.vmem %s21, 64
    %v3718 = vld [vmem:[%s3717] sm:$0xff]
    %v3719 = vld [vmem:[%s3717 + $0x8] sm:$0xff]
    %v3720 = vld [vmem:[%s3717 + $0x10] sm:$0xff]
    %v3721 = vld [vmem:[%s3717 + $0x18] sm:$0xff]
    %s3722 = scalar_lea.vmem %s23, 2
    %v3723 = vld [vmem:[%s3722] sm:$0x1]
    %v3725 = vperm.slane %v3723, 0
    %3727 = vmatpush.msra.mxu0 0.0
    %3728 = vmatpush.msra.mxu0 0.0
    %3729 = vmatpush.msra.mxu0 0.0
    %3730 = vmatpush.msra.mxu0 0.0
    %3731 = vmatpush.msra.mxu0 0.0
    %3732 = vmatpush.msra.mxu0 0.0
    %3733 = vmatpush.msra.mxu0 0.0
    %3734 = vmatpush.msra.mxu0 0.0
    %3735 = vmatpush.msra.mxu0 0.0
    %3736 = vmatpush.msra.mxu0 0.0
    %3737 = vmatpush.msra.mxu0 0.0
    %3738 = vmatpush.msra.mxu0 0.0
    %3739 = vmatpush.msra.mxu0 %v3721
    %3740 = vmatpush.msra.mxu0 %v3720
    %3741 = vmatpush.msra.mxu0 %v3719
    %3742 = vmatpush.msra.mxu0 %v3718
    %3743 = vmatmul.f32.gmra.mxu0 %v3620
    %v3744 = vpop.f32.mrf.mxu0
    %v3745 = vadd.f32 %v3725, %v3744
    %3746 = vmatmul.f32.gmra.mxu0 %v3623
    %v3747 = vpop.f32.mrf.mxu0
    %v3748 = vadd.f32 %v3725, %v3747
    %3749 = vmatmul.f32.gmra.mxu0 %v3626
    %v3750 = vpop.f32.mrf.mxu0
    %v3751 = vadd.f32 %v3725, %v3750
    %3752 = vmatmul.f32.gmra.mxu0 %v3629
    %v3753 = vpop.f32.mrf.mxu0
    %v3754 = vadd.f32 %v3725, %v3753
    %3755 = vmatmul.f32.gmra.mxu0 %v3632
    %v3756 = vpop.f32.mrf.mxu0
    %v3757 = vadd.f32 %v3725, %v3756
    %3758 = vmatmul.f32.gmra.mxu0 %v3635
    %v3759 = vpop.f32.mrf.mxu0
    %v3760 = vadd.f32 %v3725, %v3759
    %3761 = vdwg.mxu0
    %v3763 = vsel %vm295, %v3655, 0
    %v3766 = vsel %vm295, %v3658, 0
    %v3769 = vsel %vm295, %v3661, 0
    %v3772 = vsel %vm295, %v3664, 0
    %v3775 = vsel %vm295, %v3667, 0
    %v3778 = vsel %vm295, %v3670, 0
    %v3781 = vsel %vm295, %v3700, 0
    %v3784 = vsel %vm295, %v3703, 0
    %v3787 = vsel %vm295, %v3706, 0
    %v3790 = vsel %vm295, %v3709, 0
    %v3793 = vsel %vm295, %v3712, 0
    %v3796 = vsel %vm295, %v3715, 0
    %3798 = vmatpush.xpose.msra.mxu0 0.0
    %3799 = vmatpush.xpose.msra.mxu0 0.0
    %3800 = vmatpush.xpose.msra.mxu0 0.0
    %3801 = vmatpush.xpose.msra.mxu0 0.0
    %3802 = vmatpush.xpose.msra.mxu0 0.0
    %3803 = vmatpush.xpose.msra.mxu0 0.0
    %3804 = vmatpush.xpose.msra.mxu0 0.0
    %3805 = vmatpush.xpose.msra.mxu0 0.0
    %3806 = vmatpush.xpose.msra.mxu0 0.0
    %3807 = vmatpush.xpose.msra.mxu0 0.0
    %3808 = vmatpush.xpose.msra.mxu0 %v3796
    %3809 = vmatpush.xpose.msra.mxu0 %v3793
    %3810 = vmatpush.xpose.msra.mxu0 %v3790
    %3811 = vmatpush.xpose.msra.mxu0 %v3787
    %3812 = vmatpush.xpose.msra.mxu0 %v3784
    %3813 = vmatpush.xpose.msra.mxu0 %v3781
    %3814 = vmatmul.f32.gmra.mxu0 %v3763
    %v3815 = vpop.f32.mrf.mxu0
    %v3816 = vadd.f32 0.0, %v3815
    %3817 = vmatmul.f32.gmra.mxu0 %v3766
    %v3818 = vpop.f32.mrf.mxu0
    %v3819 = vadd.f32 0.0, %v3818
    %3820 = vmatmul.f32.gmra.mxu0 %v3769
    %v3821 = vpop.f32.mrf.mxu0
    %v3822 = vadd.f32 0.0, %v3821
    %3823 = vmatmul.f32.gmra.mxu0 %v3772
    %v3824 = vpop.f32.mrf.mxu0
    %v3825 = vadd.f32 0.0, %v3824
    %3826 = vmatmul.f32.gmra.mxu0 %v3775
    %v3827 = vpop.f32.mrf.mxu0
    %v3828 = vadd.f32 0.0, %v3827
    %3829 = vmatmul.f32.gmra.mxu0 %v3778
    %v3830 = vpop.f32.mrf.mxu0
    %v3831 = vadd.f32 0.0, %v3830
    %3832 = vdwg.mxu0
    %v3833 = vmul.f32 %v3816, 0.35355338
    %v3834 = vmul.f32 %v3819, 0.35355338
    %v3835 = vmul.f32 %v3822, 0.35355338
    %v3836 = vmul.f32 %v3825, 0.35355338
    %v3837 = vmul.f32 %v3828, 0.35355338
    %v3838 = vmul.f32 %v3831, 0.35355338
    %v3839 = vadd.f32 %v3833, %v141
    %v3840 = vadd.f32 %v3834, %v142
    %v3841 = vadd.f32 %v3835, %v143
    %v3842 = vadd.f32 %v3836, %v144
    %v3843 = vadd.f32 %v3837, %v145
    %v3844 = vadd.f32 %v3838, %v146
    %v3845 = vsel %vm379, %v3839, -inf
    %3846 = vmax.xlane.f32.xlu0 %v3845
    %v3847 = vpop.xlane.xlu0 %3846
    %v3848 = vsel %vm379, %v3840, -inf
    %3849 = vmax.xlane.f32.xlu0 %v3848
    %v3850 = vpop.xlane.xlu0 %3849
    %v3851 = vsel %vm379, %v3841, -inf
    %3852 = vmax.xlane.f32.xlu0 %v3851
    %v3853 = vpop.xlane.xlu0 %3852
    %v3854 = vsel %vm379, %v3842, -inf
    %3855 = vmax.xlane.f32.xlu0 %v3854
    %v3856 = vpop.xlane.xlu0 %3855
    %v3857 = vsel %vm379, %v3843, -inf
    %3858 = vmax.xlane.f32.xlu0 %v3857
    %v3859 = vpop.xlane.xlu0 %3858
    %v3860 = vsel %vm379, %v3844, -inf
    %3861 = vmax.xlane.f32.xlu0 %v3860
    %v3862 = vpop.xlane.xlu0 %3861
    %v3863 = vsub.f32 %v3839, %v3847
    %v3864 = vsub.f32 %v3840, %v3850
    %v3865 = vsub.f32 %v3841, %v3853
    %v3866 = vsub.f32 %v3842, %v3856
    %v3867 = vsub.f32 %v3843, %v3859
    %v3868 = vsub.f32 %v3844, %v3862
    %v3869 = vmul.f32 %v3863, 1.442695
    %v3870 = vpow.pop %v3869
    %v3871 = vmul.f32 %v3864, 1.442695
    %v3872 = vpow.pop %v3871
    %v3873 = vmul.f32 %v3865, 1.442695
    %v3874 = vpow.pop %v3873
    %v3875 = vmul.f32 %v3866, 1.442695
    %v3876 = vpow.pop %v3875
    %v3877 = vmul.f32 %v3867, 1.442695
    %v3878 = vpow.pop %v3877
    %v3879 = vmul.f32 %v3868, 1.442695
    %v3880 = vpow.pop %v3879
    %v3881 = vsel %vm379, %v3870, 0.0
    %3882 = vadd.xlane.f32.xlu0 %v3881
    %v3883 = vpop.xlane.xlu0 %3882
    %v3884 = vsel %vm379, %v3872, 0.0
    %3885 = vadd.xlane.f32.xlu0 %v3884
    %v3886 = vpop.xlane.xlu0 %3885
    %v3887 = vsel %vm379, %v3874, 0.0
    %3888 = vadd.xlane.f32.xlu0 %v3887
    %v3889 = vpop.xlane.xlu0 %3888
    %v3890 = vsel %vm379, %v3876, 0.0
    %3891 = vadd.xlane.f32.xlu0 %v3890
    %v3892 = vpop.xlane.xlu0 %3891
    %v3893 = vsel %vm379, %v3878, 0.0
    %3894 = vadd.xlane.f32.xlu0 %v3893
    %v3895 = vpop.xlane.xlu0 %3894
    %v3896 = vsel %vm379, %v3880, 0.0
    %3897 = vadd.xlane.f32.xlu0 %v3896
    %v3898 = vpop.xlane.xlu0 %3897
    %v3899 = vrcp.pop %v3883
    %v3900 = vrcp.pop %v3886
    %v3901 = vrcp.pop %v3889
    %v3902 = vrcp.pop %v3892
    %v3903 = vrcp.pop %v3895
    %v3904 = vrcp.pop %v3898
    %v3905 = vmul.f32 %v3870, %v3899
    %v3906 = vmul.f32 %v3872, %v3900
    %v3907 = vmul.f32 %v3874, %v3901
    %v3908 = vmul.f32 %v3876, %v3902
    %v3909 = vmul.f32 %v3878, %v3903
    %v3910 = vmul.f32 %v3880, %v3904
    %v3912 = vsel %vm379, %v3905, 0
    %v3915 = vsel %vm379, %v3906, 0
    %v3918 = vsel %vm379, %v3907, 0
    %v3921 = vsel %vm379, %v3908, 0
    %v3924 = vsel %vm379, %v3909, 0
    %v3927 = vsel %vm379, %v3910, 0
    %3929 = vmatpush.msra.mxu0 0.0
    %3930 = vmatpush.msra.mxu0 0.0
    %3931 = vmatpush.msra.mxu0 0.0
    %3932 = vmatpush.msra.mxu0 0.0
    %3933 = vmatpush.msra.mxu0 0.0
    %3934 = vmatpush.msra.mxu0 0.0
    %3935 = vmatpush.msra.mxu0 0.0
    %3936 = vmatpush.msra.mxu0 0.0
    %3937 = vmatpush.msra.mxu0 0.0
    %3938 = vmatpush.msra.mxu0 0.0
    %3939 = vmatpush.msra.mxu0 %v3760
    %3940 = vmatpush.msra.mxu0 %v3757
    %3941 = vmatpush.msra.mxu0 %v3754
    %3942 = vmatpush.msra.mxu0 %v3751
    %3943 = vmatpush.msra.mxu0 %v3748
    %3944 = vmatpush.msra.mxu0 %v3745
    %3945 = vmatmul.f32.gmra.mxu0 %v3912
    %v3946 = vpop.f32.mrf.mxu0
    %v3947 = vadd.f32 0.0, %v3946
    %3948 = vmatmul.f32.gmra.mxu0 %v3915
    %v3949 = vpop.f32.mrf.mxu0
    %v3950 = vadd.f32 0.0, %v3949
    %3951 = vmatmul.f32.gmra.mxu0 %v3918
    %v3952 = vpop.f32.mrf.mxu0
    %v3953 = vadd.f32 0.0, %v3952
    %3954 = vmatmul.f32.gmra.mxu0 %v3921
    %v3955 = vpop.f32.mrf.mxu0
    %v3956 = vadd.f32 0.0, %v3955
    %3957 = vmatmul.f32.gmra.mxu0 %v3924
    %v3958 = vpop.f32.mrf.mxu0
    %v3959 = vadd.f32 0.0, %v3958
    %3960 = vmatmul.f32.gmra.mxu0 %v3927
    %v3961 = vpop.f32.mrf.mxu0
    %v3962 = vadd.f32 0.0, %v3961
    %3963 = vdwg.mxu0
    %3964 = vst.msk [vmem:[#allocation2] sm:$0xff] %vm295, %v3947
    %3965 = vst.msk [vmem:[#allocation2 + $0x8] sm:$0xff] %vm295, %v3950
    %3966 = vst.msk [vmem:[#allocation2 + $0x10] sm:$0xff] %vm295, %v3953
    %3967 = vst.msk [vmem:[#allocation2 + $0x18] sm:$0xff] %vm295, %v3956
    %3968 = vst.msk [vmem:[#allocation2 + $0x20] sm:$0xff] %vm295, %v3959
    %3969 = vst.msk [vmem:[#allocation2 + $0x28] sm:$0xff] %vm295, %v3962
    %3970 = vrot.lane.b32.xlu0 %v3655, 120
    %v3971 = vpop.permute.xlu0 %3970
    %3972 = vrot.lane.b32.xlu0 %v3658, 120
    %v3973 = vpop.permute.xlu0 %3972
    %3974 = vrot.lane.b32.xlu0 %v3661, 120
    %v3975 = vpop.permute.xlu0 %3974
    %3976 = vrot.lane.b32.xlu0 %v3664, 120
    %v3977 = vpop.permute.xlu0 %3976
    %3978 = vrot.lane.b32.xlu0 %v3667, 120
    %v3979 = vpop.permute.xlu0 %3978
    %3980 = vrot.lane.b32.xlu0 %v3670, 120
    %v3981 = vpop.permute.xlu0 %3980
    %3982 = vrot.lane.b32.xlu0 %v3700, 120
    %v3983 = vpop.permute.xlu0 %3982
    %3984 = vrot.lane.b32.xlu0 %v3703, 120
    %v3985 = vpop.permute.xlu0 %3984
    %3986 = vrot.lane.b32.xlu0 %v3706, 120
    %v3987 = vpop.permute.xlu0 %3986
    %3988 = vrot.lane.b32.xlu0 %v3709, 120
    %v3989 = vpop.permute.xlu0 %3988
    %3990 = vrot.lane.b32.xlu0 %v3712, 120
    %v3991 = vpop.permute.xlu0 %3990
    %3992 = vrot.lane.b32.xlu0 %v3715, 120
    %v3993 = vpop.permute.xlu0 %3992
    %v3994 = vsel %vm295, %v3971, 0
    %v3996 = vsel %vm295, %v3973, 0
    %v3998 = vsel %vm295, %v3975, 0
    %v4000 = vsel %vm295, %v3977, 0
    %v4002 = vsel %vm295, %v3979, 0
    %v4004 = vsel %vm295, %v3981, 0
    %v4006 = vsel %vm295, %v3983, 0
    %v4008 = vsel %vm295, %v3985, 0
    %v4010 = vsel %vm295, %v3987, 0
    %v4012 = vsel %vm295, %v3989, 0
    %v4014 = vsel %vm295, %v3991, 0
    %v4016 = vsel %vm295, %v3993, 0
    %4018 = vmatpush.xpose.msra.mxu0 0.0
    %4019 = vmatpush.xpose.msra.mxu0 0.0
    %4020 = vmatpush.xpose.msra.mxu0 0.0
    %4021 = vmatpush.xpose.msra.mxu0 0.0
    %4022 = vmatpush.xpose.msra.mxu0 0.0
    %4023 = vmatpush.xpose.msra.mxu0 0.0
    %4024 = vmatpush.xpose.msra.mxu0 0.0
    %4025 = vmatpush.xpose.msra.mxu0 0.0
    %4026 = vmatpush.xpose.msra.mxu0 0.0
    %4027 = vmatpush.xpose.msra.mxu0 0.0
    %4028 = vmatpush.xpose.msra.mxu0 %v4016
    %4029 = vmatpush.xpose.msra.mxu0 %v4014
    %4030 = vmatpush.xpose.msra.mxu0 %v4012
    %4031 = vmatpush.xpose.msra.mxu0 %v4010
    %4032 = vmatpush.xpose.msra.mxu0 %v4008
    %4033 = vmatpush.xpose.msra.mxu0 %v4006
    %4034 = vmatmul.f32.gmra.mxu0 %v3994
    %v4035 = vpop.f32.mrf.mxu0
    %v4036 = vadd.f32 0.0, %v4035
    %4037 = vmatmul.f32.gmra.mxu0 %v3996
    %v4038 = vpop.f32.mrf.mxu0
    %v4039 = vadd.f32 0.0, %v4038
    %4040 = vmatmul.f32.gmra.mxu0 %v3998
    %v4041 = vpop.f32.mrf.mxu0
    %v4042 = vadd.f32 0.0, %v4041
    %4043 = vmatmul.f32.gmra.mxu0 %v4000
    %v4044 = vpop.f32.mrf.mxu0
    %v4045 = vadd.f32 0.0, %v4044
    %4046 = vmatmul.f32.gmra.mxu0 %v4002
    %v4047 = vpop.f32.mrf.mxu0
    %v4048 = vadd.f32 0.0, %v4047
    %4049 = vmatmul.f32.gmra.mxu0 %v4004
    %v4050 = vpop.f32.mrf.mxu0
    %v4051 = vadd.f32 0.0, %v4050
    %4052 = vdwg.mxu0
    %v4053 = vmul.f32 %v4036, 0.35355338
    %v4054 = vmul.f32 %v4039, 0.35355338
    %v4055 = vmul.f32 %v4042, 0.35355338
    %v4056 = vmul.f32 %v4045, 0.35355338
    %v4057 = vmul.f32 %v4048, 0.35355338
    %v4058 = vmul.f32 %v4051, 0.35355338
    %v4059 = vadd.f32 %v4053, %v141
    %v4060 = vadd.f32 %v4054, %v142
    %v4061 = vadd.f32 %v4055, %v143
    %v4062 = vadd.f32 %v4056, %v144
    %v4063 = vadd.f32 %v4057, %v145
    %v4064 = vadd.f32 %v4058, %v146
    %v4065 = vsel %vm379, %v4059, -inf
    %4066 = vmax.xlane.f32.xlu0 %v4065
    %v4067 = vpop.xlane.xlu0 %4066
    %v4068 = vsel %vm379, %v4060, -inf
    %4069 = vmax.xlane.f32.xlu0 %v4068
    %v4070 = vpop.xlane.xlu0 %4069
    %v4071 = vsel %vm379, %v4061, -inf
    %4072 = vmax.xlane.f32.xlu0 %v4071
    %v4073 = vpop.xlane.xlu0 %4072
    %v4074 = vsel %vm379, %v4062, -inf
    %4075 = vmax.xlane.f32.xlu0 %v4074
    %v4076 = vpop.xlane.xlu0 %4075
    %v4077 = vsel %vm379, %v4063, -inf
    %4078 = vmax.xlane.f32.xlu0 %v4077
    %v4079 = vpop.xlane.xlu0 %4078
    %v4080 = vsel %vm379, %v4064, -inf
    %4081 = vmax.xlane.f32.xlu0 %v4080
    %v4082 = vpop.xlane.xlu0 %4081
    %v4083 = vsub.f32 %v4059, %v4067
    %v4084 = vsub.f32 %v4060, %v4070
    %v4085 = vsub.f32 %v4061, %v4073
    %v4086 = vsub.f32 %v4062, %v4076
    %v4087 = vsub.f32 %v4063, %v4079
    %v4088 = vsub.f32 %v4064, %v4082
    %v4089 = vmul.f32 %v4083, 1.442695
    %v4090 = vpow.pop %v4089
    %v4091 = vmul.f32 %v4084, 1.442695
    %v4092 = vpow.pop %v4091
    %v4093 = vmul.f32 %v4085, 1.442695
    %v4094 = vpow.pop %v4093
    %v4095 = vmul.f32 %v4086, 1.442695
    %v4096 = vpow.pop %v4095
    %v4097 = vmul.f32 %v4087, 1.442695
    %v4098 = vpow.pop %v4097
    %v4099 = vmul.f32 %v4088, 1.442695
    %v4100 = vpow.pop %v4099
    %v4101 = vsel %vm379, %v4090, 0.0
    %4102 = vadd.xlane.f32.xlu0 %v4101
    %v4103 = vpop.xlane.xlu0 %4102
    %v4104 = vsel %vm379, %v4092, 0.0
    %4105 = vadd.xlane.f32.xlu0 %v4104
    %v4106 = vpop.xlane.xlu0 %4105
    %v4107 = vsel %vm379, %v4094, 0.0
    %4108 = vadd.xlane.f32.xlu0 %v4107
    %v4109 = vpop.xlane.xlu0 %4108
    %v4110 = vsel %vm379, %v4096, 0.0
    %4111 = vadd.xlane.f32.xlu0 %v4110
    %v4112 = vpop.xlane.xlu0 %4111
    %v4113 = vsel %vm379, %v4098, 0.0
    %4114 = vadd.xlane.f32.xlu0 %v4113
    %v4115 = vpop.xlane.xlu0 %4114
    %v4116 = vsel %vm379, %v4100, 0.0
    %4117 = vadd.xlane.f32.xlu0 %v4116
    %v4118 = vpop.xlane.xlu0 %4117
    %v4119 = vrcp.pop %v4103
    %v4120 = vrcp.pop %v4106
    %v4121 = vrcp.pop %v4109
    %v4122 = vrcp.pop %v4112
    %v4123 = vrcp.pop %v4115
    %v4124 = vrcp.pop %v4118
    %v4125 = vmul.f32 %v4090, %v4119
    %v4126 = vmul.f32 %v4092, %v4120
    %v4127 = vmul.f32 %v4094, %v4121
    %v4128 = vmul.f32 %v4096, %v4122
    %v4129 = vmul.f32 %v4098, %v4123
    %v4130 = vmul.f32 %v4100, %v4124
    %4137 = vrot.lane.b32.xlu0 %v3745, 120
    %v4138 = vpop.permute.xlu0 %4137
    %4139 = vrot.lane.b32.xlu0 %v3748, 120
    %v4140 = vpop.permute.xlu0 %4139
    %4141 = vrot.lane.b32.xlu0 %v3751, 120
    %v4142 = vpop.permute.xlu0 %4141
    %4143 = vrot.lane.b32.xlu0 %v3754, 120
    %v4144 = vpop.permute.xlu0 %4143
    %4145 = vrot.lane.b32.xlu0 %v3757, 120
    %v4146 = vpop.permute.xlu0 %4145
    %4147 = vrot.lane.b32.xlu0 %v3760, 120
    %v4148 = vpop.permute.xlu0 %4147
    %v4156 = vsel %vm379, %v4125, 0
    %v4159 = vsel %vm379, %v4126, 0
    %v4162 = vsel %vm379, %v4127, 0
    %v4165 = vsel %vm379, %v4128, 0
    %v4168 = vsel %vm379, %v4129, 0
    %v4171 = vsel %vm379, %v4130, 0
    %4173 = vmatpush.msra.mxu0 0.0
    %4174 = vmatpush.msra.mxu0 0.0
    %4175 = vmatpush.msra.mxu0 0.0
    %4176 = vmatpush.msra.mxu0 0.0
    %4177 = vmatpush.msra.mxu0 0.0
    %4178 = vmatpush.msra.mxu0 0.0
    %4179 = vmatpush.msra.mxu0 0.0
    %4180 = vmatpush.msra.mxu0 0.0
    %4181 = vmatpush.msra.mxu0 0.0
    %4182 = vmatpush.msra.mxu0 0.0
    %4183 = vmatpush.msra.mxu0 %v4148
    %4184 = vmatpush.msra.mxu0 %v4146
    %4185 = vmatpush.msra.mxu0 %v4144
    %4186 = vmatpush.msra.mxu0 %v4142
    %4187 = vmatpush.msra.mxu0 %v4140
    %4188 = vmatpush.msra.mxu0 %v4138
    %4189 = vmatmul.f32.gmra.mxu0 %v4156
    %v4190 = vpop.f32.mrf.mxu0
    %v4191 = vadd.f32 0.0, %v4190
    %4192 = vmatmul.f32.gmra.mxu0 %v4159
    %v4193 = vpop.f32.mrf.mxu0
    %v4194 = vadd.f32 0.0, %v4193
    %4195 = vmatmul.f32.gmra.mxu0 %v4162
    %v4196 = vpop.f32.mrf.mxu0
    %v4197 = vadd.f32 0.0, %v4196
    %4198 = vmatmul.f32.gmra.mxu0 %v4165
    %v4199 = vpop.f32.mrf.mxu0
    %v4200 = vadd.f32 0.0, %v4199
    %4201 = vmatmul.f32.gmra.mxu0 %v4168
    %v4202 = vpop.f32.mrf.mxu0
    %v4203 = vadd.f32 0.0, %v4202
    %4204 = vmatmul.f32.gmra.mxu0 %v4171
    %v4205 = vpop.f32.mrf.mxu0
    %v4206 = vadd.f32 0.0, %v4205
    %4207 = vdwg.mxu0
    %4214 = vrot.lane.b32.xlu0 %v4191, 8
    %v4215 = vpop.permute.xlu0 %4214
    %4216 = vrot.lane.b32.xlu0 %v4194, 8
    %v4217 = vpop.permute.xlu0 %4216
    %4218 = vrot.lane.b32.xlu0 %v4197, 8
    %v4219 = vpop.permute.xlu0 %4218
    %4220 = vrot.lane.b32.xlu0 %v4200, 8
    %v4221 = vpop.permute.xlu0 %4220
    %4222 = vrot.lane.b32.xlu0 %v4203, 8
    %v4223 = vpop.permute.xlu0 %4222
    %4224 = vrot.lane.b32.xlu0 %v4206, 8
    %v4225 = vpop.permute.xlu0 %4224
    %4232 = vst.msk [vmem:[#allocation2] sm:$0xff] %vm767, %v4215
    %4233 = vst.msk [vmem:[#allocation2 + $0x8] sm:$0xff] %vm767, %v4217
    %4234 = vst.msk [vmem:[#allocation2 + $0x10] sm:$0xff] %vm767, %v4219
    %4235 = vst.msk [vmem:[#allocation2 + $0x18] sm:$0xff] %vm767, %v4221
    %4236 = vst.msk [vmem:[#allocation2 + $0x20] sm:$0xff] %vm767, %v4223
    %4237 = vst.msk [vmem:[#allocation2 + $0x28] sm:$0xff] %vm767, %v4225
    %4238 = vrot.lane.b32.xlu0 %v3655, 112
    %v4239 = vpop.permute.xlu0 %4238
    %4240 = vrot.lane.b32.xlu0 %v3658, 112
    %v4241 = vpop.permute.xlu0 %4240
    %4242 = vrot.lane.b32.xlu0 %v3661, 112
    %v4243 = vpop.permute.xlu0 %4242
    %4244 = vrot.lane.b32.xlu0 %v3664, 112
    %v4245 = vpop.permute.xlu0 %4244
    %4246 = vrot.lane.b32.xlu0 %v3667, 112
    %v4247 = vpop.permute.xlu0 %4246
    %4248 = vrot.lane.b32.xlu0 %v3670, 112
    %v4249 = vpop.permute.xlu0 %4248
    %4250 = vrot.lane.b32.xlu0 %v3700, 112
    %v4251 = vpop.permute.xlu0 %4250
    %4252 = vrot.lane.b32.xlu0 %v3703, 112
    %v4253 = vpop.permute.xlu0 %4252
    %4254 = vrot.lane.b32.xlu0 %v3706, 112
    %v4255 = vpop.permute.xlu0 %4254
    %4256 = vrot.lane.b32.xlu0 %v3709, 112
    %v4257 = vpop.permute.xlu0 %4256
    %4258 = vrot.lane.b32.xlu0 %v3712, 112
    %v4259 = vpop.permute.xlu0 %4258
    %4260 = vrot.lane.b32.xlu0 %v3715, 112
    %v4261 = vpop.permute.xlu0 %4260
    %v4262 = vsel %vm295, %v4239, 0
    %v4264 = vsel %vm295, %v4241, 0
    %v4266 = vsel %vm295, %v4243, 0
    %v4268 = vsel %vm295, %v4245, 0
    %v4270 = vsel %vm295, %v4247, 0
    %v4272 = vsel %vm295, %v4249, 0
    %v4274 = vsel %vm295, %v4251, 0
    %v4276 = vsel %vm295, %v4253, 0
    %v4278 = vsel %vm295, %v4255, 0
    %v4280 = vsel %vm295, %v4257, 0
    %v4282 = vsel %vm295, %v4259, 0
    %v4284 = vsel %vm295, %v4261, 0
    %4286 = vmatpush.xpose.msra.mxu0 0.0
    %4287 = vmatpush.xpose.msra.mxu0 0.0
    %4288 = vmatpush.xpose.msra.mxu0 0.0
    %4289 = vmatpush.xpose.msra.mxu0 0.0
    %4290 = vmatpush.xpose.msra.mxu0 0.0
    %4291 = vmatpush.xpose.msra.mxu0 0.0
    %4292 = vmatpush.xpose.msra.mxu0 0.0
    %4293 = vmatpush.xpose.msra.mxu0 0.0
    %4294 = vmatpush.xpose.msra.mxu0 0.0
    %4295 = vmatpush.xpose.msra.mxu0 0.0
    %4296 = vmatpush.xpose.msra.mxu0 %v4284
    %4297 = vmatpush.xpose.msra.mxu0 %v4282
    %4298 = vmatpush.xpose.msra.mxu0 %v4280
    %4299 = vmatpush.xpose.msra.mxu0 %v4278
    %4300 = vmatpush.xpose.msra.mxu0 %v4276
    %4301 = vmatpush.xpose.msra.mxu0 %v4274
    %4302 = vmatmul.f32.gmra.mxu0 %v4262
    %v4303 = vpop.f32.mrf.mxu0
    %v4304 = vadd.f32 0.0, %v4303
    %4305 = vmatmul.f32.gmra.mxu0 %v4264
    %v4306 = vpop.f32.mrf.mxu0
    %v4307 = vadd.f32 0.0, %v4306
    %4308 = vmatmul.f32.gmra.mxu0 %v4266
    %v4309 = vpop.f32.mrf.mxu0
    %v4310 = vadd.f32 0.0, %v4309
    %4311 = vmatmul.f32.gmra.mxu0 %v4268
    %v4312 = vpop.f32.mrf.mxu0
    %v4313 = vadd.f32 0.0, %v4312
    %4314 = vmatmul.f32.gmra.mxu0 %v4270
    %v4315 = vpop.f32.mrf.mxu0
    %v4316 = vadd.f32 0.0, %v4315
    %4317 = vmatmul.f32.gmra.mxu0 %v4272
    %v4318 = vpop.f32.mrf.mxu0
    %v4319 = vadd.f32 0.0, %v4318
    %4320 = vdwg.mxu0
    %v4321 = vmul.f32 %v4304, 0.35355338
    %v4322 = vmul.f32 %v4307, 0.35355338
    %v4323 = vmul.f32 %v4310, 0.35355338
    %v4324 = vmul.f32 %v4313, 0.35355338
    %v4325 = vmul.f32 %v4316, 0.35355338
    %v4326 = vmul.f32 %v4319, 0.35355338
    %v4327 = vadd.f32 %v4321, %v141
    %v4328 = vadd.f32 %v4322, %v142
    %v4329 = vadd.f32 %v4323, %v143
    %v4330 = vadd.f32 %v4324, %v144
    %v4331 = vadd.f32 %v4325, %v145
    %v4332 = vadd.f32 %v4326, %v146
    %v4333 = vsel %vm379, %v4327, -inf
    %4334 = vmax.xlane.f32.xlu0 %v4333
    %v4335 = vpop.xlane.xlu0 %4334
    %v4336 = vsel %vm379, %v4328, -inf
    %4337 = vmax.xlane.f32.xlu0 %v4336
    %v4338 = vpop.xlane.xlu0 %4337
    %v4339 = vsel %vm379, %v4329, -inf
    %4340 = vmax.xlane.f32.xlu0 %v4339
    %v4341 = vpop.xlane.xlu0 %4340
    %v4342 = vsel %vm379, %v4330, -inf
    %4343 = vmax.xlane.f32.xlu0 %v4342
    %v4344 = vpop.xlane.xlu0 %4343
    %v4345 = vsel %vm379, %v4331, -inf
    %4346 = vmax.xlane.f32.xlu0 %v4345
    %v4347 = vpop.xlane.xlu0 %4346
    %v4348 = vsel %vm379, %v4332, -inf
    %4349 = vmax.xlane.f32.xlu0 %v4348
    %v4350 = vpop.xlane.xlu0 %4349
    %v4351 = vsub.f32 %v4327, %v4335
    %v4352 = vsub.f32 %v4328, %v4338
    %v4353 = vsub.f32 %v4329, %v4341
    %v4354 = vsub.f32 %v4330, %v4344
    %v4355 = vsub.f32 %v4331, %v4347
    %v4356 = vsub.f32 %v4332, %v4350
    %v4357 = vmul.f32 %v4351, 1.442695
    %v4358 = vpow.pop %v4357
    %v4359 = vmul.f32 %v4352, 1.442695
    %v4360 = vpow.pop %v4359
    %v4361 = vmul.f32 %v4353, 1.442695
    %v4362 = vpow.pop %v4361
    %v4363 = vmul.f32 %v4354, 1.442695
    %v4364 = vpow.pop %v4363
    %v4365 = vmul.f32 %v4355, 1.442695
    %v4366 = vpow.pop %v4365
    %v4367 = vmul.f32 %v4356, 1.442695
    %v4368 = vpow.pop %v4367
    %v4369 = vsel %vm379, %v4358, 0.0
    %4370 = vadd.xlane.f32.xlu0 %v4369
    %v4371 = vpop.xlane.xlu0 %4370
    %v4372 = vsel %vm379, %v4360, 0.0
    %4373 = vadd.xlane.f32.xlu0 %v4372
    %v4374 = vpop.xlane.xlu0 %4373
    %v4375 = vsel %vm379, %v4362, 0.0
    %4376 = vadd.xlane.f32.xlu0 %v4375
    %v4377 = vpop.xlane.xlu0 %4376
    %v4378 = vsel %vm379, %v4364, 0.0
    %4379 = vadd.xlane.f32.xlu0 %v4378
    %v4380 = vpop.xlane.xlu0 %4379
    %v4381 = vsel %vm379, %v4366, 0.0
    %4382 = vadd.xlane.f32.xlu0 %v4381
    %v4383 = vpop.xlane.xlu0 %4382
    %v4384 = vsel %vm379, %v4368, 0.0
    %4385 = vadd.xlane.f32.xlu0 %v4384
    %v4386 = vpop.xlane.xlu0 %4385
    %v4387 = vrcp.pop %v4371
    %v4388 = vrcp.pop %v4374
    %v4389 = vrcp.pop %v4377
    %v4390 = vrcp.pop %v4380
    %v4391 = vrcp.pop %v4383
    %v4392 = vrcp.pop %v4386
    %v4393 = vmul.f32 %v4358, %v4387
    %v4394 = vmul.f32 %v4360, %v4388
    %v4395 = vmul.f32 %v4362, %v4389
    %v4396 = vmul.f32 %v4364, %v4390
    %v4397 = vmul.f32 %v4366, %v4391
    %v4398 = vmul.f32 %v4368, %v4392
    %4399 = vrot.lane.b32.xlu0 %v3745, 112
    %v4400 = vpop.permute.xlu0 %4399
    %4401 = vrot.lane.b32.xlu0 %v3748, 112
    %v4402 = vpop.permute.xlu0 %4401
    %4403 = vrot.lane.b32.xlu0 %v3751, 112
    %v4404 = vpop.permute.xlu0 %4403
    %4405 = vrot.lane.b32.xlu0 %v3754, 112
    %v4406 = vpop.permute.xlu0 %4405
    %4407 = vrot.lane.b32.xlu0 %v3757, 112
    %v4408 = vpop.permute.xlu0 %4407
    %4409 = vrot.lane.b32.xlu0 %v3760, 112
    %v4410 = vpop.permute.xlu0 %4409
    %v4418 = vsel %vm379, %v4393, 0
    %v4421 = vsel %vm379, %v4394, 0
    %v4424 = vsel %vm379, %v4395, 0
    %v4427 = vsel %vm379, %v4396, 0
    %v4430 = vsel %vm379, %v4397, 0
    %v4433 = vsel %vm379, %v4398, 0
    %4435 = vmatpush.msra.mxu0 0.0
    %4436 = vmatpush.msra.mxu0 0.0
    %4437 = vmatpush.msra.mxu0 0.0
    %4438 = vmatpush.msra.mxu0 0.0
    %4439 = vmatpush.msra.mxu0 0.0
    %4440 = vmatpush.msra.mxu0 0.0
    %4441 = vmatpush.msra.mxu0 0.0
    %4442 = vmatpush.msra.mxu0 0.0
    %4443 = vmatpush.msra.mxu0 0.0
    %4444 = vmatpush.msra.mxu0 0.0
    %4445 = vmatpush.msra.mxu0 %v4410
    %4446 = vmatpush.msra.mxu0 %v4408
    %4447 = vmatpush.msra.mxu0 %v4406
    %4448 = vmatpush.msra.mxu0 %v4404
    %4449 = vmatpush.msra.mxu0 %v4402
    %4450 = vmatpush.msra.mxu0 %v4400
    %4451 = vmatmul.f32.gmra.mxu0 %v4418
    %v4452 = vpop.f32.mrf.mxu0
    %v4453 = vadd.f32 0.0, %v4452
    %4454 = vmatmul.f32.gmra.mxu0 %v4421
    %v4455 = vpop.f32.mrf.mxu0
    %v4456 = vadd.f32 0.0, %v4455
    %4457 = vmatmul.f32.gmra.mxu0 %v4424
    %v4458 = vpop.f32.mrf.mxu0
    %v4459 = vadd.f32 0.0, %v4458
    %4460 = vmatmul.f32.gmra.mxu0 %v4427
    %v4461 = vpop.f32.mrf.mxu0
    %v4462 = vadd.f32 0.0, %v4461
    %4463 = vmatmul.f32.gmra.mxu0 %v4430
    %v4464 = vpop.f32.mrf.mxu0
    %v4465 = vadd.f32 0.0, %v4464
    %4466 = vmatmul.f32.gmra.mxu0 %v4433
    %v4467 = vpop.f32.mrf.mxu0
    %v4468 = vadd.f32 0.0, %v4467
    %4469 = vdwg.mxu0
    %4476 = vrot.lane.b32.xlu0 %v4453, 16
    %v4477 = vpop.permute.xlu0 %4476
    %4478 = vrot.lane.b32.xlu0 %v4456, 16
    %v4479 = vpop.permute.xlu0 %4478
    %4480 = vrot.lane.b32.xlu0 %v4459, 16
    %v4481 = vpop.permute.xlu0 %4480
    %4482 = vrot.lane.b32.xlu0 %v4462, 16
    %v4483 = vpop.permute.xlu0 %4482
    %4484 = vrot.lane.b32.xlu0 %v4465, 16
    %v4485 = vpop.permute.xlu0 %4484
    %4486 = vrot.lane.b32.xlu0 %v4468, 16
    %v4487 = vpop.permute.xlu0 %4486
    %4494 = vst.msk [vmem:[#allocation2] sm:$0xff] %vm1030, %v4477
    %4495 = vst.msk [vmem:[#allocation2 + $0x8] sm:$0xff] %vm1030, %v4479
    %4496 = vst.msk [vmem:[#allocation2 + $0x10] sm:$0xff] %vm1030, %v4481
    %4497 = vst.msk [vmem:[#allocation2 + $0x18] sm:$0xff] %vm1030, %v4483
    %4498 = vst.msk [vmem:[#allocation2 + $0x20] sm:$0xff] %vm1030, %v4485
    %4499 = vst.msk [vmem:[#allocation2 + $0x28] sm:$0xff] %vm1030, %v4487
    %4500 = vrot.lane.b32.xlu0 %v3655, 104
    %v4501 = vpop.permute.xlu0 %4500
    %4502 = vrot.lane.b32.xlu0 %v3658, 104
    %v4503 = vpop.permute.xlu0 %4502
    %4504 = vrot.lane.b32.xlu0 %v3661, 104
    %v4505 = vpop.permute.xlu0 %4504
    %4506 = vrot.lane.b32.xlu0 %v3664, 104
    %v4507 = vpop.permute.xlu0 %4506
    %4508 = vrot.lane.b32.xlu0 %v3667, 104
    %v4509 = vpop.permute.xlu0 %4508
    %4510 = vrot.lane.b32.xlu0 %v3670, 104
    %v4511 = vpop.permute.xlu0 %4510
    %4512 = vrot.lane.b32.xlu0 %v3700, 104
    %v4513 = vpop.permute.xlu0 %4512
    %4514 = vrot.lane.b32.xlu0 %v3703, 104
    %v4515 = vpop.permute.xlu0 %4514
    %4516 = vrot.lane.b32.xlu0 %v3706, 104
    %v4517 = vpop.permute.xlu0 %4516
    %4518 = vrot.lane.b32.xlu0 %v3709, 104
    %v4519 = vpop.permute.xlu0 %4518
    %4520 = vrot.lane.b32.xlu0 %v3712, 104
    %v4521 = vpop.permute.xlu0 %4520
    %4522 = vrot.lane.b32.xlu0 %v3715, 104
    %v4523 = vpop.permute.xlu0 %4522
    %v4524 = vsel %vm295, %v4501, 0
    %v4526 = vsel %vm295, %v4503, 0
    %v4528 = vsel %vm295, %v4505, 0
    %v4530 = vsel %vm295, %v4507, 0
    %v4532 = vsel %vm295, %v4509, 0
    %v4534 = vsel %vm295, %v4511, 0
    %v4536 = vsel %vm295, %v4513, 0
    %v4538 = vsel %vm295, %v4515, 0
    %v4540 = vsel %vm295, %v4517, 0
    %v4542 = vsel %vm295, %v4519, 0
    %v4544 = vsel %vm295, %v4521, 0
    %v4546 = vsel %vm295, %v4523, 0
    %4548 = vmatpush.xpose.msra.mxu0 0.0
    %4549 = vmatpush.xpose.msra.mxu0 0.0
    %4550 = vmatpush.xpose.msra.mxu0 0.0
    %4551 = vmatpush.xpose.msra.mxu0 0.0
    %4552 = vmatpush.xpose.msra.mxu0 0.0
    %4553 = vmatpush.xpose.msra.mxu0 0.0
    %4554 = vmatpush.xpose.msra.mxu0 0.0
    %4555 = vmatpush.xpose.msra.mxu0 0.0
    %4556 = vmatpush.xpose.msra.mxu0 0.0
    %4557 = vmatpush.xpose.msra.mxu0 0.0
    %4558 = vmatpush.xpose.msra.mxu0 %v4546
    %4559 = vmatpush.xpose.msra.mxu0 %v4544
    %4560 = vmatpush.xpose.msra.mxu0 %v4542
    %4561 = vmatpush.xpose.msra.mxu0 %v4540
    %4562 = vmatpush.xpose.msra.mxu0 %v4538
    %4563 = vmatpush.xpose.msra.mxu0 %v4536
    %4564 = vmatmul.f32.gmra.mxu0 %v4524
    %v4565 = vpop.f32.mrf.mxu0
    %v4566 = vadd.f32 0.0, %v4565
    %4567 = vmatmul.f32.gmra.mxu0 %v4526
    %v4568 = vpop.f32.mrf.mxu0
    %v4569 = vadd.f32 0.0, %v4568
    %4570 = vmatmul.f32.gmra.mxu0 %v4528
    %v4571 = vpop.f32.mrf.mxu0
    %v4572 = vadd.f32 0.0, %v4571
    %4573 = vmatmul.f32.gmra.mxu0 %v4530
    %v4574 = vpop.f32.mrf.mxu0
    %v4575 = vadd.f32 0.0, %v4574
    %4576 = vmatmul.f32.gmra.mxu0 %v4532
    %v4577 = vpop.f32.mrf.mxu0
    %v4578 = vadd.f32 0.0, %v4577
    %4579 = vmatmul.f32.gmra.mxu0 %v4534
    %v4580 = vpop.f32.mrf.mxu0
    %v4581 = vadd.f32 0.0, %v4580
    %4582 = vdwg.mxu0
    %v4583 = vmul.f32 %v4566, 0.35355338
    %v4584 = vmul.f32 %v4569, 0.35355338
    %v4585 = vmul.f32 %v4572, 0.35355338
    %v4586 = vmul.f32 %v4575, 0.35355338
    %v4587 = vmul.f32 %v4578, 0.35355338
    %v4588 = vmul.f32 %v4581, 0.35355338
    %v4589 = vadd.f32 %v4583, %v141
    %v4590 = vadd.f32 %v4584, %v142
    %v4591 = vadd.f32 %v4585, %v143
    %v4592 = vadd.f32 %v4586, %v144
    %v4593 = vadd.f32 %v4587, %v145
    %v4594 = vadd.f32 %v4588, %v146
    %v4595 = vsel %vm379, %v4589, -inf
    %4596 = vmax.xlane.f32.xlu0 %v4595
    %v4597 = vpop.xlane.xlu0 %4596
    %v4598 = vsel %vm379, %v4590, -inf
    %4599 = vmax.xlane.f32.xlu0 %v4598
    %v4600 = vpop.xlane.xlu0 %4599
    %v4601 = vsel %vm379, %v4591, -inf
    %4602 = vmax.xlane.f32.xlu0 %v4601
    %v4603 = vpop.xlane.xlu0 %4602
    %v4604 = vsel %vm379, %v4592, -inf
    %4605 = vmax.xlane.f32.xlu0 %v4604
    %v4606 = vpop.xlane.xlu0 %4605
    %v4607 = vsel %vm379, %v4593, -inf
    %4608 = vmax.xlane.f32.xlu0 %v4607
    %v4609 = vpop.xlane.xlu0 %4608
    %v4610 = vsel %vm379, %v4594, -inf
    %4611 = vmax.xlane.f32.xlu0 %v4610
    %v4612 = vpop.xlane.xlu0 %4611
    %v4613 = vsub.f32 %v4589, %v4597
    %v4614 = vsub.f32 %v4590, %v4600
    %v4615 = vsub.f32 %v4591, %v4603
    %v4616 = vsub.f32 %v4592, %v4606
    %v4617 = vsub.f32 %v4593, %v4609
    %v4618 = vsub.f32 %v4594, %v4612
    %v4619 = vmul.f32 %v4613, 1.442695
    %v4620 = vpow.pop %v4619
    %v4621 = vmul.f32 %v4614, 1.442695
    %v4622 = vpow.pop %v4621
    %v4623 = vmul.f32 %v4615, 1.442695
    %v4624 = vpow.pop %v4623
    %v4625 = vmul.f32 %v4616, 1.442695
    %v4626 = vpow.pop %v4625
    %v4627 = vmul.f32 %v4617, 1.442695
    %v4628 = vpow.pop %v4627
    %v4629 = vmul.f32 %v4618, 1.442695
    %v4630 = vpow.pop %v4629
    %v4631 = vsel %vm379, %v4620, 0.0
    %4632 = vadd.xlane.f32.xlu0 %v4631
    %v4633 = vpop.xlane.xlu0 %4632
    %v4634 = vsel %vm379, %v4622, 0.0
    %4635 = vadd.xlane.f32.xlu0 %v4634
    %v4636 = vpop.xlane.xlu0 %4635
    %v4637 = vsel %vm379, %v4624, 0.0
    %4638 = vadd.xlane.f32.xlu0 %v4637
    %v4639 = vpop.xlane.xlu0 %4638
    %v4640 = vsel %vm379, %v4626, 0.0
    %4641 = vadd.xlane.f32.xlu0 %v4640
    %v4642 = vpop.xlane.xlu0 %4641
    %v4643 = vsel %vm379, %v4628, 0.0
    %4644 = vadd.xlane.f32.xlu0 %v4643
    %v4645 = vpop.xlane.xlu0 %4644
    %v4646 = vsel %vm379, %v4630, 0.0
    %4647 = vadd.xlane.f32.xlu0 %v4646
    %v4648 = vpop.xlane.xlu0 %4647
    %v4649 = vrcp.pop %v4633
    %v4650 = vrcp.pop %v4636
    %v4651 = vrcp.pop %v4639
    %v4652 = vrcp.pop %v4642
    %v4653 = vrcp.pop %v4645
    %v4654 = vrcp.pop %v4648
    %v4655 = vmul.f32 %v4620, %v4649
    %v4656 = vmul.f32 %v4622, %v4650
    %v4657 = vmul.f32 %v4624, %v4651
    %v4658 = vmul.f32 %v4626, %v4652
    %v4659 = vmul.f32 %v4628, %v4653
    %v4660 = vmul.f32 %v4630, %v4654
    %4661 = vrot.lane.b32.xlu0 %v3745, 104
    %v4662 = vpop.permute.xlu0 %4661
    %4663 = vrot.lane.b32.xlu0 %v3748, 104
    %v4664 = vpop.permute.xlu0 %4663
    %4665 = vrot.lane.b32.xlu0 %v3751, 104
    %v4666 = vpop.permute.xlu0 %4665
    %4667 = vrot.lane.b32.xlu0 %v3754, 104
    %v4668 = vpop.permute.xlu0 %4667
    %4669 = vrot.lane.b32.xlu0 %v3757, 104
    %v4670 = vpop.permute.xlu0 %4669
    %4671 = vrot.lane.b32.xlu0 %v3760, 104
    %v4672 = vpop.permute.xlu0 %4671
    %v4680 = vsel %vm379, %v4655, 0
    %v4683 = vsel %vm379, %v4656, 0
    %v4686 = vsel %vm379, %v4657, 0
    %v4689 = vsel %vm379, %v4658, 0
    %v4692 = vsel %vm379, %v4659, 0
    %v4695 = vsel %vm379, %v4660, 0
    %4697 = vmatpush.msra.mxu0 0.0
    %4698 = vmatpush.msra.mxu0 0.0
    %4699 = vmatpush.msra.mxu0 0.0
    %4700 = vmatpush.msra.mxu0 0.0
    %4701 = vmatpush.msra.mxu0 0.0
    %4702 = vmatpush.msra.mxu0 0.0
    %4703 = vmatpush.msra.mxu0 0.0
    %4704 = vmatpush.msra.mxu0 0.0
    %4705 = vmatpush.msra.mxu0 0.0
    %4706 = vmatpush.msra.mxu0 0.0
    %4707 = vmatpush.msra.mxu0 %v4672
    %4708 = vmatpush.msra.mxu0 %v4670
    %4709 = vmatpush.msra.mxu0 %v4668
    %4710 = vmatpush.msra.mxu0 %v4666
    %4711 = vmatpush.msra.mxu0 %v4664
    %4712 = vmatpush.msra.mxu0 %v4662
    %4713 = vmatmul.f32.gmra.mxu0 %v4680
    %v4714 = vpop.f32.mrf.mxu0
    %v4715 = vadd.f32 0.0, %v4714
    %4716 = vmatmul.f32.gmra.mxu0 %v4683
    %v4717 = vpop.f32.mrf.mxu0
    %v4718 = vadd.f32 0.0, %v4717
    %4719 = vmatmul.f32.gmra.mxu0 %v4686
    %v4720 = vpop.f32.mrf.mxu0
    %v4721 = vadd.f32 0.0, %v4720
    %4722 = vmatmul.f32.gmra.mxu0 %v4689
    %v4723 = vpop.f32.mrf.mxu0
    %v4724 = vadd.f32 0.0, %v4723
    %4725 = vmatmul.f32.gmra.mxu0 %v4692
    %v4726 = vpop.f32.mrf.mxu0
    %v4727 = vadd.f32 0.0, %v4726
    %4728 = vmatmul.f32.gmra.mxu0 %v4695
    %v4729 = vpop.f32.mrf.mxu0
    %v4730 = vadd.f32 0.0, %v4729
    %4731 = vdwg.mxu0
    %4738 = vrot.lane.b32.xlu0 %v4715, 24
    %v4739 = vpop.permute.xlu0 %4738
    %4740 = vrot.lane.b32.xlu0 %v4718, 24
    %v4741 = vpop.permute.xlu0 %4740
    %4742 = vrot.lane.b32.xlu0 %v4721, 24
    %v4743 = vpop.permute.xlu0 %4742
    %4744 = vrot.lane.b32.xlu0 %v4724, 24
    %v4745 = vpop.permute.xlu0 %4744
    %4746 = vrot.lane.b32.xlu0 %v4727, 24
    %v4747 = vpop.permute.xlu0 %4746
    %4748 = vrot.lane.b32.xlu0 %v4730, 24
    %v4749 = vpop.permute.xlu0 %4748
    %4756 = vst.msk [vmem:[#allocation2] sm:$0xff] %vm1293, %v4739
    %4757 = vst.msk [vmem:[#allocation2 + $0x8] sm:$0xff] %vm1293, %v4741
    %4758 = vst.msk [vmem:[#allocation2 + $0x10] sm:$0xff] %vm1293, %v4743
    %4759 = vst.msk [vmem:[#allocation2 + $0x18] sm:$0xff] %vm1293, %v4745
    %4760 = vst.msk [vmem:[#allocation2 + $0x20] sm:$0xff] %vm1293, %v4747
    %4761 = vst.msk [vmem:[#allocation2 + $0x28] sm:$0xff] %vm1293, %v4749
    %v4762 = vld [vmem:[#allocation2] sm:$0xff]
    %v4763 = vld [vmem:[#allocation2 + $0x8] sm:$0xff]
    %v4764 = vld [vmem:[#allocation2 + $0x10] sm:$0xff]
    %v4765 = vld [vmem:[#allocation2 + $0x18] sm:$0xff]
    %v4766 = vld [vmem:[#allocation2 + $0x20] sm:$0xff]
    %v4767 = vld [vmem:[#allocation2 + $0x28] sm:$0xff]
    %s4768 = scalar_lea.vmem %s25, 64
    %v4769 = vld [vmem:[%s4768] sm:$0xff]
    %v4770 = vld [vmem:[%s4768 + $0x8] sm:$0xff]
    %v4771 = vld [vmem:[%s4768 + $0x10] sm:$0xff]
    %v4772 = vld [vmem:[%s4768 + $0x18] sm:$0xff]
    %s4773 = scalar_lea.vmem %s27, 2
    %v4774 = vld [vmem:[%s4773] sm:$0x1]
    %v4776 = vperm.slane %v4774, 0
    %v4779 = vsel %vm155, %v4762, 0
    %v4782 = vsel %vm155, %v4763, 0
    %v4785 = vsel %vm155, %v4764, 0
    %v4788 = vsel %vm155, %v4765, 0
    %v4791 = vsel %vm155, %v4766, 0
    %v4794 = vsel %vm155, %v4767, 0
    %4796 = vmatpush.msra.mxu0 0.0
    %4797 = vmatpush.msra.mxu0 0.0
    %4798 = vmatpush.msra.mxu0 0.0
    %4799 = vmatpush.msra.mxu0 0.0
    %4800 = vmatpush.msra.mxu0 0.0
    %4801 = vmatpush.msra.mxu0 0.0
    %4802 = vmatpush.msra.mxu0 0.0
    %4803 = vmatpush.msra.mxu0 0.0
    %4804 = vmatpush.msra.mxu0 0.0
    %4805 = vmatpush.msra.mxu0 0.0
    %4806 = vmatpush.msra.mxu0 0.0
    %4807 = vmatpush.msra.mxu0 0.0
    %4808 = vmatpush.msra.mxu0 %v4772
    %4809 = vmatpush.msra.mxu0 %v4771
    %4810 = vmatpush.msra.mxu0 %v4770
    %4811 = vmatpush.msra.mxu0 %v4769
    %4812 = vmatmul.f32.gmra.mxu0 %v4779
    %v4813 = vpop.f32.mrf.mxu0
    %v4814 = vadd.f32 %v4776, %v4813
    %4815 = vmatmul.f32.gmra.mxu0 %v4782
    %v4816 = vpop.f32.mrf.mxu0
    %v4817 = vadd.f32 %v4776, %v4816
    %4818 = vmatmul.f32.gmra.mxu0 %v4785
    %v4819 = vpop.f32.mrf.mxu0
    %v4820 = vadd.f32 %v4776, %v4819
    %4821 = vmatmul.f32.gmra.mxu0 %v4788
    %v4822 = vpop.f32.mrf.mxu0
    %v4823 = vadd.f32 %v4776, %v4822
    %4824 = vmatmul.f32.gmra.mxu0 %v4791
    %v4825 = vpop.f32.mrf.mxu0
    %v4826 = vadd.f32 %v4776, %v4825
    %4827 = vmatmul.f32.gmra.mxu0 %v4794
    %v4828 = vpop.f32.mrf.mxu0
    %v4829 = vadd.f32 %v4776, %v4828
    %4830 = vdwg.mxu0
    %v4831 = vadd.f32 %v3597, %v4814
    %v4832 = vadd.f32 %v3598, %v4817
    %v4833 = vadd.f32 %v3599, %v4820
    %v4834 = vadd.f32 %v3600, %v4823
    %v4835 = vadd.f32 %v3601, %v4826
    %v4836 = vadd.f32 %v3602, %v4829
    %s4837 = scalar_lea.vmem %s29, 2
    %v4838 = vld [vmem:[%s4837] sm:$0x1]
    %s4839 = scalar_lea.vmem %s31, 2
    %v4840 = vld [vmem:[%s4839] sm:$0x1]
    %v4841 = vsel %vm155, %v4831, 0.0
    %4842 = vadd.xlane.f32.xlu0 %v4841
    %v4843 = vpop.xlane.xlu0 %4842
    %v4844 = vsel %vm155, %v4832, 0.0
    %4845 = vadd.xlane.f32.xlu0 %v4844
    %v4846 = vpop.xlane.xlu0 %4845
    %v4847 = vsel %vm155, %v4833, 0.0
    %4848 = vadd.xlane.f32.xlu0 %v4847
    %v4849 = vpop.xlane.xlu0 %4848
    %v4850 = vsel %vm155, %v4834, 0.0
    %4851 = vadd.xlane.f32.xlu0 %v4850
    %v4852 = vpop.xlane.xlu0 %4851
    %v4853 = vsel %vm155, %v4835, 0.0
    %4854 = vadd.xlane.f32.xlu0 %v4853
    %v4855 = vpop.xlane.xlu0 %4854
    %v4856 = vsel %vm155, %v4836, 0.0
    %4857 = vadd.xlane.f32.xlu0 %v4856
    %v4858 = vpop.xlane.xlu0 %4857
    %v4859 = vmul.f32 %v4843, %v1399
    %v4860 = vmul.f32 %v4846, %v1399
    %v4861 = vmul.f32 %v4849, %v1399
    %v4862 = vmul.f32 %v4852, %v1399
    %v4863 = vmul.f32 %v4855, %v1399
    %v4864 = vmul.f32 %v4858, %v1399
    %v4865 = vsub.f32 %v4831, %v4859
    %v4866 = vsub.f32 %v4832, %v4860
    %v4867 = vsub.f32 %v4833, %v4861
    %v4868 = vsub.f32 %v4834, %v4862
    %v4869 = vsub.f32 %v4835, %v4863
    %v4870 = vsub.f32 %v4836, %v4864
    %v4871 = vmul.f32 %v4865, %v4865
    %v4872 = vmul.f32 %v4866, %v4866
    %v4873 = vmul.f32 %v4867, %v4867
    %v4874 = vmul.f32 %v4868, %v4868
    %v4875 = vmul.f32 %v4869, %v4869
    %v4876 = vmul.f32 %v4870, %v4870
    %v4877 = vsel %vm155, %v4871, 0.0
    %4878 = vadd.xlane.f32.xlu0 %v4877
    %v4879 = vpop.xlane.xlu0 %4878
    %v4880 = vsel %vm155, %v4872, 0.0
    %4881 = vadd.xlane.f32.xlu0 %v4880
    %v4882 = vpop.xlane.xlu0 %4881
    %v4883 = vsel %vm155, %v4873, 0.0
    %4884 = vadd.xlane.f32.xlu0 %v4883
    %v4885 = vpop.xlane.xlu0 %4884
    %v4886 = vsel %vm155, %v4874, 0.0
    %4887 = vadd.xlane.f32.xlu0 %v4886
    %v4888 = vpop.xlane.xlu0 %4887
    %v4889 = vsel %vm155, %v4875, 0.0
    %4890 = vadd.xlane.f32.xlu0 %v4889
    %v4891 = vpop.xlane.xlu0 %4890
    %v4892 = vsel %vm155, %v4876, 0.0
    %4893 = vadd.xlane.f32.xlu0 %v4892
    %v4894 = vpop.xlane.xlu0 %4893
    %v4895 = vmul.f32 %v4879, %v1399
    %v4896 = vmul.f32 %v4882, %v1399
    %v4897 = vmul.f32 %v4885, %v1399
    %v4898 = vmul.f32 %v4888, %v1399
    %v4899 = vmul.f32 %v4891, %v1399
    %v4900 = vmul.f32 %v4894, %v1399
    %v4901 = vadd.f32 %v4895, 1e-12
    %v4902 = vadd.f32 %v4896, 1e-12
    %v4903 = vadd.f32 %v4897, 1e-12
    %v4904 = vadd.f32 %v4898, 1e-12
    %v4905 = vadd.f32 %v4899, 1e-12
    %v4906 = vadd.f32 %v4900, 1e-12
    %v4907 = vrsqrt.pop %v4901
    %v4908 = vmul.f32 %v4907, %v4901
    %v4909 = vmul.f32 %v4908, %v4907
    %v4910 = vmul.f32 0.5, %v4909
    %v4911 = vsub.f32 1.5, %v4910
    %v4912 = vmul.f32 %v4907, %v4911
    %vm4913 = vweird.f32 %v4901
    %vm4914 = vweird.f32 %v4907
    %vm4915 = vmor %vm4913, %vm4914
    %v4916 = vsel %vm4915, %v4907, %v4912
    %v4917 = vrsqrt.pop %v4902
    %v4918 = vmul.f32 %v4917, %v4902
    %v4919 = vmul.f32 %v4918, %v4917
    %v4920 = vmul.f32 0.5, %v4919
    %v4921 = vsub.f32 1.5, %v4920
    %v4922 = vmul.f32 %v4917, %v4921
    %vm4923 = vweird.f32 %v4902
    %vm4924 = vweird.f32 %v4917
    %vm4925 = vmor %vm4923, %vm4924
    %v4926 = vsel %vm4925, %v4917, %v4922
    %v4927 = vrsqrt.pop %v4903
    %v4928 = vmul.f32 %v4927, %v4903
    %v4929 = vmul.f32 %v4928, %v4927
    %v4930 = vmul.f32 0.5, %v4929
    %v4931 = vsub.f32 1.5, %v4930
    %v4932 = vmul.f32 %v4927, %v4931
    %vm4933 = vweird.f32 %v4903
    %vm4934 = vweird.f32 %v4927
    %vm4935 = vmor %vm4933, %vm4934
    %v4936 = vsel %vm4935, %v4927, %v4932
    %v4937 = vrsqrt.pop %v4904
    %v4938 = vmul.f32 %v4937, %v4904
    %v4939 = vmul.f32 %v4938, %v4937
    %v4940 = vmul.f32 0.5, %v4939
    %v4941 = vsub.f32 1.5, %v4940
    %v4942 = vmul.f32 %v4937, %v4941
    %vm4943 = vweird.f32 %v4904
    %vm4944 = vweird.f32 %v4937
    %vm4945 = vmor %vm4943, %vm4944
    %v4946 = vsel %vm4945, %v4937, %v4942
    %v4947 = vrsqrt.pop %v4905
    %v4948 = vmul.f32 %v4947, %v4905
    %v4949 = vmul.f32 %v4948, %v4947
    %v4950 = vmul.f32 0.5, %v4949
    %v4951 = vsub.f32 1.5, %v4950
    %v4952 = vmul.f32 %v4947, %v4951
    %vm4953 = vweird.f32 %v4905
    %vm4954 = vweird.f32 %v4947
    %vm4955 = vmor %vm4953, %vm4954
    %v4956 = vsel %vm4955, %v4947, %v4952
    %v4957 = vrsqrt.pop %v4906
    %v4958 = vmul.f32 %v4957, %v4906
    %v4959 = vmul.f32 %v4958, %v4957
    %v4960 = vmul.f32 0.5, %v4959
    %v4961 = vsub.f32 1.5, %v4960
    %v4962 = vmul.f32 %v4957, %v4961
    %vm4963 = vweird.f32 %v4906
    %vm4964 = vweird.f32 %v4957
    %vm4965 = vmor %vm4963, %vm4964
    %v4966 = vsel %vm4965, %v4957, %v4962
    %v4967 = vmul.f32 %v4865, %v4916
    %v4968 = vmul.f32 %v4866, %v4926
    %v4969 = vmul.f32 %v4867, %v4936
    %v4970 = vmul.f32 %v4868, %v4946
    %v4971 = vmul.f32 %v4869, %v4956
    %v4972 = vmul.f32 %v4870, %v4966
    %v4974 = vperm.slane %v4838, 0
    %v4976 = vmul.f32 %v4967, %v4974
    %v4977 = vmul.f32 %v4968, %v4974
    %v4978 = vmul.f32 %v4969, %v4974
    %v4979 = vmul.f32 %v4970, %v4974
    %v4980 = vmul.f32 %v4971, %v4974
    %v4981 = vmul.f32 %v4972, %v4974
    %v4983 = vperm.slane %v4840, 0
    %v4985 = vadd.f32 %v4976, %v4983
    %v4986 = vadd.f32 %v4977, %v4983
    %v4987 = vadd.f32 %v4978, %v4983
    %v4988 = vadd.f32 %v4979, %v4983
    %v4989 = vadd.f32 %v4980, %v4983
    %v4990 = vadd.f32 %v4981, %v4983
    %s4991 = scalar_lea.vmem %s33, 64
    %v4992 = vld [vmem:[%s4991] sm:$0xff]
    %v4993 = vld [vmem:[%s4991 + $0x8] sm:$0xff]
    %v4994 = vld [vmem:[%s4991 + $0x10] sm:$0xff]
    %v4995 = vld [vmem:[%s4991 + $0x18] sm:$0xff]
    %s4996 = scalar_lea.vmem %s35, 2
    %v4997 = vld [vmem:[%s4996] sm:$0x1]
    %v4999 = vperm.slane %v4997, 0
    %v5002 = vsel %vm155, %v4985, 0
    %v5005 = vsel %vm155, %v4986, 0
    %v5008 = vsel %vm155, %v4987, 0
    %v5011 = vsel %vm155, %v4988, 0
    %v5014 = vsel %vm155, %v4989, 0
    %v5017 = vsel %vm155, %v4990, 0
    %5019 = vmatpush.msra.mxu0 0.0
    %5020 = vmatpush.msra.mxu0 0.0
    %5021 = vmatpush.msra.mxu0 0.0
    %5022 = vmatpush.msra.mxu0 0.0
    %5023 = vmatpush.msra.mxu0 0.0
    %5024 = vmatpush.msra.mxu0 0.0
    %5025 = vmatpush.msra.mxu0 0.0
    %5026 = vmatpush.msra.mxu0 0.0
    %5027 = vmatpush.msra.mxu0 0.0
    %5028 = vmatpush.msra.mxu0 0.0
    %5029 = vmatpush.msra.mxu0 0.0
    %5030 = vmatpush.msra.mxu0 0.0
    %5031 = vmatpush.msra.mxu0 %v4995
    %5032 = vmatpush.msra.mxu0 %v4994
    %5033 = vmatpush.msra.mxu0 %v4993
    %5034 = vmatpush.msra.mxu0 %v4992
    %5035 = vmatmul.f32.gmra.mxu0 %v5002
    %v5036 = vpop.f32.mrf.mxu0
    %v5037 = vadd.f32 %v4999, %v5036
    %5038 = vmatmul.f32.gmra.mxu0 %v5005
    %v5039 = vpop.f32.mrf.mxu0
    %v5040 = vadd.f32 %v4999, %v5039
    %5041 = vmatmul.f32.gmra.mxu0 %v5008
    %v5042 = vpop.f32.mrf.mxu0
    %v5043 = vadd.f32 %v4999, %v5042
    %5044 = vmatmul.f32.gmra.mxu0 %v5011
    %v5045 = vpop.f32.mrf.mxu0
    %v5046 = vadd.f32 %v4999, %v5045
    %5047 = vmatmul.f32.gmra.mxu0 %v5014
    %v5048 = vpop.f32.mrf.mxu0
    %v5049 = vadd.f32 %v4999, %v5048
    %5050 = vmatmul.f32.gmra.mxu0 %v5017
    %v5051 = vpop.f32.mrf.mxu0
    %v5052 = vadd.f32 %v4999, %v5051
    %5053 = vdwg.mxu0
    %v5054 = vmul.f32 %v5037, %v5037
    %v5055 = vmul.f32 %v5040, %v5040
    %v5056 = vmul.f32 %v5043, %v5043
    %v5057 = vmul.f32 %v5046, %v5046
    %v5058 = vmul.f32 %v5049, %v5049
    %v5059 = vmul.f32 %v5052, %v5052
    %v5060 = vmul.f32 %v5037, %v5054
    %v5061 = vmul.f32 %v5040, %v5055
    %v5062 = vmul.f32 %v5043, %v5056
    %v5063 = vmul.f32 %v5046, %v5057
    %v5064 = vmul.f32 %v5049, %v5058
    %v5065 = vmul.f32 %v5052, %v5059
    %v5066 = vmul.f32 %v5060, 0.044715
    %v5067 = vmul.f32 %v5061, 0.044715
    %v5068 = vmul.f32 %v5062, 0.044715
    %v5069 = vmul.f32 %v5063, 0.044715
    %v5070 = vmul.f32 %v5064, 0.044715
    %v5071 = vmul.f32 %v5065, 0.044715
    %v5072 = vadd.f32 %v5037, %v5066
    %v5073 = vadd.f32 %v5040, %v5067
    %v5074 = vadd.f32 %v5043, %v5068
    %v5075 = vadd.f32 %v5046, %v5069
    %v5076 = vadd.f32 %v5049, %v5070
    %v5077 = vadd.f32 %v5052, %v5071
    %v5078 = vmul.f32 %v5072, 0.7978846
    %v5079 = vmul.f32 %v5073, 0.7978846
    %v5080 = vmul.f32 %v5074, 0.7978846
    %v5081 = vmul.f32 %v5075, 0.7978846
    %v5082 = vmul.f32 %v5076, 0.7978846
    %v5083 = vmul.f32 %v5077, 0.7978846
    %v5084 = vtanh.pop %v5078
    %v5085 = vtanh.pop %v5079
    %v5086 = vtanh.pop %v5080
    %v5087 = vtanh.pop %v5081
    %v5088 = vtanh.pop %v5082
    %v5089 = vtanh.pop %v5083
    %v5090 = vadd.f32 %v5084, 1.0
    %v5091 = vadd.f32 %v5085, 1.0
    %v5092 = vadd.f32 %v5086, 1.0
    %v5093 = vadd.f32 %v5087, 1.0
    %v5094 = vadd.f32 %v5088, 1.0
    %v5095 = vadd.f32 %v5089, 1.0
    %v5096 = vmul.f32 %v5090, 0.5
    %v5097 = vmul.f32 %v5091, 0.5
    %v5098 = vmul.f32 %v5092, 0.5
    %v5099 = vmul.f32 %v5093, 0.5
    %v5100 = vmul.f32 %v5094, 0.5
    %v5101 = vmul.f32 %v5095, 0.5
    %v5102 = vmul.f32 %v5037, %v5096
    %v5103 = vmul.f32 %v5040, %v5097
    %v5104 = vmul.f32 %v5043, %v5098
    %v5105 = vmul.f32 %v5046, %v5099
    %v5106 = vmul.f32 %v5049, %v5100
    %v5107 = vmul.f32 %v5052, %v5101
    %s5108 = scalar_lea.vmem %s37, 128
    %v5109 = vld [vmem:[%s5108] sm:$0xff]
    %v5110 = vld [vmem:[%s5108 + $0x8] sm:$0xff]
    %v5111 = vld [vmem:[%s5108 + $0x10] sm:$0xff]
    %v5112 = vld [vmem:[%s5108 + $0x18] sm:$0xff]
    %v5113 = vld [vmem:[%s5108 + $0x20] sm:$0xff]
    %v5114 = vld [vmem:[%s5108 + $0x28] sm:$0xff]
    %v5115 = vld [vmem:[%s5108 + $0x30] sm:$0xff]
    %v5116 = vld [vmem:[%s5108 + $0x38] sm:$0xff]
    %s5117 = scalar_lea.vmem %s39, 2
    %v5118 = vld [vmem:[%s5117] sm:$0x1]
    %v5120 = vperm.slane %v5118, 0
    %v5123 = vsel %vm1659, %v5102, 0
    %v5126 = vsel %vm1659, %v5103, 0
    %v5129 = vsel %vm1659, %v5104, 0
    %v5132 = vsel %vm1659, %v5105, 0
    %v5135 = vsel %vm1659, %v5106, 0
    %v5138 = vsel %vm1659, %v5107, 0
    %5140 = vmatpush.msra.mxu0 0.0
    %5141 = vmatpush.msra.mxu0 0.0
    %5142 = vmatpush.msra.mxu0 0.0
    %5143 = vmatpush.msra.mxu0 0.0
    %5144 = vmatpush.msra.mxu0 0.0
    %5145 = vmatpush.msra.mxu0 0.0
    %5146 = vmatpush.msra.mxu0 0.0
    %5147 = vmatpush.msra.mxu0 0.0
    %5148 = vmatpush.msra.mxu0 %v5116
    %5149 = vmatpush.msra.mxu0 %v5115
    %5150 = vmatpush.msra.mxu0 %v5114
    %5151 = vmatpush.msra.mxu0 %v5113
    %5152 = vmatpush.msra.mxu0 %v5112
    %5153 = vmatpush.msra.mxu0 %v5111
    %5154 = vmatpush.msra.mxu0 %v5110
    %5155 = vmatpush.msra.mxu0 %v5109
    %5156 = vmatmul.f32.gmra.mxu0 %v5123
    %v5157 = vpop.f32.mrf.mxu0
    %v5158 = vadd.f32 %v5120, %v5157
    %5159 = vmatmul.f32.gmra.mxu0 %v5126
    %v5160 = vpop.f32.mrf.mxu0
    %v5161 = vadd.f32 %v5120, %v5160
    %5162 = vmatmul.f32.gmra.mxu0 %v5129
    %v5163 = vpop.f32.mrf.mxu0
    %v5164 = vadd.f32 %v5120, %v5163
    %5165 = vmatmul.f32.gmra.mxu0 %v5132
    %v5166 = vpop.f32.mrf.mxu0
    %v5167 = vadd.f32 %v5120, %v5166
    %5168 = vmatmul.f32.gmra.mxu0 %v5135
    %v5169 = vpop.f32.mrf.mxu0
    %v5170 = vadd.f32 %v5120, %v5169
    %5171 = vmatmul.f32.gmra.mxu0 %v5138
    %v5172 = vpop.f32.mrf.mxu0
    %v5173 = vadd.f32 %v5120, %v5172
    %5174 = vdwg.mxu0
    %v5175 = vadd.f32 %v4985, %v5158
    %v5176 = vadd.f32 %v4986, %v5161
    %v5177 = vadd.f32 %v4987, %v5164
    %v5178 = vadd.f32 %v4988, %v5167
    %v5179 = vadd.f32 %v4989, %v5170
    %v5180 = vadd.f32 %v4990, %v5173
    %s5181 = scalar_lea.vmem %s41, 2
    %v5182 = vld [vmem:[%s5181] sm:$0x1]
    %s5183 = scalar_lea.vmem %s43, 2
    %v5184 = vld [vmem:[%s5183] sm:$0x1]
    %v5185 = vsel %vm155, %v5175, 0.0
    %5186 = vadd.xlane.f32.xlu0 %v5185
    %v5187 = vpop.xlane.xlu0 %5186
    %v5188 = vsel %vm155, %v5176, 0.0
    %5189 = vadd.xlane.f32.xlu0 %v5188
    %v5190 = vpop.xlane.xlu0 %5189
    %v5191 = vsel %vm155, %v5177, 0.0
    %5192 = vadd.xlane.f32.xlu0 %v5191
    %v5193 = vpop.xlane.xlu0 %5192
    %v5194 = vsel %vm155, %v5178, 0.0
    %5195 = vadd.xlane.f32.xlu0 %v5194
    %v5196 = vpop.xlane.xlu0 %5195
    %v5197 = vsel %vm155, %v5179, 0.0
    %5198 = vadd.xlane.f32.xlu0 %v5197
    %v5199 = vpop.xlane.xlu0 %5198
    %v5200 = vsel %vm155, %v5180, 0.0
    %5201 = vadd.xlane.f32.xlu0 %v5200
    %v5202 = vpop.xlane.xlu0 %5201
    %v5203 = vmul.f32 %v5187, %v1399
    %v5204 = vmul.f32 %v5190, %v1399
    %v5205 = vmul.f32 %v5193, %v1399
    %v5206 = vmul.f32 %v5196, %v1399
    %v5207 = vmul.f32 %v5199, %v1399
    %v5208 = vmul.f32 %v5202, %v1399
    %v5209 = vsub.f32 %v5175, %v5203
    %v5210 = vsub.f32 %v5176, %v5204
    %v5211 = vsub.f32 %v5177, %v5205
    %v5212 = vsub.f32 %v5178, %v5206
    %v5213 = vsub.f32 %v5179, %v5207
    %v5214 = vsub.f32 %v5180, %v5208
    %v5215 = vmul.f32 %v5209, %v5209
    %v5216 = vmul.f32 %v5210, %v5210
    %v5217 = vmul.f32 %v5211, %v5211
    %v5218 = vmul.f32 %v5212, %v5212
    %v5219 = vmul.f32 %v5213, %v5213
    %v5220 = vmul.f32 %v5214, %v5214
    %v5221 = vsel %vm155, %v5215, 0.0
    %5222 = vadd.xlane.f32.xlu0 %v5221
    %v5223 = vpop.xlane.xlu0 %5222
    %v5224 = vsel %vm155, %v5216, 0.0
    %5225 = vadd.xlane.f32.xlu0 %v5224
    %v5226 = vpop.xlane.xlu0 %5225
    %v5227 = vsel %vm155, %v5217, 0.0
    %5228 = vadd.xlane.f32.xlu0 %v5227
    %v5229 = vpop.xlane.xlu0 %5228
    %v5230 = vsel %vm155, %v5218, 0.0
    %5231 = vadd.xlane.f32.xlu0 %v5230
    %v5232 = vpop.xlane.xlu0 %5231
    %v5233 = vsel %vm155, %v5219, 0.0
    %5234 = vadd.xlane.f32.xlu0 %v5233
    %v5235 = vpop.xlane.xlu0 %5234
    %v5236 = vsel %vm155, %v5220, 0.0
    %5237 = vadd.xlane.f32.xlu0 %v5236
    %v5238 = vpop.xlane.xlu0 %5237
    %v5239 = vmul.f32 %v5223, %v1399
    %v5240 = vmul.f32 %v5226, %v1399
    %v5241 = vmul.f32 %v5229, %v1399
    %v5242 = vmul.f32 %v5232, %v1399
    %v5243 = vmul.f32 %v5235, %v1399
    %v5244 = vmul.f32 %v5238, %v1399
    %v5245 = vadd.f32 %v5239, 1e-12
    %v5246 = vadd.f32 %v5240, 1e-12
    %v5247 = vadd.f32 %v5241, 1e-12
    %v5248 = vadd.f32 %v5242, 1e-12
    %v5249 = vadd.f32 %v5243, 1e-12
    %v5250 = vadd.f32 %v5244, 1e-12
    %v5251 = vrsqrt.pop %v5245
    %v5252 = vmul.f32 %v5251, %v5245
    %v5253 = vmul.f32 %v5252, %v5251
    %v5254 = vmul.f32 0.5, %v5253
    %v5255 = vsub.f32 1.5, %v5254
    %v5256 = vmul.f32 %v5251, %v5255
    %vm5257 = vweird.f32 %v5245
    %vm5258 = vweird.f32 %v5251
    %vm5259 = vmor %vm5257, %vm5258
    %v5260 = vsel %vm5259, %v5251, %v5256
    %v5261 = vrsqrt.pop %v5246
    %v5262 = vmul.f32 %v5261, %v5246
    %v5263 = vmul.f32 %v5262, %v5261
    %v5264 = vmul.f32 0.5, %v5263
    %v5265 = vsub.f32 1.5, %v5264
    %v5266 = vmul.f32 %v5261, %v5265
    %vm5267 = vweird.f32 %v5246
    %vm5268 = vweird.f32 %v5261
    %vm5269 = vmor %vm5267, %vm5268
    %v5270 = vsel %vm5269, %v5261, %v5266
    %v5271 = vrsqrt.pop %v5247
    %v5272 = vmul.f32 %v5271, %v5247
    %v5273 = vmul.f32 %v5272, %v5271
    %v5274 = vmul.f32 0.5, %v5273
    %v5275 = vsub.f32 1.5, %v5274
    %v5276 = vmul.f32 %v5271, %v5275
    %vm5277 = vweird.f32 %v5247
    %vm5278 = vweird.f32 %v5271
    %vm5279 = vmor %vm5277, %vm5278
    %v5280 = vsel %vm5279, %v5271, %v5276
    %v5281 = vrsqrt.pop %v5248
    %v5282 = vmul.f32 %v5281, %v5248
    %v5283 = vmul.f32 %v5282, %v5281
    %v5284 = vmul.f32 0.5, %v5283
    %v5285 = vsub.f32 1.5, %v5284
    %v5286 = vmul.f32 %v5281, %v5285
    %vm5287 = vweird.f32 %v5248
    %vm5288 = vweird.f32 %v5281
    %vm5289 = vmor %vm5287, %vm5288
    %v5290 = vsel %vm5289, %v5281, %v5286
    %v5291 = vrsqrt.pop %v5249
    %v5292 = vmul.f32 %v5291, %v5249
    %v5293 = vmul.f32 %v5292, %v5291
    %v5294 = vmul.f32 0.5, %v5293
    %v5295 = vsub.f32 1.5, %v5294
    %v5296 = vmul.f32 %v5291, %v5295
    %vm5297 = vweird.f32 %v5249
    %vm5298 = vweird.f32 %v5291
    %vm5299 = vmor %vm5297, %vm5298
    %v5300 = vsel %vm5299, %v5291, %v5296
    %v5301 = vrsqrt.pop %v5250
    %v5302 = vmul.f32 %v5301, %v5250
    %v5303 = vmul.f32 %v5302, %v5301
    %v5304 = vmul.f32 0.5, %v5303
    %v5305 = vsub.f32 1.5, %v5304
    %v5306 = vmul.f32 %v5301, %v5305
    %vm5307 = vweird.f32 %v5250
    %vm5308 = vweird.f32 %v5301
    %vm5309 = vmor %vm5307, %vm5308
    %v5310 = vsel %vm5309, %v5301, %v5306
    %v5311 = vmul.f32 %v5209, %v5260
    %v5312 = vmul.f32 %v5210, %v5270
    %v5313 = vmul.f32 %v5211, %v5280
    %v5314 = vmul.f32 %v5212, %v5290
    %v5315 = vmul.f32 %v5213, %v5300
    %v5316 = vmul.f32 %v5214, %v5310
    %v5318 = vperm.slane %v5182, 0
    %v5320 = vmul.f32 %v5311, %v5318
    %v5321 = vmul.f32 %v5312, %v5318
    %v5322 = vmul.f32 %v5313, %v5318
    %v5323 = vmul.f32 %v5314, %v5318
    %v5324 = vmul.f32 %v5315, %v5318
    %v5325 = vmul.f32 %v5316, %v5318
    %v5327 = vperm.slane %v5184, 0
    %v5329 = vadd.f32 %v5320, %v5327
    %v5330 = vadd.f32 %v5321, %v5327
    %v5331 = vadd.f32 %v5322, %v5327
    %v5332 = vadd.f32 %v5323, %v5327
    %v5333 = vadd.f32 %v5324, %v5327
    %v5334 = vadd.f32 %v5325, %v5327
    %v5335 = vadd.f32 %v3603, %v5329
    %v5336 = vadd.f32 %v3604, %v5330
    %v5337 = vadd.f32 %v3605, %v5331
    %v5338 = vadd.f32 %v3606, %v5332
    %v5339 = vadd.f32 %v3607, %v5333
    %v5340 = vadd.f32 %v3608, %v5334
    %s5341 = scalar_lea.vmem %s13, 96
    %v5342 = vld [vmem:[%s5341] sm:$0xff]
    %v5343 = vld [vmem:[%s5341 + $0x8] sm:$0xff]
    %v5344 = vld [vmem:[%s5341 + $0x10] sm:$0xff]
    %v5345 = vld [vmem:[%s5341 + $0x18] sm:$0xff]
    %s5346 = scalar_lea.vmem %s15, 3
    %v5347 = vld [vmem:[%s5346] sm:$0x1]
    %v5349 = vperm.slane %v5347, 0
    %v5352 = vsel %vm155, %v5329, 0
    %v5355 = vsel %vm155, %v5330, 0
    %v5358 = vsel %vm155, %v5331, 0
    %v5361 = vsel %vm155, %v5332, 0
    %v5364 = vsel %vm155, %v5333, 0
    %v5367 = vsel %vm155, %v5334, 0
    %5369 = vmatpush.msra.mxu0 0.0
    %5370 = vmatpush.msra.mxu0 0.0
    %5371 = vmatpush.msra.mxu0 0.0
    %5372 = vmatpush.msra.mxu0 0.0
    %5373 = vmatpush.msra.mxu0 0.0
    %5374 = vmatpush.msra.mxu0 0.0
    %5375 = vmatpush.msra.mxu0 0.0
    %5376 = vmatpush.msra.mxu0 0.0
    %5377 = vmatpush.msra.mxu0 0.0
    %5378 = vmatpush.msra.mxu0 0.0
    %5379 = vmatpush.msra.mxu0 0.0
    %5380 = vmatpush.msra.mxu0 0.0
    %5381 = vmatpush.msra.mxu0 %v5345
    %5382 = vmatpush.msra.mxu0 %v5344
    %5383 = vmatpush.msra.mxu0 %v5343
    %5384 = vmatpush.msra.mxu0 %v5342
    %5385 = vmatmul.f32.gmra.mxu0 %v5352
    %v5386 = vpop.f32.mrf.mxu0
    %v5387 = vadd.f32 %v5349, %v5386
    %5388 = vmatmul.f32.gmra.mxu0 %v5355
    %v5389 = vpop.f32.mrf.mxu0
    %v5390 = vadd.f32 %v5349, %v5389
    %5391 = vmatmul.f32.gmra.mxu0 %v5358
    %v5392 = vpop.f32.mrf.mxu0
    %v5393 = vadd.f32 %v5349, %v5392
    %5394 = vmatmul.f32.gmra.mxu0 %v5361
    %v5395 = vpop.f32.mrf.mxu0
    %v5396 = vadd.f32 %v5349, %v5395
    %5397 = vmatmul.f32.gmra.mxu0 %v5364
    %v5398 = vpop.f32.mrf.mxu0
    %v5399 = vadd.f32 %v5349, %v5398
    %5400 = vmatmul.f32.gmra.mxu0 %v5367
    %v5401 = vpop.f32.mrf.mxu0
    %v5402 = vadd.f32 %v5349, %v5401
    %5403 = vdwg.mxu0
    %s5404 = scalar_lea.vmem %s17, 96
    %v5405 = vld [vmem:[%s5404] sm:$0xff]
    %v5406 = vld [vmem:[%s5404 + $0x8] sm:$0xff]
    %v5407 = vld [vmem:[%s5404 + $0x10] sm:$0xff]
    %v5408 = vld [vmem:[%s5404 + $0x18] sm:$0xff]
    %s5409 = scalar_lea.vmem %s19, 3
    %v5410 = vld [vmem:[%s5409] sm:$0x1]
    %v5412 = vperm.slane %v5410, 0
    %5414 = vmatpush.msra.mxu0 0.0
    %5415 = vmatpush.msra.mxu0 0.0
    %5416 = vmatpush.msra.mxu0 0.0
    %5417 = vmatpush.msra.mxu0 0.0
    %5418 = vmatpush.msra.mxu0 0.0
    %5419 = vmatpush.msra.mxu0 0.0
    %5420 = vmatpush.msra.mxu0 0.0
    %5421 = vmatpush.msra.mxu0 0.0
    %5422 = vmatpush.msra.mxu0 0.0
    %5423 = vmatpush.msra.mxu0 0.0
    %5424 = vmatpush.msra.mxu0 0.0
    %5425 = vmatpush.msra.mxu0 0.0
    %5426 = vmatpush.msra.mxu0 %v5408
    %5427 = vmatpush.msra.mxu0 %v5407
    %5428 = vmatpush.msra.mxu0 %v5406
    %5429 = vmatpush.msra.mxu0 %v5405
    %5430 = vmatmul.f32.gmra.mxu0 %v5352
    %v5431 = vpop.f32.mrf.mxu0
    %v5432 = vadd.f32 %v5412, %v5431
    %5433 = vmatmul.f32.gmra.mxu0 %v5355
    %v5434 = vpop.f32.mrf.mxu0
    %v5435 = vadd.f32 %v5412, %v5434
    %5436 = vmatmul.f32.gmra.mxu0 %v5358
    %v5437 = vpop.f32.mrf.mxu0
    %v5438 = vadd.f32 %v5412, %v5437
    %5439 = vmatmul.f32.gmra.mxu0 %v5361
    %v5440 = vpop.f32.mrf.mxu0
    %v5441 = vadd.f32 %v5412, %v5440
    %5442 = vmatmul.f32.gmra.mxu0 %v5364
    %v5443 = vpop.f32.mrf.mxu0
    %v5444 = vadd.f32 %v5412, %v5443
    %5445 = vmatmul.f32.gmra.mxu0 %v5367
    %v5446 = vpop.f32.mrf.mxu0
    %v5447 = vadd.f32 %v5412, %v5446
    %5448 = vdwg.mxu0
    %s5449 = scalar_lea.vmem %s21, 96
    %v5450 = vld [vmem:[%s5449] sm:$0xff]
    %v5451 = vld [vmem:[%s5449 + $0x8] sm:$0xff]
    %v5452 = vld [vmem:[%s5449 + $0x10] sm:$0xff]
    %v5453 = vld [vmem:[%s5449 + $0x18] sm:$0xff]
    %s5454 = scalar_lea.vmem %s23, 3
    %v5455 = vld [vmem:[%s5454] sm:$0x1]
    %v5457 = vperm.slane %v5455, 0
    %5459 = vmatpush.msra.mxu0 0.0
    %5460 = vmatpush.msra.mxu0 0.0
    %5461 = vmatpush.msra.mxu0 0.0
    %5462 = vmatpush.msra.mxu0 0.0
    %5463 = vmatpush.msra.mxu0 0.0
    %5464 = vmatpush.msra.mxu0 0.0
    %5465 = vmatpush.msra.mxu0 0.0
    %5466 = vmatpush.msra.mxu0 0.0
    %5467 = vmatpush.msra.mxu0 0.0
    %5468 = vmatpush.msra.mxu0 0.0
    %5469 = vmatpush.msra.mxu0 0.0
    %5470 = vmatpush.msra.mxu0 0.0
    %5471 = vmatpush.msra.mxu0 %v5453
    %5472 = vmatpush.msra.mxu0 %v5452
    %5473 = vmatpush.msra.mxu0 %v5451
    %5474 = vmatpush.msra.mxu0 %v5450
    %5475 = vmatmul.f32.gmra.mxu0 %v5352
    %v5476 = vpop.f32.mrf.mxu0
    %v5477 = vadd.f32 %v5457, %v5476
    %5478 = vmatmul.f32.gmra.mxu0 %v5355
    %v5479 = vpop.f32.mrf.mxu0
    %v5480 = vadd.f32 %v5457, %v5479
    %5481 = vmatmul.f32.gmra.mxu0 %v5358
    %v5482 = vpop.f32.mrf.mxu0
    %v5483 = vadd.f32 %v5457, %v5482
    %5484 = vmatmul.f32.gmra.mxu0 %v5361
    %v5485 = vpop.f32.mrf.mxu0
    %v5486 = vadd.f32 %v5457, %v5485
    %5487 = vmatmul.f32.gmra.mxu0 %v5364
    %v5488 = vpop.f32.mrf.mxu0
    %v5489 = vadd.f32 %v5457, %v5488
    %5490 = vmatmul.f32.gmra.mxu0 %v5367
    %v5491 = vpop.f32.mrf.mxu0
    %v5492 = vadd.f32 %v5457, %v5491
    %5493 = vdwg.mxu0
    %v5495 = vsel %vm295, %v5387, 0
    %v5498 = vsel %vm295, %v5390, 0
    %v5501 = vsel %vm295, %v5393, 0
    %v5504 = vsel %vm295, %v5396, 0
    %v5507 = vsel %vm295, %v5399, 0
    %v5510 = vsel %vm295, %v5402, 0
    %v5513 = vsel %vm295, %v5432, 0
    %v5516 = vsel %vm295, %v5435, 0
    %v5519 = vsel %vm295, %v5438, 0
    %v5522 = vsel %vm295, %v5441, 0
    %v5525 = vsel %vm295, %v5444, 0
    %v5528 = vsel %vm295, %v5447, 0
    %5530 = vmatpush.xpose.msra.mxu0 0.0
    %5531 = vmatpush.xpose.msra.mxu0 0.0
    %5532 = vmatpush.xpose.msra.mxu0 0.0
    %5533 = vmatpush.xpose.msra.mxu0 0.0
    %5534 = vmatpush.xpose.msra.mxu0 0.0
    %5535 = vmatpush.xpose.msra.mxu0 0.0
    %5536 = vmatpush.xpose.msra.mxu0 0.0
    %5537 = vmatpush.xpose.msra.mxu0 0.0
    %5538 = vmatpush.xpose.msra.mxu0 0.0
    %5539 = vmatpush.xpose.msra.mxu0 0.0
    %5540 = vmatpush.xpose.msra.mxu0 %v5528
    %5541 = vmatpush.xpose.msra.mxu0 %v5525
    %5542 = vmatpush.xpose.msra.mxu0 %v5522
    %5543 = vmatpush.xpose.msra.mxu0 %v5519
    %5544 = vmatpush.xpose.msra.mxu0 %v5516
    %5545 = vmatpush.xpose.msra.mxu0 %v5513
    %5546 = vmatmul.f32.gmra.mxu0 %v5495
    %v5547 = vpop.f32.mrf.mxu0
    %v5548 = vadd.f32 0.0, %v5547
    %5549 = vmatmul.f32.gmra.mxu0 %v5498
    %v5550 = vpop.f32.mrf.mxu0
    %v5551 = vadd.f32 0.0, %v5550
    %5552 = vmatmul.f32.gmra.mxu0 %v5501
    %v5553 = vpop.f32.mrf.mxu0
    %v5554 = vadd.f32 0.0, %v5553
    %5555 = vmatmul.f32.gmra.mxu0 %v5504
    %v5556 = vpop.f32.mrf.mxu0
    %v5557 = vadd.f32 0.0, %v5556
    %5558 = vmatmul.f32.gmra.mxu0 %v5507
    %v5559 = vpop.f32.mrf.mxu0
    %v5560 = vadd.f32 0.0, %v5559
    %5561 = vmatmul.f32.gmra.mxu0 %v5510
    %v5562 = vpop.f32.mrf.mxu0
    %v5563 = vadd.f32 0.0, %v5562
    %5564 = vdwg.mxu0
    %v5565 = vmul.f32 %v5548, 0.35355338
    %v5566 = vmul.f32 %v5551, 0.35355338
    %v5567 = vmul.f32 %v5554, 0.35355338
    %v5568 = vmul.f32 %v5557, 0.35355338
    %v5569 = vmul.f32 %v5560, 0.35355338
    %v5570 = vmul.f32 %v5563, 0.35355338
    %v5571 = vadd.f32 %v5565, %v141
    %v5572 = vadd.f32 %v5566, %v142
    %v5573 = vadd.f32 %v5567, %v143
    %v5574 = vadd.f32 %v5568, %v144
    %v5575 = vadd.f32 %v5569, %v145
    %v5576 = vadd.f32 %v5570, %v146
    %v5577 = vsel %vm379, %v5571, -inf
    %5578 = vmax.xlane.f32.xlu0 %v5577
    %v5579 = vpop.xlane.xlu0 %5578
    %v5580 = vsel %vm379, %v5572, -inf
    %5581 = vmax.xlane.f32.xlu0 %v5580
    %v5582 = vpop.xlane.xlu0 %5581
    %v5583 = vsel %vm379, %v5573, -inf
    %5584 = vmax.xlane.f32.xlu0 %v5583
    %v5585 = vpop.xlane.xlu0 %5584
    %v5586 = vsel %vm379, %v5574, -inf
    %5587 = vmax.xlane.f32.xlu0 %v5586
    %v5588 = vpop.xlane.xlu0 %5587
    %v5589 = vsel %vm379, %v5575, -inf
    %5590 = vmax.xlane.f32.xlu0 %v5589
    %v5591 = vpop.xlane.xlu0 %5590
    %v5592 = vsel %vm379, %v5576, -inf
    %5593 = vmax.xlane.f32.xlu0 %v5592
    %v5594 = vpop.xlane.xlu0 %5593
    %v5595 = vsub.f32 %v5571, %v5579
    %v5596 = vsub.f32 %v5572, %v5582
    %v5597 = vsub.f32 %v5573, %v5585
    %v5598 = vsub.f32 %v5574, %v5588
    %v5599 = vsub.f32 %v5575, %v5591
    %v5600 = vsub.f32 %v5576, %v5594
    %v5601 = vmul.f32 %v5595, 1.442695
    %v5602 = vpow.pop %v5601
    %v5603 = vmul.f32 %v5596, 1.442695
    %v5604 = vpow.pop %v5603
    %v5605 = vmul.f32 %v5597, 1.442695
    %v5606 = vpow.pop %v5605
    %v5607 = vmul.f32 %v5598, 1.442695
    %v5608 = vpow.pop %v5607
    %v5609 = vmul.f32 %v5599, 1.442695
    %v5610 = vpow.pop %v5609
    %v5611 = vmul.f32 %v5600, 1.442695
    %v5612 = vpow.pop %v5611
    %v5613 = vsel %vm379, %v5602, 0.0
    %5614 = vadd.xlane.f32.xlu0 %v5613
    %v5615 = vpop.xlane.xlu0 %5614
    %v5616 = vsel %vm379, %v5604, 0.0
    %5617 = vadd.xlane.f32.xlu0 %v5616
    %v5618 = vpop.xlane.xlu0 %5617
    %v5619 = vsel %vm379, %v5606, 0.0
    %5620 = vadd.xlane.f32.xlu0 %v5619
    %v5621 = vpop.xlane.xlu0 %5620
    %v5622 = vsel %vm379, %v5608, 0.0
    %5623 = vadd.xlane.f32.xlu0 %v5622
    %v5624 = vpop.xlane.xlu0 %5623
    %v5625 = vsel %vm379, %v5610, 0.0
    %5626 = vadd.xlane.f32.xlu0 %v5625
    %v5627 = vpop.xlane.xlu0 %5626
    %v5628 = vsel %vm379, %v5612, 0.0
    %5629 = vadd.xlane.f32.xlu0 %v5628
    %v5630 = vpop.xlane.xlu0 %5629
    %v5631 = vrcp.pop %v5615
    %v5632 = vrcp.pop %v5618
    %v5633 = vrcp.pop %v5621
    %v5634 = vrcp.pop %v5624
    %v5635 = vrcp.pop %v5627
    %v5636 = vrcp.pop %v5630
    %v5637 = vmul.f32 %v5602, %v5631
    %v5638 = vmul.f32 %v5604, %v5632
    %v5639 = vmul.f32 %v5606, %v5633
    %v5640 = vmul.f32 %v5608, %v5634
    %v5641 = vmul.f32 %v5610, %v5635
    %v5642 = vmul.f32 %v5612, %v5636
    %v5644 = vsel %vm379, %v5637, 0
    %v5647 = vsel %vm379, %v5638, 0
    %v5650 = vsel %vm379, %v5639, 0
    %v5653 = vsel %vm379, %v5640, 0
    %v5656 = vsel %vm379, %v5641, 0
    %v5659 = vsel %vm379, %v5642, 0
    %5661 = vmatpush.msra.mxu0 0.0
    %5662 = vmatpush.msra.mxu0 0.0
    %5663 = vmatpush.msra.mxu0 0.0
    %5664 = vmatpush.msra.mxu0 0.0
    %5665 = vmatpush.msra.mxu0 0.0
    %5666 = vmatpush.msra.mxu0 0.0
    %5667 = vmatpush.msra.mxu0 0.0
    %5668 = vmatpush.msra.mxu0 0.0
    %5669 = vmatpush.msra.mxu0 0.0
    %5670 = vmatpush.msra.mxu0 0.0
    %5671 = vmatpush.msra.mxu0 %v5492
    %5672 = vmatpush.msra.mxu0 %v5489
    %5673 = vmatpush.msra.mxu0 %v5486
    %5674 = vmatpush.msra.mxu0 %v5483
    %5675 = vmatpush.msra.mxu0 %v5480
    %5676 = vmatpush.msra.mxu0 %v5477
    %5677 = vmatmul.f32.gmra.mxu0 %v5644
    %v5678 = vpop.f32.mrf.mxu0
    %v5679 = vadd.f32 0.0, %v5678
    %5680 = vmatmul.f32.gmra.mxu0 %v5647
    %v5681 = vpop.f32.mrf.mxu0
    %v5682 = vadd.f32 0.0, %v5681
    %5683 = vmatmul.f32.gmra.mxu0 %v5650
    %v5684 = vpop.f32.mrf.mxu0
    %v5685 = vadd.f32 0.0, %v5684
    %5686 = vmatmul.f32.gmra.mxu0 %v5653
    %v5687 = vpop.f32.mrf.mxu0
    %v5688 = vadd.f32 0.0, %v5687
    %5689 = vmatmul.f32.gmra.mxu0 %v5656
    %v5690 = vpop.f32.mrf.mxu0
    %v5691 = vadd.f32 0.0, %v5690
    %5692 = vmatmul.f32.gmra.mxu0 %v5659
    %v5693 = vpop.f32.mrf.mxu0
    %v5694 = vadd.f32 0.0, %v5693
    %5695 = vdwg.mxu0
    %5696 = vst.msk [vmem:[#allocation2] sm:$0xff] %vm295, %v5679
    %5697 = vst.msk [vmem:[#allocation2 + $0x8] sm:$0xff] %vm295, %v5682
    %5698 = vst.msk [vmem:[#allocation2 + $0x10] sm:$0xff] %vm295, %v5685
    %5699 = vst.msk [vmem:[#allocation2 + $0x18] sm:$0xff] %vm295, %v5688
    %5700 = vst.msk [vmem:[#allocation2 + $0x20] sm:$0xff] %vm295, %v5691
    %5701 = vst.msk [vmem:[#allocation2 + $0x28] sm:$0xff] %vm295, %v5694
    %5702 = vrot.lane.b32.xlu0 %v5387, 120
    %v5703 = vpop.permute.xlu0 %5702
    %5704 = vrot.lane.b32.xlu0 %v5390, 120
    %v5705 = vpop.permute.xlu0 %5704
    %5706 = vrot.lane.b32.xlu0 %v5393, 120
    %v5707 = vpop.permute.xlu0 %5706
    %5708 = vrot.lane.b32.xlu0 %v5396, 120
    %v5709 = vpop.permute.xlu0 %5708
    %5710 = vrot.lane.b32.xlu0 %v5399, 120
    %v5711 = vpop.permute.xlu0 %5710
    %5712 = vrot.lane.b32.xlu0 %v5402, 120
    %v5713 = vpop.permute.xlu0 %5712
    %5714 = vrot.lane.b32.xlu0 %v5432, 120
    %v5715 = vpop.permute.xlu0 %5714
    %5716 = vrot.lane.b32.xlu0 %v5435, 120
    %v5717 = vpop.permute.xlu0 %5716
    %5718 = vrot.lane.b32.xlu0 %v5438, 120
    %v5719 = vpop.permute.xlu0 %5718
    %5720 = vrot.lane.b32.xlu0 %v5441, 120
    %v5721 = vpop.permute.xlu0 %5720
    %5722 = vrot.lane.b32.xlu0 %v5444, 120
    %v5723 = vpop.permute.xlu0 %5722
    %5724 = vrot.lane.b32.xlu0 %v5447, 120
    %v5725 = vpop.permute.xlu0 %5724
    %v5726 = vsel %vm295, %v5703, 0
    %v5728 = vsel %vm295, %v5705, 0
    %v5730 = vsel %vm295, %v5707, 0
    %v5732 = vsel %vm295, %v5709, 0
    %v5734 = vsel %vm295, %v5711, 0
    %v5736 = vsel %vm295, %v5713, 0
    %v5738 = vsel %vm295, %v5715, 0
    %v5740 = vsel %vm295, %v5717, 0
    %v5742 = vsel %vm295, %v5719, 0
    %v5744 = vsel %vm295, %v5721, 0
    %v5746 = vsel %vm295, %v5723, 0
    %v5748 = vsel %vm295, %v5725, 0
    %5750 = vmatpush.xpose.msra.mxu0 0.0
    %5751 = vmatpush.xpose.msra.mxu0 0.0
    %5752 = vmatpush.xpose.msra.mxu0 0.0
    %5753 = vmatpush.xpose.msra.mxu0 0.0
    %5754 = vmatpush.xpose.msra.mxu0 0.0
    %5755 = vmatpush.xpose.msra.mxu0 0.0
    %5756 = vmatpush.xpose.msra.mxu0 0.0
    %5757 = vmatpush.xpose.msra.mxu0 0.0
    %5758 = vmatpush.xpose.msra.mxu0 0.0
    %5759 = vmatpush.xpose.msra.mxu0 0.0
    %5760 = vmatpush.xpose.msra.mxu0 %v5748
    %5761 = vmatpush.xpose.msra.mxu0 %v5746
    %5762 = vmatpush.xpose.msra.mxu0 %v5744
    %5763 = vmatpush.xpose.msra.mxu0 %v5742
    %5764 = vmatpush.xpose.msra.mxu0 %v5740
    %5765 = vmatpush.xpose.msra.mxu0 %v5738
    %5766 = vmatmul.f32.gmra.mxu0 %v5726
    %v5767 = vpop.f32.mrf.mxu0
    %v5768 = vadd.f32 0.0, %v5767
    %5769 = vmatmul.f32.gmra.mxu0 %v5728
    %v5770 = vpop.f32.mrf.mxu0
    %v5771 = vadd.f32 0.0, %v5770
    %5772 = vmatmul.f32.gmra.mxu0 %v5730
    %v5773 = vpop.f32.mrf.mxu0
    %v5774 = vadd.f32 0.0, %v5773
    %5775 = vmatmul.f32.gmra.mxu0 %v5732
    %v5776 = vpop.f32.mrf.mxu0
    %v5777 = vadd.f32 0.0, %v5776
    %5778 = vmatmul.f32.gmra.mxu0 %v5734
    %v5779 = vpop.f32.mrf.mxu0
    %v5780 = vadd.f32 0.0, %v5779
    %5781 = vmatmul.f32.gmra.mxu0 %v5736
    %v5782 = vpop.f32.mrf.mxu0
    %v5783 = vadd.f32 0.0, %v5782
    %5784 = vdwg.mxu0
    %v5785 = vmul.f32 %v5768, 0.35355338
    %v5786 = vmul.f32 %v5771, 0.35355338
    %v5787 = vmul.f32 %v5774, 0.35355338
    %v5788 = vmul.f32 %v5777, 0.35355338
    %v5789 = vmul.f32 %v5780, 0.35355338
    %v5790 = vmul.f32 %v5783, 0.35355338
    %v5791 = vadd.f32 %v5785, %v141
    %v5792 = vadd.f32 %v5786, %v142
    %v5793 = vadd.f32 %v5787, %v143
    %v5794 = vadd.f32 %v5788, %v144
    %v5795 = vadd.f32 %v5789, %v145
    %v5796 = vadd.f32 %v5790, %v146
    %v5797 = vsel %vm379, %v5791, -inf
    %5798 = vmax.xlane.f32.xlu0 %v5797
    %v5799 = vpop.xlane.xlu0 %5798
    %v5800 = vsel %vm379, %v5792, -inf
    %5801 = vmax.xlane.f32.xlu0 %v5800
    %v5802 = vpop.xlane.xlu0 %5801
    %v5803 = vsel %vm379, %v5793, -inf
    %5804 = vmax.xlane.f32.xlu0 %v5803
    %v5805 = vpop.xlane.xlu0 %5804
    %v5806 = vsel %vm379, %v5794, -inf
    %5807 = vmax.xlane.f32.xlu0 %v5806
    %v5808 = vpop.xlane.xlu0 %5807
    %v5809 = vsel %vm379, %v5795, -inf
    %5810 = vmax.xlane.f32.xlu0 %v5809
    %v5811 = vpop.xlane.xlu0 %5810
    %v5812 = vsel %vm379, %v5796, -inf
    %5813 = vmax.xlane.f32.xlu0 %v5812
    %v5814 = vpop.xlane.xlu0 %5813
    %v5815 = vsub.f32 %v5791, %v5799
    %v5816 = vsub.f32 %v5792, %v5802
    %v5817 = vsub.f32 %v5793, %v5805
    %v5818 = vsub.f32 %v5794, %v5808
    %v5819 = vsub.f32 %v5795, %v5811
    %v5820 = vsub.f32 %v5796, %v5814
    %v5821 = vmul.f32 %v5815, 1.442695
    %v5822 = vpow.pop %v5821
    %v5823 = vmul.f32 %v5816, 1.442695
    %v5824 = vpow.pop %v5823
    %v5825 = vmul.f32 %v5817, 1.442695
    %v5826 = vpow.pop %v5825
    %v5827 = vmul.f32 %v5818, 1.442695
    %v5828 = vpow.pop %v5827
    %v5829 = vmul.f32 %v5819, 1.442695
    %v5830 = vpow.pop %v5829
    %v5831 = vmul.f32 %v5820, 1.442695
    %v5832 = vpow.pop %v5831
    %v5833 = vsel %vm379, %v5822, 0.0
    %5834 = vadd.xlane.f32.xlu0 %v5833
    %v5835 = vpop.xlane.xlu0 %5834
    %v5836 = vsel %vm379, %v5824, 0.0
    %5837 = vadd.xlane.f32.xlu0 %v5836
    %v5838 = vpop.xlane.xlu0 %5837
    %v5839 = vsel %vm379, %v5826, 0.0
    %5840 = vadd.xlane.f32.xlu0 %v5839
    %v5841 = vpop.xlane.xlu0 %5840
    %v5842 = vsel %vm379, %v5828, 0.0
    %5843 = vadd.xlane.f32.xlu0 %v5842
    %v5844 = vpop.xlane.xlu0 %5843
    %v5845 = vsel %vm379, %v5830, 0.0
    %5846 = vadd.xlane.f32.xlu0 %v5845
    %v5847 = vpop.xlane.xlu0 %5846
    %v5848 = vsel %vm379, %v5832, 0.0
    %5849 = vadd.xlane.f32.xlu0 %v5848
    %v5850 = vpop.xlane.xlu0 %5849
    %v5851 = vrcp.pop %v5835
    %v5852 = vrcp.pop %v5838
    %v5853 = vrcp.pop %v5841
    %v5854 = vrcp.pop %v5844
    %v5855 = vrcp.pop %v5847
    %v5856 = vrcp.pop %v5850
    %v5857 = vmul.f32 %v5822, %v5851
    %v5858 = vmul.f32 %v5824, %v5852
    %v5859 = vmul.f32 %v5826, %v5853
    %v5860 = vmul.f32 %v5828, %v5854
    %v5861 = vmul.f32 %v5830, %v5855
    %v5862 = vmul.f32 %v5832, %v5856
    %5869 = vrot.lane.b32.xlu0 %v5477, 120
    %v5870 = vpop.permute.xlu0 %5869
    %5871 = vrot.lane.b32.xlu0 %v5480, 120
    %v5872 = vpop.permute.xlu0 %5871
    %5873 = vrot.lane.b32.xlu0 %v5483, 120
    %v5874 = vpop.permute.xlu0 %5873
    %5875 = vrot.lane.b32.xlu0 %v5486, 120
    %v5876 = vpop.permute.xlu0 %5875
    %5877 = vrot.lane.b32.xlu0 %v5489, 120
    %v5878 = vpop.permute.xlu0 %5877
    %5879 = vrot.lane.b32.xlu0 %v5492, 120
    %v5880 = vpop.permute.xlu0 %5879
    %v5888 = vsel %vm379, %v5857, 0
    %v5891 = vsel %vm379, %v5858, 0
    %v5894 = vsel %vm379, %v5859, 0
    %v5897 = vsel %vm379, %v5860, 0
    %v5900 = vsel %vm379, %v5861, 0
    %v5903 = vsel %vm379, %v5862, 0
    %5905 = vmatpush.msra.mxu0 0.0
    %5906 = vmatpush.msra.mxu0 0.0
    %5907 = vmatpush.msra.mxu0 0.0
    %5908 = vmatpush.msra.mxu0 0.0
    %5909 = vmatpush.msra.mxu0 0.0
    %5910 = vmatpush.msra.mxu0 0.0
    %5911 = vmatpush.msra.mxu0 0.0
    %5912 = vmatpush.msra.mxu0 0.0
    %5913 = vmatpush.msra.mxu0 0.0
    %5914 = vmatpush.msra.mxu0 0.0
    %5915 = vmatpush.msra.mxu0 %v5880
    %5916 = vmatpush.msra.mxu0 %v5878
    %5917 = vmatpush.msra.mxu0 %v5876
    %5918 = vmatpush.msra.mxu0 %v5874
    %5919 = vmatpush.msra.mxu0 %v5872
    %5920 = vmatpush.msra.mxu0 %v5870
    %5921 = vmatmul.f32.gmra.mxu0 %v5888
    %v5922 = vpop.f32.mrf.mxu0
    %v5923 = vadd.f32 0.0, %v5922
    %5924 = vmatmul.f32.gmra.mxu0 %v5891
    %v5925 = vpop.f32.mrf.mxu0
    %v5926 = vadd.f32 0.0, %v5925
    %5927 = vmatmul.f32.gmra.mxu0 %v5894
    %v5928 = vpop.f32.mrf.mxu0
    %v5929 = vadd.f32 0.0, %v5928
    %5930 = vmatmul.f32.gmra.mxu0 %v5897
    %v5931 = vpop.f32.mrf.mxu0
    %v5932 = vadd.f32 0.0, %v5931
    %5933 = vmatmul.f32.gmra.mxu0 %v5900
    %v5934 = vpop.f32.mrf.mxu0
    %v5935 = vadd.f32 0.0, %v5934
    %5936 = vmatmul.f32.gmra.mxu0 %v5903
    %v5937 = vpop.f32.mrf.mxu0
    %v5938 = vadd.f32 0.0, %v5937
    %5939 = vdwg.mxu0
    %5946 = vrot.lane.b32.xlu0 %v5923, 8
    %v5947 = vpop.permute.xlu0 %5946
    %5948 = vrot.lane.b32.xlu0 %v5926, 8
    %v5949 = vpop.permute.xlu0 %5948
    %5950 = vrot.lane.b32.xlu0 %v5929, 8
    %v5951 = vpop.permute.xlu0 %5950
    %5952 = vrot.lane.b32.xlu0 %v5932, 8
    %v5953 = vpop.permute.xlu0 %5952
    %5954 = vrot.lane.b32.xlu0 %v5935, 8
    %v5955 = vpop.permute.xlu0 %5954
    %5956 = vrot.lane.b32.xlu0 %v5938, 8
    %v5957 = vpop.permute.xlu0 %5956
    %5964 = vst.msk [vmem:[#allocation2] sm:$0xff] %vm767, %v5947
    %5965 = vst.msk [vmem:[#allocation2 + $0x8] sm:$0xff] %vm767, %v5949
    %5966 = vst.msk [vmem:[#allocation2 + $0x10] sm:$0xff] %vm767, %v5951
    %5967 = vst.msk [vmem:[#allocation2 + $0x18] sm:$0xff] %vm767, %v5953
    %5968 = vst.msk [vmem:[#allocation2 + $0x20] sm:$0xff] %vm767, %v5955
    %5969 = vst.msk [vmem:[#allocation2 + $0x28] sm:$0xff] %vm767, %v5957
    %5970 = vrot.lane.b32.xlu0 %v5387, 112
    %v5971 = vpop.permute.xlu0 %5970
    %5972 = vrot.lane.b32.xlu0 %v5390, 112
    %v5973 = vpop.permute.xlu0 %5972
    %5974 = vrot.lane.b32.xlu0 %v5393, 112
    %v5975 = vpop.permute.xlu0 %5974
    %5976 = vrot.lane.b32.xlu0 %v5396, 112
    %v5977 = vpop.permute.xlu0 %5976
    %5978 = vrot.lane.b32.xlu0 %v5399, 112
    %v5979 = vpop.permute.xlu0 %5978
    %5980 = vrot.lane.b32.xlu0 %v5402, 112
    %v5981 = vpop.permute.xlu0 %5980
    %5982 = vrot.lane.b32.xlu0 %v5432, 112
    %v5983 = vpop.permute.xlu0 %5982
    %5984 = vrot.lane.b32.xlu0 %v5435, 112
    %v5985 = vpop.permute.xlu0 %5984
    %5986 = vrot.lane.b32.xlu0 %v5438, 112
    %v5987 = vpop.permute.xlu0 %5986
    %5988 = vrot.lane.b32.xlu0 %v5441, 112
    %v5989 = vpop.permute.xlu0 %5988
    %5990 = vrot.lane.b32.xlu0 %v5444, 112
    %v5991 = vpop.permute.xlu0 %5990
    %5992 = vrot.lane.b32.xlu0 %v5447, 112
    %v5993 = vpop.permute.xlu0 %5992
    %v5994 = vsel %vm295, %v5971, 0
    %v5996 = vsel %vm295, %v5973, 0
    %v5998 = vsel %vm295, %v5975, 0
    %v6000 = vsel %vm295, %v5977, 0
    %v6002 = vsel %vm295, %v5979, 0
    %v6004 = vsel %vm295, %v5981, 0
    %v6006 = vsel %vm295, %v5983, 0
    %v6008 = vsel %vm295, %v5985, 0
    %v6010 = vsel %vm295, %v5987, 0
    %v6012 = vsel %vm295, %v5989, 0
    %v6014 = vsel %vm295, %v5991, 0
    %v6016 = vsel %vm295, %v5993, 0
    %6018 = vmatpush.xpose.msra.mxu0 0.0
    %6019 = vmatpush.xpose.msra.mxu0 0.0
    %6020 = vmatpush.xpose.msra.mxu0 0.0
    %6021 = vmatpush.xpose.msra.mxu0 0.0
    %6022 = vmatpush.xpose.msra.mxu0 0.0
    %6023 = vmatpush.xpose.msra.mxu0 0.0
    %6024 = vmatpush.xpose.msra.mxu0 0.0
    %6025 = vmatpush.xpose.msra.mxu0 0.0
    %6026 = vmatpush.xpose.msra.mxu0 0.0
    %6027 = vmatpush.xpose.msra.mxu0 0.0
    %6028 = vmatpush.xpose.msra.mxu0 %v6016
    %6029 = vmatpush.xpose.msra.mxu0 %v6014
    %6030 = vmatpush.xpose.msra.mxu0 %v6012
    %6031 = vmatpush.xpose.msra.mxu0 %v6010
    %6032 = vmatpush.xpose.msra.mxu0 %v6008
    %6033 = vmatpush.xpose.msra.mxu0 %v6006
    %6034 = vmatmul.f32.gmra.mxu0 %v5994
    %v6035 = vpop.f32.mrf.mxu0
    %v6036 = vadd.f32 0.0, %v6035
    %6037 = vmatmul.f32.gmra.mxu0 %v5996
    %v6038 = vpop.f32.mrf.mxu0
    %v6039 = vadd.f32 0.0, %v6038
    %6040 = vmatmul.f32.gmra.mxu0 %v5998
    %v6041 = vpop.f32.mrf.mxu0
    %v6042 = vadd.f32 0.0, %v6041
    %6043 = vmatmul.f32.gmra.mxu0 %v6000
    %v6044 = vpop.f32.mrf.mxu0
    %v6045 = vadd.f32 0.0, %v6044
    %6046 = vmatmul.f32.gmra.mxu0 %v6002
    %v6047 = vpop.f32.mrf.mxu0
    %v6048 = vadd.f32 0.0, %v6047
    %6049 = vmatmul.f32.gmra.mxu0 %v6004
    %v6050 = vpop.f32.mrf.mxu0
    %v6051 = vadd.f32 0.0, %v6050
    %6052 = vdwg.mxu0
    %v6053 = vmul.f32 %v6036, 0.35355338
    %v6054 = vmul.f32 %v6039, 0.35355338
    %v6055 = vmul.f32 %v6042, 0.35355338
    %v6056 = vmul.f32 %v6045, 0.35355338
    %v6057 = vmul.f32 %v6048, 0.35355338
    %v6058 = vmul.f32 %v6051, 0.35355338
    %v6059 = vadd.f32 %v6053, %v141
    %v6060 = vadd.f32 %v6054, %v142
    %v6061 = vadd.f32 %v6055, %v143
    %v6062 = vadd.f32 %v6056, %v144
    %v6063 = vadd.f32 %v6057, %v145
    %v6064 = vadd.f32 %v6058, %v146
    %v6065 = vsel %vm379, %v6059, -inf
    %6066 = vmax.xlane.f32.xlu0 %v6065
    %v6067 = vpop.xlane.xlu0 %6066
    %v6068 = vsel %vm379, %v6060, -inf
    %6069 = vmax.xlane.f32.xlu0 %v6068
    %v6070 = vpop.xlane.xlu0 %6069
    %v6071 = vsel %vm379, %v6061, -inf
    %6072 = vmax.xlane.f32.xlu0 %v6071
    %v6073 = vpop.xlane.xlu0 %6072
    %v6074 = vsel %vm379, %v6062, -inf
    %6075 = vmax.xlane.f32.xlu0 %v6074
    %v6076 = vpop.xlane.xlu0 %6075
    %v6077 = vsel %vm379, %v6063, -inf
    %6078 = vmax.xlane.f32.xlu0 %v6077
    %v6079 = vpop.xlane.xlu0 %6078
    %v6080 = vsel %vm379, %v6064, -inf
    %6081 = vmax.xlane.f32.xlu0 %v6080
    %v6082 = vpop.xlane.xlu0 %6081
    %v6083 = vsub.f32 %v6059, %v6067
    %v6084 = vsub.f32 %v6060, %v6070
    %v6085 = vsub.f32 %v6061, %v6073
    %v6086 = vsub.f32 %v6062, %v6076
    %v6087 = vsub.f32 %v6063, %v6079
    %v6088 = vsub.f32 %v6064, %v6082
    %v6089 = vmul.f32 %v6083, 1.442695
    %v6090 = vpow.pop %v6089
    %v6091 = vmul.f32 %v6084, 1.442695
    %v6092 = vpow.pop %v6091
    %v6093 = vmul.f32 %v6085, 1.442695
    %v6094 = vpow.pop %v6093
    %v6095 = vmul.f32 %v6086, 1.442695
    %v6096 = vpow.pop %v6095
    %v6097 = vmul.f32 %v6087, 1.442695
    %v6098 = vpow.pop %v6097
    %v6099 = vmul.f32 %v6088, 1.442695
    %v6100 = vpow.pop %v6099
    %v6101 = vsel %vm379, %v6090, 0.0
    %6102 = vadd.xlane.f32.xlu0 %v6101
    %v6103 = vpop.xlane.xlu0 %6102
    %v6104 = vsel %vm379, %v6092, 0.0
    %6105 = vadd.xlane.f32.xlu0 %v6104
    %v6106 = vpop.xlane.xlu0 %6105
    %v6107 = vsel %vm379, %v6094, 0.0
    %6108 = vadd.xlane.f32.xlu0 %v6107
    %v6109 = vpop.xlane.xlu0 %6108
    %v6110 = vsel %vm379, %v6096, 0.0
    %6111 = vadd.xlane.f32.xlu0 %v6110
    %v6112 = vpop.xlane.xlu0 %6111
    %v6113 = vsel %vm379, %v6098, 0.0
    %6114 = vadd.xlane.f32.xlu0 %v6113
    %v6115 = vpop.xlane.xlu0 %6114
    %v6116 = vsel %vm379, %v6100, 0.0
    %6117 = vadd.xlane.f32.xlu0 %v6116
    %v6118 = vpop.xlane.xlu0 %6117
    %v6119 = vrcp.pop %v6103
    %v6120 = vrcp.pop %v6106
    %v6121 = vrcp.pop %v6109
    %v6122 = vrcp.pop %v6112
    %v6123 = vrcp.pop %v6115
    %v6124 = vrcp.pop %v6118
    %v6125 = vmul.f32 %v6090, %v6119
    %v6126 = vmul.f32 %v6092, %v6120
    %v6127 = vmul.f32 %v6094, %v6121
    %v6128 = vmul.f32 %v6096, %v6122
    %v6129 = vmul.f32 %v6098, %v6123
    %v6130 = vmul.f32 %v6100, %v6124
    %6131 = vrot.lane.b32.xlu0 %v5477, 112
    %v6132 = vpop.permute.xlu0 %6131
    %6133 = vrot.lane.b32.xlu0 %v5480, 112
    %v6134 = vpop.permute.xlu0 %6133
    %6135 = vrot.lane.b32.xlu0 %v5483, 112
    %v6136 = vpop.permute.xlu0 %6135
    %6137 = vrot.lane.b32.xlu0 %v5486, 112
    %v6138 = vpop.permute.xlu0 %6137
    %6139 = vrot.lane.b32.xlu0 %v5489, 112
    %v6140 = vpop.permute.xlu0 %6139
    %6141 = vrot.lane.b32.xlu0 %v5492, 112
    %v6142 = vpop.permute.xlu0 %6141
    %v6150 = vsel %vm379, %v6125, 0
    %v6153 = vsel %vm379, %v6126, 0
    %v6156 = vsel %vm379, %v6127, 0
    %v6159 = vsel %vm379, %v6128, 0
    %v6162 = vsel %vm379, %v6129, 0
    %v6165 = vsel %vm379, %v6130, 0
    %6167 = vmatpush.msra.mxu0 0.0
    %6168 = vmatpush.msra.mxu0 0.0
    %6169 = vmatpush.msra.mxu0 0.0
    %6170 = vmatpush.msra.mxu0 0.0
    %6171 = vmatpush.msra.mxu0 0.0
    %6172 = vmatpush.msra.mxu0 0.0
    %6173 = vmatpush.msra.mxu0 0.0
    %6174 = vmatpush.msra.mxu0 0.0
    %6175 = vmatpush.msra.mxu0 0.0
    %6176 = vmatpush.msra.mxu0 0.0
    %6177 = vmatpush.msra.mxu0 %v6142
    %6178 = vmatpush.msra.mxu0 %v6140
    %6179 = vmatpush.msra.mxu0 %v6138
    %6180 = vmatpush.msra.mxu0 %v6136
    %6181 = vmatpush.msra.mxu0 %v6134
    %6182 = vmatpush.msra.mxu0 %v6132
    %6183 = vmatmul.f32.gmra.mxu0 %v6150
    %v6184 = vpop.f32.mrf.mxu0
    %v6185 = vadd.f32 0.0, %v6184
    %6186 = vmatmul.f32.gmra.mxu0 %v6153
    %v6187 = vpop.f32.mrf.mxu0
    %v6188 = vadd.f32 0.0, %v6187
    %6189 = vmatmul.f32.gmra.mxu0 %v6156
    %v6190 = vpop.f32.mrf.mxu0
    %v6191 = vadd.f32 0.0, %v6190
    %6192 = vmatmul.f32.gmra.mxu0 %v6159
    %v6193 = vpop.f32.mrf.mxu0
    %v6194 = vadd.f32 0.0, %v6193
    %6195 = vmatmul.f32.gmra.mxu0 %v6162
    %v6196 = vpop.f32.mrf.mxu0
    %v6197 = vadd.f32 0.0, %v6196
    %6198 = vmatmul.f32.gmra.mxu0 %v6165
    %v6199 = vpop.f32.mrf.mxu0
    %v6200 = vadd.f32 0.0, %v6199
    %6201 = vdwg.mxu0
    %6208 = vrot.lane.b32.xlu0 %v6185, 16
    %v6209 = vpop.permute.xlu0 %6208
    %6210 = vrot.lane.b32.xlu0 %v6188, 16
    %v6211 = vpop.permute.xlu0 %6210
    %6212 = vrot.lane.b32.xlu0 %v6191, 16
    %v6213 = vpop.permute.xlu0 %6212
    %6214 = vrot.lane.b32.xlu0 %v6194, 16
    %v6215 = vpop.permute.xlu0 %6214
    %6216 = vrot.lane.b32.xlu0 %v6197, 16
    %v6217 = vpop.permute.xlu0 %6216
    %6218 = vrot.lane.b32.xlu0 %v6200, 16
    %v6219 = vpop.permute.xlu0 %6218
    %6226 = vst.msk [vmem:[#allocation2] sm:$0xff] %vm1030, %v6209
    %6227 = vst.msk [vmem:[#allocation2 + $0x8] sm:$0xff] %vm1030, %v6211
    %6228 = vst.msk [vmem:[#allocation2 + $0x10] sm:$0xff] %vm1030, %v6213
    %6229 = vst.msk [vmem:[#allocation2 + $0x18] sm:$0xff] %vm1030, %v6215
    %6230 = vst.msk [vmem:[#allocation2 + $0x20] sm:$0xff] %vm1030, %v6217
    %6231 = vst.msk [vmem:[#allocation2 + $0x28] sm:$0xff] %vm1030, %v6219
    %6232 = vrot.lane.b32.xlu0 %v5387, 104
    %v6233 = vpop.permute.xlu0 %6232
    %6234 = vrot.lane.b32.xlu0 %v5390, 104
    %v6235 = vpop.permute.xlu0 %6234
    %6236 = vrot.lane.b32.xlu0 %v5393, 104
    %v6237 = vpop.permute.xlu0 %6236
    %6238 = vrot.lane.b32.xlu0 %v5396, 104
    %v6239 = vpop.permute.xlu0 %6238
    %6240 = vrot.lane.b32.xlu0 %v5399, 104
    %v6241 = vpop.permute.xlu0 %6240
    %6242 = vrot.lane.b32.xlu0 %v5402, 104
    %v6243 = vpop.permute.xlu0 %6242
    %6244 = vrot.lane.b32.xlu0 %v5432, 104
    %v6245 = vpop.permute.xlu0 %6244
    %6246 = vrot.lane.b32.xlu0 %v5435, 104
    %v6247 = vpop.permute.xlu0 %6246
    %6248 = vrot.lane.b32.xlu0 %v5438, 104
    %v6249 = vpop.permute.xlu0 %6248
    %6250 = vrot.lane.b32.xlu0 %v5441, 104
    %v6251 = vpop.permute.xlu0 %6250
    %6252 = vrot.lane.b32.xlu0 %v5444, 104
    %v6253 = vpop.permute.xlu0 %6252
    %6254 = vrot.lane.b32.xlu0 %v5447, 104
    %v6255 = vpop.permute.xlu0 %6254
    %v6256 = vsel %vm295, %v6233, 0
    %v6258 = vsel %vm295, %v6235, 0
    %v6260 = vsel %vm295, %v6237, 0
    %v6262 = vsel %vm295, %v6239, 0
    %v6264 = vsel %vm295, %v6241, 0
    %v6266 = vsel %vm295, %v6243, 0
    %v6268 = vsel %vm295, %v6245, 0
    %v6270 = vsel %vm295, %v6247, 0
    %v6272 = vsel %vm295, %v6249, 0
    %v6274 = vsel %vm295, %v6251, 0
    %v6276 = vsel %vm295, %v6253, 0
    %v6278 = vsel %vm295, %v6255, 0
    %6280 = vmatpush.xpose.msra.mxu0 0.0
    %6281 = vmatpush.xpose.msra.mxu0 0.0
    %6282 = vmatpush.xpose.msra.mxu0 0.0
    %6283 = vmatpush.xpose.msra.mxu0 0.0
    %6284 = vmatpush.xpose.msra.mxu0 0.0
    %6285 = vmatpush.xpose.msra.mxu0 0.0
    %6286 = vmatpush.xpose.msra.mxu0 0.0
    %6287 = vmatpush.xpose.msra.mxu0 0.0
    %6288 = vmatpush.xpose.msra.mxu0 0.0
    %6289 = vmatpush.xpose.msra.mxu0 0.0
    %6290 = vmatpush.xpose.msra.mxu0 %v6278
    %6291 = vmatpush.xpose.msra.mxu0 %v6276
    %6292 = vmatpush.xpose.msra.mxu0 %v6274
    %6293 = vmatpush.xpose.msra.mxu0 %v6272
    %6294 = vmatpush.xpose.msra.mxu0 %v6270
    %6295 = vmatpush.xpose.msra.mxu0 %v6268
    %6296 = vmatmul.f32.gmra.mxu0 %v6256
    %v6297 = vpop.f32.mrf.mxu0
    %v6298 = vadd.f32 0.0, %v6297
    %6299 = vmatmul.f32.gmra.mxu0 %v6258
    %v6300 = vpop.f32.mrf.mxu0
    %v6301 = vadd.f32 0.0, %v6300
    %6302 = vmatmul.f32.gmra.mxu0 %v6260
    %v6303 = vpop.f32.mrf.mxu0
    %v6304 = vadd.f32 0.0, %v6303
    %6305 = vmatmul.f32.gmra.mxu0 %v6262
    %v6306 = vpop.f32.mrf.mxu0
    %v6307 = vadd.f32 0.0, %v6306
    %6308 = vmatmul.f32.gmra.mxu0 %v6264
    %v6309 = vpop.f32.mrf.mxu0
    %v6310 = vadd.f32 0.0, %v6309
    %6311 = vmatmul.f32.gmra.mxu0 %v6266
    %v6312 = vpop.f32.mrf.mxu0
    %v6313 = vadd.f32 0.0, %v6312
    %6314 = vdwg.mxu0
    %v6315 = vmul.f32 %v6298, 0.35355338
    %v6316 = vmul.f32 %v6301, 0.35355338
    %v6317 = vmul.f32 %v6304, 0.35355338
    %v6318 = vmul.f32 %v6307, 0.35355338
    %v6319 = vmul.f32 %v6310, 0.35355338
    %v6320 = vmul.f32 %v6313, 0.35355338
    %v6321 = vadd.f32 %v6315, %v141
    %v6322 = vadd.f32 %v6316, %v142
    %v6323 = vadd.f32 %v6317, %v143
    %v6324 = vadd.f32 %v6318, %v144
    %v6325 = vadd.f32 %v6319, %v145
    %v6326 = vadd.f32 %v6320, %v146
    %v6327 = vsel %vm379, %v6321, -inf
    %6328 = vmax.xlane.f32.xlu0 %v6327
    %v6329 = vpop.xlane.xlu0 %6328
    %v6330 = vsel %vm379, %v6322, -inf
    %6331 = vmax.xlane.f32.xlu0 %v6330
    %v6332 = vpop.xlane.xlu0 %6331
    %v6333 = vsel %vm379, %v6323, -inf
    %6334 = vmax.xlane.f32.xlu0 %v6333
    %v6335 = vpop.xlane.xlu0 %6334
    %v6336 = vsel %vm379, %v6324, -inf
    %6337 = vmax.xlane.f32.xlu0 %v6336
    %v6338 = vpop.xlane.xlu0 %6337
    %v6339 = vsel %vm379, %v6325, -inf
    %6340 = vmax.xlane.f32.xlu0 %v6339
    %v6341 = vpop.xlane.xlu0 %6340
    %v6342 = vsel %vm379, %v6326, -inf
    %6343 = vmax.xlane.f32.xlu0 %v6342
    %v6344 = vpop.xlane.xlu0 %6343
    %v6345 = vsub.f32 %v6321, %v6329
    %v6346 = vsub.f32 %v6322, %v6332
    %v6347 = vsub.f32 %v6323, %v6335
    %v6348 = vsub.f32 %v6324, %v6338
    %v6349 = vsub.f32 %v6325, %v6341
    %v6350 = vsub.f32 %v6326, %v6344
    %v6351 = vmul.f32 %v6345, 1.442695
    %v6352 = vpow.pop %v6351
    %v6353 = vmul.f32 %v6346, 1.442695
    %v6354 = vpow.pop %v6353
    %v6355 = vmul.f32 %v6347, 1.442695
    %v6356 = vpow.pop %v6355
    %v6357 = vmul.f32 %v6348, 1.442695
    %v6358 = vpow.pop %v6357
    %v6359 = vmul.f32 %v6349, 1.442695
    %v6360 = vpow.pop %v6359
    %v6361 = vmul.f32 %v6350, 1.442695
    %v6362 = vpow.pop %v6361
    %v6363 = vsel %vm379, %v6352, 0.0
    %6364 = vadd.xlane.f32.xlu0 %v6363
    %v6365 = vpop.xlane.xlu0 %6364
    %v6366 = vsel %vm379, %v6354, 0.0
    %6367 = vadd.xlane.f32.xlu0 %v6366
    %v6368 = vpop.xlane.xlu0 %6367
    %v6369 = vsel %vm379, %v6356, 0.0
    %6370 = vadd.xlane.f32.xlu0 %v6369
    %v6371 = vpop.xlane.xlu0 %6370
    %v6372 = vsel %vm379, %v6358, 0.0
    %6373 = vadd.xlane.f32.xlu0 %v6372
    %v6374 = vpop.xlane.xlu0 %6373
    %v6375 = vsel %vm379, %v6360, 0.0
    %6376 = vadd.xlane.f32.xlu0 %v6375
    %v6377 = vpop.xlane.xlu0 %6376
    %v6378 = vsel %vm379, %v6362, 0.0
    %6379 = vadd.xlane.f32.xlu0 %v6378
    %v6380 = vpop.xlane.xlu0 %6379
    %v6381 = vrcp.pop %v6365
    %v6382 = vrcp.pop %v6368
    %v6383 = vrcp.pop %v6371
    %v6384 = vrcp.pop %v6374
    %v6385 = vrcp.pop %v6377
    %v6386 = vrcp.pop %v6380
    %v6387 = vmul.f32 %v6352, %v6381
    %v6388 = vmul.f32 %v6354, %v6382
    %v6389 = vmul.f32 %v6356, %v6383
    %v6390 = vmul.f32 %v6358, %v6384
    %v6391 = vmul.f32 %v6360, %v6385
    %v6392 = vmul.f32 %v6362, %v6386
    %6393 = vrot.lane.b32.xlu0 %v5477, 104
    %v6394 = vpop.permute.xlu0 %6393
    %6395 = vrot.lane.b32.xlu0 %v5480, 104
    %v6396 = vpop.permute.xlu0 %6395
    %6397 = vrot.lane.b32.xlu0 %v5483, 104
    %v6398 = vpop.permute.xlu0 %6397
    %6399 = vrot.lane.b32.xlu0 %v5486, 104
    %v6400 = vpop.permute.xlu0 %6399
    %6401 = vrot.lane.b32.xlu0 %v5489, 104
    %v6402 = vpop.permute.xlu0 %6401
    %6403 = vrot.lane.b32.xlu0 %v5492, 104
    %v6404 = vpop.permute.xlu0 %6403
    %v6412 = vsel %vm379, %v6387, 0
    %v6415 = vsel %vm379, %v6388, 0
    %v6418 = vsel %vm379, %v6389, 0
    %v6421 = vsel %vm379, %v6390, 0
    %v6424 = vsel %vm379, %v6391, 0
    %v6427 = vsel %vm379, %v6392, 0
    %6429 = vmatpush.msra.mxu0 0.0
    %6430 = vmatpush.msra.mxu0 0.0
    %6431 = vmatpush.msra.mxu0 0.0
    %6432 = vmatpush.msra.mxu0 0.0
    %6433 = vmatpush.msra.mxu0 0.0
    %6434 = vmatpush.msra.mxu0 0.0
    %6435 = vmatpush.msra.mxu0 0.0
    %6436 = vmatpush.msra.mxu0 0.0
    %6437 = vmatpush.msra.mxu0 0.0
    %6438 = vmatpush.msra.mxu0 0.0
    %6439 = vmatpush.msra.mxu0 %v6404
    %6440 = vmatpush.msra.mxu0 %v6402
    %6441 = vmatpush.msra.mxu0 %v6400
    %6442 = vmatpush.msra.mxu0 %v6398
    %6443 = vmatpush.msra.mxu0 %v6396
    %6444 = vmatpush.msra.mxu0 %v6394
    %6445 = vmatmul.f32.gmra.mxu0 %v6412
    %v6446 = vpop.f32.mrf.mxu0
    %v6447 = vadd.f32 0.0, %v6446
    %6448 = vmatmul.f32.gmra.mxu0 %v6415
    %v6449 = vpop.f32.mrf.mxu0
    %v6450 = vadd.f32 0.0, %v6449
    %6451 = vmatmul.f32.gmra.mxu0 %v6418
    %v6452 = vpop.f32.mrf.mxu0
    %v6453 = vadd.f32 0.0, %v6452
    %6454 = vmatmul.f32.gmra.mxu0 %v6421
    %v6455 = vpop.f32.mrf.mxu0
    %v6456 = vadd.f32 0.0, %v6455
    %6457 = vmatmul.f32.gmra.mxu0 %v6424
    %v6458 = vpop.f32.mrf.mxu0
    %v6459 = vadd.f32 0.0, %v6458
    %6460 = vmatmul.f32.gmra.mxu0 %v6427
    %v6461 = vpop.f32.mrf.mxu0
    %v6462 = vadd.f32 0.0, %v6461
    %6463 = vdwg.mxu0
    %6470 = vrot.lane.b32.xlu0 %v6447, 24
    %v6471 = vpop.permute.xlu0 %6470
    %6472 = vrot.lane.b32.xlu0 %v6450, 24
    %v6473 = vpop.permute.xlu0 %6472
    %6474 = vrot.lane.b32.xlu0 %v6453, 24
    %v6475 = vpop.permute.xlu0 %6474
    %6476 = vrot.lane.b32.xlu0 %v6456, 24
    %v6477 = vpop.permute.xlu0 %6476
    %6478 = vrot.lane.b32.xlu0 %v6459, 24
    %v6479 = vpop.permute.xlu0 %6478
    %6480 = vrot.lane.b32.xlu0 %v6462, 24
    %v6481 = vpop.permute.xlu0 %6480
    %6488 = vst.msk [vmem:[#allocation2] sm:$0xff] %vm1293, %v6471
    %6489 = vst.msk [vmem:[#allocation2 + $0x8] sm:$0xff] %vm1293, %v6473
    %6490 = vst.msk [vmem:[#allocation2 + $0x10] sm:$0xff] %vm1293, %v6475
    %6491 = vst.msk [vmem:[#allocation2 + $0x18] sm:$0xff] %vm1293, %v6477
    %6492 = vst.msk [vmem:[#allocation2 + $0x20] sm:$0xff] %vm1293, %v6479
    %6493 = vst.msk [vmem:[#allocation2 + $0x28] sm:$0xff] %vm1293, %v6481
    %v6494 = vld [vmem:[#allocation2] sm:$0xff]
    %v6495 = vld [vmem:[#allocation2 + $0x8] sm:$0xff]
    %v6496 = vld [vmem:[#allocation2 + $0x10] sm:$0xff]
    %v6497 = vld [vmem:[#allocation2 + $0x18] sm:$0xff]
    %v6498 = vld [vmem:[#allocation2 + $0x20] sm:$0xff]
    %v6499 = vld [vmem:[#allocation2 + $0x28] sm:$0xff]
    %s6500 = scalar_lea.vmem %s25, 96
    %v6501 = vld [vmem:[%s6500] sm:$0xff]
    %v6502 = vld [vmem:[%s6500 + $0x8] sm:$0xff]
    %v6503 = vld [vmem:[%s6500 + $0x10] sm:$0xff]
    %v6504 = vld [vmem:[%s6500 + $0x18] sm:$0xff]
    %s6505 = scalar_lea.vmem %s27, 3
    %v6506 = vld [vmem:[%s6505] sm:$0x1]
    %v6508 = vperm.slane %v6506, 0
    %v6511 = vsel %vm155, %v6494, 0
    %v6514 = vsel %vm155, %v6495, 0
    %v6517 = vsel %vm155, %v6496, 0
    %v6520 = vsel %vm155, %v6497, 0
    %v6523 = vsel %vm155, %v6498, 0
    %v6526 = vsel %vm155, %v6499, 0
    %6528 = vmatpush.msra.mxu0 0.0
    %6529 = vmatpush.msra.mxu0 0.0
    %6530 = vmatpush.msra.mxu0 0.0
    %6531 = vmatpush.msra.mxu0 0.0
    %6532 = vmatpush.msra.mxu0 0.0
    %6533 = vmatpush.msra.mxu0 0.0
    %6534 = vmatpush.msra.mxu0 0.0
    %6535 = vmatpush.msra.mxu0 0.0
    %6536 = vmatpush.msra.mxu0 0.0
    %6537 = vmatpush.msra.mxu0 0.0
    %6538 = vmatpush.msra.mxu0 0.0
    %6539 = vmatpush.msra.mxu0 0.0
    %6540 = vmatpush.msra.mxu0 %v6504
    %6541 = vmatpush.msra.mxu0 %v6503
    %6542 = vmatpush.msra.mxu0 %v6502
    %6543 = vmatpush.msra.mxu0 %v6501
    %6544 = vmatmul.f32.gmra.mxu0 %v6511
    %v6545 = vpop.f32.mrf.mxu0
    %v6546 = vadd.f32 %v6508, %v6545
    %6547 = vmatmul.f32.gmra.mxu0 %v6514
    %v6548 = vpop.f32.mrf.mxu0
    %v6549 = vadd.f32 %v6508, %v6548
    %6550 = vmatmul.f32.gmra.mxu0 %v6517
    %v6551 = vpop.f32.mrf.mxu0
    %v6552 = vadd.f32 %v6508, %v6551
    %6553 = vmatmul.f32.gmra.mxu0 %v6520
    %v6554 = vpop.f32.mrf.mxu0
    %v6555 = vadd.f32 %v6508, %v6554
    %6556 = vmatmul.f32.gmra.mxu0 %v6523
    %v6557 = vpop.f32.mrf.mxu0
    %v6558 = vadd.f32 %v6508, %v6557
    %6559 = vmatmul.f32.gmra.mxu0 %v6526
    %v6560 = vpop.f32.mrf.mxu0
    %v6561 = vadd.f32 %v6508, %v6560
    %6562 = vdwg.mxu0
    %v6563 = vadd.f32 %v5329, %v6546
    %v6564 = vadd.f32 %v5330, %v6549
    %v6565 = vadd.f32 %v5331, %v6552
    %v6566 = vadd.f32 %v5332, %v6555
    %v6567 = vadd.f32 %v5333, %v6558
    %v6568 = vadd.f32 %v5334, %v6561
    %s6569 = scalar_lea.vmem %s29, 3
    %v6570 = vld [vmem:[%s6569] sm:$0x1]
    %s6571 = scalar_lea.vmem %s31, 3
    %v6572 = vld [vmem:[%s6571] sm:$0x1]
    %v6573 = vsel %vm155, %v6563, 0.0
    %6574 = vadd.xlane.f32.xlu0 %v6573
    %v6575 = vpop.xlane.xlu0 %6574
    %v6576 = vsel %vm155, %v6564, 0.0
    %6577 = vadd.xlane.f32.xlu0 %v6576
    %v6578 = vpop.xlane.xlu0 %6577
    %v6579 = vsel %vm155, %v6565, 0.0
    %6580 = vadd.xlane.f32.xlu0 %v6579
    %v6581 = vpop.xlane.xlu0 %6580
    %v6582 = vsel %vm155, %v6566, 0.0
    %6583 = vadd.xlane.f32.xlu0 %v6582
    %v6584 = vpop.xlane.xlu0 %6583
    %v6585 = vsel %vm155, %v6567, 0.0
    %6586 = vadd.xlane.f32.xlu0 %v6585
    %v6587 = vpop.xlane.xlu0 %6586
    %v6588 = vsel %vm155, %v6568, 0.0
    %6589 = vadd.xlane.f32.xlu0 %v6588
    %v6590 = vpop.xlane.xlu0 %6589
    %v6591 = vmul.f32 %v6575, %v1399
    %v6592 = vmul.f32 %v6578, %v1399
    %v6593 = vmul.f32 %v6581, %v1399
    %v6594 = vmul.f32 %v6584, %v1399
    %v6595 = vmul.f32 %v6587, %v1399
    %v6596 = vmul.f32 %v6590, %v1399
    %v6597 = vsub.f32 %v6563, %v6591
    %v6598 = vsub.f32 %v6564, %v6592
    %v6599 = vsub.f32 %v6565, %v6593
    %v6600 = vsub.f32 %v6566, %v6594
    %v6601 = vsub.f32 %v6567, %v6595
    %v6602 = vsub.f32 %v6568, %v6596
    %v6603 = vmul.f32 %v6597, %v6597
    %v6604 = vmul.f32 %v6598, %v6598
    %v6605 = vmul.f32 %v6599, %v6599
    %v6606 = vmul.f32 %v6600, %v6600
    %v6607 = vmul.f32 %v6601, %v6601
    %v6608 = vmul.f32 %v6602, %v6602
    %v6609 = vsel %vm155, %v6603, 0.0
    %6610 = vadd.xlane.f32.xlu0 %v6609
    %v6611 = vpop.xlane.xlu0 %6610
    %v6612 = vsel %vm155, %v6604, 0.0
    %6613 = vadd.xlane.f32.xlu0 %v6612
    %v6614 = vpop.xlane.xlu0 %6613
    %v6615 = vsel %vm155, %v6605, 0.0
    %6616 = vadd.xlane.f32.xlu0 %v6615
    %v6617 = vpop.xlane.xlu0 %6616
    %v6618 = vsel %vm155, %v6606, 0.0
    %6619 = vadd.xlane.f32.xlu0 %v6618
    %v6620 = vpop.xlane.xlu0 %6619
    %v6621 = vsel %vm155, %v6607, 0.0
    %6622 = vadd.xlane.f32.xlu0 %v6621
    %v6623 = vpop.xlane.xlu0 %6622
    %v6624 = vsel %vm155, %v6608, 0.0
    %6625 = vadd.xlane.f32.xlu0 %v6624
    %v6626 = vpop.xlane.xlu0 %6625
    %v6627 = vmul.f32 %v6611, %v1399
    %v6628 = vmul.f32 %v6614, %v1399
    %v6629 = vmul.f32 %v6617, %v1399
    %v6630 = vmul.f32 %v6620, %v1399
    %v6631 = vmul.f32 %v6623, %v1399
    %v6632 = vmul.f32 %v6626, %v1399
    %v6633 = vadd.f32 %v6627, 1e-12
    %v6634 = vadd.f32 %v6628, 1e-12
    %v6635 = vadd.f32 %v6629, 1e-12
    %v6636 = vadd.f32 %v6630, 1e-12
    %v6637 = vadd.f32 %v6631, 1e-12
    %v6638 = vadd.f32 %v6632, 1e-12
    %v6639 = vrsqrt.pop %v6633
    %v6640 = vmul.f32 %v6639, %v6633
    %v6641 = vmul.f32 %v6640, %v6639
    %v6642 = vmul.f32 0.5, %v6641
    %v6643 = vsub.f32 1.5, %v6642
    %v6644 = vmul.f32 %v6639, %v6643
    %vm6645 = vweird.f32 %v6633
    %vm6646 = vweird.f32 %v6639
    %vm6647 = vmor %vm6645, %vm6646
    %v6648 = vsel %vm6647, %v6639, %v6644
    %v6649 = vrsqrt.pop %v6634
    %v6650 = vmul.f32 %v6649, %v6634
    %v6651 = vmul.f32 %v6650, %v6649
    %v6652 = vmul.f32 0.5, %v6651
    %v6653 = vsub.f32 1.5, %v6652
    %v6654 = vmul.f32 %v6649, %v6653
    %vm6655 = vweird.f32 %v6634
    %vm6656 = vweird.f32 %v6649
    %vm6657 = vmor %vm6655, %vm6656
    %v6658 = vsel %vm6657, %v6649, %v6654
    %v6659 = vrsqrt.pop %v6635
    %v6660 = vmul.f32 %v6659, %v6635
    %v6661 = vmul.f32 %v6660, %v6659
    %v6662 = vmul.f32 0.5, %v6661
    %v6663 = vsub.f32 1.5, %v6662
    %v6664 = vmul.f32 %v6659, %v6663
    %vm6665 = vweird.f32 %v6635
    %vm6666 = vweird.f32 %v6659
    %vm6667 = vmor %vm6665, %vm6666
    %v6668 = vsel %vm6667, %v6659, %v6664
    %v6669 = vrsqrt.pop %v6636
    %v6670 = vmul.f32 %v6669, %v6636
    %v6671 = vmul.f32 %v6670, %v6669
    %v6672 = vmul.f32 0.5, %v6671
    %v6673 = vsub.f32 1.5, %v6672
    %v6674 = vmul.f32 %v6669, %v6673
    %vm6675 = vweird.f32 %v6636
    %vm6676 = vweird.f32 %v6669
    %vm6677 = vmor %vm6675, %vm6676
    %v6678 = vsel %vm6677, %v6669, %v6674
    %v6679 = vrsqrt.pop %v6637
    %v6680 = vmul.f32 %v6679, %v6637
    %v6681 = vmul.f32 %v6680, %v6679
    %v6682 = vmul.f32 0.5, %v6681
    %v6683 = vsub.f32 1.5, %v6682
    %v6684 = vmul.f32 %v6679, %v6683
    %vm6685 = vweird.f32 %v6637
    %vm6686 = vweird.f32 %v6679
    %vm6687 = vmor %vm6685, %vm6686
    %v6688 = vsel %vm6687, %v6679, %v6684
    %v6689 = vrsqrt.pop %v6638
    %v6690 = vmul.f32 %v6689, %v6638
    %v6691 = vmul.f32 %v6690, %v6689
    %v6692 = vmul.f32 0.5, %v6691
    %v6693 = vsub.f32 1.5, %v6692
    %v6694 = vmul.f32 %v6689, %v6693
    %vm6695 = vweird.f32 %v6638
    %vm6696 = vweird.f32 %v6689
    %vm6697 = vmor %vm6695, %vm6696
    %v6698 = vsel %vm6697, %v6689, %v6694
    %v6699 = vmul.f32 %v6597, %v6648
    %v6700 = vmul.f32 %v6598, %v6658
    %v6701 = vmul.f32 %v6599, %v6668
    %v6702 = vmul.f32 %v6600, %v6678
    %v6703 = vmul.f32 %v6601, %v6688
    %v6704 = vmul.f32 %v6602, %v6698
    %v6706 = vperm.slane %v6570, 0
    %v6708 = vmul.f32 %v6699, %v6706
    %v6709 = vmul.f32 %v6700, %v6706
    %v6710 = vmul.f32 %v6701, %v6706
    %v6711 = vmul.f32 %v6702, %v6706
    %v6712 = vmul.f32 %v6703, %v6706
    %v6713 = vmul.f32 %v6704, %v6706
    %v6715 = vperm.slane %v6572, 0
    %v6717 = vadd.f32 %v6708, %v6715
    %v6718 = vadd.f32 %v6709, %v6715
    %v6719 = vadd.f32 %v6710, %v6715
    %v6720 = vadd.f32 %v6711, %v6715
    %v6721 = vadd.f32 %v6712, %v6715
    %v6722 = vadd.f32 %v6713, %v6715
    %s6723 = scalar_lea.vmem %s33, 96
    %v6724 = vld [vmem:[%s6723] sm:$0xff]
    %v6725 = vld [vmem:[%s6723 + $0x8] sm:$0xff]
    %v6726 = vld [vmem:[%s6723 + $0x10] sm:$0xff]
    %v6727 = vld [vmem:[%s6723 + $0x18] sm:$0xff]
    %s6728 = scalar_lea.vmem %s35, 3
    %v6729 = vld [vmem:[%s6728] sm:$0x1]
    %v6731 = vperm.slane %v6729, 0
    %v6734 = vsel %vm155, %v6717, 0
    %v6737 = vsel %vm155, %v6718, 0
    %v6740 = vsel %vm155, %v6719, 0
    %v6743 = vsel %vm155, %v6720, 0
    %v6746 = vsel %vm155, %v6721, 0
    %v6749 = vsel %vm155, %v6722, 0
    %6751 = vmatpush.msra.mxu0 0.0
    %6752 = vmatpush.msra.mxu0 0.0
    %6753 = vmatpush.msra.mxu0 0.0
    %6754 = vmatpush.msra.mxu0 0.0
    %6755 = vmatpush.msra.mxu0 0.0
    %6756 = vmatpush.msra.mxu0 0.0
    %6757 = vmatpush.msra.mxu0 0.0
    %6758 = vmatpush.msra.mxu0 0.0
    %6759 = vmatpush.msra.mxu0 0.0
    %6760 = vmatpush.msra.mxu0 0.0
    %6761 = vmatpush.msra.mxu0 0.0
    %6762 = vmatpush.msra.mxu0 0.0
    %6763 = vmatpush.msra.mxu0 %v6727
    %6764 = vmatpush.msra.mxu0 %v6726
    %6765 = vmatpush.msra.mxu0 %v6725
    %6766 = vmatpush.msra.mxu0 %v6724
    %6767 = vmatmul.f32.gmra.mxu0 %v6734
    %v6768 = vpop.f32.mrf.mxu0
    %v6769 = vadd.f32 %v6731, %v6768
    %6770 = vmatmul.f32.gmra.mxu0 %v6737
    %v6771 = vpop.f32.mrf.mxu0
    %v6772 = vadd.f32 %v6731, %v6771
    %6773 = vmatmul.f32.gmra.mxu0 %v6740
    %v6774 = vpop.f32.mrf.mxu0
    %v6775 = vadd.f32 %v6731, %v6774
    %6776 = vmatmul.f32.gmra.mxu0 %v6743
    %v6777 = vpop.f32.mrf.mxu0
    %v6778 = vadd.f32 %v6731, %v6777
    %6779 = vmatmul.f32.gmra.mxu0 %v6746
    %v6780 = vpop.f32.mrf.mxu0
    %v6781 = vadd.f32 %v6731, %v6780
    %6782 = vmatmul.f32.gmra.mxu0 %v6749
    %v6783 = vpop.f32.mrf.mxu0
    %v6784 = vadd.f32 %v6731, %v6783
    %6785 = vdwg.mxu0
    %v6786 = vmul.f32 %v6769, %v6769
    %v6787 = vmul.f32 %v6772, %v6772
    %v6788 = vmul.f32 %v6775, %v6775
    %v6789 = vmul.f32 %v6778, %v6778
    %v6790 = vmul.f32 %v6781, %v6781
    %v6791 = vmul.f32 %v6784, %v6784
    %v6792 = vmul.f32 %v6769, %v6786
    %v6793 = vmul.f32 %v6772, %v6787
    %v6794 = vmul.f32 %v6775, %v6788
    %v6795 = vmul.f32 %v6778, %v6789
    %v6796 = vmul.f32 %v6781, %v6790
    %v6797 = vmul.f32 %v6784, %v6791
    %v6798 = vmul.f32 %v6792, 0.044715
    %v6799 = vmul.f32 %v6793, 0.044715
    %v6800 = vmul.f32 %v6794, 0.044715
    %v6801 = vmul.f32 %v6795, 0.044715
    %v6802 = vmul.f32 %v6796, 0.044715
    %v6803 = vmul.f32 %v6797, 0.044715
    %v6804 = vadd.f32 %v6769, %v6798
    %v6805 = vadd.f32 %v6772, %v6799
    %v6806 = vadd.f32 %v6775, %v6800
    %v6807 = vadd.f32 %v6778, %v6801
    %v6808 = vadd.f32 %v6781, %v6802
    %v6809 = vadd.f32 %v6784, %v6803
    %v6810 = vmul.f32 %v6804, 0.7978846
    %v6811 = vmul.f32 %v6805, 0.7978846
    %v6812 = vmul.f32 %v6806, 0.7978846
    %v6813 = vmul.f32 %v6807, 0.7978846
    %v6814 = vmul.f32 %v6808, 0.7978846
    %v6815 = vmul.f32 %v6809, 0.7978846
    %v6816 = vtanh.pop %v6810
    %v6817 = vtanh.pop %v6811
    %v6818 = vtanh.pop %v6812
    %v6819 = vtanh.pop %v6813
    %v6820 = vtanh.pop %v6814
    %v6821 = vtanh.pop %v6815
    %v6822 = vadd.f32 %v6816, 1.0
    %v6823 = vadd.f32 %v6817, 1.0
    %v6824 = vadd.f32 %v6818, 1.0
    %v6825 = vadd.f32 %v6819, 1.0
    %v6826 = vadd.f32 %v6820, 1.0
    %v6827 = vadd.f32 %v6821, 1.0
    %v6828 = vmul.f32 %v6822, 0.5
    %v6829 = vmul.f32 %v6823, 0.5
    %v6830 = vmul.f32 %v6824, 0.5
    %v6831 = vmul.f32 %v6825, 0.5
    %v6832 = vmul.f32 %v6826, 0.5
    %v6833 = vmul.f32 %v6827, 0.5
    %v6834 = vmul.f32 %v6769, %v6828
    %v6835 = vmul.f32 %v6772, %v6829
    %v6836 = vmul.f32 %v6775, %v6830
    %v6837 = vmul.f32 %v6778, %v6831
    %v6838 = vmul.f32 %v6781, %v6832
    %v6839 = vmul.f32 %v6784, %v6833
    %s6840 = scalar_lea.vmem %s37, 192
    %v6841 = vld [vmem:[%s6840] sm:$0xff]
    %v6842 = vld [vmem:[%s6840 + $0x8] sm:$0xff]
    %v6843 = vld [vmem:[%s6840 + $0x10] sm:$0xff]
    %v6844 = vld [vmem:[%s6840 + $0x18] sm:$0xff]
    %v6845 = vld [vmem:[%s6840 + $0x20] sm:$0xff]
    %v6846 = vld [vmem:[%s6840 + $0x28] sm:$0xff]
    %v6847 = vld [vmem:[%s6840 + $0x30] sm:$0xff]
    %v6848 = vld [vmem:[%s6840 + $0x38] sm:$0xff]
    %s6849 = scalar_lea.vmem %s39, 3
    %v6850 = vld [vmem:[%s6849] sm:$0x1]
    %v6852 = vperm.slane %v6850, 0
    %v6855 = vsel %vm1659, %v6834, 0
    %v6858 = vsel %vm1659, %v6835, 0
    %v6861 = vsel %vm1659, %v6836, 0
    %v6864 = vsel %vm1659, %v6837, 0
    %v6867 = vsel %vm1659, %v6838, 0
    %v6870 = vsel %vm1659, %v6839, 0
    %6872 = vmatpush.msra.mxu0 0.0
    %6873 = vmatpush.msra.mxu0 0.0
    %6874 = vmatpush.msra.mxu0 0.0
    %6875 = vmatpush.msra.mxu0 0.0
    %6876 = vmatpush.msra.mxu0 0.0
    %6877 = vmatpush.msra.mxu0 0.0
    %6878 = vmatpush.msra.mxu0 0.0
    %6879 = vmatpush.msra.mxu0 0.0
    %6880 = vmatpush.msra.mxu0 %v6848
    %6881 = vmatpush.msra.mxu0 %v6847
    %6882 = vmatpush.msra.mxu0 %v6846
    %6883 = vmatpush.msra.mxu0 %v6845
    %6884 = vmatpush.msra.mxu0 %v6844
    %6885 = vmatpush.msra.mxu0 %v6843
    %6886 = vmatpush.msra.mxu0 %v6842
    %6887 = vmatpush.msra.mxu0 %v6841
    %6888 = vmatmul.f32.gmra.mxu0 %v6855
    %v6889 = vpop.f32.mrf.mxu0
    %v6890 = vadd.f32 %v6852, %v6889
    %6891 = vmatmul.f32.gmra.mxu0 %v6858
    %v6892 = vpop.f32.mrf.mxu0
    %v6893 = vadd.f32 %v6852, %v6892
    %6894 = vmatmul.f32.gmra.mxu0 %v6861
    %v6895 = vpop.f32.mrf.mxu0
    %v6896 = vadd.f32 %v6852, %v6895
    %6897 = vmatmul.f32.gmra.mxu0 %v6864
    %v6898 = vpop.f32.mrf.mxu0
    %v6899 = vadd.f32 %v6852, %v6898
    %6900 = vmatmul.f32.gmra.mxu0 %v6867
    %v6901 = vpop.f32.mrf.mxu0
    %v6902 = vadd.f32 %v6852, %v6901
    %6903 = vmatmul.f32.gmra.mxu0 %v6870
    %v6904 = vpop.f32.mrf.mxu0
    %v6905 = vadd.f32 %v6852, %v6904
    %6906 = vdwg.mxu0
    %v6907 = vadd.f32 %v6717, %v6890
    %v6908 = vadd.f32 %v6718, %v6893
    %v6909 = vadd.f32 %v6719, %v6896
    %v6910 = vadd.f32 %v6720, %v6899
    %v6911 = vadd.f32 %v6721, %v6902
    %v6912 = vadd.f32 %v6722, %v6905
    %s6913 = scalar_lea.vmem %s41, 3
    %v6914 = vld [vmem:[%s6913] sm:$0x1]
    %s6915 = scalar_lea.vmem %s43, 3
    %v6916 = vld [vmem:[%s6915] sm:$0x1]
    %v6917 = vsel %vm155, %v6907, 0.0
    %6918 = vadd.xlane.f32.xlu0 %v6917
    %v6919 = vpop.xlane.xlu0 %6918
    %v6920 = vsel %vm155, %v6908, 0.0
    %6921 = vadd.xlane.f32.xlu0 %v6920
    %v6922 = vpop.xlane.xlu0 %6921
    %v6923 = vsel %vm155, %v6909, 0.0
    %6924 = vadd.xlane.f32.xlu0 %v6923
    %v6925 = vpop.xlane.xlu0 %6924
    %v6926 = vsel %vm155, %v6910, 0.0
    %6927 = vadd.xlane.f32.xlu0 %v6926
    %v6928 = vpop.xlane.xlu0 %6927
    %v6929 = vsel %vm155, %v6911, 0.0
    %6930 = vadd.xlane.f32.xlu0 %v6929
    %v6931 = vpop.xlane.xlu0 %6930
    %v6932 = vsel %vm155, %v6912, 0.0
    %6933 = vadd.xlane.f32.xlu0 %v6932
    %v6934 = vpop.xlane.xlu0 %6933
    %v6935 = vmul.f32 %v6919, %v1399
    %v6936 = vmul.f32 %v6922, %v1399
    %v6937 = vmul.f32 %v6925, %v1399
    %v6938 = vmul.f32 %v6928, %v1399
    %v6939 = vmul.f32 %v6931, %v1399
    %v6940 = vmul.f32 %v6934, %v1399
    %v6941 = vsub.f32 %v6907, %v6935
    %v6942 = vsub.f32 %v6908, %v6936
    %v6943 = vsub.f32 %v6909, %v6937
    %v6944 = vsub.f32 %v6910, %v6938
    %v6945 = vsub.f32 %v6911, %v6939
    %v6946 = vsub.f32 %v6912, %v6940
    %v6947 = vmul.f32 %v6941, %v6941
    %v6948 = vmul.f32 %v6942, %v6942
    %v6949 = vmul.f32 %v6943, %v6943
    %v6950 = vmul.f32 %v6944, %v6944
    %v6951 = vmul.f32 %v6945, %v6945
    %v6952 = vmul.f32 %v6946, %v6946
    %v6953 = vsel %vm155, %v6947, 0.0
    %6954 = vadd.xlane.f32.xlu0 %v6953
    %v6955 = vpop.xlane.xlu0 %6954
    %v6956 = vsel %vm155, %v6948, 0.0
    %6957 = vadd.xlane.f32.xlu0 %v6956
    %v6958 = vpop.xlane.xlu0 %6957
    %v6959 = vsel %vm155, %v6949, 0.0
    %6960 = vadd.xlane.f32.xlu0 %v6959
    %v6961 = vpop.xlane.xlu0 %6960
    %v6962 = vsel %vm155, %v6950, 0.0
    %6963 = vadd.xlane.f32.xlu0 %v6962
    %v6964 = vpop.xlane.xlu0 %6963
    %v6965 = vsel %vm155, %v6951, 0.0
    %6966 = vadd.xlane.f32.xlu0 %v6965
    %v6967 = vpop.xlane.xlu0 %6966
    %v6968 = vsel %vm155, %v6952, 0.0
    %6969 = vadd.xlane.f32.xlu0 %v6968
    %v6970 = vpop.xlane.xlu0 %6969
    %v6971 = vmul.f32 %v6955, %v1399
    %v6972 = vmul.f32 %v6958, %v1399
    %v6973 = vmul.f32 %v6961, %v1399
    %v6974 = vmul.f32 %v6964, %v1399
    %v6975 = vmul.f32 %v6967, %v1399
    %v6976 = vmul.f32 %v6970, %v1399
    %v6977 = vadd.f32 %v6971, 1e-12
    %v6978 = vadd.f32 %v6972, 1e-12
    %v6979 = vadd.f32 %v6973, 1e-12
    %v6980 = vadd.f32 %v6974, 1e-12
    %v6981 = vadd.f32 %v6975, 1e-12
    %v6982 = vadd.f32 %v6976, 1e-12
    %v6983 = vrsqrt.pop %v6977
    %v6984 = vmul.f32 %v6983, %v6977
    %v6985 = vmul.f32 %v6984, %v6983
    %v6986 = vmul.f32 0.5, %v6985
    %v6987 = vsub.f32 1.5, %v6986
    %v6988 = vmul.f32 %v6983, %v6987
    %vm6989 = vweird.f32 %v6977
    %vm6990 = vweird.f32 %v6983
    %vm6991 = vmor %vm6989, %vm6990
    %v6992 = vsel %vm6991, %v6983, %v6988
    %v6993 = vrsqrt.pop %v6978
    %v6994 = vmul.f32 %v6993, %v6978
    %v6995 = vmul.f32 %v6994, %v6993
    %v6996 = vmul.f32 0.5, %v6995
    %v6997 = vsub.f32 1.5, %v6996
    %v6998 = vmul.f32 %v6993, %v6997
    %vm6999 = vweird.f32 %v6978
    %vm7000 = vweird.f32 %v6993
    %vm7001 = vmor %vm6999, %vm7000
    %v7002 = vsel %vm7001, %v6993, %v6998
    %v7003 = vrsqrt.pop %v6979
    %v7004 = vmul.f32 %v7003, %v6979
    %v7005 = vmul.f32 %v7004, %v7003
    %v7006 = vmul.f32 0.5, %v7005
    %v7007 = vsub.f32 1.5, %v7006
    %v7008 = vmul.f32 %v7003, %v7007
    %vm7009 = vweird.f32 %v6979
    %vm7010 = vweird.f32 %v7003
    %vm7011 = vmor %vm7009, %vm7010
    %v7012 = vsel %vm7011, %v7003, %v7008
    %v7013 = vrsqrt.pop %v6980
    %v7014 = vmul.f32 %v7013, %v6980
    %v7015 = vmul.f32 %v7014, %v7013
    %v7016 = vmul.f32 0.5, %v7015
    %v7017 = vsub.f32 1.5, %v7016
    %v7018 = vmul.f32 %v7013, %v7017
    %vm7019 = vweird.f32 %v6980
    %vm7020 = vweird.f32 %v7013
    %vm7021 = vmor %vm7019, %vm7020
    %v7022 = vsel %vm7021, %v7013, %v7018
    %v7023 = vrsqrt.pop %v6981
    %v7024 = vmul.f32 %v7023, %v6981
    %v7025 = vmul.f32 %v7024, %v7023
    %v7026 = vmul.f32 0.5, %v7025
    %v7027 = vsub.f32 1.5, %v7026
    %v7028 = vmul.f32 %v7023, %v7027
    %vm7029 = vweird.f32 %v6981
    %vm7030 = vweird.f32 %v7023
    %vm7031 = vmor %vm7029, %vm7030
    %v7032 = vsel %vm7031, %v7023, %v7028
    %v7033 = vrsqrt.pop %v6982
    %v7034 = vmul.f32 %v7033, %v6982
    %v7035 = vmul.f32 %v7034, %v7033
    %v7036 = vmul.f32 0.5, %v7035
    %v7037 = vsub.f32 1.5, %v7036
    %v7038 = vmul.f32 %v7033, %v7037
    %vm7039 = vweird.f32 %v6982
    %vm7040 = vweird.f32 %v7033
    %vm7041 = vmor %vm7039, %vm7040
    %v7042 = vsel %vm7041, %v7033, %v7038
    %v7043 = vmul.f32 %v6941, %v6992
    %v7044 = vmul.f32 %v6942, %v7002
    %v7045 = vmul.f32 %v6943, %v7012
    %v7046 = vmul.f32 %v6944, %v7022
    %v7047 = vmul.f32 %v6945, %v7032
    %v7048 = vmul.f32 %v6946, %v7042
    %v7050 = vperm.slane %v6914, 0
    %v7052 = vmul.f32 %v7043, %v7050
    %v7053 = vmul.f32 %v7044, %v7050
    %v7054 = vmul.f32 %v7045, %v7050
    %v7055 = vmul.f32 %v7046, %v7050
    %v7056 = vmul.f32 %v7047, %v7050
    %v7057 = vmul.f32 %v7048, %v7050
    %v7059 = vperm.slane %v6916, 0
    %v7061 = vadd.f32 %v7052, %v7059
    %v7062 = vadd.f32 %v7053, %v7059
    %v7063 = vadd.f32 %v7054, %v7059
    %v7064 = vadd.f32 %v7055, %v7059
    %v7065 = vadd.f32 %v7056, %v7059
    %v7066 = vadd.f32 %v7057, %v7059
    %v7067 = vadd.f32 %v5335, %v7061
    %v7068 = vadd.f32 %v5336, %v7062
    %v7069 = vadd.f32 %v5337, %v7063
    %v7070 = vadd.f32 %v5338, %v7064
    %v7071 = vadd.f32 %v5339, %v7065
    %v7072 = vadd.f32 %v5340, %v7066
    %v7073 = vld [vmem:[%s5] sm:$0x3f]
    %v7075 = vsel %vm379, %v7073, 0
    %7077 = vmatpush.msra.mxu0 0.0
    %7078 = vmatpush.msra.mxu0 0.0
    %7079 = vmatpush.msra.mxu0 0.0
    %7080 = vmatpush.msra.mxu0 0.0
    %7081 = vmatpush.msra.mxu0 0.0
    %7082 = vmatpush.msra.mxu0 0.0
    %7083 = vmatpush.msra.mxu0 0.0
    %7084 = vmatpush.msra.mxu0 0.0
    %7085 = vmatpush.msra.mxu0 0.0
    %7086 = vmatpush.msra.mxu0 0.0
    %7087 = vmatpush.msra.mxu0 %v7072
    %7088 = vmatpush.msra.mxu0 %v7071
    %7089 = vmatpush.msra.mxu0 %v7070
    %7090 = vmatpush.msra.mxu0 %v7069
    %7091 = vmatpush.msra.mxu0 %v7068
    %7092 = vmatpush.msra.mxu0 %v7067
    %7093 = vmatmul.f32.gmra.mxu0 %v7075
    %v7094 = vpop.f32.mrf.mxu0
    %v7095 = vadd.f32 0.0, %v7094
    %7096 = vdwg.mxu0
    %v7097 = vld [vmem:[%s7] sm:$0x3f]
    %v7098 = vld [vmem:[%s45] sm:$0xff]
    %v7099 = vld [vmem:[%s45 + $0x8] sm:$0xff]
    %v7100 = vld [vmem:[%s45 + $0x10] sm:$0xff]
    %v7101 = vld [vmem:[%s45 + $0x18] sm:$0xff]
    %v7102 = vld [vmem:[%s47] sm:$0x7]
    %vm7103 = vcmask 23552
    %v7105 = vsel %vm7103, %v7097, 0
    %vm7107 = vcmask 1042432
    %v7109 = vsel %vm7107, %v7102, 0
    %7111 = vmatpush.msra.mxu0 0.0
    %7112 = vmatpush.msra.mxu0 0.0
    %7113 = vmatpush.msra.mxu0 0.0
    %7114 = vmatpush.msra.mxu0 0.0
    %7115 = vmatpush.msra.mxu0 0.0
    %7116 = vmatpush.msra.mxu0 0.0
    %7117 = vmatpush.msra.mxu0 0.0
    %7118 = vmatpush.msra.mxu0 0.0
    %7119 = vmatpush.msra.mxu0 0.0
    %7120 = vmatpush.msra.mxu0 0.0
    %7121 = vmatpush.msra.mxu0 0.0
    %7122 = vmatpush.msra.mxu0 0.0
    %7123 = vmatpush.msra.mxu0 0.0
    %7124 = vmatpush.msra.mxu0 0.0
    %7125 = vmatpush.msra.mxu0 0.0
    %7126 = vmatpush.msra.mxu0 %v7109
    %7127 = vmatmul.f32.gmra.mxu0 %v7105
    %v7128 = vpop.f32.mrf.mxu0
    %v7129 = vadd.f32 0.0, %v7128
    %7130 = vdwg.mxu0
    %v7132 = vsel %vm155, %v7095, 0
    %7134 = vmatpush.msra.mxu0 0.0
    %7135 = vmatpush.msra.mxu0 0.0
    %7136 = vmatpush.msra.mxu0 0.0
    %7137 = vmatpush.msra.mxu0 0.0
    %7138 = vmatpush.msra.mxu0 0.0
    %7139 = vmatpush.msra.mxu0 0.0
    %7140 = vmatpush.msra.mxu0 0.0
    %7141 = vmatpush.msra.mxu0 0.0
    %7142 = vmatpush.msra.mxu0 0.0
    %7143 = vmatpush.msra.mxu0 0.0
    %7144 = vmatpush.msra.mxu0 0.0
    %7145 = vmatpush.msra.mxu0 0.0
    %7146 = vmatpush.msra.mxu0 %v7101
    %7147 = vmatpush.msra.mxu0 %v7100
    %7148 = vmatpush.msra.mxu0 %v7099
    %7149 = vmatpush.msra.mxu0 %v7098
    %7150 = vmatmul.f32.gmra.mxu0 %v7132
    %v7151 = vpop.f32.mrf.mxu0
    %v7152 = vadd.f32 %v7129, %v7151
    %7153 = vdwg.mxu0
    %v7154 = vld [vmem:[%s49] sm:$0x1]
    %v7156 = vperm.slane %v7154, 0
    %v7158 = vadd.f32 %v7152, %v7156
    %v7159 = vtanh.pop %v7158
    %v7160 = vld [vmem:[%s51] sm:$0xff]
    %v7161 = vld [vmem:[%s51 + $0x8] sm:$0xff]
    %vm7162 = vcmask 130048
    %v7164 = vsel %vm7162, %v7159, 0
    %7166 = vmatpush.msra.mxu0 0.0
    %7167 = vmatpush.msra.mxu0 0.0
    %7168 = vmatpush.msra.mxu0 0.0
    %7169 = vmatpush.msra.mxu0 0.0
    %7170 = vmatpush.msra.mxu0 0.0
    %7171 = vmatpush.msra.mxu0 0.0
    %7172 = vmatpush.msra.mxu0 0.0
    %7173 = vmatpush.msra.mxu0 0.0
    %7174 = vmatpush.msra.mxu0 0.0
    %7175 = vmatpush.msra.mxu0 0.0
    %7176 = vmatpush.msra.mxu0 0.0
    %7177 = vmatpush.msra.mxu0 0.0
    %7178 = vmatpush.msra.mxu0 0.0
    %7179 = vmatpush.msra.mxu0 0.0
    %7180 = vmatpush.msra.mxu0 %v7161
    %7181 = vmatpush.msra.mxu0 %v7160
    %7182 = vmatmul.f32.gmra.mxu0 %v7164
    %v7183 = vpop.f32.mrf.mxu0
    %v7184 = vadd.f32 0.0, %v7183
    %7185 = vdwg.mxu0
    %v7186 = vld [vmem:[%s9] sm:$0x3f]
    %vm7187 = vcmp.gt.f32.partialorder %v7186, 0.5
    %v7188 = vsel %vm7187, %v7184, -1e+09
    %v7189 = vld [vmem:[%s11] sm:$0x3]
    %v7190 = vld [vmem:[%s53] sm:$0xf]
    %v7191 = vld [vmem:[%s55] sm:$0x1]
    %v7193 = vperm.slane %v7191, 0
    %vm7195 = vcmask 31744
    %v7197 = vsel %vm7195, %v7189, 0
    %vm7199 = vcmask 1043456
    %v7201 = vsel %vm7199, %v7190, 0
    %7203 = vmatpush.msra.mxu0 0.0
    %7204 = vmatpush.msra.mxu0 0.0
    %7205 = vmatpush.msra.mxu0 0.0
    %7206 = vmatpush.msra.mxu0 0.0
    %7207 = vmatpush.msra.mxu0 0.0
    %7208 = vmatpush.msra.mxu0 0.0
    %7209 = vmatpush.msra.mxu0 0.0
    %7210 = vmatpush.msra.mxu0 0.0
    %7211 = vmatpush.msra.mxu0 0.0
    %7212 = vmatpush.msra.mxu0 0.0
    %7213 = vmatpush.msra.mxu0 0.0
    %7214 = vmatpush.msra.mxu0 0.0
    %7215 = vmatpush.msra.mxu0 0.0
    %7216 = vmatpush.msra.mxu0 0.0
    %7217 = vmatpush.msra.mxu0 0.0
    %7218 = vmatpush.msra.mxu0 %v7201
    %7219 = vmatmul.f32.gmra.mxu0 %v7197
    %v7220 = vpop.f32.mrf.mxu0
    %v7221 = vadd.f32 %v7193, %v7220
    %7222 = vdwg.mxu0
    %v7223 = vmax.f32 %v7221, 0.0
    %vm7224 = vcmask 2048
    %v7225 = vsel %vm7224, %v7188, -inf
    %v7226 = vrot.slane %v7225, 4
    %v7227 = vmax.f32 %v7225, %v7226
    %v7228 = vrot.slane %v7227, 2
    %v7229 = vmax.f32 %v7227, %v7228
    %v7230 = vrot.slane %v7229, 1
    %v7231 = vmax.f32 %v7229, %v7230
    %v7232 = vsub.f32 %v7188, %v7231
    %v7233 = vmul.f32 %v7232, 1.442695
    %v7234 = vpow.pop %v7233
    %v7235 = vsel %vm7224, %v7234, 0.0
    %v7236 = vrot.slane %v7235, 4
    %v7237 = vadd.f32 %v7235, %v7236
    %v7238 = vrot.slane %v7237, 2
    %v7239 = vadd.f32 %v7237, %v7238
    %v7240 = vrot.slane %v7239, 1
    %v7241 = vadd.f32 %v7239, %v7240
    %v7242 = vrcp.pop %v7241
    %v7243 = vmul.f32 %v7234, %v7242
    %7245 = vset.pattern.permute.xlu0 0
    %7246 = vperm.xlu0 %7245, %v7243
    %v7247 = vpop.permute.xlu0 %7246
    %v7249 = vmul.f32 %v7247, %v7095
    %vm7250 = vcmask 256000
    %v7251 = vsel %vm7250, %v7249, 0.0
    %v7252 = vrot.slane %v7251, 4
    %v7253 = vadd.f32 %v7251, %v7252
    %v7254 = vrot.slane %v7253, 2
    %v7255 = vadd.f32 %v7253, %v7254
    %v7256 = vrot.slane %v7255, 1
    %v7257 = vadd.f32 %v7255, %v7256
    %v7258 = vmul.f32 %v7247, %v7097
    %vm7259 = vcmask 18432
    %v7260 = vsel %vm7259, %v7258, 0.0
    %v7261 = vrot.slane %v7260, 4
    %v7262 = vadd.f32 %v7260, %v7261
    %v7263 = vrot.slane %v7262, 2
    %v7264 = vadd.f32 %v7262, %v7263
    %v7265 = vrot.slane %v7264, 1
    %v7266 = vadd.f32 %v7264, %v7265
    %v7267 = vld [vmem:[%s57] sm:$0xff]
    %v7268 = vld [vmem:[%s57 + $0x8] sm:$0xff]
    %v7269 = vld [vmem:[%s57 + $0x10] sm:$0xff]
    %v7270 = vld [vmem:[%s57 + $0x18] sm:$0xff]
    %v7271 = vld [vmem:[%s59] sm:$0x7]
    %v7273 = vsel %vm7103, %v7266, 0
    %v7276 = vsel %vm7107, %v7271, 0
    %7278 = vmatpush.msra.mxu0 0.0
    %7279 = vmatpush.msra.mxu0 0.0
    %7280 = vmatpush.msra.mxu0 0.0
    %7281 = vmatpush.msra.mxu0 0.0
    %7282 = vmatpush.msra.mxu0 0.0
    %7283 = vmatpush.msra.mxu0 0.0
    %7284 = vmatpush.msra.mxu0 0.0
    %7285 = vmatpush.msra.mxu0 0.0
    %7286 = vmatpush.msra.mxu0 0.0
    %7287 = vmatpush.msra.mxu0 0.0
    %7288 = vmatpush.msra.mxu0 0.0
    %7289 = vmatpush.msra.mxu0 0.0
    %7290 = vmatpush.msra.mxu0 0.0
    %7291 = vmatpush.msra.mxu0 0.0
    %7292 = vmatpush.msra.mxu0 0.0
    %7293 = vmatpush.msra.mxu0 %v7276
    %7294 = vmatmul.f32.gmra.mxu0 %v7273
    %v7295 = vpop.f32.mrf.mxu0
    %v7296 = vadd.f32 0.0, %v7295
    %7297 = vdwg.mxu0
    %v7299 = vsel %vm155, %v7257, 0
    %7301 = vmatpush.msra.mxu0 0.0
    %7302 = vmatpush.msra.mxu0 0.0
    %7303 = vmatpush.msra.mxu0 0.0
    %7304 = vmatpush.msra.mxu0 0.0
    %7305 = vmatpush.msra.mxu0 0.0
    %7306 = vmatpush.msra.mxu0 0.0
    %7307 = vmatpush.msra.mxu0 0.0
    %7308 = vmatpush.msra.mxu0 0.0
    %7309 = vmatpush.msra.mxu0 0.0
    %7310 = vmatpush.msra.mxu0 0.0
    %7311 = vmatpush.msra.mxu0 0.0
    %7312 = vmatpush.msra.mxu0 0.0
    %7313 = vmatpush.msra.mxu0 %v7270
    %7314 = vmatpush.msra.mxu0 %v7269
    %7315 = vmatpush.msra.mxu0 %v7268
    %7316 = vmatpush.msra.mxu0 %v7267
    %7317 = vmatmul.f32.gmra.mxu0 %v7299
    %v7318 = vpop.f32.mrf.mxu0
    %v7319 = vadd.f32 %v7296, %v7318
    %7320 = vdwg.mxu0
    %v7321 = vld [vmem:[%s61] sm:$0xff]
    %v7323 = vsel %vm295, %v7223, 0
    %7325 = vmatpush.msra.mxu0 0.0
    %7326 = vmatpush.msra.mxu0 0.0
    %7327 = vmatpush.msra.mxu0 0.0
    %7328 = vmatpush.msra.mxu0 0.0
    %7329 = vmatpush.msra.mxu0 0.0
    %7330 = vmatpush.msra.mxu0 0.0
    %7331 = vmatpush.msra.mxu0 0.0
    %7332 = vmatpush.msra.mxu0 0.0
    %7333 = vmatpush.msra.mxu0 0.0
    %7334 = vmatpush.msra.mxu0 0.0
    %7335 = vmatpush.msra.mxu0 0.0
    %7336 = vmatpush.msra.mxu0 0.0
    %7337 = vmatpush.msra.mxu0 0.0
    %7338 = vmatpush.msra.mxu0 0.0
    %7339 = vmatpush.msra.mxu0 0.0
    %7340 = vmatpush.msra.mxu0 %v7321
    %7341 = vmatmul.f32.gmra.mxu0 %v7323
    %v7342 = vpop.f32.mrf.mxu0
    %v7343 = vadd.f32 0.0, %v7342
    %7344 = vdwg.mxu0
    %v7345 = vadd.f32 %v7319, %v7343
    %v7346 = vld [vmem:[%s63] sm:$0x1]
    %v7347 = vadd.f32 %v7345, %v7346
    %v7348 = vxor.u32 %v7347, 2147483648
    %v7349 = vmul.f32 %v7348, 1.442695
    %v7350 = vpow.pop %v7349
    %v7351 = vadd.f32 %v7350, 1.0
    %v7352 = vrcp.pop %v7351
    %v7353 = vmul.f32 %v7351, %v7352
    %v7354 = vsub.f32 1.0, %v7353
    %v7355 = vmul.f32 %v7352, %v7354
    %v7356 = vadd.f32 %v7352, %v7355
    %vm7357 = vweird.f32 %v7351
    %vm7358 = vweird.f32 %v7352
    %vm7359 = vmor %vm7357, %vm7358
    %v7360 = vsel %vm7359, %v7352, %v7356
    %v7361 = vand.u32 2147483647, %v7351
    %vm7362 = vcmp.eq.f32.partialorder %v7361, 8.507059e+37
    %v7363 = vand.u32 %v7351, 2147483648
    %v7364 = vor.u32 1.1754944e-38, %v7363
    %v7365 = vsel %vm7362, %v7364, %v7360
    %v7366 = vmul.f32 1.0, %v7365
    %vm7367 = vcmask 32768
    %7368 = vst.msk [vmem:[#allocation3] sm:$0x1] %vm7367, %v7366
    %vm7369 = vcmask 5123
    %v7370 = vsel %vm7369, %v7188, -inf
    %v7371 = vrot.slane %v7370, 4
    %v7372 = vmax.f32 %v7370, %v7371
    %v7373 = vrot.slane %v7372, 2
    %v7374 = vmax.f32 %v7372, %v7373
    %v7375 = vrot.slane %v7374, 1
    %v7376 = vmax.f32 %v7374, %v7375
    %v7377 = vsub.f32 %v7188, %v7376
    %v7378 = vmul.f32 %v7377, 1.442695
    %v7379 = vpow.pop %v7378
    %v7381 = vrot.slane %v7379, 3
    %v7383 = vsel %vm7224, %v7381, 0.0
    %v7384 = vrot.slane %v7383, 4
    %v7385 = vadd.f32 %v7383, %v7384
    %v7386 = vrot.slane %v7385, 2
    %v7387 = vadd.f32 %v7385, %v7386
    %v7388 = vrot.slane %v7387, 1
    %v7389 = vadd.f32 %v7387, %v7388
    %v7390 = vrcp.pop %v7389
    %v7391 = vmul.f32 %v7379, %v7390
    %7393 = vset.pattern.permute.xlu0 0
    %7394 = vperm.xlu0 %7393, %v7391
    %v7395 = vpop.permute.xlu0 %7394
    %v7397 = vmul.f32 %v7395, %v7095
    %v7399 = vrot.slane %v7397, 3
    %v7401 = vsel %vm7250, %v7399, 0.0
    %v7402 = vrot.slane %v7401, 4
    %v7403 = vadd.f32 %v7401, %v7402
    %v7404 = vrot.slane %v7403, 2
    %v7405 = vadd.f32 %v7403, %v7404
    %v7406 = vrot.slane %v7405, 1
    %v7407 = vadd.f32 %v7405, %v7406
    %v7408 = vmul.f32 %v7395, %v7097
    %v7410 = vrot.slane %v7408, 3
    %v7412 = vsel %vm7259, %v7410, 0.0
    %v7413 = vrot.slane %v7412, 4
    %v7414 = vadd.f32 %v7412, %v7413
    %v7415 = vrot.slane %v7414, 2
    %v7416 = vadd.f32 %v7414, %v7415
    %v7417 = vrot.slane %v7416, 1
    %v7418 = vadd.f32 %v7416, %v7417
    %v7419 = vld [vmem:[%s57] sm:$0xff]
    %v7420 = vld [vmem:[%s57 + $0x8] sm:$0xff]
    %v7421 = vld [vmem:[%s57 + $0x10] sm:$0xff]
    %v7422 = vld [vmem:[%s57 + $0x18] sm:$0xff]
    %v7423 = vld [vmem:[%s59] sm:$0x7]
    %v7425 = vsel %vm7103, %v7418, 0
    %v7428 = vsel %vm7107, %v7423, 0
    %7430 = vmatpush.msra.mxu0 0.0
    %7431 = vmatpush.msra.mxu0 0.0
    %7432 = vmatpush.msra.mxu0 0.0
    %7433 = vmatpush.msra.mxu0 0.0
    %7434 = vmatpush.msra.mxu0 0.0
    %7435 = vmatpush.msra.mxu0 0.0
    %7436 = vmatpush.msra.mxu0 0.0
    %7437 = vmatpush.msra.mxu0 0.0
    %7438 = vmatpush.msra.mxu0 0.0
    %7439 = vmatpush.msra.mxu0 0.0
    %7440 = vmatpush.msra.mxu0 0.0
    %7441 = vmatpush.msra.mxu0 0.0
    %7442 = vmatpush.msra.mxu0 0.0
    %7443 = vmatpush.msra.mxu0 0.0
    %7444 = vmatpush.msra.mxu0 0.0
    %7445 = vmatpush.msra.mxu0 %v7428
    %7446 = vmatmul.f32.gmra.mxu0 %v7425
    %v7447 = vpop.f32.mrf.mxu0
    %v7448 = vadd.f32 0.0, %v7447
    %7449 = vdwg.mxu0
    %v7451 = vsel %vm155, %v7407, 0
    %7453 = vmatpush.msra.mxu0 0.0
    %7454 = vmatpush.msra.mxu0 0.0
    %7455 = vmatpush.msra.mxu0 0.0
    %7456 = vmatpush.msra.mxu0 0.0
    %7457 = vmatpush.msra.mxu0 0.0
    %7458 = vmatpush.msra.mxu0 0.0
    %7459 = vmatpush.msra.mxu0 0.0
    %7460 = vmatpush.msra.mxu0 0.0
    %7461 = vmatpush.msra.mxu0 0.0
    %7462 = vmatpush.msra.mxu0 0.0
    %7463 = vmatpush.msra.mxu0 0.0
    %7464 = vmatpush.msra.mxu0 0.0
    %7465 = vmatpush.msra.mxu0 %v7422
    %7466 = vmatpush.msra.mxu0 %v7421
    %7467 = vmatpush.msra.mxu0 %v7420
    %7468 = vmatpush.msra.mxu0 %v7419
    %7469 = vmatmul.f32.gmra.mxu0 %v7451
    %v7470 = vpop.f32.mrf.mxu0
    %v7471 = vadd.f32 %v7448, %v7470
    %7472 = vdwg.mxu0
    %v7473 = vld [vmem:[%s61] sm:$0xff]
    %v7474 = vrot.slane %v7223, 1
    %v7475 = vsel %vm295, %v7474, 0
    %7477 = vmatpush.msra.mxu0 0.0
    %7478 = vmatpush.msra.mxu0 0.0
    %7479 = vmatpush.msra.mxu0 0.0
    %7480 = vmatpush.msra.mxu0 0.0
    %7481 = vmatpush.msra.mxu0 0.0
    %7482 = vmatpush.msra.mxu0 0.0
    %7483 = vmatpush.msra.mxu0 0.0
    %7484 = vmatpush.msra.mxu0 0.0
    %7485 = vmatpush.msra.mxu0 0.0
    %7486 = vmatpush.msra.mxu0 0.0
    %7487 = vmatpush.msra.mxu0 0.0
    %7488 = vmatpush.msra.mxu0 0.0
    %7489 = vmatpush.msra.mxu0 0.0
    %7490 = vmatpush.msra.mxu0 0.0
    %7491 = vmatpush.msra.mxu0 0.0
    %7492 = vmatpush.msra.mxu0 %v7473
    %7493 = vmatmul.f32.gmra.mxu0 %v7475
    %v7494 = vpop.f32.mrf.mxu0
    %v7495 = vadd.f32 0.0, %v7494
    %7496 = vdwg.mxu0
    %v7497 = vadd.f32 %v7471, %v7495
    %v7498 = vld [vmem:[%s63] sm:$0x1]
    %v7499 = vadd.f32 %v7497, %v7498
    %v7500 = vxor.u32 %v7499, 2147483648
    %v7501 = vmul.f32 %v7500, 1.442695
    %v7502 = vpow.pop %v7501
    %v7503 = vadd.f32 %v7502, 1.0
    %v7504 = vrcp.pop %v7503
    %v7505 = vmul.f32 %v7503, %v7504
    %v7506 = vsub.f32 1.0, %v7505
    %v7507 = vmul.f32 %v7504, %v7506
    %v7508 = vadd.f32 %v7504, %v7507
    %vm7509 = vweird.f32 %v7503
    %vm7510 = vweird.f32 %v7504
    %vm7511 = vmor %vm7509, %vm7510
    %v7512 = vsel %vm7511, %v7504, %v7508
    %v7513 = vand.u32 2147483647, %v7503
    %vm7514 = vcmp.eq.f32.partialorder %v7513, 8.507059e+37
    %v7515 = vand.u32 %v7503, 2147483648
    %v7516 = vor.u32 1.1754944e-38, %v7515
    %v7517 = vsel %vm7514, %v7516, %v7512
    %v7518 = vmul.f32 1.0, %v7517
    %7519 = vst.msk [vmem:[#allocation3 + $0x1] sm:$0x1] %vm7367, %v7518
    // Predicated region
    $region130: #{personality_model_forward.1} parent=1 // pred_check
      _
    $region131: #{personality_model_forward.1} parent=1 // pred_check_branch
      %7521 = sbr.rel (0) target = $region133
    $region132: #{personality_model_forward.1} parent=1 // pred_region
      %7523 = vsyncadd [#allocation4], 0
      %s7525 = sshll.u32 [#allocation3], 4
      %s7526 = int_to_ptr.vmem [resolvable:$true] %s7525
      %s7527 = sshll.u32 %s65, 4
      %s7528 = int_to_ptr.hbm [resolvable:$true] %s7527
      %7530 = dma.vmem_to_hbm [thread:$0]  %s7526, 32, %s7528, [#allocation4]
    $region133: #{personality_model_forward.1} parent=1 // pred_fallthru
      _
    // Predicated region
    $region134: #{personality_model_forward.1} parent=1 // pred_check
      _
    $region135: #{personality_model_forward.1} parent=1 // pred_check_branch
      %7532 = sbr.rel (0) target = $region137
    $region136: #{personality_model_forward.1} parent=1 // pred_region
      %7534 = dma.done [#allocation4], 32
    $region137: #{personality_model_forward.1} parent=1 // pred_fallthru
      _
    %7535 = vsyncpa [#allocation4], 1

</llo_original>
